<compile_context>
chip_gen: v7x
topology: tpu7x:2x2x1
jax: 0.10.0
libtpu: 0.0.40
codegen_flags: <defaults>
</compile_context>

<pallas_src>
import functools

import numpy as np
import jax
import jax.numpy as jnp
from jax.experimental import pallas as pl
from jax.experimental.pallas import tpu as pltpu

_BATCH_BLOCK = 8          # batch rows per grid step (sublane aligned)
_NUM_LAYERS = 6           # conv1..conv4, fc1, fc2


# ----------------------------------------------------------------------------
# Fused Pallas kernel: the entire encoder forward on one batch-row block.
# ----------------------------------------------------------------------------
def _split_hi_lo(a_f32):
    hi = a_f32.astype(jnp.bfloat16)
    lo = (a_f32 - hi.astype(jnp.float32)).astype(jnp.bfloat16)
    return hi, lo


def _layer(h_f32, w_hi_ref, w_lo_ref, b_ref, apply_relu):
    """acc = h @ (w_hi + w_lo) + b via 3 bf16 MXU passes, f32 accumulation."""
    h_hi, h_lo = _split_hi_lo(h_f32)
    mm = functools.partial(jnp.dot, preferred_element_type=jnp.float32)
    w_hi = w_hi_ref[...]
    acc = mm(h_hi, w_hi) + mm(h_lo, w_hi) + mm(h_hi, w_lo_ref[...])
    acc = acc + b_ref[...]                 # (1, N) bias broadcasts over rows
    if apply_relu:
        acc = jnp.maximum(acc, 0.0)
    return acc


def _encoder_kernel(x_ref,
                    w1h, w1l, b1, w2h, w2l, b2, w3h, w3l, b3,
                    w4h, w4l, b4, w5h, w5l, b5, w6h, w6l, b6,
                    o_ref):
    h = x_ref[...]                                    # (MB, H*W)       f32
    h = _layer(h, w1h, w1l, b1, True)                 # conv1 -> (MB, 8*8*16)
    h = _layer(h, w2h, w2l, b2, True)                 # conv2 -> (MB, 4*4*32)
    h = _layer(h, w3h, w3l, b3, True)                 # conv3 -> (MB, 2*2*64)
    h = _layer(h, w4h, w4l, b4, True)                 # conv4 -> (MB, 2*2*64)
    h = _layer(h, w5h, w5l, b5, True)                 # fc1   -> (MB, 250)
    o_ref[...] = _layer(h, w6h, w6l, b6, False).astype(o_ref.dtype)   # fc2


def _fused_forward(x_flat, kparams):
    n_rows, k0 = x_flat.shape
    assert n_rows % _BATCH_BLOCK == 0
    operands = [x_flat]
    in_specs = [pl.BlockSpec((_BATCH_BLOCK, k0), lambda i: (i, 0))]
    for idx in range(1, _NUM_LAYERS + 1):
        for key in (f"w{idx}_hi", f"w{idx}_lo", f"b{idx}"):
            arr = kparams[key]
            operands.append(arr)
            # Full-array blocks with constant index map: DMA'd once, stays
            # resident in VMEM across all batch-row grid steps.
            in_specs.append(pl.BlockSpec(arr.shape, lambda i: (0, 0)))
    n_out = kparams[f"b{_NUM_LAYERS}"].shape[1]
    return pl.pallas_call(
        _encoder_kernel,
        out_shape=jax.ShapeDtypeStruct((n_rows, n_out), jnp.float32),
        grid=(n_rows // _BATCH_BLOCK,),
        in_specs=in_specs,
        out_specs=pl.BlockSpec((_BATCH_BLOCK, n_out), lambda i: (i, 0)),
        compiler_params=pltpu.CompilerParams(
            dimension_semantics=("parallel",),      # shards rows on v7x TCs
            vmem_limit_bytes=32 * 1024 * 1024),
    )(*operands)


# ----------------------------------------------------------------------------
# One-time weight preparation (kernel layout; nothing is transposed at runtime)
# ----------------------------------------------------------------------------
def _conv_as_matrix(w_oihw, b, h_in, w_in, stride, pad):
    """Linearise a Conv2d into a dense (Hin*Win*Cin, Hout*Wout*Cout) matrix
    acting on NHWC-flattened activations; zero padding / stride baked in."""
    w = np.asarray(w_oihw, np.float32)
    b = np.asarray(b, np.float32)
    c_out, c_in, kh, kw = w.shape
    h_out = (h_in + 2 * pad - kh) // stride + 1
    w_out = (w_in + 2 * pad - kw) // stride + 1
    taps = np.transpose(w, (2, 3, 1, 0))              # (kh, kw, cin, cout)
    m = np.zeros((h_in, w_in, c_in, h_out, w_out, c_out), np.float32)
    for ho in range(h_out):
        for wo in range(w_out):
            for di in range(kh):
                hi = ho * stride + di - pad
                if not 0 <= hi < h_in:
                    continue
                for dj in range(kw):
                    wi = wo * stride + dj - pad
                    if 0 <= wi < w_in:
                        m[hi, wi, :, ho, wo, :] += taps[di, dj]
    m = m.reshape(h_in * w_in * c_in, h_out * w_out * c_out)
    b_full = np.tile(b, h_out * w_out)[None, :]       # NHWC-flat bias (1, N)
    return m, b_full, (h_out, w_out, c_out)


def build_kernel_params(params, im_rows, im_cols):
    """Convert PyTorch-layout params into fused-kernel operands (called once)."""
    mats = []
    h, w = im_rows, im_cols
    c = 1
    for name, stride in (("conv1", 2), ("conv2", 2), ("conv3", 2), ("conv4", 1)):
        m, bb, (h, w, c) = _conv_as_matrix(
            params[f"{name}_w"], params[f"{name}_b"], h, w, stride, pad=2)
        mats.append((m, bb))

    # fc1: permute columns from PyTorch's (C,H,W) flatten order to the
    # kernel's (H,W,C) flatten order, store as (in, out).
    fc1_w = np.asarray(params["fc1_w"], np.float32)               # (250, C*H*W)
    perm = np.transpose(np.arange(c * h * w).reshape(c, h, w), (1, 2, 0)).reshape(-1)
    mats.append((fc1_w[:, perm].T,
                 np.asarray(params["fc1_b"], np.float32)[None, :]))
    fc2_w = np.asarray(params["fc2_w"], np.float32)               # (n_comp, 250)
    mats.append((fc2_w.T, np.asarray(params["fc2_b"], np.float32)[None, :]))

    kp = {}
    for idx, (m, bb) in enumerate(mats, start=1):
        m = jnp.asarray(m, jnp.float32)
        hi = m.astype(jnp.bfloat16)
        lo = (m - hi.astype(jnp.float32)).astype(jnp.bfloat16)
        kp[f"w{idx}_hi"] = hi
        kp[f"w{idx}_lo"] = lo
        kp[f"b{idx}"] = jnp.asarray(bb, jnp.float32)
    return kp


# ----------------------------------------------------------------------------
# Parameters (deterministic synthetic init, PyTorch-shaped)
# ----------------------------------------------------------------------------
def init_params(key, im_cols, im_rows, n_components):
    ks = jax.random.split(key, 12)
    fc1_in = (im_rows // 8) * (im_cols // 8) * 64

    def w(k, shape, fan_in):
        return jax.random.normal(k, shape, jnp.float32) / jnp.sqrt(fan_in)

    return {
        "conv1_w": w(ks[0], (16, 1, 5, 5), 1 * 25),
        "conv1_b": 0.01 * jax.random.normal(ks[1], (16,), jnp.float32),
        "conv2_w": w(ks[2], (32, 16, 5, 5), 16 * 25),
        "conv2_b": 0.01 * jax.random.normal(ks[3], (32,), jnp.float32),
        "conv3_w": w(ks[4], (64, 32, 5, 5), 32 * 25),
        "conv3_b": 0.01 * jax.random.normal(ks[5], (64,), jnp.float32),
        "conv4_w": w(ks[6], (64, 64, 5, 5), 64 * 25),
        "conv4_b": 0.01 * jax.random.normal(ks[7], (64,), jnp.float32),
        "fc1_w": w(ks[8], (250, fc1_in), fc1_in),      # (out, in), PyTorch layout
        "fc1_b": 0.01 * jax.random.normal(ks[9], (250,), jnp.float32),
        "fc2_w": w(ks[10], (n_components, 250), 250),
        "fc2_b": 0.01 * jax.random.normal(ks[11], (n_components,), jnp.float32),
    }


# ----------------------------------------------------------------------------
# Forward pass (mirrors EncoderDeepConv.forward); one pallas_call per forward.
# ----------------------------------------------------------------------------
def encoder_deep_conv_forward(kparams, x_nchw):
    n = x_nchw.shape[0]
    # in_channels == 1, so the NCHW flatten equals the kernel's (H, W, C) flatten.
    x_flat = x_nchw.astype(jnp.float32).reshape(n, -1)
    n_pad = pl.cdiv(n, _BATCH_BLOCK) * _BATCH_BLOCK
    if n_pad != n:
        x_flat = jnp.pad(x_flat, ((0, n_pad - n), (0, 0)))
    out = _fused_forward(x_flat, kparams)
    return out[:n]


# ----------------------------------------------------------------------------
# Pure-JAX reference (full-precision; for the correctness check only)
# ----------------------------------------------------------------------------
def _reference_forward(params, x_nchw):
    hi = jax.lax.Precision.HIGHEST

    def conv(x, w, b, stride):
        y = jax.lax.conv_general_dilated(
            x, w, window_strides=(stride, stride), padding=[(2, 2), (2, 2)],
            dimension_numbers=("NCHW", "OIHW", "NCHW"), precision=hi)
        return jax.nn.relu(y + b[None, :, None, None])

    x = x_nchw.astype(jnp.float32)
    x = conv(x, params["conv1_w"], params["conv1_b"], 2)
    x = conv(x, params["conv2_w"], params["conv2_b"], 2)
    x = conv(x, params["conv3_w"], params["conv3_b"], 2)
    x = conv(x, params["conv4_w"], params["conv4_b"], 1)
    x = x.reshape(x.shape[0], -1)                              # (C,H,W) order
    x = jax.nn.relu(jnp.dot(x, params["fc1_w"].T, precision=hi) + params["fc1_b"])
    return jnp.dot(x, params["fc2_w"].T, precision=hi) + params["fc2_b"]


if __name__ == "__main__":
    im_rows = im_cols = 16
    n_components = 8
    batch = 2

    key = jax.random.PRNGKey(0)
    k_params, k_x = jax.random.split(key)
    params = init_params(k_params, im_cols, im_rows, n_components)
    x = jax.random.normal(k_x, (batch, 1, im_rows, im_cols), jnp.float32)

    kparams = build_kernel_params(params, im_rows, im_cols)   # one-time layout

    fwd = jax.jit(encoder_deep_conv_forward)
    out = jax.block_until_ready(fwd(kparams, x))
    assert out.shape == (batch, n_components), out.shape

    ref = jax.block_until_ready(_reference_forward(params, x))
    err = float(jnp.max(jnp.abs(out - ref)))
    # Tightened from 2e-2 (review feedback): the bf16 hi/lo 3-pass matmuls track
    # the f32 HIGHEST-precision reference to ~1e-4, so 1e-3 catches any layout /
    # ordering / precision regression.
    assert err < 1e-3, err
    print("KERNEL_OK")
</pallas_src>

<mosaic_0001>
module attributes {stable_mosaic.version = 11 : i64} {
  func.func @_encoder_kernel(%arg0: i32, %arg1: memref<8x256xf32, #tpu.memory_space<vmem>>, %arg2: memref<256x1024xbf16, #tpu.memory_space<vmem>>, %arg3: memref<256x1024xbf16, #tpu.memory_space<vmem>>, %arg4: memref<1x1024xf32, #tpu.memory_space<vmem>>, %arg5: memref<1024x512xbf16, #tpu.memory_space<vmem>>, %arg6: memref<1024x512xbf16, #tpu.memory_space<vmem>>, %arg7: memref<1x512xf32, #tpu.memory_space<vmem>>, %arg8: memref<512x256xbf16, #tpu.memory_space<vmem>>, %arg9: memref<512x256xbf16, #tpu.memory_space<vmem>>, %arg10: memref<1x256xf32, #tpu.memory_space<vmem>>, %arg11: memref<256x256xbf16, #tpu.memory_space<vmem>>, %arg12: memref<256x256xbf16, #tpu.memory_space<vmem>>, %arg13: memref<1x256xf32, #tpu.memory_space<vmem>>, %arg14: memref<256x250xbf16, #tpu.memory_space<vmem>>, %arg15: memref<256x250xbf16, #tpu.memory_space<vmem>>, %arg16: memref<1x250xf32, #tpu.memory_space<vmem>>, %arg17: memref<250x8xbf16, #tpu.memory_space<vmem>>, %arg18: memref<250x8xbf16, #tpu.memory_space<vmem>>, %arg19: memref<1x8xf32, #tpu.memory_space<vmem>>, %arg20: memref<8x8xf32, #tpu.memory_space<vmem>>) attributes {dimension_semantics = [#tpu.dimension_semantics<parallel>], iteration_bounds = array<i64: 1>, scalar_prefetch = 0 : i64, scratch_operands = 0 : i64, tpu.core_type = #tpu.core_type<tc>, window_params = [{transform_indices = @transform_0, window_bounds = array<i64: 8, 256>}, {pipeline_mode = #tpu.pipeline_mode<synchronous>, transform_indices = @transform_1, window_bounds = array<i64: 256, 1024>}, {pipeline_mode = #tpu.pipeline_mode<synchronous>, transform_indices = @transform_2, window_bounds = array<i64: 256, 1024>}, {pipeline_mode = #tpu.pipeline_mode<synchronous>, transform_indices = @transform_3, window_bounds = array<i64: 1, 1024>}, {pipeline_mode = #tpu.pipeline_mode<synchronous>, transform_indices = @transform_4, window_bounds = array<i64: 1024, 512>}, {pipeline_mode = #tpu.pipeline_mode<synchronous>, transform_indices = @transform_5, window_bounds = array<i64: 1024, 512>}, {pipeline_mode = #tpu.pipeline_mode<synchronous>, transform_indices = @transform_6, window_bounds = array<i64: 1, 512>}, {pipeline_mode = #tpu.pipeline_mode<synchronous>, transform_indices = @transform_7, window_bounds = array<i64: 512, 256>}, {pipeline_mode = #tpu.pipeline_mode<synchronous>, transform_indices = @transform_8, window_bounds = array<i64: 512, 256>}, {pipeline_mode = #tpu.pipeline_mode<synchronous>, transform_indices = @transform_9, window_bounds = array<i64: 1, 256>}, {pipeline_mode = #tpu.pipeline_mode<synchronous>, transform_indices = @transform_10, window_bounds = array<i64: 256, 256>}, {pipeline_mode = #tpu.pipeline_mode<synchronous>, transform_indices = @transform_11, window_bounds = array<i64: 256, 256>}, {pipeline_mode = #tpu.pipeline_mode<synchronous>, transform_indices = @transform_12, window_bounds = array<i64: 1, 256>}, {pipeline_mode = #tpu.pipeline_mode<synchronous>, transform_indices = @transform_13, window_bounds = array<i64: 256, 250>}, {pipeline_mode = #tpu.pipeline_mode<synchronous>, transform_indices = @transform_14, window_bounds = array<i64: 256, 250>}, {pipeline_mode = #tpu.pipeline_mode<synchronous>, transform_indices = @transform_15, window_bounds = array<i64: 1, 250>}, {pipeline_mode = #tpu.pipeline_mode<synchronous>, transform_indices = @transform_16, window_bounds = array<i64: 250, 8>}, {pipeline_mode = #tpu.pipeline_mode<synchronous>, transform_indices = @transform_17, window_bounds = array<i64: 250, 8>}, {pipeline_mode = #tpu.pipeline_mode<synchronous>, transform_indices = @transform_18, window_bounds = array<i64: 1, 8>}, {transform_indices = @transform_19, window_bounds = array<i64: 8, 8>}]} {
    %c0 = arith.constant 0 : index
    %c0_0 = arith.constant 0 : index
    %0 = vector.load %arg1[%c0, %c0_0] : memref<8x256xf32, #tpu.memory_space<vmem>>, vector<8x256xf32>
    %1 = arith.truncf %0 : vector<8x256xf32> to vector<8x256xbf16>
    %2 = arith.extf %1 : vector<8x256xbf16> to vector<8x256xf32>
    %3 = arith.subf %0, %2 : vector<8x256xf32>
    %4 = arith.truncf %3 : vector<8x256xf32> to vector<8x256xbf16>
    %c0_1 = arith.constant 0 : index
    %c0_2 = arith.constant 0 : index
    %5 = vector.load %arg2[%c0_1, %c0_2] : memref<256x1024xbf16, #tpu.memory_space<vmem>>, vector<256x1024xbf16>
    %cst = arith.constant dense<0.000000e+00> : vector<8x1024xf32>
    %6 = tpu.matmul %1, %5, %cst {dimension_numbers = #tpu.dot_dimension_numbers<[1], [0], [0], [1], [0, 0, 1, 1], [], []>} : vector<8x256xbf16>, vector<256x1024xbf16>, vector<8x1024xf32> -> vector<8x1024xf32>
    %cst_3 = arith.constant dense<0.000000e+00> : vector<8x1024xf32>
    %7 = tpu.matmul %4, %5, %cst_3 {dimension_numbers = #tpu.dot_dimension_numbers<[1], [0], [0], [1], [0, 0, 1, 1], [], []>} : vector<8x256xbf16>, vector<256x1024xbf16>, vector<8x1024xf32> -> vector<8x1024xf32>
    %8 = arith.addf %6, %7 : vector<8x1024xf32>
    %c0_4 = arith.constant 0 : index
    %c0_5 = arith.constant 0 : index
    %9 = vector.load %arg3[%c0_4, %c0_5] : memref<256x1024xbf16, #tpu.memory_space<vmem>>, vector<256x1024xbf16>
    %cst_6 = arith.constant dense<0.000000e+00> : vector<8x1024xf32>
    %10 = tpu.matmul %1, %9, %cst_6 {dimension_numbers = #tpu.dot_dimension_numbers<[1], [0], [0], [1], [0, 0, 1, 1], [], []>} : vector<8x256xbf16>, vector<256x1024xbf16>, vector<8x1024xf32> -> vector<8x1024xf32>
    %11 = arith.addf %8, %10 : vector<8x1024xf32>
    %c0_7 = arith.constant 0 : index
    %c0_8 = arith.constant 0 : index
    %12 = vector.load %arg4[%c0_7, %c0_8] : memref<1x1024xf32, #tpu.memory_space<vmem>>, vector<1x1024xf32>
    %13 = vector.broadcast %12 : vector<1x1024xf32> to vector<8x1024xf32>
    %14 = arith.addf %11, %13 : vector<8x1024xf32>
    %cst_9 = arith.constant 0.000000e+00 : f32
    %15 = vector.broadcast %cst_9 : f32 to vector<8x1024xf32>
    %16 = arith.maximumf %14, %15 : vector<8x1024xf32>
    %17 = arith.truncf %16 : vector<8x1024xf32> to vector<8x1024xbf16>
    %18 = arith.extf %17 : vector<8x1024xbf16> to vector<8x1024xf32>
    %19 = arith.subf %16, %18 : vector<8x1024xf32>
    %20 = arith.truncf %19 : vector<8x1024xf32> to vector<8x1024xbf16>
    %c0_10 = arith.constant 0 : index
    %c0_11 = arith.constant 0 : index
    %21 = vector.load %arg5[%c0_10, %c0_11] : memref<1024x512xbf16, #tpu.memory_space<vmem>>, vector<1024x512xbf16>
    %cst_12 = arith.constant dense<0.000000e+00> : vector<8x512xf32>
    %22 = tpu.matmul %17, %21, %cst_12 {dimension_numbers = #tpu.dot_dimension_numbers<[1], [0], [0], [1], [0, 0, 1, 1], [], []>} : vector<8x1024xbf16>, vector<1024x512xbf16>, vector<8x512xf32> -> vector<8x512xf32>
    %cst_13 = arith.constant dense<0.000000e+00> : vector<8x512xf32>
    %23 = tpu.matmul %20, %21, %cst_13 {dimension_numbers = #tpu.dot_dimension_numbers<[1], [0], [0], [1], [0, 0, 1, 1], [], []>} : vector<8x1024xbf16>, vector<1024x512xbf16>, vector<8x512xf32> -> vector<8x512xf32>
    %24 = arith.addf %22, %23 : vector<8x512xf32>
    %c0_14 = arith.constant 0 : index
    %c0_15 = arith.constant 0 : index
    %25 = vector.load %arg6[%c0_14, %c0_15] : memref<1024x512xbf16, #tpu.memory_space<vmem>>, vector<1024x512xbf16>
    %cst_16 = arith.constant dense<0.000000e+00> : vector<8x512xf32>
    %26 = tpu.matmul %17, %25, %cst_16 {dimension_numbers = #tpu.dot_dimension_numbers<[1], [0], [0], [1], [0, 0, 1, 1], [], []>} : vector<8x1024xbf16>, vector<1024x512xbf16>, vector<8x512xf32> -> vector<8x512xf32>
    %27 = arith.addf %24, %26 : vector<8x512xf32>
    %c0_17 = arith.constant 0 : index
    %c0_18 = arith.constant 0 : index
    %28 = vector.load %arg7[%c0_17, %c0_18] : memref<1x512xf32, #tpu.memory_space<vmem>>, vector<1x512xf32>
    %29 = vector.broadcast %28 : vector<1x512xf32> to vector<8x512xf32>
    %30 = arith.addf %27, %29 : vector<8x512xf32>
    %cst_19 = arith.constant 0.000000e+00 : f32
    %31 = vector.broadcast %cst_19 : f32 to vector<8x512xf32>
    %32 = arith.maximumf %30, %31 : vector<8x512xf32>
    %33 = arith.truncf %32 : vector<8x512xf32> to vector<8x512xbf16>
    %34 = arith.extf %33 : vector<8x512xbf16> to vector<8x512xf32>
    %35 = arith.subf %32, %34 : vector<8x512xf32>
    %36 = arith.truncf %35 : vector<8x512xf32> to vector<8x512xbf16>
    %c0_20 = arith.constant 0 : index
    %c0_21 = arith.constant 0 : index
    %37 = vector.load %arg8[%c0_20, %c0_21] : memref<512x256xbf16, #tpu.memory_space<vmem>>, vector<512x256xbf16>
    %cst_22 = arith.constant dense<0.000000e+00> : vector<8x256xf32>
    %38 = tpu.matmul %33, %37, %cst_22 {dimension_numbers = #tpu.dot_dimension_numbers<[1], [0], [0], [1], [0, 0, 1, 1], [], []>} : vector<8x512xbf16>, vector<512x256xbf16>, vector<8x256xf32> -> vector<8x256xf32>
    %cst_23 = arith.constant dense<0.000000e+00> : vector<8x256xf32>
    %39 = tpu.matmul %36, %37, %cst_23 {dimension_numbers = #tpu.dot_dimension_numbers<[1], [0], [0], [1], [0, 0, 1, 1], [], []>} : vector<8x512xbf16>, vector<512x256xbf16>, vector<8x256xf32> -> vector<8x256xf32>
    %40 = arith.addf %38, %39 : vector<8x256xf32>
    %c0_24 = arith.constant 0 : index
    %c0_25 = arith.constant 0 : index
    %41 = vector.load %arg9[%c0_24, %c0_25] : memref<512x256xbf16, #tpu.memory_space<vmem>>, vector<512x256xbf16>
    %cst_26 = arith.constant dense<0.000000e+00> : vector<8x256xf32>
    %42 = tpu.matmul %33, %41, %cst_26 {dimension_numbers = #tpu.dot_dimension_numbers<[1], [0], [0], [1], [0, 0, 1, 1], [], []>} : vector<8x512xbf16>, vector<512x256xbf16>, vector<8x256xf32> -> vector<8x256xf32>
    %43 = arith.addf %40, %42 : vector<8x256xf32>
    %c0_27 = arith.constant 0 : index
    %c0_28 = arith.constant 0 : index
    %44 = vector.load %arg10[%c0_27, %c0_28] : memref<1x256xf32, #tpu.memory_space<vmem>>, vector<1x256xf32>
    %45 = vector.broadcast %44 : vector<1x256xf32> to vector<8x256xf32>
    %46 = arith.addf %43, %45 : vector<8x256xf32>
    %cst_29 = arith.constant 0.000000e+00 : f32
    %47 = vector.broadcast %cst_29 : f32 to vector<8x256xf32>
    %48 = arith.maximumf %46, %47 : vector<8x256xf32>
    %49 = arith.truncf %48 : vector<8x256xf32> to vector<8x256xbf16>
    %50 = arith.extf %49 : vector<8x256xbf16> to vector<8x256xf32>
    %51 = arith.subf %48, %50 : vector<8x256xf32>
    %52 = arith.truncf %51 : vector<8x256xf32> to vector<8x256xbf16>
    %c0_30 = arith.constant 0 : index
    %c0_31 = arith.constant 0 : index
    %53 = vector.load %arg11[%c0_30, %c0_31] : memref<256x256xbf16, #tpu.memory_space<vmem>>, vector<256x256xbf16>
    %cst_32 = arith.constant dense<0.000000e+00> : vector<8x256xf32>
    %54 = tpu.matmul %49, %53, %cst_32 {dimension_numbers = #tpu.dot_dimension_numbers<[1], [0], [0], [1], [0, 0, 1, 1], [], []>} : vector<8x256xbf16>, vector<256x256xbf16>, vector<8x256xf32> -> vector<8x256xf32>
    %cst_33 = arith.constant dense<0.000000e+00> : vector<8x256xf32>
    %55 = tpu.matmul %52, %53, %cst_33 {dimension_numbers = #tpu.dot_dimension_numbers<[1], [0], [0], [1], [0, 0, 1, 1], [], []>} : vector<8x256xbf16>, vector<256x256xbf16>, vector<8x256xf32> -> vector<8x256xf32>
    %56 = arith.addf %54, %55 : vector<8x256xf32>
    %c0_34 = arith.constant 0 : index
    %c0_35 = arith.constant 0 : index
    %57 = vector.load %arg12[%c0_34, %c0_35] : memref<256x256xbf16, #tpu.memory_space<vmem>>, vector<256x256xbf16>
    %cst_36 = arith.constant dense<0.000000e+00> : vector<8x256xf32>
    %58 = tpu.matmul %49, %57, %cst_36 {dimension_numbers = #tpu.dot_dimension_numbers<[1], [0], [0], [1], [0, 0, 1, 1], [], []>} : vector<8x256xbf16>, vector<256x256xbf16>, vector<8x256xf32> -> vector<8x256xf32>
    %59 = arith.addf %56, %58 : vector<8x256xf32>
    %c0_37 = arith.constant 0 : index
    %c0_38 = arith.constant 0 : index
    %60 = vector.load %arg13[%c0_37, %c0_38] : memref<1x256xf32, #tpu.memory_space<vmem>>, vector<1x256xf32>
    %61 = vector.broadcast %60 : vector<1x256xf32> to vector<8x256xf32>
    %62 = arith.addf %59, %61 : vector<8x256xf32>
    %cst_39 = arith.constant 0.000000e+00 : f32
    %63 = vector.broadcast %cst_39 : f32 to vector<8x256xf32>
    %64 = arith.maximumf %62, %63 : vector<8x256xf32>
    %65 = arith.truncf %64 : vector<8x256xf32> to vector<8x256xbf16>
    %66 = arith.extf %65 : vector<8x256xbf16> to vector<8x256xf32>
    %67 = arith.subf %64, %66 : vector<8x256xf32>
    %68 = arith.truncf %67 : vector<8x256xf32> to vector<8x256xbf16>
    %c0_40 = arith.constant 0 : index
    %c0_41 = arith.constant 0 : index
    %69 = vector.load %arg14[%c0_40, %c0_41] : memref<256x250xbf16, #tpu.memory_space<vmem>>, vector<256x250xbf16>
    %cst_42 = arith.constant dense<0.000000e+00> : vector<8x250xf32>
    %70 = tpu.matmul %65, %69, %cst_42 {dimension_numbers = #tpu.dot_dimension_numbers<[1], [0], [0], [1], [0, 0, 1, 1], [], []>} : vector<8x256xbf16>, vector<256x250xbf16>, vector<8x250xf32> -> vector<8x250xf32>
    %cst_43 = arith.constant dense<0.000000e+00> : vector<8x250xf32>
    %71 = tpu.matmul %68, %69, %cst_43 {dimension_numbers = #tpu.dot_dimension_numbers<[1], [0], [0], [1], [0, 0, 1, 1], [], []>} : vector<8x256xbf16>, vector<256x250xbf16>, vector<8x250xf32> -> vector<8x250xf32>
    %72 = arith.addf %70, %71 : vector<8x250xf32>
    %c0_44 = arith.constant 0 : index
    %c0_45 = arith.constant 0 : index
    %73 = vector.load %arg15[%c0_44, %c0_45] : memref<256x250xbf16, #tpu.memory_space<vmem>>, vector<256x250xbf16>
    %cst_46 = arith.constant dense<0.000000e+00> : vector<8x250xf32>
    %74 = tpu.matmul %65, %73, %cst_46 {dimension_numbers = #tpu.dot_dimension_numbers<[1], [0], [0], [1], [0, 0, 1, 1], [], []>} : vector<8x256xbf16>, vector<256x250xbf16>, vector<8x250xf32> -> vector<8x250xf32>
    %75 = arith.addf %72, %74 : vector<8x250xf32>
    %c0_47 = arith.constant 0 : index
    %c0_48 = arith.constant 0 : index
    %76 = vector.load %arg16[%c0_47, %c0_48] : memref<1x250xf32, #tpu.memory_space<vmem>>, vector<1x250xf32>
    %77 = vector.broadcast %76 : vector<1x250xf32> to vector<8x250xf32>
    %78 = arith.addf %75, %77 : vector<8x250xf32>
    %cst_49 = arith.constant 0.000000e+00 : f32
    %79 = vector.broadcast %cst_49 : f32 to vector<8x250xf32>
    %80 = arith.maximumf %78, %79 : vector<8x250xf32>
    %81 = arith.truncf %80 : vector<8x250xf32> to vector<8x250xbf16>
    %82 = arith.extf %81 : vector<8x250xbf16> to vector<8x250xf32>
    %83 = arith.subf %80, %82 : vector<8x250xf32>
    %84 = arith.truncf %83 : vector<8x250xf32> to vector<8x250xbf16>
    %c0_50 = arith.constant 0 : index
    %c0_51 = arith.constant 0 : index
    %85 = vector.load %arg17[%c0_50, %c0_51] : memref<250x8xbf16, #tpu.memory_space<vmem>>, vector<250x8xbf16>
    %cst_52 = arith.constant dense<0.000000e+00> : vector<8x8xf32>
    %86 = tpu.matmul %81, %85, %cst_52 {dimension_numbers = #tpu.dot_dimension_numbers<[1], [0], [0], [1], [0, 0, 1, 1], [], []>} : vector<8x250xbf16>, vector<250x8xbf16>, vector<8x8xf32> -> vector<8x8xf32>
    %cst_53 = arith.constant dense<0.000000e+00> : vector<8x8xf32>
    %87 = tpu.matmul %84, %85, %cst_53 {dimension_numbers = #tpu.dot_dimension_numbers<[1], [0], [0], [1], [0, 0, 1, 1], [], []>} : vector<8x250xbf16>, vector<250x8xbf16>, vector<8x8xf32> -> vector<8x8xf32>
    %88 = arith.addf %86, %87 : vector<8x8xf32>
    %c0_54 = arith.constant 0 : index
    %c0_55 = arith.constant 0 : index
    %89 = vector.load %arg18[%c0_54, %c0_55] : memref<250x8xbf16, #tpu.memory_space<vmem>>, vector<250x8xbf16>
    %cst_56 = arith.constant dense<0.000000e+00> : vector<8x8xf32>
    %90 = tpu.matmul %81, %89, %cst_56 {dimension_numbers = #tpu.dot_dimension_numbers<[1], [0], [0], [1], [0, 0, 1, 1], [], []>} : vector<8x250xbf16>, vector<250x8xbf16>, vector<8x8xf32> -> vector<8x8xf32>
    %91 = arith.addf %88, %90 : vector<8x8xf32>
    %c0_57 = arith.constant 0 : index
    %c0_58 = arith.constant 0 : index
    %92 = vector.load %arg19[%c0_57, %c0_58] : memref<1x8xf32, #tpu.memory_space<vmem>>, vector<1x8xf32>
    %93 = vector.broadcast %92 : vector<1x8xf32> to vector<8x8xf32>
    %94 = arith.addf %91, %93 : vector<8x8xf32>
    %c0_59 = arith.constant 0 : index
    %c0_60 = arith.constant 0 : index
    %95 = vector.load %arg20[%c0_59, %c0_60] : memref<8x8xf32, #tpu.memory_space<vmem>>, vector<8x8xf32>
    tpu.vector_store %arg20[%c0_59, %c0_60], %94 {strides = array<i32>} : memref<8x8xf32, #tpu.memory_space<vmem>>, vector<8x8xf32>,
    return
  }
  func.func @transform_0(%arg0: i32) -> (i32, i32) {
    %c0_i32 = arith.constant 0 : i32
    %c0_i32_0 = arith.constant 0 : i32
    return %arg0, %c0_i32 : i32, i32
  }
  func.func @transform_1(%arg0: i32) -> (i32, i32) {
    %c0_i32 = arith.constant 0 : i32
    %c0_i32_0 = arith.constant 0 : i32
    %c0_i32_1 = arith.constant 0 : i32
    return %c0_i32, %c0_i32_0 : i32, i32
  }
  func.func @transform_2(%arg0: i32) -> (i32, i32) {
    %c0_i32 = arith.constant 0 : i32
    %c0_i32_0 = arith.constant 0 : i32
    %c0_i32_1 = arith.constant 0 : i32
    return %c0_i32, %c0_i32_0 : i32, i32
  }
  func.func @transform_3(%arg0: i32) -> (i32, i32) {
    %c0_i32 = arith.constant 0 : i32
    %c0_i32_0 = arith.constant 0 : i32
    %c0_i32_1 = arith.constant 0 : i32
    return %c0_i32, %c0_i32_0 : i32, i32
  }
  func.func @transform_4(%arg0: i32) -> (i32, i32) {
    %c0_i32 = arith.constant 0 : i32
    %c0_i32_0 = arith.constant 0 : i32
    %c0_i32_1 = arith.constant 0 : i32
    return %c0_i32, %c0_i32_0 : i32, i32
  }
  func.func @transform_5(%arg0: i32) -> (i32, i32) {
    %c0_i32 = arith.constant 0 : i32
    %c0_i32_0 = arith.constant 0 : i32
    %c0_i32_1 = arith.constant 0 : i32
    return %c0_i32, %c0_i32_0 : i32, i32
  }
  func.func @transform_6(%arg0: i32) -> (i32, i32) {
    %c0_i32 = arith.constant 0 : i32
    %c0_i32_0 = arith.constant 0 : i32
    %c0_i32_1 = arith.constant 0 : i32
    return %c0_i32, %c0_i32_0 : i32, i32
  }
  func.func @transform_7(%arg0: i32) -> (i32, i32) {
    %c0_i32 = arith.constant 0 : i32
    %c0_i32_0 = arith.constant 0 : i32
    %c0_i32_1 = arith.constant 0 : i32
    return %c0_i32, %c0_i32_0 : i32, i32
  }
  func.func @transform_8(%arg0: i32) -> (i32, i32) {
    %c0_i32 = arith.constant 0 : i32
    %c0_i32_0 = arith.constant 0 : i32
    %c0_i32_1 = arith.constant 0 : i32
    return %c0_i32, %c0_i32_0 : i32, i32
  }
  func.func @transform_9(%arg0: i32) -> (i32, i32) {
    %c0_i32 = arith.constant 0 : i32
    %c0_i32_0 = arith.constant 0 : i32
    %c0_i32_1 = arith.constant 0 : i32
    return %c0_i32, %c0_i32_0 : i32, i32
  }
  func.func @transform_10(%arg0: i32) -> (i32, i32) {
    %c0_i32 = arith.constant 0 : i32
    %c0_i32_0 = arith.constant 0 : i32
    %c0_i32_1 = arith.constant 0 : i32
    return %c0_i32, %c0_i32_0 : i32, i32
  }
  func.func @transform_11(%arg0: i32) -> (i32, i32) {
    %c0_i32 = arith.constant 0 : i32
    %c0_i32_0 = arith.constant 0 : i32
    %c0_i32_1 = arith.constant 0 : i32
    return %c0_i32, %c0_i32_0 : i32, i32
  }
  func.func @transform_12(%arg0: i32) -> (i32, i32) {
    %c0_i32 = arith.constant 0 : i32
    %c0_i32_0 = arith.constant 0 : i32
    %c0_i32_1 = arith.constant 0 : i32
    return %c0_i32, %c0_i32_0 : i32, i32
  }
  func.func @transform_13(%arg0: i32) -> (i32, i32) {
    %c0_i32 = arith.constant 0 : i32
    %c0_i32_0 = arith.constant 0 : i32
    %c0_i32_1 = arith.constant 0 : i32
    return %c0_i32, %c0_i32_0 : i32, i32
  }
  func.func @transform_14(%arg0: i32) -> (i32, i32) {
    %c0_i32 = arith.constant 0 : i32
    %c0_i32_0 = arith.constant 0 : i32
    %c0_i32_1 = arith.constant 0 : i32
    return %c0_i32, %c0_i32_0 : i32, i32
  }
  func.func @transform_15(%arg0: i32) -> (i32, i32) {
    %c0_i32 = arith.constant 0 : i32
    %c0_i32_0 = arith.constant 0 : i32
    %c0_i32_1 = arith.constant 0 : i32
    return %c0_i32, %c0_i32_0 : i32, i32
  }
  func.func @transform_16(%arg0: i32) -> (i32, i32) {
    %c0_i32 = arith.constant 0 : i32
    %c0_i32_0 = arith.constant 0 : i32
    %c0_i32_1 = arith.constant 0 : i32
    return %c0_i32, %c0_i32_0 : i32, i32
  }
  func.func @transform_17(%arg0: i32) -> (i32, i32) {
    %c0_i32 = arith.constant 0 : i32
    %c0_i32_0 = arith.constant 0 : i32
    %c0_i32_1 = arith.constant 0 : i32
    return %c0_i32, %c0_i32_0 : i32, i32
  }
  func.func @transform_18(%arg0: i32) -> (i32, i32) {
    %c0_i32 = arith.constant 0 : i32
    %c0_i32_0 = arith.constant 0 : i32
    %c0_i32_1 = arith.constant 0 : i32
    return %c0_i32, %c0_i32_0 : i32, i32
  }
  func.func @transform_19(%arg0: i32) -> (i32, i32) {
    %c0_i32 = arith.constant 0 : i32
    %c0_i32_0 = arith.constant 0 : i32
    return %arg0, %c0_i32 : i32, i32
  }
}

</mosaic_0001>

<llo_original>
// kernel: encoder_deep_conv_forward.1
$region0: #{encoder_deep_conv_forward.1}
  #allocation0 [shape = 'u32[]', space=smem, size = 0x4, offset = 0x4, fixed_abs, tag = 'smem constant byte address 0x4 - core index']
  #allocation1 [shape = 'u32[144,128]{1,0:T(1,128)}', space=vmem, size = 0x12000, scoped, tag = 'internal scratch']
  %s0 = inlined_call_operand.vmem [shape: f32[8,256], index: 0, kind: input, shape index: {}]
  %s1 = inlined_call_operand.hbm [shape: bf16[256,1024], index: 1, kind: input, shape index: {}]
  %s2 = inlined_call_operand.hbm [shape: bf16[256,1024], index: 2, kind: input, shape index: {}]
  %s3 = inlined_call_operand.vmem [shape: f32[1,1024], index: 3, kind: input, shape index: {}]
  %s4 = inlined_call_operand.hbm [shape: bf16[1024,512], index: 4, kind: input, shape index: {}]
  %s5 = inlined_call_operand.hbm [shape: bf16[1024,512], index: 5, kind: input, shape index: {}]
  %s6 = inlined_call_operand.vmem [shape: f32[1,512], index: 6, kind: input, shape index: {}]
  %s7 = inlined_call_operand.hbm [shape: bf16[512,256], index: 7, kind: input, shape index: {}]
  %s8 = inlined_call_operand.hbm [shape: bf16[512,256], index: 8, kind: input, shape index: {}]
  %s9 = inlined_call_operand.vmem [shape: f32[1,256], index: 9, kind: input, shape index: {}]
  %s10 = inlined_call_operand.vmem [shape: bf16[256,256], index: 10, kind: input, shape index: {}]
  %s11 = inlined_call_operand.hbm [shape: bf16[256,256], index: 11, kind: input, shape index: {}]
  %s12 = inlined_call_operand.vmem [shape: f32[1,256], index: 12, kind: input, shape index: {}]
  %s13 = inlined_call_operand.hbm [shape: bf16[256,250], index: 13, kind: input, shape index: {}]
  %s14 = inlined_call_operand.hbm [shape: bf16[256,250], index: 14, kind: input, shape index: {}]
  %s15 = inlined_call_operand.vmem [shape: f32[1,250], index: 15, kind: input, shape index: {}]
  %s16 = inlined_call_operand.vmem [shape: bf16[250,8], index: 16, kind: input, shape index: {}]
  %s17 = inlined_call_operand.vmem [shape: bf16[250,8], index: 17, kind: input, shape index: {}]
  %s18 = inlined_call_operand.vmem [shape: f32[1,8], index: 18, kind: input, shape index: {}]
  %s19 = inlined_call_operand.vmem [shape: f32[8,8], index: 19, kind: output, shape index: {}]
  %s20 = sld [smem:[#allocation0]]
  $region122: #{encoder_deep_conv_forward.1} parent=0
    _
  %s22 = ssub.s32 1, %s20
  %s23 = scalar_select 0, %s22, %s20
  $region1: #{encoder_deep_conv_forward.1} parent=0
    #allocation2 [shape = 'u8[524288]{0}', space=vmem, size = 0x80000, scoped, tag = 'input window, operand 1, single buffered']
    #allocation3 [shape = 's32[1]{0}', space=sflag, size = 0x4, scoped, tag = 'scoped memory for encoder_deep_conv_forward.1']
    #allocation4 [shape = 'u8[524288]{0}', space=vmem, size = 0x80000, scoped, tag = 'input window, operand 2, single buffered']
    #allocation5 [shape = 's32[1]{0}', space=sflag, size = 0x4, scoped, tag = 'scoped memory for encoder_deep_conv_forward.1']
    #allocation6 [shape = 'u8[1048576]{0}', space=vmem, size = 0x100000, scoped, tag = 'input window, operand 4, single buffered']
    #allocation7 [shape = 'u8[1048576]{0}', space=vmem, size = 0x100000, scoped, tag = 'input window, operand 5, single buffered']
    #allocation8 [shape = 's32[1]{0}', space=sflag, size = 0x4, scoped, tag = 'scoped memory for encoder_deep_conv_forward.1']
    #allocation9 [shape = 'u8[262144]{0}', space=vmem, size = 0x40000, scoped, tag = 'input window, operand 7, single buffered']
    #allocation10 [shape = 'u8[262144]{0}', space=vmem, size = 0x40000, scoped, tag = 'input window, operand 8, single buffered']
    #allocation11 [shape = 's32[1]{0}', space=sflag, size = 0x4, scoped, tag = 'scoped memory for encoder_deep_conv_forward.1']
    #allocation12 [shape = 'u8[131072]{0}', space=vmem, size = 0x20000, scoped, tag = 'input window, operand 11, single buffered']
    #allocation13 [shape = 'u8[131072]{0}', space=vmem, size = 0x20000, scoped, tag = 'input window, operand 13, single buffered']
    #allocation14 [shape = 's32[1]{0}', space=sflag, size = 0x4, scoped, tag = 'scoped memory for encoder_deep_conv_forward.1']
    #allocation15 [shape = 'u8[131072]{0}', space=vmem, size = 0x20000, scoped, tag = 'input window, operand 14, single buffered']
    %24 = vsyncpa [#allocation3], 0
    %25 = vsyncpa [#allocation5], 0
    %26 = vsyncpa [#allocation8], 0
    %27 = vsyncpa [#allocation11], 0
    %28 = vsyncpa [#allocation14], 0
    // Predicated region
    $region2: #{encoder_deep_conv_forward.1} parent=1 // pred_check
      _
    $region3: #{encoder_deep_conv_forward.1} parent=1 // pred_check_branch
      %30 = sbr.rel (0) target = $region5
    $region4: #{encoder_deep_conv_forward.1} parent=1 // pred_region
      _
    $region5: #{encoder_deep_conv_forward.1} parent=1 // pred_fallthru
      _
    // Predicated region
    $region6: #{encoder_deep_conv_forward.1} parent=1 // pred_check
      _
    $region7: #{encoder_deep_conv_forward.1} parent=1 // pred_check_branch
      %32 = sbr.rel (0) target = $region9
    $region8: #{encoder_deep_conv_forward.1} parent=1 // pred_region
      %s34 = ssub.s32 16384, 16384
      %35 = vsyncadd [#allocation3], %s34
      %s36 = sshll.u32 [#allocation2], 4
      %s37 = int_to_ptr.vmem [resolvable:$true] %s36
      %42 = dma.hbm_to_vmem [thread:$0]  %s1, 16384, %s37, [#allocation3], 512, 512, 32
    $region9: #{encoder_deep_conv_forward.1} parent=1 // pred_fallthru
      _
    // Predicated region
    $region10: #{encoder_deep_conv_forward.1} parent=1 // pred_check
      _
    $region11: #{encoder_deep_conv_forward.1} parent=1 // pred_check_branch
      %44 = sbr.rel (0) target = $region13
    $region12: #{encoder_deep_conv_forward.1} parent=1 // pred_region
      %s46 = ssub.s32 16384, 16384
      %47 = vsyncadd [#allocation5], %s46
      %s48 = sshll.u32 [#allocation4], 4
      %s49 = int_to_ptr.vmem [resolvable:$true] %s48
      %54 = dma.hbm_to_vmem [thread:$0]  %s2, 16384, %s49, [#allocation5], 512, 512, 32
    $region13: #{encoder_deep_conv_forward.1} parent=1 // pred_fallthru
      _
    // Predicated region
    $region14: #{encoder_deep_conv_forward.1} parent=1 // pred_check
      _
    $region15: #{encoder_deep_conv_forward.1} parent=1 // pred_check_branch
      %56 = sbr.rel (0) target = $region17
    $region16: #{encoder_deep_conv_forward.1} parent=1 // pred_region
      _
    $region17: #{encoder_deep_conv_forward.1} parent=1 // pred_fallthru
      _
    // Predicated region
    $region18: #{encoder_deep_conv_forward.1} parent=1 // pred_check
      _
    $region19: #{encoder_deep_conv_forward.1} parent=1 // pred_check_branch
      %58 = sbr.rel (0) target = $region21
    $region20: #{encoder_deep_conv_forward.1} parent=1 // pred_region
      %s60 = ssub.s32 32768, 32768
      %61 = vsyncadd [#allocation5], %s60
      %s62 = sshll.u32 [#allocation6], 4
      %s63 = int_to_ptr.vmem [resolvable:$true] %s62
      %68 = dma.hbm_to_vmem [thread:$0]  %s4, 32768, %s63, [#allocation5], 256, 256, 16
    $region21: #{encoder_deep_conv_forward.1} parent=1 // pred_fallthru
      _
    // Predicated region
    $region22: #{encoder_deep_conv_forward.1} parent=1 // pred_check
      _
    $region23: #{encoder_deep_conv_forward.1} parent=1 // pred_check_branch
      %70 = sbr.rel (0) target = $region25
    $region24: #{encoder_deep_conv_forward.1} parent=1 // pred_region
      %s72 = ssub.s32 32768, 32768
      %73 = vsyncadd [#allocation8], %s72
      %s74 = sshll.u32 [#allocation7], 4
      %s75 = int_to_ptr.vmem [resolvable:$true] %s74
      %80 = dma.hbm_to_vmem [thread:$0]  %s5, 32768, %s75, [#allocation8], 256, 256, 16
    $region25: #{encoder_deep_conv_forward.1} parent=1 // pred_fallthru
      _
    // Predicated region
    $region26: #{encoder_deep_conv_forward.1} parent=1 // pred_check
      _
    $region27: #{encoder_deep_conv_forward.1} parent=1 // pred_check_branch
      %82 = sbr.rel (0) target = $region29
    $region28: #{encoder_deep_conv_forward.1} parent=1 // pred_region
      _
    $region29: #{encoder_deep_conv_forward.1} parent=1 // pred_fallthru
      _
    // Predicated region
    $region30: #{encoder_deep_conv_forward.1} parent=1 // pred_check
      _
    $region31: #{encoder_deep_conv_forward.1} parent=1 // pred_check_branch
      %84 = sbr.rel (0) target = $region33
    $region32: #{encoder_deep_conv_forward.1} parent=1 // pred_region
      %s86 = ssub.s32 8192, 8192
      %87 = vsyncadd [#allocation8], %s86
      %s88 = sshll.u32 [#allocation9], 4
      %s89 = int_to_ptr.vmem [resolvable:$true] %s88
      %94 = dma.hbm_to_vmem [thread:$0]  %s7, 8192, %s89, [#allocation8], 128, 128, 8
    $region33: #{encoder_deep_conv_forward.1} parent=1 // pred_fallthru
      _
    // Predicated region
    $region34: #{encoder_deep_conv_forward.1} parent=1 // pred_check
      _
    $region35: #{encoder_deep_conv_forward.1} parent=1 // pred_check_branch
      %96 = sbr.rel (0) target = $region37
    $region36: #{encoder_deep_conv_forward.1} parent=1 // pred_region
      %s98 = ssub.s32 8192, 8192
      %99 = vsyncadd [#allocation11], %s98
      %s100 = sshll.u32 [#allocation10], 4
      %s101 = int_to_ptr.vmem [resolvable:$true] %s100
      %106 = dma.hbm_to_vmem [thread:$0]  %s8, 8192, %s101, [#allocation11], 128, 128, 8
    $region37: #{encoder_deep_conv_forward.1} parent=1 // pred_fallthru
      _
    // Predicated region
    $region38: #{encoder_deep_conv_forward.1} parent=1 // pred_check
      _
    $region39: #{encoder_deep_conv_forward.1} parent=1 // pred_check_branch
      %108 = sbr.rel (0) target = $region41
    $region40: #{encoder_deep_conv_forward.1} parent=1 // pred_region
      _
    $region41: #{encoder_deep_conv_forward.1} parent=1 // pred_fallthru
      _
    // Predicated region
    $region42: #{encoder_deep_conv_forward.1} parent=1 // pred_check
      _
    $region43: #{encoder_deep_conv_forward.1} parent=1 // pred_check_branch
      %110 = sbr.rel (0) target = $region45
    $region44: #{encoder_deep_conv_forward.1} parent=1 // pred_region
      _
    $region45: #{encoder_deep_conv_forward.1} parent=1 // pred_fallthru
      _
    // Predicated region
    $region46: #{encoder_deep_conv_forward.1} parent=1 // pred_check
      _
    $region47: #{encoder_deep_conv_forward.1} parent=1 // pred_check_branch
      %112 = sbr.rel (0) target = $region49
    $region48: #{encoder_deep_conv_forward.1} parent=1 // pred_region
      %s114 = ssub.s32 4096, 4096
      %115 = vsyncadd [#allocation11], %s114
      %s116 = sshll.u32 [#allocation12], 4
      %s117 = int_to_ptr.vmem [resolvable:$true] %s116
      %122 = dma.hbm_to_vmem [thread:$0]  %s11, 4096, %s117, [#allocation11], 128, 128, 8
    $region49: #{encoder_deep_conv_forward.1} parent=1 // pred_fallthru
      _
    // Predicated region
    $region50: #{encoder_deep_conv_forward.1} parent=1 // pred_check
      _
    $region51: #{encoder_deep_conv_forward.1} parent=1 // pred_check_branch
      %124 = sbr.rel (0) target = $region53
    $region52: #{encoder_deep_conv_forward.1} parent=1 // pred_region
      _
    $region53: #{encoder_deep_conv_forward.1} parent=1 // pred_fallthru
      _
    // Predicated region
    $region54: #{encoder_deep_conv_forward.1} parent=1 // pred_check
      _
    $region55: #{encoder_deep_conv_forward.1} parent=1 // pred_check_branch
      %126 = sbr.rel (0) target = $region57
    $region56: #{encoder_deep_conv_forward.1} parent=1 // pred_region
      %s128 = ssub.s32 4096, 4096
      %129 = vsyncadd [#allocation14], %s128
      %s130 = sshll.u32 [#allocation13], 4
      %s131 = int_to_ptr.vmem [resolvable:$true] %s130
      %136 = dma.hbm_to_vmem [thread:$0]  %s13, 4096, %s131, [#allocation14], 128, 128, 8
    $region57: #{encoder_deep_conv_forward.1} parent=1 // pred_fallthru
      _
    // Predicated region
    $region58: #{encoder_deep_conv_forward.1} parent=1 // pred_check
      _
    $region59: #{encoder_deep_conv_forward.1} parent=1 // pred_check_branch
      %138 = sbr.rel (0) target = $region61
    $region60: #{encoder_deep_conv_forward.1} parent=1 // pred_region
      %s140 = ssub.s32 4096, 4096
      %141 = vsyncadd [#allocation14], %s140
      %s142 = sshll.u32 [#allocation15], 4
      %s143 = int_to_ptr.vmem [resolvable:$true] %s142
      %148 = dma.hbm_to_vmem [thread:$0]  %s14, 4096, %s143, [#allocation14], 128, 128, 8
    $region61: #{encoder_deep_conv_forward.1} parent=1 // pred_fallthru
      _
    // Predicated region
    $region62: #{encoder_deep_conv_forward.1} parent=1 // pred_check
      _
    $region63: #{encoder_deep_conv_forward.1} parent=1 // pred_check_branch
      %150 = sbr.rel (0) target = $region65
    $region64: #{encoder_deep_conv_forward.1} parent=1 // pred_region
      _
    $region65: #{encoder_deep_conv_forward.1} parent=1 // pred_fallthru
      _
    // Predicated region
    $region66: #{encoder_deep_conv_forward.1} parent=1 // pred_check
      _
    $region67: #{encoder_deep_conv_forward.1} parent=1 // pred_check_branch
      %152 = sbr.rel (0) target = $region69
    $region68: #{encoder_deep_conv_forward.1} parent=1 // pred_region
      _
    $region69: #{encoder_deep_conv_forward.1} parent=1 // pred_fallthru
      _
    // Predicated region
    $region70: #{encoder_deep_conv_forward.1} parent=1 // pred_check
      _
    $region71: #{encoder_deep_conv_forward.1} parent=1 // pred_check_branch
      %154 = sbr.rel (0) target = $region73
    $region72: #{encoder_deep_conv_forward.1} parent=1 // pred_region
      _
    $region73: #{encoder_deep_conv_forward.1} parent=1 // pred_fallthru
      _
    // Predicated region
    $region74: #{encoder_deep_conv_forward.1} parent=1 // pred_check
      _
    $region75: #{encoder_deep_conv_forward.1} parent=1 // pred_check_branch
      %156 = sbr.rel (0) target = $region77
    $region76: #{encoder_deep_conv_forward.1} parent=1 // pred_region
      _
    $region77: #{encoder_deep_conv_forward.1} parent=1 // pred_fallthru
      _
    // Predicated region
    $region78: #{encoder_deep_conv_forward.1} parent=1 // pred_check
      _
    $region79: #{encoder_deep_conv_forward.1} parent=1 // pred_check_branch
      %158 = sbr.rel (0) target = $region81
    $region80: #{encoder_deep_conv_forward.1} parent=1 // pred_region
      %159 = dma.done [#allocation3], 16384
    $region81: #{encoder_deep_conv_forward.1} parent=1 // pred_fallthru
      _
    // Predicated region
    $region82: #{encoder_deep_conv_forward.1} parent=1 // pred_check
      _
    $region83: #{encoder_deep_conv_forward.1} parent=1 // pred_check_branch
      %161 = sbr.rel (0) target = $region85
    $region84: #{encoder_deep_conv_forward.1} parent=1 // pred_region
      %162 = dma.done [#allocation5], 16384
    $region85: #{encoder_deep_conv_forward.1} parent=1 // pred_fallthru
      _
    // Predicated region
    $region86: #{encoder_deep_conv_forward.1} parent=1 // pred_check
      _
    $region87: #{encoder_deep_conv_forward.1} parent=1 // pred_check_branch
      %164 = sbr.rel (0) target = $region89
    $region88: #{encoder_deep_conv_forward.1} parent=1 // pred_region
      %165 = dma.done [#allocation5], 32768
    $region89: #{encoder_deep_conv_forward.1} parent=1 // pred_fallthru
      _
    // Predicated region
    $region90: #{encoder_deep_conv_forward.1} parent=1 // pred_check
      _
    $region91: #{encoder_deep_conv_forward.1} parent=1 // pred_check_branch
      %167 = sbr.rel (0) target = $region93
    $region92: #{encoder_deep_conv_forward.1} parent=1 // pred_region
      %168 = dma.done [#allocation8], 32768
    $region93: #{encoder_deep_conv_forward.1} parent=1 // pred_fallthru
      _
    // Predicated region
    $region94: #{encoder_deep_conv_forward.1} parent=1 // pred_check
      _
    $region95: #{encoder_deep_conv_forward.1} parent=1 // pred_check_branch
      %170 = sbr.rel (0) target = $region97
    $region96: #{encoder_deep_conv_forward.1} parent=1 // pred_region
      %171 = dma.done [#allocation8], 8192
    $region97: #{encoder_deep_conv_forward.1} parent=1 // pred_fallthru
      _
    // Predicated region
    $region98: #{encoder_deep_conv_forward.1} parent=1 // pred_check
      _
    $region99: #{encoder_deep_conv_forward.1} parent=1 // pred_check_branch
      %173 = sbr.rel (0) target = $region101
    $region100: #{encoder_deep_conv_forward.1} parent=1 // pred_region
      %174 = dma.done [#allocation11], 8192
    $region101: #{encoder_deep_conv_forward.1} parent=1 // pred_fallthru
      _
    // Predicated region
    $region102: #{encoder_deep_conv_forward.1} parent=1 // pred_check
      _
    $region103: #{encoder_deep_conv_forward.1} parent=1 // pred_check_branch
      %176 = sbr.rel (0) target = $region105
    $region104: #{encoder_deep_conv_forward.1} parent=1 // pred_region
      %177 = dma.done [#allocation11], 4096
    $region105: #{encoder_deep_conv_forward.1} parent=1 // pred_fallthru
      _
    // Predicated region
    $region106: #{encoder_deep_conv_forward.1} parent=1 // pred_check
      _
    $region107: #{encoder_deep_conv_forward.1} parent=1 // pred_check_branch
      %179 = sbr.rel (0) target = $region109
    $region108: #{encoder_deep_conv_forward.1} parent=1 // pred_region
      %180 = dma.done [#allocation14], 4096
    $region109: #{encoder_deep_conv_forward.1} parent=1 // pred_fallthru
      _
    // Predicated region
    $region110: #{encoder_deep_conv_forward.1} parent=1 // pred_check
      _
    $region111: #{encoder_deep_conv_forward.1} parent=1 // pred_check_branch
      %182 = sbr.rel (0) target = $region113
    $region112: #{encoder_deep_conv_forward.1} parent=1 // pred_region
      %183 = dma.done [#allocation14], 4096
    $region113: #{encoder_deep_conv_forward.1} parent=1 // pred_fallthru
      _
    %v185 = vld [vmem:[%s0] sm:$0xff]
    %v186 = vld [vmem:[%s0 + $0x8] sm:$0xff]
    %v187 = vpack.c.bf16 %v185, %v185
    %v188 = vpack.c.bf16 %v186, %v186
    %v189 = vunpack.c.l.bf16 %v187
    %v190 = vunpack.c.l.bf16 %v188
    %v191 = vsub.f32 %v185, %v189
    %v192 = vsub.f32 %v186, %v190
    %v193 = vpack.c.bf16 %v191, %v191
    %v194 = vpack.c.bf16 %v192, %v192
    %v195 = vld [vmem:[#allocation2] sm:$0xff]
    %v196 = vld [vmem:[#allocation2 + $0x8] sm:$0xff]
    %v197 = vld [vmem:[#allocation2 + $0x10] sm:$0xff]
    %v198 = vld [vmem:[#allocation2 + $0x18] sm:$0xff]
    %v199 = vld [vmem:[#allocation2 + $0x20] sm:$0xff]
    %v200 = vld [vmem:[#allocation2 + $0x28] sm:$0xff]
    %v201 = vld [vmem:[#allocation2 + $0x30] sm:$0xff]
    %v202 = vld [vmem:[#allocation2 + $0x38] sm:$0xff]
    %v203 = vld [vmem:[#allocation2 + $0x40] sm:$0xff]
    %v204 = vld [vmem:[#allocation2 + $0x48] sm:$0xff]
    %v205 = vld [vmem:[#allocation2 + $0x50] sm:$0xff]
    %v206 = vld [vmem:[#allocation2 + $0x58] sm:$0xff]
    %v207 = vld [vmem:[#allocation2 + $0x60] sm:$0xff]
    %v208 = vld [vmem:[#allocation2 + $0x68] sm:$0xff]
    %v209 = vld [vmem:[#allocation2 + $0x70] sm:$0xff]
    %v210 = vld [vmem:[#allocation2 + $0x78] sm:$0xff]
    %v211 = vld [vmem:[#allocation2 + $0x80] sm:$0xff]
    %v212 = vld [vmem:[#allocation2 + $0x88] sm:$0xff]
    %v213 = vld [vmem:[#allocation2 + $0x90] sm:$0xff]
    %v214 = vld [vmem:[#allocation2 + $0x98] sm:$0xff]
    %v215 = vld [vmem:[#allocation2 + $0xa0] sm:$0xff]
    %v216 = vld [vmem:[#allocation2 + $0xa8] sm:$0xff]
    %v217 = vld [vmem:[#allocation2 + $0xb0] sm:$0xff]
    %v218 = vld [vmem:[#allocation2 + $0xb8] sm:$0xff]
    %v219 = vld [vmem:[#allocation2 + $0xc0] sm:$0xff]
    %v220 = vld [vmem:[#allocation2 + $0xc8] sm:$0xff]
    %v221 = vld [vmem:[#allocation2 + $0xd0] sm:$0xff]
    %v222 = vld [vmem:[#allocation2 + $0xd8] sm:$0xff]
    %v223 = vld [vmem:[#allocation2 + $0xe0] sm:$0xff]
    %v224 = vld [vmem:[#allocation2 + $0xe8] sm:$0xff]
    %v225 = vld [vmem:[#allocation2 + $0xf0] sm:$0xff]
    %v226 = vld [vmem:[#allocation2 + $0xf8] sm:$0xff]
    %v227 = vld [vmem:[#allocation2 + $0x100] sm:$0xff]
    %v228 = vld [vmem:[#allocation2 + $0x108] sm:$0xff]
    %v229 = vld [vmem:[#allocation2 + $0x110] sm:$0xff]
    %v230 = vld [vmem:[#allocation2 + $0x118] sm:$0xff]
    %v231 = vld [vmem:[#allocation2 + $0x120] sm:$0xff]
    %v232 = vld [vmem:[#allocation2 + $0x128] sm:$0xff]
    %v233 = vld [vmem:[#allocation2 + $0x130] sm:$0xff]
    %v234 = vld [vmem:[#allocation2 + $0x138] sm:$0xff]
    %v235 = vld [vmem:[#allocation2 + $0x140] sm:$0xff]
    %v236 = vld [vmem:[#allocation2 + $0x148] sm:$0xff]
    %v237 = vld [vmem:[#allocation2 + $0x150] sm:$0xff]
    %v238 = vld [vmem:[#allocation2 + $0x158] sm:$0xff]
    %v239 = vld [vmem:[#allocation2 + $0x160] sm:$0xff]
    %v240 = vld [vmem:[#allocation2 + $0x168] sm:$0xff]
    %v241 = vld [vmem:[#allocation2 + $0x170] sm:$0xff]
    %v242 = vld [vmem:[#allocation2 + $0x178] sm:$0xff]
    %v243 = vld [vmem:[#allocation2 + $0x180] sm:$0xff]
    %v244 = vld [vmem:[#allocation2 + $0x188] sm:$0xff]
    %v245 = vld [vmem:[#allocation2 + $0x190] sm:$0xff]
    %v246 = vld [vmem:[#allocation2 + $0x198] sm:$0xff]
    %v247 = vld [vmem:[#allocation2 + $0x1a0] sm:$0xff]
    %v248 = vld [vmem:[#allocation2 + $0x1a8] sm:$0xff]
    %v249 = vld [vmem:[#allocation2 + $0x1b0] sm:$0xff]
    %v250 = vld [vmem:[#allocation2 + $0x1b8] sm:$0xff]
    %v251 = vld [vmem:[#allocation2 + $0x1c0] sm:$0xff]
    %v252 = vld [vmem:[#allocation2 + $0x1c8] sm:$0xff]
    %v253 = vld [vmem:[#allocation2 + $0x1d0] sm:$0xff]
    %v254 = vld [vmem:[#allocation2 + $0x1d8] sm:$0xff]
    %v255 = vld [vmem:[#allocation2 + $0x1e0] sm:$0xff]
    %v256 = vld [vmem:[#allocation2 + $0x1e8] sm:$0xff]
    %v257 = vld [vmem:[#allocation2 + $0x1f0] sm:$0xff]
    %v258 = vld [vmem:[#allocation2 + $0x1f8] sm:$0xff]
    %v259 = vld [vmem:[#allocation2 + $0x200] sm:$0xff]
    %v260 = vld [vmem:[#allocation2 + $0x208] sm:$0xff]
    %v261 = vld [vmem:[#allocation2 + $0x210] sm:$0xff]
    %v262 = vld [vmem:[#allocation2 + $0x218] sm:$0xff]
    %v263 = vld [vmem:[#allocation2 + $0x220] sm:$0xff]
    %v264 = vld [vmem:[#allocation2 + $0x228] sm:$0xff]
    %v265 = vld [vmem:[#allocation2 + $0x230] sm:$0xff]
    %v266 = vld [vmem:[#allocation2 + $0x238] sm:$0xff]
    %v267 = vld [vmem:[#allocation2 + $0x240] sm:$0xff]
    %v268 = vld [vmem:[#allocation2 + $0x248] sm:$0xff]
    %v269 = vld [vmem:[#allocation2 + $0x250] sm:$0xff]
    %v270 = vld [vmem:[#allocation2 + $0x258] sm:$0xff]
    %v271 = vld [vmem:[#allocation2 + $0x260] sm:$0xff]
    %v272 = vld [vmem:[#allocation2 + $0x268] sm:$0xff]
    %v273 = vld [vmem:[#allocation2 + $0x270] sm:$0xff]
    %v274 = vld [vmem:[#allocation2 + $0x278] sm:$0xff]
    %v275 = vld [vmem:[#allocation2 + $0x280] sm:$0xff]
    %v276 = vld [vmem:[#allocation2 + $0x288] sm:$0xff]
    %v277 = vld [vmem:[#allocation2 + $0x290] sm:$0xff]
    %v278 = vld [vmem:[#allocation2 + $0x298] sm:$0xff]
    %v279 = vld [vmem:[#allocation2 + $0x2a0] sm:$0xff]
    %v280 = vld [vmem:[#allocation2 + $0x2a8] sm:$0xff]
    %v281 = vld [vmem:[#allocation2 + $0x2b0] sm:$0xff]
    %v282 = vld [vmem:[#allocation2 + $0x2b8] sm:$0xff]
    %v283 = vld [vmem:[#allocation2 + $0x2c0] sm:$0xff]
    %v284 = vld [vmem:[#allocation2 + $0x2c8] sm:$0xff]
    %v285 = vld [vmem:[#allocation2 + $0x2d0] sm:$0xff]
    %v286 = vld [vmem:[#allocation2 + $0x2d8] sm:$0xff]
    %v287 = vld [vmem:[#allocation2 + $0x2e0] sm:$0xff]
    %v288 = vld [vmem:[#allocation2 + $0x2e8] sm:$0xff]
    %v289 = vld [vmem:[#allocation2 + $0x2f0] sm:$0xff]
    %v290 = vld [vmem:[#allocation2 + $0x2f8] sm:$0xff]
    %v291 = vld [vmem:[#allocation2 + $0x300] sm:$0xff]
    %v292 = vld [vmem:[#allocation2 + $0x308] sm:$0xff]
    %v293 = vld [vmem:[#allocation2 + $0x310] sm:$0xff]
    %v294 = vld [vmem:[#allocation2 + $0x318] sm:$0xff]
    %v295 = vld [vmem:[#allocation2 + $0x320] sm:$0xff]
    %v296 = vld [vmem:[#allocation2 + $0x328] sm:$0xff]
    %v297 = vld [vmem:[#allocation2 + $0x330] sm:$0xff]
    %v298 = vld [vmem:[#allocation2 + $0x338] sm:$0xff]
    %v299 = vld [vmem:[#allocation2 + $0x340] sm:$0xff]
    %v300 = vld [vmem:[#allocation2 + $0x348] sm:$0xff]
    %v301 = vld [vmem:[#allocation2 + $0x350] sm:$0xff]
    %v302 = vld [vmem:[#allocation2 + $0x358] sm:$0xff]
    %v303 = vld [vmem:[#allocation2 + $0x360] sm:$0xff]
    %v304 = vld [vmem:[#allocation2 + $0x368] sm:$0xff]
    %v305 = vld [vmem:[#allocation2 + $0x370] sm:$0xff]
    %v306 = vld [vmem:[#allocation2 + $0x378] sm:$0xff]
    %v307 = vld [vmem:[#allocation2 + $0x380] sm:$0xff]
    %v308 = vld [vmem:[#allocation2 + $0x388] sm:$0xff]
    %v309 = vld [vmem:[#allocation2 + $0x390] sm:$0xff]
    %v310 = vld [vmem:[#allocation2 + $0x398] sm:$0xff]
    %v311 = vld [vmem:[#allocation2 + $0x3a0] sm:$0xff]
    %v312 = vld [vmem:[#allocation2 + $0x3a8] sm:$0xff]
    %v313 = vld [vmem:[#allocation2 + $0x3b0] sm:$0xff]
    %v314 = vld [vmem:[#allocation2 + $0x3b8] sm:$0xff]
    %v315 = vld [vmem:[#allocation2 + $0x3c0] sm:$0xff]
    %v316 = vld [vmem:[#allocation2 + $0x3c8] sm:$0xff]
    %v317 = vld [vmem:[#allocation2 + $0x3d0] sm:$0xff]
    %v318 = vld [vmem:[#allocation2 + $0x3d8] sm:$0xff]
    %v319 = vld [vmem:[#allocation2 + $0x3e0] sm:$0xff]
    %v320 = vld [vmem:[#allocation2 + $0x3e8] sm:$0xff]
    %v321 = vld [vmem:[#allocation2 + $0x3f0] sm:$0xff]
    %v322 = vld [vmem:[#allocation2 + $0x3f8] sm:$0xff]
    %v451 = vunpack.c.l.b16 %v195
    %v452 = vunpack.c.h.b16 %v195
    %v453 = vunpack.c.l.b16 %v196
    %v454 = vunpack.c.h.b16 %v196
    %v455 = vunpack.c.l.b16 %v197
    %v456 = vunpack.c.h.b16 %v197
    %v457 = vunpack.c.l.b16 %v198
    %v458 = vunpack.c.h.b16 %v198
    %v459 = vunpack.c.l.b16 %v199
    %v460 = vunpack.c.h.b16 %v199
    %v461 = vunpack.c.l.b16 %v200
    %v462 = vunpack.c.h.b16 %v200
    %v463 = vunpack.c.l.b16 %v201
    %v464 = vunpack.c.h.b16 %v201
    %v465 = vunpack.c.l.b16 %v202
    %v466 = vunpack.c.h.b16 %v202
    %v467 = vunpack.c.l.b16 %v203
    %v468 = vunpack.c.h.b16 %v203
    %v469 = vunpack.c.l.b16 %v204
    %v470 = vunpack.c.h.b16 %v204
    %v471 = vunpack.c.l.b16 %v205
    %v472 = vunpack.c.h.b16 %v205
    %v473 = vunpack.c.l.b16 %v206
    %v474 = vunpack.c.h.b16 %v206
    %v475 = vunpack.c.l.b16 %v207
    %v476 = vunpack.c.h.b16 %v207
    %v477 = vunpack.c.l.b16 %v208
    %v478 = vunpack.c.h.b16 %v208
    %v479 = vunpack.c.l.b16 %v209
    %v480 = vunpack.c.h.b16 %v209
    %v481 = vunpack.c.l.b16 %v210
    %v482 = vunpack.c.h.b16 %v210
    %v483 = vunpack.c.l.b16 %v211
    %v484 = vunpack.c.h.b16 %v211
    %v485 = vunpack.c.l.b16 %v212
    %v486 = vunpack.c.h.b16 %v212
    %v487 = vunpack.c.l.b16 %v213
    %v488 = vunpack.c.h.b16 %v213
    %v489 = vunpack.c.l.b16 %v214
    %v490 = vunpack.c.h.b16 %v214
    %v491 = vunpack.c.l.b16 %v215
    %v492 = vunpack.c.h.b16 %v215
    %v493 = vunpack.c.l.b16 %v216
    %v494 = vunpack.c.h.b16 %v216
    %v495 = vunpack.c.l.b16 %v217
    %v496 = vunpack.c.h.b16 %v217
    %v497 = vunpack.c.l.b16 %v218
    %v498 = vunpack.c.h.b16 %v218
    %v499 = vunpack.c.l.b16 %v219
    %v500 = vunpack.c.h.b16 %v219
    %v501 = vunpack.c.l.b16 %v220
    %v502 = vunpack.c.h.b16 %v220
    %v503 = vunpack.c.l.b16 %v221
    %v504 = vunpack.c.h.b16 %v221
    %v505 = vunpack.c.l.b16 %v222
    %v506 = vunpack.c.h.b16 %v222
    %v507 = vunpack.c.l.b16 %v223
    %v508 = vunpack.c.h.b16 %v223
    %v509 = vunpack.c.l.b16 %v224
    %v510 = vunpack.c.h.b16 %v224
    %v511 = vunpack.c.l.b16 %v225
    %v512 = vunpack.c.h.b16 %v225
    %v513 = vunpack.c.l.b16 %v226
    %v514 = vunpack.c.h.b16 %v226
    %v515 = vunpack.c.l.b16 %v227
    %v516 = vunpack.c.h.b16 %v227
    %v517 = vunpack.c.l.b16 %v228
    %v518 = vunpack.c.h.b16 %v228
    %v519 = vunpack.c.l.b16 %v229
    %v520 = vunpack.c.h.b16 %v229
    %v521 = vunpack.c.l.b16 %v230
    %v522 = vunpack.c.h.b16 %v230
    %v523 = vunpack.c.l.b16 %v231
    %v524 = vunpack.c.h.b16 %v231
    %v525 = vunpack.c.l.b16 %v232
    %v526 = vunpack.c.h.b16 %v232
    %v527 = vunpack.c.l.b16 %v233
    %v528 = vunpack.c.h.b16 %v233
    %v529 = vunpack.c.l.b16 %v234
    %v530 = vunpack.c.h.b16 %v234
    %v531 = vunpack.c.l.b16 %v235
    %v532 = vunpack.c.h.b16 %v235
    %v533 = vunpack.c.l.b16 %v236
    %v534 = vunpack.c.h.b16 %v236
    %v535 = vunpack.c.l.b16 %v237
    %v536 = vunpack.c.h.b16 %v237
    %v537 = vunpack.c.l.b16 %v238
    %v538 = vunpack.c.h.b16 %v238
    %v539 = vunpack.c.l.b16 %v239
    %v540 = vunpack.c.h.b16 %v239
    %v541 = vunpack.c.l.b16 %v240
    %v542 = vunpack.c.h.b16 %v240
    %v543 = vunpack.c.l.b16 %v241
    %v544 = vunpack.c.h.b16 %v241
    %v545 = vunpack.c.l.b16 %v242
    %v546 = vunpack.c.h.b16 %v242
    %v547 = vunpack.c.l.b16 %v243
    %v548 = vunpack.c.h.b16 %v243
    %v549 = vunpack.c.l.b16 %v244
    %v550 = vunpack.c.h.b16 %v244
    %v551 = vunpack.c.l.b16 %v245
    %v552 = vunpack.c.h.b16 %v245
    %v553 = vunpack.c.l.b16 %v246
    %v554 = vunpack.c.h.b16 %v246
    %v555 = vunpack.c.l.b16 %v247
    %v556 = vunpack.c.h.b16 %v247
    %v557 = vunpack.c.l.b16 %v248
    %v558 = vunpack.c.h.b16 %v248
    %v559 = vunpack.c.l.b16 %v249
    %v560 = vunpack.c.h.b16 %v249
    %v561 = vunpack.c.l.b16 %v250
    %v562 = vunpack.c.h.b16 %v250
    %v563 = vunpack.c.l.b16 %v251
    %v564 = vunpack.c.h.b16 %v251
    %v565 = vunpack.c.l.b16 %v252
    %v566 = vunpack.c.h.b16 %v252
    %v567 = vunpack.c.l.b16 %v253
    %v568 = vunpack.c.h.b16 %v253
    %v569 = vunpack.c.l.b16 %v254
    %v570 = vunpack.c.h.b16 %v254
    %v571 = vunpack.c.l.b16 %v255
    %v572 = vunpack.c.h.b16 %v255
    %v573 = vunpack.c.l.b16 %v256
    %v574 = vunpack.c.h.b16 %v256
    %v575 = vunpack.c.l.b16 %v257
    %v576 = vunpack.c.h.b16 %v257
    %v577 = vunpack.c.l.b16 %v258
    %v578 = vunpack.c.h.b16 %v258
    %v579 = vunpack.c.l.b16 %v259
    %v580 = vunpack.c.h.b16 %v259
    %v581 = vunpack.c.l.b16 %v260
    %v582 = vunpack.c.h.b16 %v260
    %v583 = vunpack.c.l.b16 %v261
    %v584 = vunpack.c.h.b16 %v261
    %v585 = vunpack.c.l.b16 %v262
    %v586 = vunpack.c.h.b16 %v262
    %v587 = vunpack.c.l.b16 %v263
    %v588 = vunpack.c.h.b16 %v263
    %v589 = vunpack.c.l.b16 %v264
    %v590 = vunpack.c.h.b16 %v264
    %v591 = vunpack.c.l.b16 %v265
    %v592 = vunpack.c.h.b16 %v265
    %v593 = vunpack.c.l.b16 %v266
    %v594 = vunpack.c.h.b16 %v266
    %v595 = vunpack.c.l.b16 %v267
    %v596 = vunpack.c.h.b16 %v267
    %v597 = vunpack.c.l.b16 %v268
    %v598 = vunpack.c.h.b16 %v268
    %v599 = vunpack.c.l.b16 %v269
    %v600 = vunpack.c.h.b16 %v269
    %v601 = vunpack.c.l.b16 %v270
    %v602 = vunpack.c.h.b16 %v270
    %v603 = vunpack.c.l.b16 %v271
    %v604 = vunpack.c.h.b16 %v271
    %v605 = vunpack.c.l.b16 %v272
    %v606 = vunpack.c.h.b16 %v272
    %v607 = vunpack.c.l.b16 %v273
    %v608 = vunpack.c.h.b16 %v273
    %v609 = vunpack.c.l.b16 %v274
    %v610 = vunpack.c.h.b16 %v274
    %v611 = vunpack.c.l.b16 %v275
    %v612 = vunpack.c.h.b16 %v275
    %v613 = vunpack.c.l.b16 %v276
    %v614 = vunpack.c.h.b16 %v276
    %v615 = vunpack.c.l.b16 %v277
    %v616 = vunpack.c.h.b16 %v277
    %v617 = vunpack.c.l.b16 %v278
    %v618 = vunpack.c.h.b16 %v278
    %v619 = vunpack.c.l.b16 %v279
    %v620 = vunpack.c.h.b16 %v279
    %v621 = vunpack.c.l.b16 %v280
    %v622 = vunpack.c.h.b16 %v280
    %v623 = vunpack.c.l.b16 %v281
    %v624 = vunpack.c.h.b16 %v281
    %v625 = vunpack.c.l.b16 %v282
    %v626 = vunpack.c.h.b16 %v282
    %v627 = vunpack.c.l.b16 %v283
    %v628 = vunpack.c.h.b16 %v283
    %v629 = vunpack.c.l.b16 %v284
    %v630 = vunpack.c.h.b16 %v284
    %v631 = vunpack.c.l.b16 %v285
    %v632 = vunpack.c.h.b16 %v285
    %v633 = vunpack.c.l.b16 %v286
    %v634 = vunpack.c.h.b16 %v286
    %v635 = vunpack.c.l.b16 %v287
    %v636 = vunpack.c.h.b16 %v287
    %v637 = vunpack.c.l.b16 %v288
    %v638 = vunpack.c.h.b16 %v288
    %v639 = vunpack.c.l.b16 %v289
    %v640 = vunpack.c.h.b16 %v289
    %v641 = vunpack.c.l.b16 %v290
    %v642 = vunpack.c.h.b16 %v290
    %v643 = vunpack.c.l.b16 %v291
    %v644 = vunpack.c.h.b16 %v291
    %v645 = vunpack.c.l.b16 %v292
    %v646 = vunpack.c.h.b16 %v292
    %v647 = vunpack.c.l.b16 %v293
    %v648 = vunpack.c.h.b16 %v293
    %v649 = vunpack.c.l.b16 %v294
    %v650 = vunpack.c.h.b16 %v294
    %v651 = vunpack.c.l.b16 %v295
    %v652 = vunpack.c.h.b16 %v295
    %v653 = vunpack.c.l.b16 %v296
    %v654 = vunpack.c.h.b16 %v296
    %v655 = vunpack.c.l.b16 %v297
    %v656 = vunpack.c.h.b16 %v297
    %v657 = vunpack.c.l.b16 %v298
    %v658 = vunpack.c.h.b16 %v298
    %v659 = vunpack.c.l.b16 %v299
    %v660 = vunpack.c.h.b16 %v299
    %v661 = vunpack.c.l.b16 %v300
    %v662 = vunpack.c.h.b16 %v300
    %v663 = vunpack.c.l.b16 %v301
    %v664 = vunpack.c.h.b16 %v301
    %v665 = vunpack.c.l.b16 %v302
    %v666 = vunpack.c.h.b16 %v302
    %v667 = vunpack.c.l.b16 %v303
    %v668 = vunpack.c.h.b16 %v303
    %v669 = vunpack.c.l.b16 %v304
    %v670 = vunpack.c.h.b16 %v304
    %v671 = vunpack.c.l.b16 %v305
    %v672 = vunpack.c.h.b16 %v305
    %v673 = vunpack.c.l.b16 %v306
    %v674 = vunpack.c.h.b16 %v306
    %v675 = vunpack.c.l.b16 %v307
    %v676 = vunpack.c.h.b16 %v307
    %v677 = vunpack.c.l.b16 %v308
    %v678 = vunpack.c.h.b16 %v308
    %v679 = vunpack.c.l.b16 %v309
    %v680 = vunpack.c.h.b16 %v309
    %v681 = vunpack.c.l.b16 %v310
    %v682 = vunpack.c.h.b16 %v310
    %v683 = vunpack.c.l.b16 %v311
    %v684 = vunpack.c.h.b16 %v311
    %v685 = vunpack.c.l.b16 %v312
    %v686 = vunpack.c.h.b16 %v312
    %v687 = vunpack.c.l.b16 %v313
    %v688 = vunpack.c.h.b16 %v313
    %v689 = vunpack.c.l.b16 %v314
    %v690 = vunpack.c.h.b16 %v314
    %v691 = vunpack.c.l.b16 %v315
    %v692 = vunpack.c.h.b16 %v315
    %v693 = vunpack.c.l.b16 %v316
    %v694 = vunpack.c.h.b16 %v316
    %v695 = vunpack.c.l.b16 %v317
    %v696 = vunpack.c.h.b16 %v317
    %v697 = vunpack.c.l.b16 %v318
    %v698 = vunpack.c.h.b16 %v318
    %v699 = vunpack.c.l.b16 %v319
    %v700 = vunpack.c.h.b16 %v319
    %v701 = vunpack.c.l.b16 %v320
    %v702 = vunpack.c.h.b16 %v320
    %v703 = vunpack.c.l.b16 %v321
    %v704 = vunpack.c.h.b16 %v321
    %v705 = vunpack.c.l.b16 %v322
    %v706 = vunpack.c.h.b16 %v322
    %v707 = vpack.c.b16 %v459, %v451
    %v708 = vpack.c.b16 %v460, %v452
    %v709 = vpack.c.b16 %v461, %v453
    %v710 = vpack.c.b16 %v462, %v454
    %v711 = vpack.c.b16 %v463, %v455
    %v712 = vpack.c.b16 %v464, %v456
    %v713 = vpack.c.b16 %v465, %v457
    %v714 = vpack.c.b16 %v466, %v458
    %v715 = vpack.c.b16 %v475, %v467
    %v716 = vpack.c.b16 %v476, %v468
    %v717 = vpack.c.b16 %v477, %v469
    %v718 = vpack.c.b16 %v478, %v470
    %v719 = vpack.c.b16 %v479, %v471
    %v720 = vpack.c.b16 %v480, %v472
    %v721 = vpack.c.b16 %v481, %v473
    %v722 = vpack.c.b16 %v482, %v474
    %v723 = vpack.c.b16 %v491, %v483
    %v724 = vpack.c.b16 %v492, %v484
    %v725 = vpack.c.b16 %v493, %v485
    %v726 = vpack.c.b16 %v494, %v486
    %v727 = vpack.c.b16 %v495, %v487
    %v728 = vpack.c.b16 %v496, %v488
    %v729 = vpack.c.b16 %v497, %v489
    %v730 = vpack.c.b16 %v498, %v490
    %v731 = vpack.c.b16 %v507, %v499
    %v732 = vpack.c.b16 %v508, %v500
    %v733 = vpack.c.b16 %v509, %v501
    %v734 = vpack.c.b16 %v510, %v502
    %v735 = vpack.c.b16 %v511, %v503
    %v736 = vpack.c.b16 %v512, %v504
    %v737 = vpack.c.b16 %v513, %v505
    %v738 = vpack.c.b16 %v514, %v506
    %v739 = vpack.c.b16 %v523, %v515
    %v740 = vpack.c.b16 %v524, %v516
    %v741 = vpack.c.b16 %v525, %v517
    %v742 = vpack.c.b16 %v526, %v518
    %v743 = vpack.c.b16 %v527, %v519
    %v744 = vpack.c.b16 %v528, %v520
    %v745 = vpack.c.b16 %v529, %v521
    %v746 = vpack.c.b16 %v530, %v522
    %v747 = vpack.c.b16 %v539, %v531
    %v748 = vpack.c.b16 %v540, %v532
    %v749 = vpack.c.b16 %v541, %v533
    %v750 = vpack.c.b16 %v542, %v534
    %v751 = vpack.c.b16 %v543, %v535
    %v752 = vpack.c.b16 %v544, %v536
    %v753 = vpack.c.b16 %v545, %v537
    %v754 = vpack.c.b16 %v546, %v538
    %v755 = vpack.c.b16 %v555, %v547
    %v756 = vpack.c.b16 %v556, %v548
    %v757 = vpack.c.b16 %v557, %v549
    %v758 = vpack.c.b16 %v558, %v550
    %v759 = vpack.c.b16 %v559, %v551
    %v760 = vpack.c.b16 %v560, %v552
    %v761 = vpack.c.b16 %v561, %v553
    %v762 = vpack.c.b16 %v562, %v554
    %v763 = vpack.c.b16 %v571, %v563
    %v764 = vpack.c.b16 %v572, %v564
    %v765 = vpack.c.b16 %v573, %v565
    %v766 = vpack.c.b16 %v574, %v566
    %v767 = vpack.c.b16 %v575, %v567
    %v768 = vpack.c.b16 %v576, %v568
    %v769 = vpack.c.b16 %v577, %v569
    %v770 = vpack.c.b16 %v578, %v570
    %v771 = vpack.c.b16 %v587, %v579
    %v772 = vpack.c.b16 %v588, %v580
    %v773 = vpack.c.b16 %v589, %v581
    %v774 = vpack.c.b16 %v590, %v582
    %v775 = vpack.c.b16 %v591, %v583
    %v776 = vpack.c.b16 %v592, %v584
    %v777 = vpack.c.b16 %v593, %v585
    %v778 = vpack.c.b16 %v594, %v586
    %v779 = vpack.c.b16 %v603, %v595
    %v780 = vpack.c.b16 %v604, %v596
    %v781 = vpack.c.b16 %v605, %v597
    %v782 = vpack.c.b16 %v606, %v598
    %v783 = vpack.c.b16 %v607, %v599
    %v784 = vpack.c.b16 %v608, %v600
    %v785 = vpack.c.b16 %v609, %v601
    %v786 = vpack.c.b16 %v610, %v602
    %v787 = vpack.c.b16 %v619, %v611
    %v788 = vpack.c.b16 %v620, %v612
    %v789 = vpack.c.b16 %v621, %v613
    %v790 = vpack.c.b16 %v622, %v614
    %v791 = vpack.c.b16 %v623, %v615
    %v792 = vpack.c.b16 %v624, %v616
    %v793 = vpack.c.b16 %v625, %v617
    %v794 = vpack.c.b16 %v626, %v618
    %v795 = vpack.c.b16 %v635, %v627
    %v796 = vpack.c.b16 %v636, %v628
    %v797 = vpack.c.b16 %v637, %v629
    %v798 = vpack.c.b16 %v638, %v630
    %v799 = vpack.c.b16 %v639, %v631
    %v800 = vpack.c.b16 %v640, %v632
    %v801 = vpack.c.b16 %v641, %v633
    %v802 = vpack.c.b16 %v642, %v634
    %v803 = vpack.c.b16 %v651, %v643
    %v804 = vpack.c.b16 %v652, %v644
    %v805 = vpack.c.b16 %v653, %v645
    %v806 = vpack.c.b16 %v654, %v646
    %v807 = vpack.c.b16 %v655, %v647
    %v808 = vpack.c.b16 %v656, %v648
    %v809 = vpack.c.b16 %v657, %v649
    %v810 = vpack.c.b16 %v658, %v650
    %v811 = vpack.c.b16 %v667, %v659
    %v812 = vpack.c.b16 %v668, %v660
    %v813 = vpack.c.b16 %v669, %v661
    %v814 = vpack.c.b16 %v670, %v662
    %v815 = vpack.c.b16 %v671, %v663
    %v816 = vpack.c.b16 %v672, %v664
    %v817 = vpack.c.b16 %v673, %v665
    %v818 = vpack.c.b16 %v674, %v666
    %v819 = vpack.c.b16 %v683, %v675
    %v820 = vpack.c.b16 %v684, %v676
    %v821 = vpack.c.b16 %v685, %v677
    %v822 = vpack.c.b16 %v686, %v678
    %v823 = vpack.c.b16 %v687, %v679
    %v824 = vpack.c.b16 %v688, %v680
    %v825 = vpack.c.b16 %v689, %v681
    %v826 = vpack.c.b16 %v690, %v682
    %v827 = vpack.c.b16 %v699, %v691
    %v828 = vpack.c.b16 %v700, %v692
    %v829 = vpack.c.b16 %v701, %v693
    %v830 = vpack.c.b16 %v702, %v694
    %v831 = vpack.c.b16 %v703, %v695
    %v832 = vpack.c.b16 %v704, %v696
    %v833 = vpack.c.b16 %v705, %v697
    %v834 = vpack.c.b16 %v706, %v698
    %963 = vmatprep.subr.bf16.mxu0 %v708
    %964 = vmatpush1.bf16.msra.mxu0 %v707
    %965 = vmatprep.subr.bf16.mxu0 %v716
    %966 = vmatpush1.bf16.msra.mxu0 %v715
    %967 = vmatprep.subr.bf16.mxu0 %v724
    %968 = vmatpush1.bf16.msra.mxu0 %v723
    %969 = vmatprep.subr.bf16.mxu0 %v732
    %970 = vmatpush1.bf16.msra.mxu0 %v731
    %971 = vmatprep.subr.bf16.mxu0 %v740
    %972 = vmatpush1.bf16.msra.mxu0 %v739
    %973 = vmatprep.subr.bf16.mxu0 %v748
    %974 = vmatpush1.bf16.msra.mxu0 %v747
    %975 = vmatprep.subr.bf16.mxu0 %v756
    %976 = vmatpush1.bf16.msra.mxu0 %v755
    %977 = vmatprep.subr.bf16.mxu0 %v764
    %978 = vmatpush1.bf16.msra.mxu0 %v763
    %979 = vmatprep.subr.bf16.mxu0 %v772
    %980 = vmatpush1.bf16.msra.mxu0 %v771
    %981 = vmatprep.subr.bf16.mxu0 %v780
    %982 = vmatpush1.bf16.msra.mxu0 %v779
    %983 = vmatprep.subr.bf16.mxu0 %v788
    %984 = vmatpush1.bf16.msra.mxu0 %v787
    %985 = vmatprep.subr.bf16.mxu0 %v796
    %986 = vmatpush1.bf16.msra.mxu0 %v795
    %987 = vmatprep.subr.bf16.mxu0 %v804
    %988 = vmatpush1.bf16.msra.mxu0 %v803
    %989 = vmatprep.subr.bf16.mxu0 %v812
    %990 = vmatpush1.bf16.msra.mxu0 %v811
    %991 = vmatprep.subr.bf16.mxu0 %v820
    %992 = vmatpush1.bf16.msra.mxu0 %v819
    %993 = vmatprep.subr.bf16.mxu0 %v828
    %994 = vmatpush1.bf16.msra.mxu0 %v827
    %995 = vmatprep.mubr.bf16.mxu0 %v194
    %996 = vmatmul.mubr.bf16.gmra.mrb[0].mxu0 %v193
    %v997 = vpop.f32.mrb[0].mxu0
    %v998 = vadd.f32 0.0, %v997
    %v999 = vpop.f32.mrb[0].mxu0
    %v1000 = vadd.f32 0.0, %v999
    %v1001 = vpop.f32.mrb[0].mxu0
    %v1002 = vpop.f32.mrb[0].mxu0
    %1003 = vdwg.mxu0
    %1004 = vmatprep.subr.bf16.mxu0 %v710
    %1005 = vmatpush1.bf16.msra.mxu0 %v709
    %1006 = vmatprep.subr.bf16.mxu0 %v718
    %1007 = vmatpush1.bf16.msra.mxu0 %v717
    %1008 = vmatprep.subr.bf16.mxu0 %v726
    %1009 = vmatpush1.bf16.msra.mxu0 %v725
    %1010 = vmatprep.subr.bf16.mxu0 %v734
    %1011 = vmatpush1.bf16.msra.mxu0 %v733
    %1012 = vmatprep.subr.bf16.mxu0 %v742
    %1013 = vmatpush1.bf16.msra.mxu0 %v741
    %1014 = vmatprep.subr.bf16.mxu0 %v750
    %1015 = vmatpush1.bf16.msra.mxu0 %v749
    %1016 = vmatprep.subr.bf16.mxu0 %v758
    %1017 = vmatpush1.bf16.msra.mxu0 %v757
    %1018 = vmatprep.subr.bf16.mxu0 %v766
    %1019 = vmatpush1.bf16.msra.mxu0 %v765
    %1020 = vmatprep.subr.bf16.mxu0 %v774
    %1021 = vmatpush1.bf16.msra.mxu0 %v773
    %1022 = vmatprep.subr.bf16.mxu0 %v782
    %1023 = vmatpush1.bf16.msra.mxu0 %v781
    %1024 = vmatprep.subr.bf16.mxu0 %v790
    %1025 = vmatpush1.bf16.msra.mxu0 %v789
    %1026 = vmatprep.subr.bf16.mxu0 %v798
    %1027 = vmatpush1.bf16.msra.mxu0 %v797
    %1028 = vmatprep.subr.bf16.mxu0 %v806
    %1029 = vmatpush1.bf16.msra.mxu0 %v805
    %1030 = vmatprep.subr.bf16.mxu0 %v814
    %1031 = vmatpush1.bf16.msra.mxu0 %v813
    %1032 = vmatprep.subr.bf16.mxu0 %v822
    %1033 = vmatpush1.bf16.msra.mxu0 %v821
    %1034 = vmatprep.subr.bf16.mxu0 %v830
    %1035 = vmatpush1.bf16.msra.mxu0 %v829
    %1036 = vmatprep.mubr.bf16.mxu0 %v194
    %1037 = vmatmul.mubr.bf16.gmra.mrb[0].mxu0 %v193
    %v1038 = vpop.f32.mrb[0].mxu0
    %v1039 = vadd.f32 0.0, %v1038
    %v1040 = vpop.f32.mrb[0].mxu0
    %v1041 = vadd.f32 0.0, %v1040
    %v1042 = vpop.f32.mrb[0].mxu0
    %v1043 = vpop.f32.mrb[0].mxu0
    %1044 = vdwg.mxu0
    %1045 = vmatprep.subr.bf16.mxu0 %v712
    %1046 = vmatpush1.bf16.msra.mxu0 %v711
    %1047 = vmatprep.subr.bf16.mxu0 %v720
    %1048 = vmatpush1.bf16.msra.mxu0 %v719
    %1049 = vmatprep.subr.bf16.mxu0 %v728
    %1050 = vmatpush1.bf16.msra.mxu0 %v727
    %1051 = vmatprep.subr.bf16.mxu0 %v736
    %1052 = vmatpush1.bf16.msra.mxu0 %v735
    %1053 = vmatprep.subr.bf16.mxu0 %v744
    %1054 = vmatpush1.bf16.msra.mxu0 %v743
    %1055 = vmatprep.subr.bf16.mxu0 %v752
    %1056 = vmatpush1.bf16.msra.mxu0 %v751
    %1057 = vmatprep.subr.bf16.mxu0 %v760
    %1058 = vmatpush1.bf16.msra.mxu0 %v759
    %1059 = vmatprep.subr.bf16.mxu0 %v768
    %1060 = vmatpush1.bf16.msra.mxu0 %v767
    %1061 = vmatprep.subr.bf16.mxu0 %v776
    %1062 = vmatpush1.bf16.msra.mxu0 %v775
    %1063 = vmatprep.subr.bf16.mxu0 %v784
    %1064 = vmatpush1.bf16.msra.mxu0 %v783
    %1065 = vmatprep.subr.bf16.mxu0 %v792
    %1066 = vmatpush1.bf16.msra.mxu0 %v791
    %1067 = vmatprep.subr.bf16.mxu0 %v800
    %1068 = vmatpush1.bf16.msra.mxu0 %v799
    %1069 = vmatprep.subr.bf16.mxu0 %v808
    %1070 = vmatpush1.bf16.msra.mxu0 %v807
    %1071 = vmatprep.subr.bf16.mxu0 %v816
    %1072 = vmatpush1.bf16.msra.mxu0 %v815
    %1073 = vmatprep.subr.bf16.mxu0 %v824
    %1074 = vmatpush1.bf16.msra.mxu0 %v823
    %1075 = vmatprep.subr.bf16.mxu0 %v832
    %1076 = vmatpush1.bf16.msra.mxu0 %v831
    %1077 = vmatprep.mubr.bf16.mxu0 %v194
    %1078 = vmatmul.mubr.bf16.gmra.mrb[0].mxu0 %v193
    %v1079 = vpop.f32.mrb[0].mxu0
    %v1080 = vadd.f32 0.0, %v1079
    %v1081 = vpop.f32.mrb[0].mxu0
    %v1082 = vadd.f32 0.0, %v1081
    %v1083 = vpop.f32.mrb[0].mxu0
    %v1084 = vpop.f32.mrb[0].mxu0
    %1085 = vdwg.mxu0
    %1086 = vmatprep.subr.bf16.mxu0 %v714
    %1087 = vmatpush1.bf16.msra.mxu0 %v713
    %1088 = vmatprep.subr.bf16.mxu0 %v722
    %1089 = vmatpush1.bf16.msra.mxu0 %v721
    %1090 = vmatprep.subr.bf16.mxu0 %v730
    %1091 = vmatpush1.bf16.msra.mxu0 %v729
    %1092 = vmatprep.subr.bf16.mxu0 %v738
    %1093 = vmatpush1.bf16.msra.mxu0 %v737
    %1094 = vmatprep.subr.bf16.mxu0 %v746
    %1095 = vmatpush1.bf16.msra.mxu0 %v745
    %1096 = vmatprep.subr.bf16.mxu0 %v754
    %1097 = vmatpush1.bf16.msra.mxu0 %v753
    %1098 = vmatprep.subr.bf16.mxu0 %v762
    %1099 = vmatpush1.bf16.msra.mxu0 %v761
    %1100 = vmatprep.subr.bf16.mxu0 %v770
    %1101 = vmatpush1.bf16.msra.mxu0 %v769
    %1102 = vmatprep.subr.bf16.mxu0 %v778
    %1103 = vmatpush1.bf16.msra.mxu0 %v777
    %1104 = vmatprep.subr.bf16.mxu0 %v786
    %1105 = vmatpush1.bf16.msra.mxu0 %v785
    %1106 = vmatprep.subr.bf16.mxu0 %v794
    %1107 = vmatpush1.bf16.msra.mxu0 %v793
    %1108 = vmatprep.subr.bf16.mxu0 %v802
    %1109 = vmatpush1.bf16.msra.mxu0 %v801
    %1110 = vmatprep.subr.bf16.mxu0 %v810
    %1111 = vmatpush1.bf16.msra.mxu0 %v809
    %1112 = vmatprep.subr.bf16.mxu0 %v818
    %1113 = vmatpush1.bf16.msra.mxu0 %v817
    %1114 = vmatprep.subr.bf16.mxu0 %v826
    %1115 = vmatpush1.bf16.msra.mxu0 %v825
    %1116 = vmatprep.subr.bf16.mxu0 %v834
    %1117 = vmatpush1.bf16.msra.mxu0 %v833
    %1118 = vmatprep.mubr.bf16.mxu0 %v194
    %1119 = vmatmul.mubr.bf16.gmra.mrb[0].mxu0 %v193
    %v1120 = vpop.f32.mrb[0].mxu0
    %v1121 = vadd.f32 0.0, %v1120
    %v1122 = vpop.f32.mrb[0].mxu0
    %v1123 = vadd.f32 0.0, %v1122
    %v1124 = vpop.f32.mrb[0].mxu0
    %v1125 = vpop.f32.mrb[0].mxu0
    %1126 = vdwg.mxu0
    %1127 = vmatprep.subr.bf16.mxu0 %v708
    %1128 = vmatpush1.bf16.msra.mxu0 %v707
    %1129 = vmatprep.subr.bf16.mxu0 %v716
    %1130 = vmatpush1.bf16.msra.mxu0 %v715
    %1131 = vmatprep.subr.bf16.mxu0 %v724
    %1132 = vmatpush1.bf16.msra.mxu0 %v723
    %1133 = vmatprep.subr.bf16.mxu0 %v732
    %1134 = vmatpush1.bf16.msra.mxu0 %v731
    %1135 = vmatprep.subr.bf16.mxu0 %v740
    %1136 = vmatpush1.bf16.msra.mxu0 %v739
    %1137 = vmatprep.subr.bf16.mxu0 %v748
    %1138 = vmatpush1.bf16.msra.mxu0 %v747
    %1139 = vmatprep.subr.bf16.mxu0 %v756
    %1140 = vmatpush1.bf16.msra.mxu0 %v755
    %1141 = vmatprep.subr.bf16.mxu0 %v764
    %1142 = vmatpush1.bf16.msra.mxu0 %v763
    %1143 = vmatprep.subr.bf16.mxu0 %v772
    %1144 = vmatpush1.bf16.msra.mxu0 %v771
    %1145 = vmatprep.subr.bf16.mxu0 %v780
    %1146 = vmatpush1.bf16.msra.mxu0 %v779
    %1147 = vmatprep.subr.bf16.mxu0 %v788
    %1148 = vmatpush1.bf16.msra.mxu0 %v787
    %1149 = vmatprep.subr.bf16.mxu0 %v796
    %1150 = vmatpush1.bf16.msra.mxu0 %v795
    %1151 = vmatprep.subr.bf16.mxu0 %v804
    %1152 = vmatpush1.bf16.msra.mxu0 %v803
    %1153 = vmatprep.subr.bf16.mxu0 %v812
    %1154 = vmatpush1.bf16.msra.mxu0 %v811
    %1155 = vmatprep.subr.bf16.mxu0 %v820
    %1156 = vmatpush1.bf16.msra.mxu0 %v819
    %1157 = vmatprep.subr.bf16.mxu0 %v828
    %1158 = vmatpush1.bf16.msra.mxu0 %v827
    %1159 = vmatprep.mubr.bf16.mxu0 %v188
    %1160 = vmatmul.mubr.bf16.gmra.mrb[0].mxu0 %v187
    %v1161 = vpop.f32.mrb[0].mxu0
    %v1162 = vadd.f32 %v998, %v1161
    %v1163 = vpop.f32.mrb[0].mxu0
    %v1164 = vadd.f32 %v1000, %v1163
    %v1165 = vpop.f32.mrb[0].mxu0
    %v1166 = vpop.f32.mrb[0].mxu0
    %1167 = vdwg.mxu0
    %1168 = vmatprep.subr.bf16.mxu0 %v710
    %1169 = vmatpush1.bf16.msra.mxu0 %v709
    %1170 = vmatprep.subr.bf16.mxu0 %v718
    %1171 = vmatpush1.bf16.msra.mxu0 %v717
    %1172 = vmatprep.subr.bf16.mxu0 %v726
    %1173 = vmatpush1.bf16.msra.mxu0 %v725
    %1174 = vmatprep.subr.bf16.mxu0 %v734
    %1175 = vmatpush1.bf16.msra.mxu0 %v733
    %1176 = vmatprep.subr.bf16.mxu0 %v742
    %1177 = vmatpush1.bf16.msra.mxu0 %v741
    %1178 = vmatprep.subr.bf16.mxu0 %v750
    %1179 = vmatpush1.bf16.msra.mxu0 %v749
    %1180 = vmatprep.subr.bf16.mxu0 %v758
    %1181 = vmatpush1.bf16.msra.mxu0 %v757
    %1182 = vmatprep.subr.bf16.mxu0 %v766
    %1183 = vmatpush1.bf16.msra.mxu0 %v765
    %1184 = vmatprep.subr.bf16.mxu0 %v774
    %1185 = vmatpush1.bf16.msra.mxu0 %v773
    %1186 = vmatprep.subr.bf16.mxu0 %v782
    %1187 = vmatpush1.bf16.msra.mxu0 %v781
    %1188 = vmatprep.subr.bf16.mxu0 %v790
    %1189 = vmatpush1.bf16.msra.mxu0 %v789
    %1190 = vmatprep.subr.bf16.mxu0 %v798
    %1191 = vmatpush1.bf16.msra.mxu0 %v797
    %1192 = vmatprep.subr.bf16.mxu0 %v806
    %1193 = vmatpush1.bf16.msra.mxu0 %v805
    %1194 = vmatprep.subr.bf16.mxu0 %v814
    %1195 = vmatpush1.bf16.msra.mxu0 %v813
    %1196 = vmatprep.subr.bf16.mxu0 %v822
    %1197 = vmatpush1.bf16.msra.mxu0 %v821
    %1198 = vmatprep.subr.bf16.mxu0 %v830
    %1199 = vmatpush1.bf16.msra.mxu0 %v829
    %1200 = vmatprep.mubr.bf16.mxu0 %v188
    %1201 = vmatmul.mubr.bf16.gmra.mrb[0].mxu0 %v187
    %v1202 = vpop.f32.mrb[0].mxu0
    %v1203 = vadd.f32 %v1039, %v1202
    %v1204 = vpop.f32.mrb[0].mxu0
    %v1205 = vadd.f32 %v1041, %v1204
    %v1206 = vpop.f32.mrb[0].mxu0
    %v1207 = vpop.f32.mrb[0].mxu0
    %1208 = vdwg.mxu0
    %1209 = vmatprep.subr.bf16.mxu0 %v712
    %1210 = vmatpush1.bf16.msra.mxu0 %v711
    %1211 = vmatprep.subr.bf16.mxu0 %v720
    %1212 = vmatpush1.bf16.msra.mxu0 %v719
    %1213 = vmatprep.subr.bf16.mxu0 %v728
    %1214 = vmatpush1.bf16.msra.mxu0 %v727
    %1215 = vmatprep.subr.bf16.mxu0 %v736
    %1216 = vmatpush1.bf16.msra.mxu0 %v735
    %1217 = vmatprep.subr.bf16.mxu0 %v744
    %1218 = vmatpush1.bf16.msra.mxu0 %v743
    %1219 = vmatprep.subr.bf16.mxu0 %v752
    %1220 = vmatpush1.bf16.msra.mxu0 %v751
    %1221 = vmatprep.subr.bf16.mxu0 %v760
    %1222 = vmatpush1.bf16.msra.mxu0 %v759
    %1223 = vmatprep.subr.bf16.mxu0 %v768
    %1224 = vmatpush1.bf16.msra.mxu0 %v767
    %1225 = vmatprep.subr.bf16.mxu0 %v776
    %1226 = vmatpush1.bf16.msra.mxu0 %v775
    %1227 = vmatprep.subr.bf16.mxu0 %v784
    %1228 = vmatpush1.bf16.msra.mxu0 %v783
    %1229 = vmatprep.subr.bf16.mxu0 %v792
    %1230 = vmatpush1.bf16.msra.mxu0 %v791
    %1231 = vmatprep.subr.bf16.mxu0 %v800
    %1232 = vmatpush1.bf16.msra.mxu0 %v799
    %1233 = vmatprep.subr.bf16.mxu0 %v808
    %1234 = vmatpush1.bf16.msra.mxu0 %v807
    %1235 = vmatprep.subr.bf16.mxu0 %v816
    %1236 = vmatpush1.bf16.msra.mxu0 %v815
    %1237 = vmatprep.subr.bf16.mxu0 %v824
    %1238 = vmatpush1.bf16.msra.mxu0 %v823
    %1239 = vmatprep.subr.bf16.mxu0 %v832
    %1240 = vmatpush1.bf16.msra.mxu0 %v831
    %1241 = vmatprep.mubr.bf16.mxu0 %v188
    %1242 = vmatmul.mubr.bf16.gmra.mrb[0].mxu0 %v187
    %v1243 = vpop.f32.mrb[0].mxu0
    %v1244 = vadd.f32 %v1080, %v1243
    %v1245 = vpop.f32.mrb[0].mxu0
    %v1246 = vadd.f32 %v1082, %v1245
    %v1247 = vpop.f32.mrb[0].mxu0
    %v1248 = vpop.f32.mrb[0].mxu0
    %1249 = vdwg.mxu0
    %1250 = vmatprep.subr.bf16.mxu0 %v714
    %1251 = vmatpush1.bf16.msra.mxu0 %v713
    %1252 = vmatprep.subr.bf16.mxu0 %v722
    %1253 = vmatpush1.bf16.msra.mxu0 %v721
    %1254 = vmatprep.subr.bf16.mxu0 %v730
    %1255 = vmatpush1.bf16.msra.mxu0 %v729
    %1256 = vmatprep.subr.bf16.mxu0 %v738
    %1257 = vmatpush1.bf16.msra.mxu0 %v737
    %1258 = vmatprep.subr.bf16.mxu0 %v746
    %1259 = vmatpush1.bf16.msra.mxu0 %v745
    %1260 = vmatprep.subr.bf16.mxu0 %v754
    %1261 = vmatpush1.bf16.msra.mxu0 %v753
    %1262 = vmatprep.subr.bf16.mxu0 %v762
    %1263 = vmatpush1.bf16.msra.mxu0 %v761
    %1264 = vmatprep.subr.bf16.mxu0 %v770
    %1265 = vmatpush1.bf16.msra.mxu0 %v769
    %1266 = vmatprep.subr.bf16.mxu0 %v778
    %1267 = vmatpush1.bf16.msra.mxu0 %v777
    %1268 = vmatprep.subr.bf16.mxu0 %v786
    %1269 = vmatpush1.bf16.msra.mxu0 %v785
    %1270 = vmatprep.subr.bf16.mxu0 %v794
    %1271 = vmatpush1.bf16.msra.mxu0 %v793
    %1272 = vmatprep.subr.bf16.mxu0 %v802
    %1273 = vmatpush1.bf16.msra.mxu0 %v801
    %1274 = vmatprep.subr.bf16.mxu0 %v810
    %1275 = vmatpush1.bf16.msra.mxu0 %v809
    %1276 = vmatprep.subr.bf16.mxu0 %v818
    %1277 = vmatpush1.bf16.msra.mxu0 %v817
    %1278 = vmatprep.subr.bf16.mxu0 %v826
    %1279 = vmatpush1.bf16.msra.mxu0 %v825
    %1280 = vmatprep.subr.bf16.mxu0 %v834
    %1281 = vmatpush1.bf16.msra.mxu0 %v833
    %1282 = vmatprep.mubr.bf16.mxu0 %v188
    %1283 = vmatmul.mubr.bf16.gmra.mrb[0].mxu0 %v187
    %v1284 = vpop.f32.mrb[0].mxu0
    %v1285 = vadd.f32 %v1121, %v1284
    %v1286 = vpop.f32.mrb[0].mxu0
    %v1287 = vadd.f32 %v1123, %v1286
    %v1288 = vpop.f32.mrb[0].mxu0
    %v1289 = vpop.f32.mrb[0].mxu0
    %1290 = vdwg.mxu0
    %v1291 = vld [vmem:[#allocation4] sm:$0xff]
    %v1292 = vld [vmem:[#allocation4 + $0x8] sm:$0xff]
    %v1293 = vld [vmem:[#allocation4 + $0x10] sm:$0xff]
    %v1294 = vld [vmem:[#allocation4 + $0x18] sm:$0xff]
    %v1295 = vld [vmem:[#allocation4 + $0x20] sm:$0xff]
    %v1296 = vld [vmem:[#allocation4 + $0x28] sm:$0xff]
    %v1297 = vld [vmem:[#allocation4 + $0x30] sm:$0xff]
    %v1298 = vld [vmem:[#allocation4 + $0x38] sm:$0xff]
    %v1299 = vld [vmem:[#allocation4 + $0x40] sm:$0xff]
    %v1300 = vld [vmem:[#allocation4 + $0x48] sm:$0xff]
    %v1301 = vld [vmem:[#allocation4 + $0x50] sm:$0xff]
    %v1302 = vld [vmem:[#allocation4 + $0x58] sm:$0xff]
    %v1303 = vld [vmem:[#allocation4 + $0x60] sm:$0xff]
    %v1304 = vld [vmem:[#allocation4 + $0x68] sm:$0xff]
    %v1305 = vld [vmem:[#allocation4 + $0x70] sm:$0xff]
    %v1306 = vld [vmem:[#allocation4 + $0x78] sm:$0xff]
    %v1307 = vld [vmem:[#allocation4 + $0x80] sm:$0xff]
    %v1308 = vld [vmem:[#allocation4 + $0x88] sm:$0xff]
    %v1309 = vld [vmem:[#allocation4 + $0x90] sm:$0xff]
    %v1310 = vld [vmem:[#allocation4 + $0x98] sm:$0xff]
    %v1311 = vld [vmem:[#allocation4 + $0xa0] sm:$0xff]
    %v1312 = vld [vmem:[#allocation4 + $0xa8] sm:$0xff]
    %v1313 = vld [vmem:[#allocation4 + $0xb0] sm:$0xff]
    %v1314 = vld [vmem:[#allocation4 + $0xb8] sm:$0xff]
    %v1315 = vld [vmem:[#allocation4 + $0xc0] sm:$0xff]
    %v1316 = vld [vmem:[#allocation4 + $0xc8] sm:$0xff]
    %v1317 = vld [vmem:[#allocation4 + $0xd0] sm:$0xff]
    %v1318 = vld [vmem:[#allocation4 + $0xd8] sm:$0xff]
    %v1319 = vld [vmem:[#allocation4 + $0xe0] sm:$0xff]
    %v1320 = vld [vmem:[#allocation4 + $0xe8] sm:$0xff]
    %v1321 = vld [vmem:[#allocation4 + $0xf0] sm:$0xff]
    %v1322 = vld [vmem:[#allocation4 + $0xf8] sm:$0xff]
    %v1323 = vld [vmem:[#allocation4 + $0x100] sm:$0xff]
    %v1324 = vld [vmem:[#allocation4 + $0x108] sm:$0xff]
    %v1325 = vld [vmem:[#allocation4 + $0x110] sm:$0xff]
    %v1326 = vld [vmem:[#allocation4 + $0x118] sm:$0xff]
    %v1327 = vld [vmem:[#allocation4 + $0x120] sm:$0xff]
    %v1328 = vld [vmem:[#allocation4 + $0x128] sm:$0xff]
    %v1329 = vld [vmem:[#allocation4 + $0x130] sm:$0xff]
    %v1330 = vld [vmem:[#allocation4 + $0x138] sm:$0xff]
    %v1331 = vld [vmem:[#allocation4 + $0x140] sm:$0xff]
    %v1332 = vld [vmem:[#allocation4 + $0x148] sm:$0xff]
    %v1333 = vld [vmem:[#allocation4 + $0x150] sm:$0xff]
    %v1334 = vld [vmem:[#allocation4 + $0x158] sm:$0xff]
    %v1335 = vld [vmem:[#allocation4 + $0x160] sm:$0xff]
    %v1336 = vld [vmem:[#allocation4 + $0x168] sm:$0xff]
    %v1337 = vld [vmem:[#allocation4 + $0x170] sm:$0xff]
    %v1338 = vld [vmem:[#allocation4 + $0x178] sm:$0xff]
    %v1339 = vld [vmem:[#allocation4 + $0x180] sm:$0xff]
    %v1340 = vld [vmem:[#allocation4 + $0x188] sm:$0xff]
    %v1341 = vld [vmem:[#allocation4 + $0x190] sm:$0xff]
    %v1342 = vld [vmem:[#allocation4 + $0x198] sm:$0xff]
    %v1343 = vld [vmem:[#allocation4 + $0x1a0] sm:$0xff]
    %v1344 = vld [vmem:[#allocation4 + $0x1a8] sm:$0xff]
    %v1345 = vld [vmem:[#allocation4 + $0x1b0] sm:$0xff]
    %v1346 = vld [vmem:[#allocation4 + $0x1b8] sm:$0xff]
    %v1347 = vld [vmem:[#allocation4 + $0x1c0] sm:$0xff]
    %v1348 = vld [vmem:[#allocation4 + $0x1c8] sm:$0xff]
    %v1349 = vld [vmem:[#allocation4 + $0x1d0] sm:$0xff]
    %v1350 = vld [vmem:[#allocation4 + $0x1d8] sm:$0xff]
    %v1351 = vld [vmem:[#allocation4 + $0x1e0] sm:$0xff]
    %v1352 = vld [vmem:[#allocation4 + $0x1e8] sm:$0xff]
    %v1353 = vld [vmem:[#allocation4 + $0x1f0] sm:$0xff]
    %v1354 = vld [vmem:[#allocation4 + $0x1f8] sm:$0xff]
    %v1355 = vld [vmem:[#allocation4 + $0x200] sm:$0xff]
    %v1356 = vld [vmem:[#allocation4 + $0x208] sm:$0xff]
    %v1357 = vld [vmem:[#allocation4 + $0x210] sm:$0xff]
    %v1358 = vld [vmem:[#allocation4 + $0x218] sm:$0xff]
    %v1359 = vld [vmem:[#allocation4 + $0x220] sm:$0xff]
    %v1360 = vld [vmem:[#allocation4 + $0x228] sm:$0xff]
    %v1361 = vld [vmem:[#allocation4 + $0x230] sm:$0xff]
    %v1362 = vld [vmem:[#allocation4 + $0x238] sm:$0xff]
    %v1363 = vld [vmem:[#allocation4 + $0x240] sm:$0xff]
    %v1364 = vld [vmem:[#allocation4 + $0x248] sm:$0xff]
    %v1365 = vld [vmem:[#allocation4 + $0x250] sm:$0xff]
    %v1366 = vld [vmem:[#allocation4 + $0x258] sm:$0xff]
    %v1367 = vld [vmem:[#allocation4 + $0x260] sm:$0xff]
    %v1368 = vld [vmem:[#allocation4 + $0x268] sm:$0xff]
    %v1369 = vld [vmem:[#allocation4 + $0x270] sm:$0xff]
    %v1370 = vld [vmem:[#allocation4 + $0x278] sm:$0xff]
    %v1371 = vld [vmem:[#allocation4 + $0x280] sm:$0xff]
    %v1372 = vld [vmem:[#allocation4 + $0x288] sm:$0xff]
    %v1373 = vld [vmem:[#allocation4 + $0x290] sm:$0xff]
    %v1374 = vld [vmem:[#allocation4 + $0x298] sm:$0xff]
    %v1375 = vld [vmem:[#allocation4 + $0x2a0] sm:$0xff]
    %v1376 = vld [vmem:[#allocation4 + $0x2a8] sm:$0xff]
    %v1377 = vld [vmem:[#allocation4 + $0x2b0] sm:$0xff]
    %v1378 = vld [vmem:[#allocation4 + $0x2b8] sm:$0xff]
    %v1379 = vld [vmem:[#allocation4 + $0x2c0] sm:$0xff]
    %v1380 = vld [vmem:[#allocation4 + $0x2c8] sm:$0xff]
    %v1381 = vld [vmem:[#allocation4 + $0x2d0] sm:$0xff]
    %v1382 = vld [vmem:[#allocation4 + $0x2d8] sm:$0xff]
    %v1383 = vld [vmem:[#allocation4 + $0x2e0] sm:$0xff]
    %v1384 = vld [vmem:[#allocation4 + $0x2e8] sm:$0xff]
    %v1385 = vld [vmem:[#allocation4 + $0x2f0] sm:$0xff]
    %v1386 = vld [vmem:[#allocation4 + $0x2f8] sm:$0xff]
    %v1387 = vld [vmem:[#allocation4 + $0x300] sm:$0xff]
    %v1388 = vld [vmem:[#allocation4 + $0x308] sm:$0xff]
    %v1389 = vld [vmem:[#allocation4 + $0x310] sm:$0xff]
    %v1390 = vld [vmem:[#allocation4 + $0x318] sm:$0xff]
    %v1391 = vld [vmem:[#allocation4 + $0x320] sm:$0xff]
    %v1392 = vld [vmem:[#allocation4 + $0x328] sm:$0xff]
    %v1393 = vld [vmem:[#allocation4 + $0x330] sm:$0xff]
    %v1394 = vld [vmem:[#allocation4 + $0x338] sm:$0xff]
    %v1395 = vld [vmem:[#allocation4 + $0x340] sm:$0xff]
    %v1396 = vld [vmem:[#allocation4 + $0x348] sm:$0xff]
    %v1397 = vld [vmem:[#allocation4 + $0x350] sm:$0xff]
    %v1398 = vld [vmem:[#allocation4 + $0x358] sm:$0xff]
    %v1399 = vld [vmem:[#allocation4 + $0x360] sm:$0xff]
    %v1400 = vld [vmem:[#allocation4 + $0x368] sm:$0xff]
    %v1401 = vld [vmem:[#allocation4 + $0x370] sm:$0xff]
    %v1402 = vld [vmem:[#allocation4 + $0x378] sm:$0xff]
    %v1403 = vld [vmem:[#allocation4 + $0x380] sm:$0xff]
    %v1404 = vld [vmem:[#allocation4 + $0x388] sm:$0xff]
    %v1405 = vld [vmem:[#allocation4 + $0x390] sm:$0xff]
    %v1406 = vld [vmem:[#allocation4 + $0x398] sm:$0xff]
    %v1407 = vld [vmem:[#allocation4 + $0x3a0] sm:$0xff]
    %v1408 = vld [vmem:[#allocation4 + $0x3a8] sm:$0xff]
    %v1409 = vld [vmem:[#allocation4 + $0x3b0] sm:$0xff]
    %v1410 = vld [vmem:[#allocation4 + $0x3b8] sm:$0xff]
    %v1411 = vld [vmem:[#allocation4 + $0x3c0] sm:$0xff]
    %v1412 = vld [vmem:[#allocation4 + $0x3c8] sm:$0xff]
    %v1413 = vld [vmem:[#allocation4 + $0x3d0] sm:$0xff]
    %v1414 = vld [vmem:[#allocation4 + $0x3d8] sm:$0xff]
    %v1415 = vld [vmem:[#allocation4 + $0x3e0] sm:$0xff]
    %v1416 = vld [vmem:[#allocation4 + $0x3e8] sm:$0xff]
    %v1417 = vld [vmem:[#allocation4 + $0x3f0] sm:$0xff]
    %v1418 = vld [vmem:[#allocation4 + $0x3f8] sm:$0xff]
    %v1547 = vunpack.c.l.b16 %v1291
    %v1548 = vunpack.c.h.b16 %v1291
    %v1549 = vunpack.c.l.b16 %v1292
    %v1550 = vunpack.c.h.b16 %v1292
    %v1551 = vunpack.c.l.b16 %v1293
    %v1552 = vunpack.c.h.b16 %v1293
    %v1553 = vunpack.c.l.b16 %v1294
    %v1554 = vunpack.c.h.b16 %v1294
    %v1555 = vunpack.c.l.b16 %v1295
    %v1556 = vunpack.c.h.b16 %v1295
    %v1557 = vunpack.c.l.b16 %v1296
    %v1558 = vunpack.c.h.b16 %v1296
    %v1559 = vunpack.c.l.b16 %v1297
    %v1560 = vunpack.c.h.b16 %v1297
    %v1561 = vunpack.c.l.b16 %v1298
    %v1562 = vunpack.c.h.b16 %v1298
    %v1563 = vunpack.c.l.b16 %v1299
    %v1564 = vunpack.c.h.b16 %v1299
    %v1565 = vunpack.c.l.b16 %v1300
    %v1566 = vunpack.c.h.b16 %v1300
    %v1567 = vunpack.c.l.b16 %v1301
    %v1568 = vunpack.c.h.b16 %v1301
    %v1569 = vunpack.c.l.b16 %v1302
    %v1570 = vunpack.c.h.b16 %v1302
    %v1571 = vunpack.c.l.b16 %v1303
    %v1572 = vunpack.c.h.b16 %v1303
    %v1573 = vunpack.c.l.b16 %v1304
    %v1574 = vunpack.c.h.b16 %v1304
    %v1575 = vunpack.c.l.b16 %v1305
    %v1576 = vunpack.c.h.b16 %v1305
    %v1577 = vunpack.c.l.b16 %v1306
    %v1578 = vunpack.c.h.b16 %v1306
    %v1579 = vunpack.c.l.b16 %v1307
    %v1580 = vunpack.c.h.b16 %v1307
    %v1581 = vunpack.c.l.b16 %v1308
    %v1582 = vunpack.c.h.b16 %v1308
    %v1583 = vunpack.c.l.b16 %v1309
    %v1584 = vunpack.c.h.b16 %v1309
    %v1585 = vunpack.c.l.b16 %v1310
    %v1586 = vunpack.c.h.b16 %v1310
    %v1587 = vunpack.c.l.b16 %v1311
    %v1588 = vunpack.c.h.b16 %v1311
    %v1589 = vunpack.c.l.b16 %v1312
    %v1590 = vunpack.c.h.b16 %v1312
    %v1591 = vunpack.c.l.b16 %v1313
    %v1592 = vunpack.c.h.b16 %v1313
    %v1593 = vunpack.c.l.b16 %v1314
    %v1594 = vunpack.c.h.b16 %v1314
    %v1595 = vunpack.c.l.b16 %v1315
    %v1596 = vunpack.c.h.b16 %v1315
    %v1597 = vunpack.c.l.b16 %v1316
    %v1598 = vunpack.c.h.b16 %v1316
    %v1599 = vunpack.c.l.b16 %v1317
    %v1600 = vunpack.c.h.b16 %v1317
    %v1601 = vunpack.c.l.b16 %v1318
    %v1602 = vunpack.c.h.b16 %v1318
    %v1603 = vunpack.c.l.b16 %v1319
    %v1604 = vunpack.c.h.b16 %v1319
    %v1605 = vunpack.c.l.b16 %v1320
    %v1606 = vunpack.c.h.b16 %v1320
    %v1607 = vunpack.c.l.b16 %v1321
    %v1608 = vunpack.c.h.b16 %v1321
    %v1609 = vunpack.c.l.b16 %v1322
    %v1610 = vunpack.c.h.b16 %v1322
    %v1611 = vunpack.c.l.b16 %v1323
    %v1612 = vunpack.c.h.b16 %v1323
    %v1613 = vunpack.c.l.b16 %v1324
    %v1614 = vunpack.c.h.b16 %v1324
    %v1615 = vunpack.c.l.b16 %v1325
    %v1616 = vunpack.c.h.b16 %v1325
    %v1617 = vunpack.c.l.b16 %v1326
    %v1618 = vunpack.c.h.b16 %v1326
    %v1619 = vunpack.c.l.b16 %v1327
    %v1620 = vunpack.c.h.b16 %v1327
    %v1621 = vunpack.c.l.b16 %v1328
    %v1622 = vunpack.c.h.b16 %v1328
    %v1623 = vunpack.c.l.b16 %v1329
    %v1624 = vunpack.c.h.b16 %v1329
    %v1625 = vunpack.c.l.b16 %v1330
    %v1626 = vunpack.c.h.b16 %v1330
    %v1627 = vunpack.c.l.b16 %v1331
    %v1628 = vunpack.c.h.b16 %v1331
    %v1629 = vunpack.c.l.b16 %v1332
    %v1630 = vunpack.c.h.b16 %v1332
    %v1631 = vunpack.c.l.b16 %v1333
    %v1632 = vunpack.c.h.b16 %v1333
    %v1633 = vunpack.c.l.b16 %v1334
    %v1634 = vunpack.c.h.b16 %v1334
    %v1635 = vunpack.c.l.b16 %v1335
    %v1636 = vunpack.c.h.b16 %v1335
    %v1637 = vunpack.c.l.b16 %v1336
    %v1638 = vunpack.c.h.b16 %v1336
    %v1639 = vunpack.c.l.b16 %v1337
    %v1640 = vunpack.c.h.b16 %v1337
    %v1641 = vunpack.c.l.b16 %v1338
    %v1642 = vunpack.c.h.b16 %v1338
    %v1643 = vunpack.c.l.b16 %v1339
    %v1644 = vunpack.c.h.b16 %v1339
    %v1645 = vunpack.c.l.b16 %v1340
    %v1646 = vunpack.c.h.b16 %v1340
    %v1647 = vunpack.c.l.b16 %v1341
    %v1648 = vunpack.c.h.b16 %v1341
    %v1649 = vunpack.c.l.b16 %v1342
    %v1650 = vunpack.c.h.b16 %v1342
    %v1651 = vunpack.c.l.b16 %v1343
    %v1652 = vunpack.c.h.b16 %v1343
    %v1653 = vunpack.c.l.b16 %v1344
    %v1654 = vunpack.c.h.b16 %v1344
    %v1655 = vunpack.c.l.b16 %v1345
    %v1656 = vunpack.c.h.b16 %v1345
    %v1657 = vunpack.c.l.b16 %v1346
    %v1658 = vunpack.c.h.b16 %v1346
    %v1659 = vunpack.c.l.b16 %v1347
    %v1660 = vunpack.c.h.b16 %v1347
    %v1661 = vunpack.c.l.b16 %v1348
    %v1662 = vunpack.c.h.b16 %v1348
    %v1663 = vunpack.c.l.b16 %v1349
    %v1664 = vunpack.c.h.b16 %v1349
    %v1665 = vunpack.c.l.b16 %v1350
    %v1666 = vunpack.c.h.b16 %v1350
    %v1667 = vunpack.c.l.b16 %v1351
    %v1668 = vunpack.c.h.b16 %v1351
    %v1669 = vunpack.c.l.b16 %v1352
    %v1670 = vunpack.c.h.b16 %v1352
    %v1671 = vunpack.c.l.b16 %v1353
    %v1672 = vunpack.c.h.b16 %v1353
    %v1673 = vunpack.c.l.b16 %v1354
    %v1674 = vunpack.c.h.b16 %v1354
    %v1675 = vunpack.c.l.b16 %v1355
    %v1676 = vunpack.c.h.b16 %v1355
    %v1677 = vunpack.c.l.b16 %v1356
    %v1678 = vunpack.c.h.b16 %v1356
    %v1679 = vunpack.c.l.b16 %v1357
    %v1680 = vunpack.c.h.b16 %v1357
    %v1681 = vunpack.c.l.b16 %v1358
    %v1682 = vunpack.c.h.b16 %v1358
    %v1683 = vunpack.c.l.b16 %v1359
    %v1684 = vunpack.c.h.b16 %v1359
    %v1685 = vunpack.c.l.b16 %v1360
    %v1686 = vunpack.c.h.b16 %v1360
    %v1687 = vunpack.c.l.b16 %v1361
    %v1688 = vunpack.c.h.b16 %v1361
    %v1689 = vunpack.c.l.b16 %v1362
    %v1690 = vunpack.c.h.b16 %v1362
    %v1691 = vunpack.c.l.b16 %v1363
    %v1692 = vunpack.c.h.b16 %v1363
    %v1693 = vunpack.c.l.b16 %v1364
    %v1694 = vunpack.c.h.b16 %v1364
    %v1695 = vunpack.c.l.b16 %v1365
    %v1696 = vunpack.c.h.b16 %v1365
    %v1697 = vunpack.c.l.b16 %v1366
    %v1698 = vunpack.c.h.b16 %v1366
    %v1699 = vunpack.c.l.b16 %v1367
    %v1700 = vunpack.c.h.b16 %v1367
    %v1701 = vunpack.c.l.b16 %v1368
    %v1702 = vunpack.c.h.b16 %v1368
    %v1703 = vunpack.c.l.b16 %v1369
    %v1704 = vunpack.c.h.b16 %v1369
    %v1705 = vunpack.c.l.b16 %v1370
    %v1706 = vunpack.c.h.b16 %v1370
    %v1707 = vunpack.c.l.b16 %v1371
    %v1708 = vunpack.c.h.b16 %v1371
    %v1709 = vunpack.c.l.b16 %v1372
    %v1710 = vunpack.c.h.b16 %v1372
    %v1711 = vunpack.c.l.b16 %v1373
    %v1712 = vunpack.c.h.b16 %v1373
    %v1713 = vunpack.c.l.b16 %v1374
    %v1714 = vunpack.c.h.b16 %v1374
    %v1715 = vunpack.c.l.b16 %v1375
    %v1716 = vunpack.c.h.b16 %v1375
    %v1717 = vunpack.c.l.b16 %v1376
    %v1718 = vunpack.c.h.b16 %v1376
    %v1719 = vunpack.c.l.b16 %v1377
    %v1720 = vunpack.c.h.b16 %v1377
    %v1721 = vunpack.c.l.b16 %v1378
    %v1722 = vunpack.c.h.b16 %v1378
    %v1723 = vunpack.c.l.b16 %v1379
    %v1724 = vunpack.c.h.b16 %v1379
    %v1725 = vunpack.c.l.b16 %v1380
    %v1726 = vunpack.c.h.b16 %v1380
    %v1727 = vunpack.c.l.b16 %v1381
    %v1728 = vunpack.c.h.b16 %v1381
    %v1729 = vunpack.c.l.b16 %v1382
    %v1730 = vunpack.c.h.b16 %v1382
    %v1731 = vunpack.c.l.b16 %v1383
    %v1732 = vunpack.c.h.b16 %v1383
    %v1733 = vunpack.c.l.b16 %v1384
    %v1734 = vunpack.c.h.b16 %v1384
    %v1735 = vunpack.c.l.b16 %v1385
    %v1736 = vunpack.c.h.b16 %v1385
    %v1737 = vunpack.c.l.b16 %v1386
    %v1738 = vunpack.c.h.b16 %v1386
    %v1739 = vunpack.c.l.b16 %v1387
    %v1740 = vunpack.c.h.b16 %v1387
    %v1741 = vunpack.c.l.b16 %v1388
    %v1742 = vunpack.c.h.b16 %v1388
    %v1743 = vunpack.c.l.b16 %v1389
    %v1744 = vunpack.c.h.b16 %v1389
    %v1745 = vunpack.c.l.b16 %v1390
    %v1746 = vunpack.c.h.b16 %v1390
    %v1747 = vunpack.c.l.b16 %v1391
    %v1748 = vunpack.c.h.b16 %v1391
    %v1749 = vunpack.c.l.b16 %v1392
    %v1750 = vunpack.c.h.b16 %v1392
    %v1751 = vunpack.c.l.b16 %v1393
    %v1752 = vunpack.c.h.b16 %v1393
    %v1753 = vunpack.c.l.b16 %v1394
    %v1754 = vunpack.c.h.b16 %v1394
    %v1755 = vunpack.c.l.b16 %v1395
    %v1756 = vunpack.c.h.b16 %v1395
    %v1757 = vunpack.c.l.b16 %v1396
    %v1758 = vunpack.c.h.b16 %v1396
    %v1759 = vunpack.c.l.b16 %v1397
    %v1760 = vunpack.c.h.b16 %v1397
    %v1761 = vunpack.c.l.b16 %v1398
    %v1762 = vunpack.c.h.b16 %v1398
    %v1763 = vunpack.c.l.b16 %v1399
    %v1764 = vunpack.c.h.b16 %v1399
    %v1765 = vunpack.c.l.b16 %v1400
    %v1766 = vunpack.c.h.b16 %v1400
    %v1767 = vunpack.c.l.b16 %v1401
    %v1768 = vunpack.c.h.b16 %v1401
    %v1769 = vunpack.c.l.b16 %v1402
    %v1770 = vunpack.c.h.b16 %v1402
    %v1771 = vunpack.c.l.b16 %v1403
    %v1772 = vunpack.c.h.b16 %v1403
    %v1773 = vunpack.c.l.b16 %v1404
    %v1774 = vunpack.c.h.b16 %v1404
    %v1775 = vunpack.c.l.b16 %v1405
    %v1776 = vunpack.c.h.b16 %v1405
    %v1777 = vunpack.c.l.b16 %v1406
    %v1778 = vunpack.c.h.b16 %v1406
    %v1779 = vunpack.c.l.b16 %v1407
    %v1780 = vunpack.c.h.b16 %v1407
    %v1781 = vunpack.c.l.b16 %v1408
    %v1782 = vunpack.c.h.b16 %v1408
    %v1783 = vunpack.c.l.b16 %v1409
    %v1784 = vunpack.c.h.b16 %v1409
    %v1785 = vunpack.c.l.b16 %v1410
    %v1786 = vunpack.c.h.b16 %v1410
    %v1787 = vunpack.c.l.b16 %v1411
    %v1788 = vunpack.c.h.b16 %v1411
    %v1789 = vunpack.c.l.b16 %v1412
    %v1790 = vunpack.c.h.b16 %v1412
    %v1791 = vunpack.c.l.b16 %v1413
    %v1792 = vunpack.c.h.b16 %v1413
    %v1793 = vunpack.c.l.b16 %v1414
    %v1794 = vunpack.c.h.b16 %v1414
    %v1795 = vunpack.c.l.b16 %v1415
    %v1796 = vunpack.c.h.b16 %v1415
    %v1797 = vunpack.c.l.b16 %v1416
    %v1798 = vunpack.c.h.b16 %v1416
    %v1799 = vunpack.c.l.b16 %v1417
    %v1800 = vunpack.c.h.b16 %v1417
    %v1801 = vunpack.c.l.b16 %v1418
    %v1802 = vunpack.c.h.b16 %v1418
    %v1803 = vpack.c.b16 %v1555, %v1547
    %v1804 = vpack.c.b16 %v1556, %v1548
    %v1805 = vpack.c.b16 %v1557, %v1549
    %v1806 = vpack.c.b16 %v1558, %v1550
    %v1807 = vpack.c.b16 %v1559, %v1551
    %v1808 = vpack.c.b16 %v1560, %v1552
    %v1809 = vpack.c.b16 %v1561, %v1553
    %v1810 = vpack.c.b16 %v1562, %v1554
    %v1811 = vpack.c.b16 %v1571, %v1563
    %v1812 = vpack.c.b16 %v1572, %v1564
    %v1813 = vpack.c.b16 %v1573, %v1565
    %v1814 = vpack.c.b16 %v1574, %v1566
    %v1815 = vpack.c.b16 %v1575, %v1567
    %v1816 = vpack.c.b16 %v1576, %v1568
    %v1817 = vpack.c.b16 %v1577, %v1569
    %v1818 = vpack.c.b16 %v1578, %v1570
    %v1819 = vpack.c.b16 %v1587, %v1579
    %v1820 = vpack.c.b16 %v1588, %v1580
    %v1821 = vpack.c.b16 %v1589, %v1581
    %v1822 = vpack.c.b16 %v1590, %v1582
    %v1823 = vpack.c.b16 %v1591, %v1583
    %v1824 = vpack.c.b16 %v1592, %v1584
    %v1825 = vpack.c.b16 %v1593, %v1585
    %v1826 = vpack.c.b16 %v1594, %v1586
    %v1827 = vpack.c.b16 %v1603, %v1595
    %v1828 = vpack.c.b16 %v1604, %v1596
    %v1829 = vpack.c.b16 %v1605, %v1597
    %v1830 = vpack.c.b16 %v1606, %v1598
    %v1831 = vpack.c.b16 %v1607, %v1599
    %v1832 = vpack.c.b16 %v1608, %v1600
    %v1833 = vpack.c.b16 %v1609, %v1601
    %v1834 = vpack.c.b16 %v1610, %v1602
    %v1835 = vpack.c.b16 %v1619, %v1611
    %v1836 = vpack.c.b16 %v1620, %v1612
    %v1837 = vpack.c.b16 %v1621, %v1613
    %v1838 = vpack.c.b16 %v1622, %v1614
    %v1839 = vpack.c.b16 %v1623, %v1615
    %v1840 = vpack.c.b16 %v1624, %v1616
    %v1841 = vpack.c.b16 %v1625, %v1617
    %v1842 = vpack.c.b16 %v1626, %v1618
    %v1843 = vpack.c.b16 %v1635, %v1627
    %v1844 = vpack.c.b16 %v1636, %v1628
    %v1845 = vpack.c.b16 %v1637, %v1629
    %v1846 = vpack.c.b16 %v1638, %v1630
    %v1847 = vpack.c.b16 %v1639, %v1631
    %v1848 = vpack.c.b16 %v1640, %v1632
    %v1849 = vpack.c.b16 %v1641, %v1633
    %v1850 = vpack.c.b16 %v1642, %v1634
    %v1851 = vpack.c.b16 %v1651, %v1643
    %v1852 = vpack.c.b16 %v1652, %v1644
    %v1853 = vpack.c.b16 %v1653, %v1645
    %v1854 = vpack.c.b16 %v1654, %v1646
    %v1855 = vpack.c.b16 %v1655, %v1647
    %v1856 = vpack.c.b16 %v1656, %v1648
    %v1857 = vpack.c.b16 %v1657, %v1649
    %v1858 = vpack.c.b16 %v1658, %v1650
    %v1859 = vpack.c.b16 %v1667, %v1659
    %v1860 = vpack.c.b16 %v1668, %v1660
    %v1861 = vpack.c.b16 %v1669, %v1661
    %v1862 = vpack.c.b16 %v1670, %v1662
    %v1863 = vpack.c.b16 %v1671, %v1663
    %v1864 = vpack.c.b16 %v1672, %v1664
    %v1865 = vpack.c.b16 %v1673, %v1665
    %v1866 = vpack.c.b16 %v1674, %v1666
    %v1867 = vpack.c.b16 %v1683, %v1675
    %v1868 = vpack.c.b16 %v1684, %v1676
    %v1869 = vpack.c.b16 %v1685, %v1677
    %v1870 = vpack.c.b16 %v1686, %v1678
    %v1871 = vpack.c.b16 %v1687, %v1679
    %v1872 = vpack.c.b16 %v1688, %v1680
    %v1873 = vpack.c.b16 %v1689, %v1681
    %v1874 = vpack.c.b16 %v1690, %v1682
    %v1875 = vpack.c.b16 %v1699, %v1691
    %v1876 = vpack.c.b16 %v1700, %v1692
    %v1877 = vpack.c.b16 %v1701, %v1693
    %v1878 = vpack.c.b16 %v1702, %v1694
    %v1879 = vpack.c.b16 %v1703, %v1695
    %v1880 = vpack.c.b16 %v1704, %v1696
    %v1881 = vpack.c.b16 %v1705, %v1697
    %v1882 = vpack.c.b16 %v1706, %v1698
    %v1883 = vpack.c.b16 %v1715, %v1707
    %v1884 = vpack.c.b16 %v1716, %v1708
    %v1885 = vpack.c.b16 %v1717, %v1709
    %v1886 = vpack.c.b16 %v1718, %v1710
    %v1887 = vpack.c.b16 %v1719, %v1711
    %v1888 = vpack.c.b16 %v1720, %v1712
    %v1889 = vpack.c.b16 %v1721, %v1713
    %v1890 = vpack.c.b16 %v1722, %v1714
    %v1891 = vpack.c.b16 %v1731, %v1723
    %v1892 = vpack.c.b16 %v1732, %v1724
    %v1893 = vpack.c.b16 %v1733, %v1725
    %v1894 = vpack.c.b16 %v1734, %v1726
    %v1895 = vpack.c.b16 %v1735, %v1727
    %v1896 = vpack.c.b16 %v1736, %v1728
    %v1897 = vpack.c.b16 %v1737, %v1729
    %v1898 = vpack.c.b16 %v1738, %v1730
    %v1899 = vpack.c.b16 %v1747, %v1739
    %v1900 = vpack.c.b16 %v1748, %v1740
    %v1901 = vpack.c.b16 %v1749, %v1741
    %v1902 = vpack.c.b16 %v1750, %v1742
    %v1903 = vpack.c.b16 %v1751, %v1743
    %v1904 = vpack.c.b16 %v1752, %v1744
    %v1905 = vpack.c.b16 %v1753, %v1745
    %v1906 = vpack.c.b16 %v1754, %v1746
    %v1907 = vpack.c.b16 %v1763, %v1755
    %v1908 = vpack.c.b16 %v1764, %v1756
    %v1909 = vpack.c.b16 %v1765, %v1757
    %v1910 = vpack.c.b16 %v1766, %v1758
    %v1911 = vpack.c.b16 %v1767, %v1759
    %v1912 = vpack.c.b16 %v1768, %v1760
    %v1913 = vpack.c.b16 %v1769, %v1761
    %v1914 = vpack.c.b16 %v1770, %v1762
    %v1915 = vpack.c.b16 %v1779, %v1771
    %v1916 = vpack.c.b16 %v1780, %v1772
    %v1917 = vpack.c.b16 %v1781, %v1773
    %v1918 = vpack.c.b16 %v1782, %v1774
    %v1919 = vpack.c.b16 %v1783, %v1775
    %v1920 = vpack.c.b16 %v1784, %v1776
    %v1921 = vpack.c.b16 %v1785, %v1777
    %v1922 = vpack.c.b16 %v1786, %v1778
    %v1923 = vpack.c.b16 %v1795, %v1787
    %v1924 = vpack.c.b16 %v1796, %v1788
    %v1925 = vpack.c.b16 %v1797, %v1789
    %v1926 = vpack.c.b16 %v1798, %v1790
    %v1927 = vpack.c.b16 %v1799, %v1791
    %v1928 = vpack.c.b16 %v1800, %v1792
    %v1929 = vpack.c.b16 %v1801, %v1793
    %v1930 = vpack.c.b16 %v1802, %v1794
    %2059 = vmatprep.subr.bf16.mxu0 %v1804
    %2060 = vmatpush1.bf16.msra.mxu0 %v1803
    %2061 = vmatprep.subr.bf16.mxu0 %v1812
    %2062 = vmatpush1.bf16.msra.mxu0 %v1811
    %2063 = vmatprep.subr.bf16.mxu0 %v1820
    %2064 = vmatpush1.bf16.msra.mxu0 %v1819
    %2065 = vmatprep.subr.bf16.mxu0 %v1828
    %2066 = vmatpush1.bf16.msra.mxu0 %v1827
    %2067 = vmatprep.subr.bf16.mxu0 %v1836
    %2068 = vmatpush1.bf16.msra.mxu0 %v1835
    %2069 = vmatprep.subr.bf16.mxu0 %v1844
    %2070 = vmatpush1.bf16.msra.mxu0 %v1843
    %2071 = vmatprep.subr.bf16.mxu0 %v1852
    %2072 = vmatpush1.bf16.msra.mxu0 %v1851
    %2073 = vmatprep.subr.bf16.mxu0 %v1860
    %2074 = vmatpush1.bf16.msra.mxu0 %v1859
    %2075 = vmatprep.subr.bf16.mxu0 %v1868
    %2076 = vmatpush1.bf16.msra.mxu0 %v1867
    %2077 = vmatprep.subr.bf16.mxu0 %v1876
    %2078 = vmatpush1.bf16.msra.mxu0 %v1875
    %2079 = vmatprep.subr.bf16.mxu0 %v1884
    %2080 = vmatpush1.bf16.msra.mxu0 %v1883
    %2081 = vmatprep.subr.bf16.mxu0 %v1892
    %2082 = vmatpush1.bf16.msra.mxu0 %v1891
    %2083 = vmatprep.subr.bf16.mxu0 %v1900
    %2084 = vmatpush1.bf16.msra.mxu0 %v1899
    %2085 = vmatprep.subr.bf16.mxu0 %v1908
    %2086 = vmatpush1.bf16.msra.mxu0 %v1907
    %2087 = vmatprep.subr.bf16.mxu0 %v1916
    %2088 = vmatpush1.bf16.msra.mxu0 %v1915
    %2089 = vmatprep.subr.bf16.mxu0 %v1924
    %2090 = vmatpush1.bf16.msra.mxu0 %v1923
    %2091 = vmatprep.mubr.bf16.mxu0 %v188
    %2092 = vmatmul.mubr.bf16.gmra.mrb[0].mxu0 %v187
    %v2093 = vpop.f32.mrb[0].mxu0
    %v2094 = vadd.f32 0.0, %v2093
    %v2095 = vpop.f32.mrb[0].mxu0
    %v2096 = vadd.f32 0.0, %v2095
    %v2097 = vpop.f32.mrb[0].mxu0
    %v2098 = vpop.f32.mrb[0].mxu0
    %2099 = vdwg.mxu0
    %2100 = vmatprep.subr.bf16.mxu0 %v1806
    %2101 = vmatpush1.bf16.msra.mxu0 %v1805
    %2102 = vmatprep.subr.bf16.mxu0 %v1814
    %2103 = vmatpush1.bf16.msra.mxu0 %v1813
    %2104 = vmatprep.subr.bf16.mxu0 %v1822
    %2105 = vmatpush1.bf16.msra.mxu0 %v1821
    %2106 = vmatprep.subr.bf16.mxu0 %v1830
    %2107 = vmatpush1.bf16.msra.mxu0 %v1829
    %2108 = vmatprep.subr.bf16.mxu0 %v1838
    %2109 = vmatpush1.bf16.msra.mxu0 %v1837
    %2110 = vmatprep.subr.bf16.mxu0 %v1846
    %2111 = vmatpush1.bf16.msra.mxu0 %v1845
    %2112 = vmatprep.subr.bf16.mxu0 %v1854
    %2113 = vmatpush1.bf16.msra.mxu0 %v1853
    %2114 = vmatprep.subr.bf16.mxu0 %v1862
    %2115 = vmatpush1.bf16.msra.mxu0 %v1861
    %2116 = vmatprep.subr.bf16.mxu0 %v1870
    %2117 = vmatpush1.bf16.msra.mxu0 %v1869
    %2118 = vmatprep.subr.bf16.mxu0 %v1878
    %2119 = vmatpush1.bf16.msra.mxu0 %v1877
    %2120 = vmatprep.subr.bf16.mxu0 %v1886
    %2121 = vmatpush1.bf16.msra.mxu0 %v1885
    %2122 = vmatprep.subr.bf16.mxu0 %v1894
    %2123 = vmatpush1.bf16.msra.mxu0 %v1893
    %2124 = vmatprep.subr.bf16.mxu0 %v1902
    %2125 = vmatpush1.bf16.msra.mxu0 %v1901
    %2126 = vmatprep.subr.bf16.mxu0 %v1910
    %2127 = vmatpush1.bf16.msra.mxu0 %v1909
    %2128 = vmatprep.subr.bf16.mxu0 %v1918
    %2129 = vmatpush1.bf16.msra.mxu0 %v1917
    %2130 = vmatprep.subr.bf16.mxu0 %v1926
    %2131 = vmatpush1.bf16.msra.mxu0 %v1925
    %2132 = vmatprep.mubr.bf16.mxu0 %v188
    %2133 = vmatmul.mubr.bf16.gmra.mrb[0].mxu0 %v187
    %v2134 = vpop.f32.mrb[0].mxu0
    %v2135 = vadd.f32 0.0, %v2134
    %v2136 = vpop.f32.mrb[0].mxu0
    %v2137 = vadd.f32 0.0, %v2136
    %v2138 = vpop.f32.mrb[0].mxu0
    %v2139 = vpop.f32.mrb[0].mxu0
    %2140 = vdwg.mxu0
    %2141 = vmatprep.subr.bf16.mxu0 %v1808
    %2142 = vmatpush1.bf16.msra.mxu0 %v1807
    %2143 = vmatprep.subr.bf16.mxu0 %v1816
    %2144 = vmatpush1.bf16.msra.mxu0 %v1815
    %2145 = vmatprep.subr.bf16.mxu0 %v1824
    %2146 = vmatpush1.bf16.msra.mxu0 %v1823
    %2147 = vmatprep.subr.bf16.mxu0 %v1832
    %2148 = vmatpush1.bf16.msra.mxu0 %v1831
    %2149 = vmatprep.subr.bf16.mxu0 %v1840
    %2150 = vmatpush1.bf16.msra.mxu0 %v1839
    %2151 = vmatprep.subr.bf16.mxu0 %v1848
    %2152 = vmatpush1.bf16.msra.mxu0 %v1847
    %2153 = vmatprep.subr.bf16.mxu0 %v1856
    %2154 = vmatpush1.bf16.msra.mxu0 %v1855
    %2155 = vmatprep.subr.bf16.mxu0 %v1864
    %2156 = vmatpush1.bf16.msra.mxu0 %v1863
    %2157 = vmatprep.subr.bf16.mxu0 %v1872
    %2158 = vmatpush1.bf16.msra.mxu0 %v1871
    %2159 = vmatprep.subr.bf16.mxu0 %v1880
    %2160 = vmatpush1.bf16.msra.mxu0 %v1879
    %2161 = vmatprep.subr.bf16.mxu0 %v1888
    %2162 = vmatpush1.bf16.msra.mxu0 %v1887
    %2163 = vmatprep.subr.bf16.mxu0 %v1896
    %2164 = vmatpush1.bf16.msra.mxu0 %v1895
    %2165 = vmatprep.subr.bf16.mxu0 %v1904
    %2166 = vmatpush1.bf16.msra.mxu0 %v1903
    %2167 = vmatprep.subr.bf16.mxu0 %v1912
    %2168 = vmatpush1.bf16.msra.mxu0 %v1911
    %2169 = vmatprep.subr.bf16.mxu0 %v1920
    %2170 = vmatpush1.bf16.msra.mxu0 %v1919
    %2171 = vmatprep.subr.bf16.mxu0 %v1928
    %2172 = vmatpush1.bf16.msra.mxu0 %v1927
    %2173 = vmatprep.mubr.bf16.mxu0 %v188
    %2174 = vmatmul.mubr.bf16.gmra.mrb[0].mxu0 %v187
    %v2175 = vpop.f32.mrb[0].mxu0
    %v2176 = vadd.f32 0.0, %v2175
    %v2177 = vpop.f32.mrb[0].mxu0
    %v2178 = vadd.f32 0.0, %v2177
    %v2179 = vpop.f32.mrb[0].mxu0
    %v2180 = vpop.f32.mrb[0].mxu0
    %2181 = vdwg.mxu0
    %2182 = vmatprep.subr.bf16.mxu0 %v1810
    %2183 = vmatpush1.bf16.msra.mxu0 %v1809
    %2184 = vmatprep.subr.bf16.mxu0 %v1818
    %2185 = vmatpush1.bf16.msra.mxu0 %v1817
    %2186 = vmatprep.subr.bf16.mxu0 %v1826
    %2187 = vmatpush1.bf16.msra.mxu0 %v1825
    %2188 = vmatprep.subr.bf16.mxu0 %v1834
    %2189 = vmatpush1.bf16.msra.mxu0 %v1833
    %2190 = vmatprep.subr.bf16.mxu0 %v1842
    %2191 = vmatpush1.bf16.msra.mxu0 %v1841
    %2192 = vmatprep.subr.bf16.mxu0 %v1850
    %2193 = vmatpush1.bf16.msra.mxu0 %v1849
    %2194 = vmatprep.subr.bf16.mxu0 %v1858
    %2195 = vmatpush1.bf16.msra.mxu0 %v1857
    %2196 = vmatprep.subr.bf16.mxu0 %v1866
    %2197 = vmatpush1.bf16.msra.mxu0 %v1865
    %2198 = vmatprep.subr.bf16.mxu0 %v1874
    %2199 = vmatpush1.bf16.msra.mxu0 %v1873
    %2200 = vmatprep.subr.bf16.mxu0 %v1882
    %2201 = vmatpush1.bf16.msra.mxu0 %v1881
    %2202 = vmatprep.subr.bf16.mxu0 %v1890
    %2203 = vmatpush1.bf16.msra.mxu0 %v1889
    %2204 = vmatprep.subr.bf16.mxu0 %v1898
    %2205 = vmatpush1.bf16.msra.mxu0 %v1897
    %2206 = vmatprep.subr.bf16.mxu0 %v1906
    %2207 = vmatpush1.bf16.msra.mxu0 %v1905
    %2208 = vmatprep.subr.bf16.mxu0 %v1914
    %2209 = vmatpush1.bf16.msra.mxu0 %v1913
    %2210 = vmatprep.subr.bf16.mxu0 %v1922
    %2211 = vmatpush1.bf16.msra.mxu0 %v1921
    %2212 = vmatprep.subr.bf16.mxu0 %v1930
    %2213 = vmatpush1.bf16.msra.mxu0 %v1929
    %2214 = vmatprep.mubr.bf16.mxu0 %v188
    %2215 = vmatmul.mubr.bf16.gmra.mrb[0].mxu0 %v187
    %v2216 = vpop.f32.mrb[0].mxu0
    %v2217 = vadd.f32 0.0, %v2216
    %v2218 = vpop.f32.mrb[0].mxu0
    %v2219 = vadd.f32 0.0, %v2218
    %v2220 = vpop.f32.mrb[0].mxu0
    %v2221 = vpop.f32.mrb[0].mxu0
    %2222 = vdwg.mxu0
    %v2223 = vadd.f32 %v1162, %v2094
    %v2224 = vadd.f32 %v1164, %v2096
    %v2225 = vadd.f32 %v1203, %v2135
    %v2226 = vadd.f32 %v1205, %v2137
    %v2227 = vadd.f32 %v1244, %v2176
    %v2228 = vadd.f32 %v1246, %v2178
    %v2229 = vadd.f32 %v1285, %v2217
    %v2230 = vadd.f32 %v1287, %v2219
    %v2231 = vld [vmem:[%s3] sm:$0xff]
    %v2233 = vlaneseq
    %v2234 = vshrl.u32 %v2233, 7
    %v2235 = vsub.s32 0, %v2234
    %v2236 = vrot.slane %v2231, %v2235
    %v2237 = vlaneseq
    %v2238 = vshrl.u32 %v2237, 7
    %v2239 = vsub.s32 1, %v2238
    %v2240 = vrot.slane %v2231, %v2239
    %v2241 = vlaneseq
    %v2242 = vshrl.u32 %v2241, 7
    %v2243 = vsub.s32 2, %v2242
    %v2244 = vrot.slane %v2231, %v2243
    %v2245 = vlaneseq
    %v2246 = vshrl.u32 %v2245, 7
    %v2247 = vsub.s32 3, %v2246
    %v2248 = vrot.slane %v2231, %v2247
    %v2249 = vlaneseq
    %v2250 = vshrl.u32 %v2249, 7
    %v2251 = vsub.s32 4, %v2250
    %v2252 = vrot.slane %v2231, %v2251
    %v2253 = vlaneseq
    %v2254 = vshrl.u32 %v2253, 7
    %v2255 = vsub.s32 5, %v2254
    %v2256 = vrot.slane %v2231, %v2255
    %v2257 = vlaneseq
    %v2258 = vshrl.u32 %v2257, 7
    %v2259 = vsub.s32 6, %v2258
    %v2260 = vrot.slane %v2231, %v2259
    %v2261 = vlaneseq
    %v2262 = vshrl.u32 %v2261, 7
    %v2263 = vsub.s32 7, %v2262
    %v2264 = vrot.slane %v2231, %v2263
    %v2273 = vadd.f32 %v2223, %v2236
    %v2274 = vadd.f32 %v2224, %v2240
    %v2275 = vadd.f32 %v2225, %v2244
    %v2276 = vadd.f32 %v2226, %v2248
    %v2277 = vadd.f32 %v2227, %v2252
    %v2278 = vadd.f32 %v2228, %v2256
    %v2279 = vadd.f32 %v2229, %v2260
    %v2280 = vadd.f32 %v2230, %v2264
    %v2281 = vmax.f32 %v2273, 0.0
    %v2282 = vmax.f32 %v2274, 0.0
    %v2283 = vmax.f32 %v2275, 0.0
    %v2284 = vmax.f32 %v2276, 0.0
    %v2285 = vmax.f32 %v2277, 0.0
    %v2286 = vmax.f32 %v2278, 0.0
    %v2287 = vmax.f32 %v2279, 0.0
    %v2288 = vmax.f32 %v2280, 0.0
    %v2289 = vpack.c.bf16 %v2281, %v2281
    %v2290 = vpack.c.bf16 %v2282, %v2282
    %v2291 = vpack.c.bf16 %v2283, %v2283
    %v2292 = vpack.c.bf16 %v2284, %v2284
    %v2293 = vpack.c.bf16 %v2285, %v2285
    %v2294 = vpack.c.bf16 %v2286, %v2286
    %v2295 = vpack.c.bf16 %v2287, %v2287
    %v2296 = vpack.c.bf16 %v2288, %v2288
    %v2297 = vunpack.c.l.bf16 %v2289
    %v2298 = vunpack.c.l.bf16 %v2290
    %v2299 = vunpack.c.l.bf16 %v2291
    %v2300 = vunpack.c.l.bf16 %v2292
    %v2301 = vunpack.c.l.bf16 %v2293
    %v2302 = vunpack.c.l.bf16 %v2294
    %v2303 = vunpack.c.l.bf16 %v2295
    %v2304 = vunpack.c.l.bf16 %v2296
    %v2305 = vsub.f32 %v2281, %v2297
    %v2306 = vsub.f32 %v2282, %v2298
    %v2307 = vsub.f32 %v2283, %v2299
    %v2308 = vsub.f32 %v2284, %v2300
    %v2309 = vsub.f32 %v2285, %v2301
    %v2310 = vsub.f32 %v2286, %v2302
    %v2311 = vsub.f32 %v2287, %v2303
    %v2312 = vsub.f32 %v2288, %v2304
    %v2313 = vpack.c.bf16 %v2305, %v2305
    %v2314 = vpack.c.bf16 %v2306, %v2306
    %v2315 = vpack.c.bf16 %v2307, %v2307
    %v2316 = vpack.c.bf16 %v2308, %v2308
    %v2317 = vpack.c.bf16 %v2309, %v2309
    %v2318 = vpack.c.bf16 %v2310, %v2310
    %v2319 = vpack.c.bf16 %v2311, %v2311
    %v2320 = vpack.c.bf16 %v2312, %v2312
    %v2321 = vld [vmem:[#allocation6] sm:$0xff]
    %v2322 = vld [vmem:[#allocation6 + $0x8] sm:$0xff]
    %v2323 = vld [vmem:[#allocation6 + $0x10] sm:$0xff]
    %v2324 = vld [vmem:[#allocation6 + $0x18] sm:$0xff]
    %v2325 = vld [vmem:[#allocation6 + $0x20] sm:$0xff]
    %v2326 = vld [vmem:[#allocation6 + $0x28] sm:$0xff]
    %v2327 = vld [vmem:[#allocation6 + $0x30] sm:$0xff]
    %v2328 = vld [vmem:[#allocation6 + $0x38] sm:$0xff]
    %v2329 = vld [vmem:[#allocation6 + $0x40] sm:$0xff]
    %v2330 = vld [vmem:[#allocation6 + $0x48] sm:$0xff]
    %v2331 = vld [vmem:[#allocation6 + $0x50] sm:$0xff]
    %v2332 = vld [vmem:[#allocation6 + $0x58] sm:$0xff]
    %v2333 = vld [vmem:[#allocation6 + $0x60] sm:$0xff]
    %v2334 = vld [vmem:[#allocation6 + $0x68] sm:$0xff]
    %v2335 = vld [vmem:[#allocation6 + $0x70] sm:$0xff]
    %v2336 = vld [vmem:[#allocation6 + $0x78] sm:$0xff]
    %v2337 = vld [vmem:[#allocation6 + $0x80] sm:$0xff]
    %v2338 = vld [vmem:[#allocation6 + $0x88] sm:$0xff]
    %v2339 = vld [vmem:[#allocation6 + $0x90] sm:$0xff]
    %v2340 = vld [vmem:[#allocation6 + $0x98] sm:$0xff]
    %v2341 = vld [vmem:[#allocation6 + $0xa0] sm:$0xff]
    %v2342 = vld [vmem:[#allocation6 + $0xa8] sm:$0xff]
    %v2343 = vld [vmem:[#allocation6 + $0xb0] sm:$0xff]
    %v2344 = vld [vmem:[#allocation6 + $0xb8] sm:$0xff]
    %v2345 = vld [vmem:[#allocation6 + $0xc0] sm:$0xff]
    %v2346 = vld [vmem:[#allocation6 + $0xc8] sm:$0xff]
    %v2347 = vld [vmem:[#allocation6 + $0xd0] sm:$0xff]
    %v2348 = vld [vmem:[#allocation6 + $0xd8] sm:$0xff]
    %v2349 = vld [vmem:[#allocation6 + $0xe0] sm:$0xff]
    %v2350 = vld [vmem:[#allocation6 + $0xe8] sm:$0xff]
    %v2351 = vld [vmem:[#allocation6 + $0xf0] sm:$0xff]
    %v2352 = vld [vmem:[#allocation6 + $0xf8] sm:$0xff]
    %v2353 = vld [vmem:[#allocation6 + $0x100] sm:$0xff]
    %v2354 = vld [vmem:[#allocation6 + $0x108] sm:$0xff]
    %v2355 = vld [vmem:[#allocation6 + $0x110] sm:$0xff]
    %v2356 = vld [vmem:[#allocation6 + $0x118] sm:$0xff]
    %v2357 = vld [vmem:[#allocation6 + $0x120] sm:$0xff]
    %v2358 = vld [vmem:[#allocation6 + $0x128] sm:$0xff]
    %v2359 = vld [vmem:[#allocation6 + $0x130] sm:$0xff]
    %v2360 = vld [vmem:[#allocation6 + $0x138] sm:$0xff]
    %v2361 = vld [vmem:[#allocation6 + $0x140] sm:$0xff]
    %v2362 = vld [vmem:[#allocation6 + $0x148] sm:$0xff]
    %v2363 = vld [vmem:[#allocation6 + $0x150] sm:$0xff]
    %v2364 = vld [vmem:[#allocation6 + $0x158] sm:$0xff]
    %v2365 = vld [vmem:[#allocation6 + $0x160] sm:$0xff]
    %v2366 = vld [vmem:[#allocation6 + $0x168] sm:$0xff]
    %v2367 = vld [vmem:[#allocation6 + $0x170] sm:$0xff]
    %v2368 = vld [vmem:[#allocation6 + $0x178] sm:$0xff]
    %v2369 = vld [vmem:[#allocation6 + $0x180] sm:$0xff]
    %v2370 = vld [vmem:[#allocation6 + $0x188] sm:$0xff]
    %v2371 = vld [vmem:[#allocation6 + $0x190] sm:$0xff]
    %v2372 = vld [vmem:[#allocation6 + $0x198] sm:$0xff]
    %v2373 = vld [vmem:[#allocation6 + $0x1a0] sm:$0xff]
    %v2374 = vld [vmem:[#allocation6 + $0x1a8] sm:$0xff]
    %v2375 = vld [vmem:[#allocation6 + $0x1b0] sm:$0xff]
    %v2376 = vld [vmem:[#allocation6 + $0x1b8] sm:$0xff]
    %v2377 = vld [vmem:[#allocation6 + $0x1c0] sm:$0xff]
    %v2378 = vld [vmem:[#allocation6 + $0x1c8] sm:$0xff]
    %v2379 = vld [vmem:[#allocation6 + $0x1d0] sm:$0xff]
    %v2380 = vld [vmem:[#allocation6 + $0x1d8] sm:$0xff]
    %v2381 = vld [vmem:[#allocation6 + $0x1e0] sm:$0xff]
    %v2382 = vld [vmem:[#allocation6 + $0x1e8] sm:$0xff]
    %v2383 = vld [vmem:[#allocation6 + $0x1f0] sm:$0xff]
    %v2384 = vld [vmem:[#allocation6 + $0x1f8] sm:$0xff]
    %v2385 = vld [vmem:[#allocation6 + $0x200] sm:$0xff]
    %v2386 = vld [vmem:[#allocation6 + $0x208] sm:$0xff]
    %v2387 = vld [vmem:[#allocation6 + $0x210] sm:$0xff]
    %v2388 = vld [vmem:[#allocation6 + $0x218] sm:$0xff]
    %v2389 = vld [vmem:[#allocation6 + $0x220] sm:$0xff]
    %v2390 = vld [vmem:[#allocation6 + $0x228] sm:$0xff]
    %v2391 = vld [vmem:[#allocation6 + $0x230] sm:$0xff]
    %v2392 = vld [vmem:[#allocation6 + $0x238] sm:$0xff]
    %v2393 = vld [vmem:[#allocation6 + $0x240] sm:$0xff]
    %v2394 = vld [vmem:[#allocation6 + $0x248] sm:$0xff]
    %v2395 = vld [vmem:[#allocation6 + $0x250] sm:$0xff]
    %v2396 = vld [vmem:[#allocation6 + $0x258] sm:$0xff]
    %v2397 = vld [vmem:[#allocation6 + $0x260] sm:$0xff]
    %v2398 = vld [vmem:[#allocation6 + $0x268] sm:$0xff]
    %v2399 = vld [vmem:[#allocation6 + $0x270] sm:$0xff]
    %v2400 = vld [vmem:[#allocation6 + $0x278] sm:$0xff]
    %v2401 = vld [vmem:[#allocation6 + $0x280] sm:$0xff]
    %v2402 = vld [vmem:[#allocation6 + $0x288] sm:$0xff]
    %v2403 = vld [vmem:[#allocation6 + $0x290] sm:$0xff]
    %v2404 = vld [vmem:[#allocation6 + $0x298] sm:$0xff]
    %v2405 = vld [vmem:[#allocation6 + $0x2a0] sm:$0xff]
    %v2406 = vld [vmem:[#allocation6 + $0x2a8] sm:$0xff]
    %v2407 = vld [vmem:[#allocation6 + $0x2b0] sm:$0xff]
    %v2408 = vld [vmem:[#allocation6 + $0x2b8] sm:$0xff]
    %v2409 = vld [vmem:[#allocation6 + $0x2c0] sm:$0xff]
    %v2410 = vld [vmem:[#allocation6 + $0x2c8] sm:$0xff]
    %v2411 = vld [vmem:[#allocation6 + $0x2d0] sm:$0xff]
    %v2412 = vld [vmem:[#allocation6 + $0x2d8] sm:$0xff]
    %v2413 = vld [vmem:[#allocation6 + $0x2e0] sm:$0xff]
    %v2414 = vld [vmem:[#allocation6 + $0x2e8] sm:$0xff]
    %v2415 = vld [vmem:[#allocation6 + $0x2f0] sm:$0xff]
    %v2416 = vld [vmem:[#allocation6 + $0x2f8] sm:$0xff]
    %v2417 = vld [vmem:[#allocation6 + $0x300] sm:$0xff]
    %v2418 = vld [vmem:[#allocation6 + $0x308] sm:$0xff]
    %v2419 = vld [vmem:[#allocation6 + $0x310] sm:$0xff]
    %v2420 = vld [vmem:[#allocation6 + $0x318] sm:$0xff]
    %v2421 = vld [vmem:[#allocation6 + $0x320] sm:$0xff]
    %v2422 = vld [vmem:[#allocation6 + $0x328] sm:$0xff]
    %v2423 = vld [vmem:[#allocation6 + $0x330] sm:$0xff]
    %v2424 = vld [vmem:[#allocation6 + $0x338] sm:$0xff]
    %v2425 = vld [vmem:[#allocation6 + $0x340] sm:$0xff]
    %v2426 = vld [vmem:[#allocation6 + $0x348] sm:$0xff]
    %v2427 = vld [vmem:[#allocation6 + $0x350] sm:$0xff]
    %v2428 = vld [vmem:[#allocation6 + $0x358] sm:$0xff]
    %v2429 = vld [vmem:[#allocation6 + $0x360] sm:$0xff]
    %v2430 = vld [vmem:[#allocation6 + $0x368] sm:$0xff]
    %v2431 = vld [vmem:[#allocation6 + $0x370] sm:$0xff]
    %v2432 = vld [vmem:[#allocation6 + $0x378] sm:$0xff]
    %v2433 = vld [vmem:[#allocation6 + $0x380] sm:$0xff]
    %v2434 = vld [vmem:[#allocation6 + $0x388] sm:$0xff]
    %v2435 = vld [vmem:[#allocation6 + $0x390] sm:$0xff]
    %v2436 = vld [vmem:[#allocation6 + $0x398] sm:$0xff]
    %v2437 = vld [vmem:[#allocation6 + $0x3a0] sm:$0xff]
    %v2438 = vld [vmem:[#allocation6 + $0x3a8] sm:$0xff]
    %v2439 = vld [vmem:[#allocation6 + $0x3b0] sm:$0xff]
    %v2440 = vld [vmem:[#allocation6 + $0x3b8] sm:$0xff]
    %v2441 = vld [vmem:[#allocation6 + $0x3c0] sm:$0xff]
    %v2442 = vld [vmem:[#allocation6 + $0x3c8] sm:$0xff]
    %v2443 = vld [vmem:[#allocation6 + $0x3d0] sm:$0xff]
    %v2444 = vld [vmem:[#allocation6 + $0x3d8] sm:$0xff]
    %v2445 = vld [vmem:[#allocation6 + $0x3e0] sm:$0xff]
    %v2446 = vld [vmem:[#allocation6 + $0x3e8] sm:$0xff]
    %v2447 = vld [vmem:[#allocation6 + $0x3f0] sm:$0xff]
    %v2448 = vld [vmem:[#allocation6 + $0x3f8] sm:$0xff]
    %v2449 = vld [vmem:[#allocation6 + $0x400] sm:$0xff]
    %v2450 = vld [vmem:[#allocation6 + $0x408] sm:$0xff]
    %v2451 = vld [vmem:[#allocation6 + $0x410] sm:$0xff]
    %v2452 = vld [vmem:[#allocation6 + $0x418] sm:$0xff]
    %v2453 = vld [vmem:[#allocation6 + $0x420] sm:$0xff]
    %v2454 = vld [vmem:[#allocation6 + $0x428] sm:$0xff]
    %v2455 = vld [vmem:[#allocation6 + $0x430] sm:$0xff]
    %v2456 = vld [vmem:[#allocation6 + $0x438] sm:$0xff]
    %v2457 = vld [vmem:[#allocation6 + $0x440] sm:$0xff]
    %v2458 = vld [vmem:[#allocation6 + $0x448] sm:$0xff]
    %v2459 = vld [vmem:[#allocation6 + $0x450] sm:$0xff]
    %v2460 = vld [vmem:[#allocation6 + $0x458] sm:$0xff]
    %v2461 = vld [vmem:[#allocation6 + $0x460] sm:$0xff]
    %v2462 = vld [vmem:[#allocation6 + $0x468] sm:$0xff]
    %v2463 = vld [vmem:[#allocation6 + $0x470] sm:$0xff]
    %v2464 = vld [vmem:[#allocation6 + $0x478] sm:$0xff]
    %v2465 = vld [vmem:[#allocation6 + $0x480] sm:$0xff]
    %v2466 = vld [vmem:[#allocation6 + $0x488] sm:$0xff]
    %v2467 = vld [vmem:[#allocation6 + $0x490] sm:$0xff]
    %v2468 = vld [vmem:[#allocation6 + $0x498] sm:$0xff]
    %v2469 = vld [vmem:[#allocation6 + $0x4a0] sm:$0xff]
    %v2470 = vld [vmem:[#allocation6 + $0x4a8] sm:$0xff]
    %v2471 = vld [vmem:[#allocation6 + $0x4b0] sm:$0xff]
    %v2472 = vld [vmem:[#allocation6 + $0x4b8] sm:$0xff]
    %v2473 = vld [vmem:[#allocation6 + $0x4c0] sm:$0xff]
    %v2474 = vld [vmem:[#allocation6 + $0x4c8] sm:$0xff]
    %v2475 = vld [vmem:[#allocation6 + $0x4d0] sm:$0xff]
    %v2476 = vld [vmem:[#allocation6 + $0x4d8] sm:$0xff]
    %v2477 = vld [vmem:[#allocation6 + $0x4e0] sm:$0xff]
    %v2478 = vld [vmem:[#allocation6 + $0x4e8] sm:$0xff]
    %v2479 = vld [vmem:[#allocation6 + $0x4f0] sm:$0xff]
    %v2480 = vld [vmem:[#allocation6 + $0x4f8] sm:$0xff]
    %v2481 = vld [vmem:[#allocation6 + $0x500] sm:$0xff]
    %v2482 = vld [vmem:[#allocation6 + $0x508] sm:$0xff]
    %v2483 = vld [vmem:[#allocation6 + $0x510] sm:$0xff]
    %v2484 = vld [vmem:[#allocation6 + $0x518] sm:$0xff]
    %v2485 = vld [vmem:[#allocation6 + $0x520] sm:$0xff]
    %v2486 = vld [vmem:[#allocation6 + $0x528] sm:$0xff]
    %v2487 = vld [vmem:[#allocation6 + $0x530] sm:$0xff]
    %v2488 = vld [vmem:[#allocation6 + $0x538] sm:$0xff]
    %v2489 = vld [vmem:[#allocation6 + $0x540] sm:$0xff]
    %v2490 = vld [vmem:[#allocation6 + $0x548] sm:$0xff]
    %v2491 = vld [vmem:[#allocation6 + $0x550] sm:$0xff]
    %v2492 = vld [vmem:[#allocation6 + $0x558] sm:$0xff]
    %v2493 = vld [vmem:[#allocation6 + $0x560] sm:$0xff]
    %v2494 = vld [vmem:[#allocation6 + $0x568] sm:$0xff]
    %v2495 = vld [vmem:[#allocation6 + $0x570] sm:$0xff]
    %v2496 = vld [vmem:[#allocation6 + $0x578] sm:$0xff]
    %v2497 = vld [vmem:[#allocation6 + $0x580] sm:$0xff]
    %v2498 = vld [vmem:[#allocation6 + $0x588] sm:$0xff]
    %v2499 = vld [vmem:[#allocation6 + $0x590] sm:$0xff]
    %v2500 = vld [vmem:[#allocation6 + $0x598] sm:$0xff]
    %v2501 = vld [vmem:[#allocation6 + $0x5a0] sm:$0xff]
    %v2502 = vld [vmem:[#allocation6 + $0x5a8] sm:$0xff]
    %v2503 = vld [vmem:[#allocation6 + $0x5b0] sm:$0xff]
    %v2504 = vld [vmem:[#allocation6 + $0x5b8] sm:$0xff]
    %v2505 = vld [vmem:[#allocation6 + $0x5c0] sm:$0xff]
    %v2506 = vld [vmem:[#allocation6 + $0x5c8] sm:$0xff]
    %v2507 = vld [vmem:[#allocation6 + $0x5d0] sm:$0xff]
    %v2508 = vld [vmem:[#allocation6 + $0x5d8] sm:$0xff]
    %v2509 = vld [vmem:[#allocation6 + $0x5e0] sm:$0xff]
    %v2510 = vld [vmem:[#allocation6 + $0x5e8] sm:$0xff]
    %v2511 = vld [vmem:[#allocation6 + $0x5f0] sm:$0xff]
    %v2512 = vld [vmem:[#allocation6 + $0x5f8] sm:$0xff]
    %v2513 = vld [vmem:[#allocation6 + $0x600] sm:$0xff]
    %v2514 = vld [vmem:[#allocation6 + $0x608] sm:$0xff]
    %v2515 = vld [vmem:[#allocation6 + $0x610] sm:$0xff]
    %v2516 = vld [vmem:[#allocation6 + $0x618] sm:$0xff]
    %v2517 = vld [vmem:[#allocation6 + $0x620] sm:$0xff]
    %v2518 = vld [vmem:[#allocation6 + $0x628] sm:$0xff]
    %v2519 = vld [vmem:[#allocation6 + $0x630] sm:$0xff]
    %v2520 = vld [vmem:[#allocation6 + $0x638] sm:$0xff]
    %v2521 = vld [vmem:[#allocation6 + $0x640] sm:$0xff]
    %v2522 = vld [vmem:[#allocation6 + $0x648] sm:$0xff]
    %v2523 = vld [vmem:[#allocation6 + $0x650] sm:$0xff]
    %v2524 = vld [vmem:[#allocation6 + $0x658] sm:$0xff]
    %v2525 = vld [vmem:[#allocation6 + $0x660] sm:$0xff]
    %v2526 = vld [vmem:[#allocation6 + $0x668] sm:$0xff]
    %v2527 = vld [vmem:[#allocation6 + $0x670] sm:$0xff]
    %v2528 = vld [vmem:[#allocation6 + $0x678] sm:$0xff]
    %v2529 = vld [vmem:[#allocation6 + $0x680] sm:$0xff]
    %v2530 = vld [vmem:[#allocation6 + $0x688] sm:$0xff]
    %v2531 = vld [vmem:[#allocation6 + $0x690] sm:$0xff]
    %v2532 = vld [vmem:[#allocation6 + $0x698] sm:$0xff]
    %v2533 = vld [vmem:[#allocation6 + $0x6a0] sm:$0xff]
    %v2534 = vld [vmem:[#allocation6 + $0x6a8] sm:$0xff]
    %v2535 = vld [vmem:[#allocation6 + $0x6b0] sm:$0xff]
    %v2536 = vld [vmem:[#allocation6 + $0x6b8] sm:$0xff]
    %v2537 = vld [vmem:[#allocation6 + $0x6c0] sm:$0xff]
    %v2538 = vld [vmem:[#allocation6 + $0x6c8] sm:$0xff]
    %v2539 = vld [vmem:[#allocation6 + $0x6d0] sm:$0xff]
    %v2540 = vld [vmem:[#allocation6 + $0x6d8] sm:$0xff]
    %v2541 = vld [vmem:[#allocation6 + $0x6e0] sm:$0xff]
    %v2542 = vld [vmem:[#allocation6 + $0x6e8] sm:$0xff]
    %v2543 = vld [vmem:[#allocation6 + $0x6f0] sm:$0xff]
    %v2544 = vld [vmem:[#allocation6 + $0x6f8] sm:$0xff]
    %v2545 = vld [vmem:[#allocation6 + $0x700] sm:$0xff]
    %v2546 = vld [vmem:[#allocation6 + $0x708] sm:$0xff]
    %v2547 = vld [vmem:[#allocation6 + $0x710] sm:$0xff]
    %v2548 = vld [vmem:[#allocation6 + $0x718] sm:$0xff]
    %v2549 = vld [vmem:[#allocation6 + $0x720] sm:$0xff]
    %v2550 = vld [vmem:[#allocation6 + $0x728] sm:$0xff]
    %v2551 = vld [vmem:[#allocation6 + $0x730] sm:$0xff]
    %v2552 = vld [vmem:[#allocation6 + $0x738] sm:$0xff]
    %v2553 = vld [vmem:[#allocation6 + $0x740] sm:$0xff]
    %v2554 = vld [vmem:[#allocation6 + $0x748] sm:$0xff]
    %v2555 = vld [vmem:[#allocation6 + $0x750] sm:$0xff]
    %v2556 = vld [vmem:[#allocation6 + $0x758] sm:$0xff]
    %v2557 = vld [vmem:[#allocation6 + $0x760] sm:$0xff]
    %v2558 = vld [vmem:[#allocation6 + $0x768] sm:$0xff]
    %v2559 = vld [vmem:[#allocation6 + $0x770] sm:$0xff]
    %v2560 = vld [vmem:[#allocation6 + $0x778] sm:$0xff]
    %v2561 = vld [vmem:[#allocation6 + $0x780] sm:$0xff]
    %v2562 = vld [vmem:[#allocation6 + $0x788] sm:$0xff]
    %v2563 = vld [vmem:[#allocation6 + $0x790] sm:$0xff]
    %v2564 = vld [vmem:[#allocation6 + $0x798] sm:$0xff]
    %v2565 = vld [vmem:[#allocation6 + $0x7a0] sm:$0xff]
    %v2566 = vld [vmem:[#allocation6 + $0x7a8] sm:$0xff]
    %v2567 = vld [vmem:[#allocation6 + $0x7b0] sm:$0xff]
    %v2568 = vld [vmem:[#allocation6 + $0x7b8] sm:$0xff]
    %v2569 = vld [vmem:[#allocation6 + $0x7c0] sm:$0xff]
    %v2570 = vld [vmem:[#allocation6 + $0x7c8] sm:$0xff]
    %v2571 = vld [vmem:[#allocation6 + $0x7d0] sm:$0xff]
    %v2572 = vld [vmem:[#allocation6 + $0x7d8] sm:$0xff]
    %v2573 = vld [vmem:[#allocation6 + $0x7e0] sm:$0xff]
    %v2574 = vld [vmem:[#allocation6 + $0x7e8] sm:$0xff]
    %v2575 = vld [vmem:[#allocation6 + $0x7f0] sm:$0xff]
    %v2576 = vld [vmem:[#allocation6 + $0x7f8] sm:$0xff]
    %v2833 = vunpack.c.l.b16 %v2321
    %v2834 = vunpack.c.h.b16 %v2321
    %v2835 = vunpack.c.l.b16 %v2322
    %v2836 = vunpack.c.h.b16 %v2322
    %v2837 = vunpack.c.l.b16 %v2323
    %v2838 = vunpack.c.h.b16 %v2323
    %v2839 = vunpack.c.l.b16 %v2324
    %v2840 = vunpack.c.h.b16 %v2324
    %v2841 = vunpack.c.l.b16 %v2325
    %v2842 = vunpack.c.h.b16 %v2325
    %v2843 = vunpack.c.l.b16 %v2326
    %v2844 = vunpack.c.h.b16 %v2326
    %v2845 = vunpack.c.l.b16 %v2327
    %v2846 = vunpack.c.h.b16 %v2327
    %v2847 = vunpack.c.l.b16 %v2328
    %v2848 = vunpack.c.h.b16 %v2328
    %v2849 = vunpack.c.l.b16 %v2329
    %v2850 = vunpack.c.h.b16 %v2329
    %v2851 = vunpack.c.l.b16 %v2330
    %v2852 = vunpack.c.h.b16 %v2330
    %v2853 = vunpack.c.l.b16 %v2331
    %v2854 = vunpack.c.h.b16 %v2331
    %v2855 = vunpack.c.l.b16 %v2332
    %v2856 = vunpack.c.h.b16 %v2332
    %v2857 = vunpack.c.l.b16 %v2333
    %v2858 = vunpack.c.h.b16 %v2333
    %v2859 = vunpack.c.l.b16 %v2334
    %v2860 = vunpack.c.h.b16 %v2334
    %v2861 = vunpack.c.l.b16 %v2335
    %v2862 = vunpack.c.h.b16 %v2335
    %v2863 = vunpack.c.l.b16 %v2336
    %v2864 = vunpack.c.h.b16 %v2336
    %v2865 = vunpack.c.l.b16 %v2337
    %v2866 = vunpack.c.h.b16 %v2337
    %v2867 = vunpack.c.l.b16 %v2338
    %v2868 = vunpack.c.h.b16 %v2338
    %v2869 = vunpack.c.l.b16 %v2339
    %v2870 = vunpack.c.h.b16 %v2339
    %v2871 = vunpack.c.l.b16 %v2340
    %v2872 = vunpack.c.h.b16 %v2340
    %v2873 = vunpack.c.l.b16 %v2341
    %v2874 = vunpack.c.h.b16 %v2341
    %v2875 = vunpack.c.l.b16 %v2342
    %v2876 = vunpack.c.h.b16 %v2342
    %v2877 = vunpack.c.l.b16 %v2343
    %v2878 = vunpack.c.h.b16 %v2343
    %v2879 = vunpack.c.l.b16 %v2344
    %v2880 = vunpack.c.h.b16 %v2344
    %v2881 = vunpack.c.l.b16 %v2345
    %v2882 = vunpack.c.h.b16 %v2345
    %v2883 = vunpack.c.l.b16 %v2346
    %v2884 = vunpack.c.h.b16 %v2346
    %v2885 = vunpack.c.l.b16 %v2347
    %v2886 = vunpack.c.h.b16 %v2347
    %v2887 = vunpack.c.l.b16 %v2348
    %v2888 = vunpack.c.h.b16 %v2348
    %v2889 = vunpack.c.l.b16 %v2349
    %v2890 = vunpack.c.h.b16 %v2349
    %v2891 = vunpack.c.l.b16 %v2350
    %v2892 = vunpack.c.h.b16 %v2350
    %v2893 = vunpack.c.l.b16 %v2351
    %v2894 = vunpack.c.h.b16 %v2351
    %v2895 = vunpack.c.l.b16 %v2352
    %v2896 = vunpack.c.h.b16 %v2352
    %v2897 = vunpack.c.l.b16 %v2353
    %v2898 = vunpack.c.h.b16 %v2353
    %v2899 = vunpack.c.l.b16 %v2354
    %v2900 = vunpack.c.h.b16 %v2354
    %v2901 = vunpack.c.l.b16 %v2355
    %v2902 = vunpack.c.h.b16 %v2355
    %v2903 = vunpack.c.l.b16 %v2356
    %v2904 = vunpack.c.h.b16 %v2356
    %v2905 = vunpack.c.l.b16 %v2357
    %v2906 = vunpack.c.h.b16 %v2357
    %v2907 = vunpack.c.l.b16 %v2358
    %v2908 = vunpack.c.h.b16 %v2358
    %v2909 = vunpack.c.l.b16 %v2359
    %v2910 = vunpack.c.h.b16 %v2359
    %v2911 = vunpack.c.l.b16 %v2360
    %v2912 = vunpack.c.h.b16 %v2360
    %v2913 = vunpack.c.l.b16 %v2361
    %v2914 = vunpack.c.h.b16 %v2361
    %v2915 = vunpack.c.l.b16 %v2362
    %v2916 = vunpack.c.h.b16 %v2362
    %v2917 = vunpack.c.l.b16 %v2363
    %v2918 = vunpack.c.h.b16 %v2363
    %v2919 = vunpack.c.l.b16 %v2364
    %v2920 = vunpack.c.h.b16 %v2364
    %v2921 = vunpack.c.l.b16 %v2365
    %v2922 = vunpack.c.h.b16 %v2365
    %v2923 = vunpack.c.l.b16 %v2366
    %v2924 = vunpack.c.h.b16 %v2366
    %v2925 = vunpack.c.l.b16 %v2367
    %v2926 = vunpack.c.h.b16 %v2367
    %v2927 = vunpack.c.l.b16 %v2368
    %v2928 = vunpack.c.h.b16 %v2368
    %v2929 = vunpack.c.l.b16 %v2369
    %v2930 = vunpack.c.h.b16 %v2369
    %v2931 = vunpack.c.l.b16 %v2370
    %v2932 = vunpack.c.h.b16 %v2370
    %v2933 = vunpack.c.l.b16 %v2371
    %v2934 = vunpack.c.h.b16 %v2371
    %v2935 = vunpack.c.l.b16 %v2372
    %v2936 = vunpack.c.h.b16 %v2372
    %v2937 = vunpack.c.l.b16 %v2373
    %v2938 = vunpack.c.h.b16 %v2373
    %v2939 = vunpack.c.l.b16 %v2374
    %v2940 = vunpack.c.h.b16 %v2374
    %v2941 = vunpack.c.l.b16 %v2375
    %v2942 = vunpack.c.h.b16 %v2375
    %v2943 = vunpack.c.l.b16 %v2376
    %v2944 = vunpack.c.h.b16 %v2376
    %v2945 = vunpack.c.l.b16 %v2377
    %v2946 = vunpack.c.h.b16 %v2377
    %v2947 = vunpack.c.l.b16 %v2378
    %v2948 = vunpack.c.h.b16 %v2378
    %v2949 = vunpack.c.l.b16 %v2379
    %v2950 = vunpack.c.h.b16 %v2379
    %v2951 = vunpack.c.l.b16 %v2380
    %v2952 = vunpack.c.h.b16 %v2380
    %v2953 = vunpack.c.l.b16 %v2381
    %v2954 = vunpack.c.h.b16 %v2381
    %v2955 = vunpack.c.l.b16 %v2382
    %v2956 = vunpack.c.h.b16 %v2382
    %v2957 = vunpack.c.l.b16 %v2383
    %v2958 = vunpack.c.h.b16 %v2383
    %v2959 = vunpack.c.l.b16 %v2384
    %v2960 = vunpack.c.h.b16 %v2384
    %v2961 = vunpack.c.l.b16 %v2385
    %v2962 = vunpack.c.h.b16 %v2385
    %v2963 = vunpack.c.l.b16 %v2386
    %v2964 = vunpack.c.h.b16 %v2386
    %v2965 = vunpack.c.l.b16 %v2387
    %v2966 = vunpack.c.h.b16 %v2387
    %v2967 = vunpack.c.l.b16 %v2388
    %v2968 = vunpack.c.h.b16 %v2388
    %v2969 = vunpack.c.l.b16 %v2389
    %v2970 = vunpack.c.h.b16 %v2389
    %v2971 = vunpack.c.l.b16 %v2390
    %v2972 = vunpack.c.h.b16 %v2390
    %v2973 = vunpack.c.l.b16 %v2391
    %v2974 = vunpack.c.h.b16 %v2391
    %v2975 = vunpack.c.l.b16 %v2392
    %v2976 = vunpack.c.h.b16 %v2392
    %v2977 = vunpack.c.l.b16 %v2393
    %v2978 = vunpack.c.h.b16 %v2393
    %v2979 = vunpack.c.l.b16 %v2394
    %v2980 = vunpack.c.h.b16 %v2394
    %v2981 = vunpack.c.l.b16 %v2395
    %v2982 = vunpack.c.h.b16 %v2395
    %v2983 = vunpack.c.l.b16 %v2396
    %v2984 = vunpack.c.h.b16 %v2396
    %v2985 = vunpack.c.l.b16 %v2397
    %v2986 = vunpack.c.h.b16 %v2397
    %v2987 = vunpack.c.l.b16 %v2398
    %v2988 = vunpack.c.h.b16 %v2398
    %v2989 = vunpack.c.l.b16 %v2399
    %v2990 = vunpack.c.h.b16 %v2399
    %v2991 = vunpack.c.l.b16 %v2400
    %v2992 = vunpack.c.h.b16 %v2400
    %v2993 = vunpack.c.l.b16 %v2401
    %v2994 = vunpack.c.h.b16 %v2401
    %v2995 = vunpack.c.l.b16 %v2402
    %v2996 = vunpack.c.h.b16 %v2402
    %v2997 = vunpack.c.l.b16 %v2403
    %v2998 = vunpack.c.h.b16 %v2403
    %v2999 = vunpack.c.l.b16 %v2404
    %v3000 = vunpack.c.h.b16 %v2404
    %v3001 = vunpack.c.l.b16 %v2405
    %v3002 = vunpack.c.h.b16 %v2405
    %v3003 = vunpack.c.l.b16 %v2406
    %v3004 = vunpack.c.h.b16 %v2406
    %v3005 = vunpack.c.l.b16 %v2407
    %v3006 = vunpack.c.h.b16 %v2407
    %v3007 = vunpack.c.l.b16 %v2408
    %v3008 = vunpack.c.h.b16 %v2408
    %v3009 = vunpack.c.l.b16 %v2409
    %v3010 = vunpack.c.h.b16 %v2409
    %v3011 = vunpack.c.l.b16 %v2410
    %v3012 = vunpack.c.h.b16 %v2410
    %v3013 = vunpack.c.l.b16 %v2411
    %v3014 = vunpack.c.h.b16 %v2411
    %v3015 = vunpack.c.l.b16 %v2412
    %v3016 = vunpack.c.h.b16 %v2412
    %v3017 = vunpack.c.l.b16 %v2413
    %v3018 = vunpack.c.h.b16 %v2413
    %v3019 = vunpack.c.l.b16 %v2414
    %v3020 = vunpack.c.h.b16 %v2414
    %v3021 = vunpack.c.l.b16 %v2415
    %v3022 = vunpack.c.h.b16 %v2415
    %v3023 = vunpack.c.l.b16 %v2416
    %v3024 = vunpack.c.h.b16 %v2416
    %v3025 = vunpack.c.l.b16 %v2417
    %v3026 = vunpack.c.h.b16 %v2417
    %v3027 = vunpack.c.l.b16 %v2418
    %v3028 = vunpack.c.h.b16 %v2418
    %v3029 = vunpack.c.l.b16 %v2419
    %v3030 = vunpack.c.h.b16 %v2419
    %v3031 = vunpack.c.l.b16 %v2420
    %v3032 = vunpack.c.h.b16 %v2420
    %v3033 = vunpack.c.l.b16 %v2421
    %v3034 = vunpack.c.h.b16 %v2421
    %v3035 = vunpack.c.l.b16 %v2422
    %v3036 = vunpack.c.h.b16 %v2422
    %v3037 = vunpack.c.l.b16 %v2423
    %v3038 = vunpack.c.h.b16 %v2423
    %v3039 = vunpack.c.l.b16 %v2424
    %v3040 = vunpack.c.h.b16 %v2424
    %v3041 = vunpack.c.l.b16 %v2425
    %v3042 = vunpack.c.h.b16 %v2425
    %v3043 = vunpack.c.l.b16 %v2426
    %v3044 = vunpack.c.h.b16 %v2426
    %v3045 = vunpack.c.l.b16 %v2427
    %v3046 = vunpack.c.h.b16 %v2427
    %v3047 = vunpack.c.l.b16 %v2428
    %v3048 = vunpack.c.h.b16 %v2428
    %v3049 = vunpack.c.l.b16 %v2429
    %v3050 = vunpack.c.h.b16 %v2429
    %v3051 = vunpack.c.l.b16 %v2430
    %v3052 = vunpack.c.h.b16 %v2430
    %v3053 = vunpack.c.l.b16 %v2431
    %v3054 = vunpack.c.h.b16 %v2431
    %v3055 = vunpack.c.l.b16 %v2432
    %v3056 = vunpack.c.h.b16 %v2432
    %v3057 = vunpack.c.l.b16 %v2433
    %v3058 = vunpack.c.h.b16 %v2433
    %v3059 = vunpack.c.l.b16 %v2434
    %v3060 = vunpack.c.h.b16 %v2434
    %v3061 = vunpack.c.l.b16 %v2435
    %v3062 = vunpack.c.h.b16 %v2435
    %v3063 = vunpack.c.l.b16 %v2436
    %v3064 = vunpack.c.h.b16 %v2436
    %v3065 = vunpack.c.l.b16 %v2437
    %v3066 = vunpack.c.h.b16 %v2437
    %v3067 = vunpack.c.l.b16 %v2438
    %v3068 = vunpack.c.h.b16 %v2438
    %v3069 = vunpack.c.l.b16 %v2439
    %v3070 = vunpack.c.h.b16 %v2439
    %v3071 = vunpack.c.l.b16 %v2440
    %v3072 = vunpack.c.h.b16 %v2440
    %v3073 = vunpack.c.l.b16 %v2441
    %v3074 = vunpack.c.h.b16 %v2441
    %v3075 = vunpack.c.l.b16 %v2442
    %v3076 = vunpack.c.h.b16 %v2442
    %v3077 = vunpack.c.l.b16 %v2443
    %v3078 = vunpack.c.h.b16 %v2443
    %v3079 = vunpack.c.l.b16 %v2444
    %v3080 = vunpack.c.h.b16 %v2444
    %v3081 = vunpack.c.l.b16 %v2445
    %v3082 = vunpack.c.h.b16 %v2445
    %v3083 = vunpack.c.l.b16 %v2446
    %v3084 = vunpack.c.h.b16 %v2446
    %v3085 = vunpack.c.l.b16 %v2447
    %v3086 = vunpack.c.h.b16 %v2447
    %v3087 = vunpack.c.l.b16 %v2448
    %v3088 = vunpack.c.h.b16 %v2448
    %v3089 = vunpack.c.l.b16 %v2449
    %v3090 = vunpack.c.h.b16 %v2449
    %v3091 = vunpack.c.l.b16 %v2450
    %v3092 = vunpack.c.h.b16 %v2450
    %v3093 = vunpack.c.l.b16 %v2451
    %v3094 = vunpack.c.h.b16 %v2451
    %v3095 = vunpack.c.l.b16 %v2452
    %v3096 = vunpack.c.h.b16 %v2452
    %v3097 = vunpack.c.l.b16 %v2453
    %v3098 = vunpack.c.h.b16 %v2453
    %v3099 = vunpack.c.l.b16 %v2454
    %v3100 = vunpack.c.h.b16 %v2454
    %v3101 = vunpack.c.l.b16 %v2455
    %v3102 = vunpack.c.h.b16 %v2455
    %v3103 = vunpack.c.l.b16 %v2456
    %v3104 = vunpack.c.h.b16 %v2456
    %v3105 = vunpack.c.l.b16 %v2457
    %v3106 = vunpack.c.h.b16 %v2457
    %v3107 = vunpack.c.l.b16 %v2458
    %v3108 = vunpack.c.h.b16 %v2458
    %v3109 = vunpack.c.l.b16 %v2459
    %v3110 = vunpack.c.h.b16 %v2459
    %v3111 = vunpack.c.l.b16 %v2460
    %v3112 = vunpack.c.h.b16 %v2460
    %v3113 = vunpack.c.l.b16 %v2461
    %v3114 = vunpack.c.h.b16 %v2461
    %v3115 = vunpack.c.l.b16 %v2462
    %v3116 = vunpack.c.h.b16 %v2462
    %v3117 = vunpack.c.l.b16 %v2463
    %v3118 = vunpack.c.h.b16 %v2463
    %v3119 = vunpack.c.l.b16 %v2464
    %v3120 = vunpack.c.h.b16 %v2464
    %v3121 = vunpack.c.l.b16 %v2465
    %v3122 = vunpack.c.h.b16 %v2465
    %v3123 = vunpack.c.l.b16 %v2466
    %v3124 = vunpack.c.h.b16 %v2466
    %v3125 = vunpack.c.l.b16 %v2467
    %v3126 = vunpack.c.h.b16 %v2467
    %v3127 = vunpack.c.l.b16 %v2468
    %v3128 = vunpack.c.h.b16 %v2468
    %v3129 = vunpack.c.l.b16 %v2469
    %v3130 = vunpack.c.h.b16 %v2469
    %v3131 = vunpack.c.l.b16 %v2470
    %v3132 = vunpack.c.h.b16 %v2470
    %v3133 = vunpack.c.l.b16 %v2471
    %v3134 = vunpack.c.h.b16 %v2471
    %v3135 = vunpack.c.l.b16 %v2472
    %v3136 = vunpack.c.h.b16 %v2472
    %v3137 = vunpack.c.l.b16 %v2473
    %v3138 = vunpack.c.h.b16 %v2473
    %v3139 = vunpack.c.l.b16 %v2474
    %v3140 = vunpack.c.h.b16 %v2474
    %v3141 = vunpack.c.l.b16 %v2475
    %v3142 = vunpack.c.h.b16 %v2475
    %v3143 = vunpack.c.l.b16 %v2476
    %v3144 = vunpack.c.h.b16 %v2476
    %v3145 = vunpack.c.l.b16 %v2477
    %v3146 = vunpack.c.h.b16 %v2477
    %v3147 = vunpack.c.l.b16 %v2478
    %v3148 = vunpack.c.h.b16 %v2478
    %v3149 = vunpack.c.l.b16 %v2479
    %v3150 = vunpack.c.h.b16 %v2479
    %v3151 = vunpack.c.l.b16 %v2480
    %v3152 = vunpack.c.h.b16 %v2480
    %v3153 = vunpack.c.l.b16 %v2481
    %v3154 = vunpack.c.h.b16 %v2481
    %v3155 = vunpack.c.l.b16 %v2482
    %v3156 = vunpack.c.h.b16 %v2482
    %v3157 = vunpack.c.l.b16 %v2483
    %v3158 = vunpack.c.h.b16 %v2483
    %v3159 = vunpack.c.l.b16 %v2484
    %v3160 = vunpack.c.h.b16 %v2484
    %v3161 = vunpack.c.l.b16 %v2485
    %v3162 = vunpack.c.h.b16 %v2485
    %v3163 = vunpack.c.l.b16 %v2486
    %v3164 = vunpack.c.h.b16 %v2486
    %v3165 = vunpack.c.l.b16 %v2487
    %v3166 = vunpack.c.h.b16 %v2487
    %v3167 = vunpack.c.l.b16 %v2488
    %v3168 = vunpack.c.h.b16 %v2488
    %v3169 = vunpack.c.l.b16 %v2489
    %v3170 = vunpack.c.h.b16 %v2489
    %v3171 = vunpack.c.l.b16 %v2490
    %v3172 = vunpack.c.h.b16 %v2490
    %v3173 = vunpack.c.l.b16 %v2491
    %v3174 = vunpack.c.h.b16 %v2491
    %v3175 = vunpack.c.l.b16 %v2492
    %v3176 = vunpack.c.h.b16 %v2492
    %v3177 = vunpack.c.l.b16 %v2493
    %v3178 = vunpack.c.h.b16 %v2493
    %v3179 = vunpack.c.l.b16 %v2494
    %v3180 = vunpack.c.h.b16 %v2494
    %v3181 = vunpack.c.l.b16 %v2495
    %v3182 = vunpack.c.h.b16 %v2495
    %v3183 = vunpack.c.l.b16 %v2496
    %v3184 = vunpack.c.h.b16 %v2496
    %v3185 = vunpack.c.l.b16 %v2497
    %v3186 = vunpack.c.h.b16 %v2497
    %v3187 = vunpack.c.l.b16 %v2498
    %v3188 = vunpack.c.h.b16 %v2498
    %v3189 = vunpack.c.l.b16 %v2499
    %v3190 = vunpack.c.h.b16 %v2499
    %v3191 = vunpack.c.l.b16 %v2500
    %v3192 = vunpack.c.h.b16 %v2500
    %v3193 = vunpack.c.l.b16 %v2501
    %v3194 = vunpack.c.h.b16 %v2501
    %v3195 = vunpack.c.l.b16 %v2502
    %v3196 = vunpack.c.h.b16 %v2502
    %v3197 = vunpack.c.l.b16 %v2503
    %v3198 = vunpack.c.h.b16 %v2503
    %v3199 = vunpack.c.l.b16 %v2504
    %v3200 = vunpack.c.h.b16 %v2504
    %v3201 = vunpack.c.l.b16 %v2505
    %v3202 = vunpack.c.h.b16 %v2505
    %v3203 = vunpack.c.l.b16 %v2506
    %v3204 = vunpack.c.h.b16 %v2506
    %v3205 = vunpack.c.l.b16 %v2507
    %v3206 = vunpack.c.h.b16 %v2507
    %v3207 = vunpack.c.l.b16 %v2508
    %v3208 = vunpack.c.h.b16 %v2508
    %v3209 = vunpack.c.l.b16 %v2509
    %v3210 = vunpack.c.h.b16 %v2509
    %v3211 = vunpack.c.l.b16 %v2510
    %v3212 = vunpack.c.h.b16 %v2510
    %v3213 = vunpack.c.l.b16 %v2511
    %v3214 = vunpack.c.h.b16 %v2511
    %v3215 = vunpack.c.l.b16 %v2512
    %v3216 = vunpack.c.h.b16 %v2512
    %v3217 = vunpack.c.l.b16 %v2513
    %v3218 = vunpack.c.h.b16 %v2513
    %v3219 = vunpack.c.l.b16 %v2514
    %v3220 = vunpack.c.h.b16 %v2514
    %v3221 = vunpack.c.l.b16 %v2515
    %v3222 = vunpack.c.h.b16 %v2515
    %v3223 = vunpack.c.l.b16 %v2516
    %v3224 = vunpack.c.h.b16 %v2516
    %v3225 = vunpack.c.l.b16 %v2517
    %v3226 = vunpack.c.h.b16 %v2517
    %v3227 = vunpack.c.l.b16 %v2518
    %v3228 = vunpack.c.h.b16 %v2518
    %v3229 = vunpack.c.l.b16 %v2519
    %v3230 = vunpack.c.h.b16 %v2519
    %v3231 = vunpack.c.l.b16 %v2520
    %v3232 = vunpack.c.h.b16 %v2520
    %v3233 = vunpack.c.l.b16 %v2521
    %v3234 = vunpack.c.h.b16 %v2521
    %v3235 = vunpack.c.l.b16 %v2522
    %v3236 = vunpack.c.h.b16 %v2522
    %v3237 = vunpack.c.l.b16 %v2523
    %v3238 = vunpack.c.h.b16 %v2523
    %v3239 = vunpack.c.l.b16 %v2524
    %v3240 = vunpack.c.h.b16 %v2524
    %v3241 = vunpack.c.l.b16 %v2525
    %v3242 = vunpack.c.h.b16 %v2525
    %v3243 = vunpack.c.l.b16 %v2526
    %v3244 = vunpack.c.h.b16 %v2526
    %v3245 = vunpack.c.l.b16 %v2527
    %v3246 = vunpack.c.h.b16 %v2527
    %v3247 = vunpack.c.l.b16 %v2528
    %v3248 = vunpack.c.h.b16 %v2528
    %v3249 = vunpack.c.l.b16 %v2529
    %v3250 = vunpack.c.h.b16 %v2529
    %v3251 = vunpack.c.l.b16 %v2530
    %v3252 = vunpack.c.h.b16 %v2530
    %v3253 = vunpack.c.l.b16 %v2531
    %v3254 = vunpack.c.h.b16 %v2531
    %v3255 = vunpack.c.l.b16 %v2532
    %v3256 = vunpack.c.h.b16 %v2532
    %v3257 = vunpack.c.l.b16 %v2533
    %v3258 = vunpack.c.h.b16 %v2533
    %v3259 = vunpack.c.l.b16 %v2534
    %v3260 = vunpack.c.h.b16 %v2534
    %v3261 = vunpack.c.l.b16 %v2535
    %v3262 = vunpack.c.h.b16 %v2535
    %v3263 = vunpack.c.l.b16 %v2536
    %v3264 = vunpack.c.h.b16 %v2536
    %v3265 = vunpack.c.l.b16 %v2537
    %v3266 = vunpack.c.h.b16 %v2537
    %v3267 = vunpack.c.l.b16 %v2538
    %v3268 = vunpack.c.h.b16 %v2538
    %v3269 = vunpack.c.l.b16 %v2539
    %v3270 = vunpack.c.h.b16 %v2539
    %v3271 = vunpack.c.l.b16 %v2540
    %v3272 = vunpack.c.h.b16 %v2540
    %v3273 = vunpack.c.l.b16 %v2541
    %v3274 = vunpack.c.h.b16 %v2541
    %v3275 = vunpack.c.l.b16 %v2542
    %v3276 = vunpack.c.h.b16 %v2542
    %v3277 = vunpack.c.l.b16 %v2543
    %v3278 = vunpack.c.h.b16 %v2543
    %v3279 = vunpack.c.l.b16 %v2544
    %v3280 = vunpack.c.h.b16 %v2544
    %v3281 = vunpack.c.l.b16 %v2545
    %v3282 = vunpack.c.h.b16 %v2545
    %v3283 = vunpack.c.l.b16 %v2546
    %v3284 = vunpack.c.h.b16 %v2546
    %v3285 = vunpack.c.l.b16 %v2547
    %v3286 = vunpack.c.h.b16 %v2547
    %v3287 = vunpack.c.l.b16 %v2548
    %v3288 = vunpack.c.h.b16 %v2548
    %v3289 = vunpack.c.l.b16 %v2549
    %v3290 = vunpack.c.h.b16 %v2549
    %v3291 = vunpack.c.l.b16 %v2550
    %v3292 = vunpack.c.h.b16 %v2550
    %v3293 = vunpack.c.l.b16 %v2551
    %v3294 = vunpack.c.h.b16 %v2551
    %v3295 = vunpack.c.l.b16 %v2552
    %v3296 = vunpack.c.h.b16 %v2552
    %v3297 = vunpack.c.l.b16 %v2553
    %v3298 = vunpack.c.h.b16 %v2553
    %v3299 = vunpack.c.l.b16 %v2554
    %v3300 = vunpack.c.h.b16 %v2554
    %v3301 = vunpack.c.l.b16 %v2555
    %v3302 = vunpack.c.h.b16 %v2555
    %v3303 = vunpack.c.l.b16 %v2556
    %v3304 = vunpack.c.h.b16 %v2556
    %v3305 = vunpack.c.l.b16 %v2557
    %v3306 = vunpack.c.h.b16 %v2557
    %v3307 = vunpack.c.l.b16 %v2558
    %v3308 = vunpack.c.h.b16 %v2558
    %v3309 = vunpack.c.l.b16 %v2559
    %v3310 = vunpack.c.h.b16 %v2559
    %v3311 = vunpack.c.l.b16 %v2560
    %v3312 = vunpack.c.h.b16 %v2560
    %v3313 = vunpack.c.l.b16 %v2561
    %v3314 = vunpack.c.h.b16 %v2561
    %v3315 = vunpack.c.l.b16 %v2562
    %v3316 = vunpack.c.h.b16 %v2562
    %v3317 = vunpack.c.l.b16 %v2563
    %v3318 = vunpack.c.h.b16 %v2563
    %v3319 = vunpack.c.l.b16 %v2564
    %v3320 = vunpack.c.h.b16 %v2564
    %v3321 = vunpack.c.l.b16 %v2565
    %v3322 = vunpack.c.h.b16 %v2565
    %v3323 = vunpack.c.l.b16 %v2566
    %v3324 = vunpack.c.h.b16 %v2566
    %v3325 = vunpack.c.l.b16 %v2567
    %v3326 = vunpack.c.h.b16 %v2567
    %v3327 = vunpack.c.l.b16 %v2568
    %v3328 = vunpack.c.h.b16 %v2568
    %v3329 = vunpack.c.l.b16 %v2569
    %v3330 = vunpack.c.h.b16 %v2569
    %v3331 = vunpack.c.l.b16 %v2570
    %v3332 = vunpack.c.h.b16 %v2570
    %v3333 = vunpack.c.l.b16 %v2571
    %v3334 = vunpack.c.h.b16 %v2571
    %v3335 = vunpack.c.l.b16 %v2572
    %v3336 = vunpack.c.h.b16 %v2572
    %v3337 = vunpack.c.l.b16 %v2573
    %v3338 = vunpack.c.h.b16 %v2573
    %v3339 = vunpack.c.l.b16 %v2574
    %v3340 = vunpack.c.h.b16 %v2574
    %v3341 = vunpack.c.l.b16 %v2575
    %v3342 = vunpack.c.h.b16 %v2575
    %v3343 = vunpack.c.l.b16 %v2576
    %v3344 = vunpack.c.h.b16 %v2576
    %v3345 = vpack.c.b16 %v2837, %v2833
    %v3346 = vpack.c.b16 %v2838, %v2834
    %v3347 = vpack.c.b16 %v2839, %v2835
    %v3348 = vpack.c.b16 %v2840, %v2836
    %v3349 = vpack.c.b16 %v2845, %v2841
    %v3350 = vpack.c.b16 %v2846, %v2842
    %v3351 = vpack.c.b16 %v2847, %v2843
    %v3352 = vpack.c.b16 %v2848, %v2844
    %v3353 = vpack.c.b16 %v2853, %v2849
    %v3354 = vpack.c.b16 %v2854, %v2850
    %v3355 = vpack.c.b16 %v2855, %v2851
    %v3356 = vpack.c.b16 %v2856, %v2852
    %v3357 = vpack.c.b16 %v2861, %v2857
    %v3358 = vpack.c.b16 %v2862, %v2858
    %v3359 = vpack.c.b16 %v2863, %v2859
    %v3360 = vpack.c.b16 %v2864, %v2860
    %v3361 = vpack.c.b16 %v2869, %v2865
    %v3362 = vpack.c.b16 %v2870, %v2866
    %v3363 = vpack.c.b16 %v2871, %v2867
    %v3364 = vpack.c.b16 %v2872, %v2868
    %v3365 = vpack.c.b16 %v2877, %v2873
    %v3366 = vpack.c.b16 %v2878, %v2874
    %v3367 = vpack.c.b16 %v2879, %v2875
    %v3368 = vpack.c.b16 %v2880, %v2876
    %v3369 = vpack.c.b16 %v2885, %v2881
    %v3370 = vpack.c.b16 %v2886, %v2882
    %v3371 = vpack.c.b16 %v2887, %v2883
    %v3372 = vpack.c.b16 %v2888, %v2884
    %v3373 = vpack.c.b16 %v2893, %v2889
    %v3374 = vpack.c.b16 %v2894, %v2890
    %v3375 = vpack.c.b16 %v2895, %v2891
    %v3376 = vpack.c.b16 %v2896, %v2892
    %v3377 = vpack.c.b16 %v2901, %v2897
    %v3378 = vpack.c.b16 %v2902, %v2898
    %v3379 = vpack.c.b16 %v2903, %v2899
    %v3380 = vpack.c.b16 %v2904, %v2900
    %v3381 = vpack.c.b16 %v2909, %v2905
    %v3382 = vpack.c.b16 %v2910, %v2906
    %v3383 = vpack.c.b16 %v2911, %v2907
    %v3384 = vpack.c.b16 %v2912, %v2908
    %v3385 = vpack.c.b16 %v2917, %v2913
    %v3386 = vpack.c.b16 %v2918, %v2914
    %v3387 = vpack.c.b16 %v2919, %v2915
    %v3388 = vpack.c.b16 %v2920, %v2916
    %v3389 = vpack.c.b16 %v2925, %v2921
    %v3390 = vpack.c.b16 %v2926, %v2922
    %v3391 = vpack.c.b16 %v2927, %v2923
    %v3392 = vpack.c.b16 %v2928, %v2924
    %v3393 = vpack.c.b16 %v2933, %v2929
    %v3394 = vpack.c.b16 %v2934, %v2930
    %v3395 = vpack.c.b16 %v2935, %v2931
    %v3396 = vpack.c.b16 %v2936, %v2932
    %v3397 = vpack.c.b16 %v2941, %v2937
    %v3398 = vpack.c.b16 %v2942, %v2938
    %v3399 = vpack.c.b16 %v2943, %v2939
    %v3400 = vpack.c.b16 %v2944, %v2940
    %v3401 = vpack.c.b16 %v2949, %v2945
    %v3402 = vpack.c.b16 %v2950, %v2946
    %v3403 = vpack.c.b16 %v2951, %v2947
    %v3404 = vpack.c.b16 %v2952, %v2948
    %v3405 = vpack.c.b16 %v2957, %v2953
    %v3406 = vpack.c.b16 %v2958, %v2954
    %v3407 = vpack.c.b16 %v2959, %v2955
    %v3408 = vpack.c.b16 %v2960, %v2956
    %v3409 = vpack.c.b16 %v2965, %v2961
    %v3410 = vpack.c.b16 %v2966, %v2962
    %v3411 = vpack.c.b16 %v2967, %v2963
    %v3412 = vpack.c.b16 %v2968, %v2964
    %v3413 = vpack.c.b16 %v2973, %v2969
    %v3414 = vpack.c.b16 %v2974, %v2970
    %v3415 = vpack.c.b16 %v2975, %v2971
    %v3416 = vpack.c.b16 %v2976, %v2972
    %v3417 = vpack.c.b16 %v2981, %v2977
    %v3418 = vpack.c.b16 %v2982, %v2978
    %v3419 = vpack.c.b16 %v2983, %v2979
    %v3420 = vpack.c.b16 %v2984, %v2980
    %v3421 = vpack.c.b16 %v2989, %v2985
    %v3422 = vpack.c.b16 %v2990, %v2986
    %v3423 = vpack.c.b16 %v2991, %v2987
    %v3424 = vpack.c.b16 %v2992, %v2988
    %v3425 = vpack.c.b16 %v2997, %v2993
    %v3426 = vpack.c.b16 %v2998, %v2994
    %v3427 = vpack.c.b16 %v2999, %v2995
    %v3428 = vpack.c.b16 %v3000, %v2996
    %v3429 = vpack.c.b16 %v3005, %v3001
    %v3430 = vpack.c.b16 %v3006, %v3002
    %v3431 = vpack.c.b16 %v3007, %v3003
    %v3432 = vpack.c.b16 %v3008, %v3004
    %v3433 = vpack.c.b16 %v3013, %v3009
    %v3434 = vpack.c.b16 %v3014, %v3010
    %v3435 = vpack.c.b16 %v3015, %v3011
    %v3436 = vpack.c.b16 %v3016, %v3012
    %v3437 = vpack.c.b16 %v3021, %v3017
    %v3438 = vpack.c.b16 %v3022, %v3018
    %v3439 = vpack.c.b16 %v3023, %v3019
    %v3440 = vpack.c.b16 %v3024, %v3020
    %v3441 = vpack.c.b16 %v3029, %v3025
    %v3442 = vpack.c.b16 %v3030, %v3026
    %v3443 = vpack.c.b16 %v3031, %v3027
    %v3444 = vpack.c.b16 %v3032, %v3028
    %v3445 = vpack.c.b16 %v3037, %v3033
    %v3446 = vpack.c.b16 %v3038, %v3034
    %v3447 = vpack.c.b16 %v3039, %v3035
    %v3448 = vpack.c.b16 %v3040, %v3036
    %v3449 = vpack.c.b16 %v3045, %v3041
    %v3450 = vpack.c.b16 %v3046, %v3042
    %v3451 = vpack.c.b16 %v3047, %v3043
    %v3452 = vpack.c.b16 %v3048, %v3044
    %v3453 = vpack.c.b16 %v3053, %v3049
    %v3454 = vpack.c.b16 %v3054, %v3050
    %v3455 = vpack.c.b16 %v3055, %v3051
    %v3456 = vpack.c.b16 %v3056, %v3052
    %v3457 = vpack.c.b16 %v3061, %v3057
    %v3458 = vpack.c.b16 %v3062, %v3058
    %v3459 = vpack.c.b16 %v3063, %v3059
    %v3460 = vpack.c.b16 %v3064, %v3060
    %v3461 = vpack.c.b16 %v3069, %v3065
    %v3462 = vpack.c.b16 %v3070, %v3066
    %v3463 = vpack.c.b16 %v3071, %v3067
    %v3464 = vpack.c.b16 %v3072, %v3068
    %v3465 = vpack.c.b16 %v3077, %v3073
    %v3466 = vpack.c.b16 %v3078, %v3074
    %v3467 = vpack.c.b16 %v3079, %v3075
    %v3468 = vpack.c.b16 %v3080, %v3076
    %v3469 = vpack.c.b16 %v3085, %v3081
    %v3470 = vpack.c.b16 %v3086, %v3082
    %v3471 = vpack.c.b16 %v3087, %v3083
    %v3472 = vpack.c.b16 %v3088, %v3084
    %v3473 = vpack.c.b16 %v3093, %v3089
    %v3474 = vpack.c.b16 %v3094, %v3090
    %v3475 = vpack.c.b16 %v3095, %v3091
    %v3476 = vpack.c.b16 %v3096, %v3092
    %v3477 = vpack.c.b16 %v3101, %v3097
    %v3478 = vpack.c.b16 %v3102, %v3098
    %v3479 = vpack.c.b16 %v3103, %v3099
    %v3480 = vpack.c.b16 %v3104, %v3100
    %v3481 = vpack.c.b16 %v3109, %v3105
    %v3482 = vpack.c.b16 %v3110, %v3106
    %v3483 = vpack.c.b16 %v3111, %v3107
    %v3484 = vpack.c.b16 %v3112, %v3108
    %v3485 = vpack.c.b16 %v3117, %v3113
    %v3486 = vpack.c.b16 %v3118, %v3114
    %v3487 = vpack.c.b16 %v3119, %v3115
    %v3488 = vpack.c.b16 %v3120, %v3116
    %v3489 = vpack.c.b16 %v3125, %v3121
    %v3490 = vpack.c.b16 %v3126, %v3122
    %v3491 = vpack.c.b16 %v3127, %v3123
    %v3492 = vpack.c.b16 %v3128, %v3124
    %v3493 = vpack.c.b16 %v3133, %v3129
    %v3494 = vpack.c.b16 %v3134, %v3130
    %v3495 = vpack.c.b16 %v3135, %v3131
    %v3496 = vpack.c.b16 %v3136, %v3132
    %v3497 = vpack.c.b16 %v3141, %v3137
    %v3498 = vpack.c.b16 %v3142, %v3138
    %v3499 = vpack.c.b16 %v3143, %v3139
    %v3500 = vpack.c.b16 %v3144, %v3140
    %v3501 = vpack.c.b16 %v3149, %v3145
    %v3502 = vpack.c.b16 %v3150, %v3146
    %v3503 = vpack.c.b16 %v3151, %v3147
    %v3504 = vpack.c.b16 %v3152, %v3148
    %v3505 = vpack.c.b16 %v3157, %v3153
    %v3506 = vpack.c.b16 %v3158, %v3154
    %v3507 = vpack.c.b16 %v3159, %v3155
    %v3508 = vpack.c.b16 %v3160, %v3156
    %v3509 = vpack.c.b16 %v3165, %v3161
    %v3510 = vpack.c.b16 %v3166, %v3162
    %v3511 = vpack.c.b16 %v3167, %v3163
    %v3512 = vpack.c.b16 %v3168, %v3164
    %v3513 = vpack.c.b16 %v3173, %v3169
    %v3514 = vpack.c.b16 %v3174, %v3170
    %v3515 = vpack.c.b16 %v3175, %v3171
    %v3516 = vpack.c.b16 %v3176, %v3172
    %v3517 = vpack.c.b16 %v3181, %v3177
    %v3518 = vpack.c.b16 %v3182, %v3178
    %v3519 = vpack.c.b16 %v3183, %v3179
    %v3520 = vpack.c.b16 %v3184, %v3180
    %v3521 = vpack.c.b16 %v3189, %v3185
    %v3522 = vpack.c.b16 %v3190, %v3186
    %v3523 = vpack.c.b16 %v3191, %v3187
    %v3524 = vpack.c.b16 %v3192, %v3188
    %v3525 = vpack.c.b16 %v3197, %v3193
    %v3526 = vpack.c.b16 %v3198, %v3194
    %v3527 = vpack.c.b16 %v3199, %v3195
    %v3528 = vpack.c.b16 %v3200, %v3196
    %v3529 = vpack.c.b16 %v3205, %v3201
    %v3530 = vpack.c.b16 %v3206, %v3202
    %v3531 = vpack.c.b16 %v3207, %v3203
    %v3532 = vpack.c.b16 %v3208, %v3204
    %v3533 = vpack.c.b16 %v3213, %v3209
    %v3534 = vpack.c.b16 %v3214, %v3210
    %v3535 = vpack.c.b16 %v3215, %v3211
    %v3536 = vpack.c.b16 %v3216, %v3212
    %v3537 = vpack.c.b16 %v3221, %v3217
    %v3538 = vpack.c.b16 %v3222, %v3218
    %v3539 = vpack.c.b16 %v3223, %v3219
    %v3540 = vpack.c.b16 %v3224, %v3220
    %v3541 = vpack.c.b16 %v3229, %v3225
    %v3542 = vpack.c.b16 %v3230, %v3226
    %v3543 = vpack.c.b16 %v3231, %v3227
    %v3544 = vpack.c.b16 %v3232, %v3228
    %v3545 = vpack.c.b16 %v3237, %v3233
    %v3546 = vpack.c.b16 %v3238, %v3234
    %v3547 = vpack.c.b16 %v3239, %v3235
    %v3548 = vpack.c.b16 %v3240, %v3236
    %v3549 = vpack.c.b16 %v3245, %v3241
    %v3550 = vpack.c.b16 %v3246, %v3242
    %v3551 = vpack.c.b16 %v3247, %v3243
    %v3552 = vpack.c.b16 %v3248, %v3244
    %v3553 = vpack.c.b16 %v3253, %v3249
    %v3554 = vpack.c.b16 %v3254, %v3250
    %v3555 = vpack.c.b16 %v3255, %v3251
    %v3556 = vpack.c.b16 %v3256, %v3252
    %v3557 = vpack.c.b16 %v3261, %v3257
    %v3558 = vpack.c.b16 %v3262, %v3258
    %v3559 = vpack.c.b16 %v3263, %v3259
    %v3560 = vpack.c.b16 %v3264, %v3260
    %v3561 = vpack.c.b16 %v3269, %v3265
    %v3562 = vpack.c.b16 %v3270, %v3266
    %v3563 = vpack.c.b16 %v3271, %v3267
    %v3564 = vpack.c.b16 %v3272, %v3268
    %v3565 = vpack.c.b16 %v3277, %v3273
    %v3566 = vpack.c.b16 %v3278, %v3274
    %v3567 = vpack.c.b16 %v3279, %v3275
    %v3568 = vpack.c.b16 %v3280, %v3276
    %v3569 = vpack.c.b16 %v3285, %v3281
    %v3570 = vpack.c.b16 %v3286, %v3282
    %v3571 = vpack.c.b16 %v3287, %v3283
    %v3572 = vpack.c.b16 %v3288, %v3284
    %v3573 = vpack.c.b16 %v3293, %v3289
    %v3574 = vpack.c.b16 %v3294, %v3290
    %v3575 = vpack.c.b16 %v3295, %v3291
    %v3576 = vpack.c.b16 %v3296, %v3292
    %v3577 = vpack.c.b16 %v3301, %v3297
    %v3578 = vpack.c.b16 %v3302, %v3298
    %v3579 = vpack.c.b16 %v3303, %v3299
    %v3580 = vpack.c.b16 %v3304, %v3300
    %v3581 = vpack.c.b16 %v3309, %v3305
    %v3582 = vpack.c.b16 %v3310, %v3306
    %v3583 = vpack.c.b16 %v3311, %v3307
    %v3584 = vpack.c.b16 %v3312, %v3308
    %v3585 = vpack.c.b16 %v3317, %v3313
    %v3586 = vpack.c.b16 %v3318, %v3314
    %v3587 = vpack.c.b16 %v3319, %v3315
    %v3588 = vpack.c.b16 %v3320, %v3316
    %v3589 = vpack.c.b16 %v3325, %v3321
    %v3590 = vpack.c.b16 %v3326, %v3322
    %v3591 = vpack.c.b16 %v3327, %v3323
    %v3592 = vpack.c.b16 %v3328, %v3324
    %v3593 = vpack.c.b16 %v3333, %v3329
    %v3594 = vpack.c.b16 %v3334, %v3330
    %v3595 = vpack.c.b16 %v3335, %v3331
    %v3596 = vpack.c.b16 %v3336, %v3332
    %v3597 = vpack.c.b16 %v3341, %v3337
    %v3598 = vpack.c.b16 %v3342, %v3338
    %v3599 = vpack.c.b16 %v3343, %v3339
    %v3600 = vpack.c.b16 %v3344, %v3340
    %3857 = vmatprep.subr.bf16.mxu0 %v3346
    %3858 = vmatpush1.bf16.msra.mxu0 %v3345
    %3859 = vmatprep.subr.bf16.mxu0 %v3350
    %3860 = vmatpush1.bf16.msra.mxu0 %v3349
    %3861 = vmatprep.subr.bf16.mxu0 %v3354
    %3862 = vmatpush1.bf16.msra.mxu0 %v3353
    %3863 = vmatprep.subr.bf16.mxu0 %v3358
    %3864 = vmatpush1.bf16.msra.mxu0 %v3357
    %3865 = vmatprep.subr.bf16.mxu0 %v3362
    %3866 = vmatpush1.bf16.msra.mxu0 %v3361
    %3867 = vmatprep.subr.bf16.mxu0 %v3366
    %3868 = vmatpush1.bf16.msra.mxu0 %v3365
    %3869 = vmatprep.subr.bf16.mxu0 %v3370
    %3870 = vmatpush1.bf16.msra.mxu0 %v3369
    %3871 = vmatprep.subr.bf16.mxu0 %v3374
    %3872 = vmatpush1.bf16.msra.mxu0 %v3373
    %3873 = vmatprep.subr.bf16.mxu0 %v3378
    %3874 = vmatpush1.bf16.msra.mxu0 %v3377
    %3875 = vmatprep.subr.bf16.mxu0 %v3382
    %3876 = vmatpush1.bf16.msra.mxu0 %v3381
    %3877 = vmatprep.subr.bf16.mxu0 %v3386
    %3878 = vmatpush1.bf16.msra.mxu0 %v3385
    %3879 = vmatprep.subr.bf16.mxu0 %v3390
    %3880 = vmatpush1.bf16.msra.mxu0 %v3389
    %3881 = vmatprep.subr.bf16.mxu0 %v3394
    %3882 = vmatpush1.bf16.msra.mxu0 %v3393
    %3883 = vmatprep.subr.bf16.mxu0 %v3398
    %3884 = vmatpush1.bf16.msra.mxu0 %v3397
    %3885 = vmatprep.subr.bf16.mxu0 %v3402
    %3886 = vmatpush1.bf16.msra.mxu0 %v3401
    %3887 = vmatprep.subr.bf16.mxu0 %v3406
    %3888 = vmatpush1.bf16.msra.mxu0 %v3405
    %3889 = vmatprep.mubr.bf16.mxu0 %v2314
    %3890 = vmatmul.mubr.bf16.gmra.mrb[0].mxu0 %v2313
    %v3891 = vpop.f32.mrb[0].mxu0
    %v3892 = vadd.f32 0.0, %v3891
    %v3893 = vpop.f32.mrb[0].mxu0
    %v3894 = vadd.f32 0.0, %v3893
    %v3895 = vpop.f32.mrb[0].mxu0
    %v3896 = vpop.f32.mrb[0].mxu0
    %3897 = vdwg.mxu0
    %3898 = vmatprep.subr.bf16.mxu0 %v3410
    %3899 = vmatpush1.bf16.msra.mxu0 %v3409
    %3900 = vmatprep.subr.bf16.mxu0 %v3414
    %3901 = vmatpush1.bf16.msra.mxu0 %v3413
    %3902 = vmatprep.subr.bf16.mxu0 %v3418
    %3903 = vmatpush1.bf16.msra.mxu0 %v3417
    %3904 = vmatprep.subr.bf16.mxu0 %v3422
    %3905 = vmatpush1.bf16.msra.mxu0 %v3421
    %3906 = vmatprep.subr.bf16.mxu0 %v3426
    %3907 = vmatpush1.bf16.msra.mxu0 %v3425
    %3908 = vmatprep.subr.bf16.mxu0 %v3430
    %3909 = vmatpush1.bf16.msra.mxu0 %v3429
    %3910 = vmatprep.subr.bf16.mxu0 %v3434
    %3911 = vmatpush1.bf16.msra.mxu0 %v3433
    %3912 = vmatprep.subr.bf16.mxu0 %v3438
    %3913 = vmatpush1.bf16.msra.mxu0 %v3437
    %3914 = vmatprep.subr.bf16.mxu0 %v3442
    %3915 = vmatpush1.bf16.msra.mxu0 %v3441
    %3916 = vmatprep.subr.bf16.mxu0 %v3446
    %3917 = vmatpush1.bf16.msra.mxu0 %v3445
    %3918 = vmatprep.subr.bf16.mxu0 %v3450
    %3919 = vmatpush1.bf16.msra.mxu0 %v3449
    %3920 = vmatprep.subr.bf16.mxu0 %v3454
    %3921 = vmatpush1.bf16.msra.mxu0 %v3453
    %3922 = vmatprep.subr.bf16.mxu0 %v3458
    %3923 = vmatpush1.bf16.msra.mxu0 %v3457
    %3924 = vmatprep.subr.bf16.mxu0 %v3462
    %3925 = vmatpush1.bf16.msra.mxu0 %v3461
    %3926 = vmatprep.subr.bf16.mxu0 %v3466
    %3927 = vmatpush1.bf16.msra.mxu0 %v3465
    %3928 = vmatprep.subr.bf16.mxu0 %v3470
    %3929 = vmatpush1.bf16.msra.mxu0 %v3469
    %3930 = vmatprep.mubr.bf16.mxu0 %v2316
    %3931 = vmatmul.mubr.bf16.gmra.mrb[0].mxu0 %v2315
    %v3932 = vpop.f32.mrb[0].mxu0
    %v3933 = vadd.f32 %v3892, %v3932
    %v3934 = vpop.f32.mrb[0].mxu0
    %v3935 = vadd.f32 %v3894, %v3934
    %v3936 = vpop.f32.mrb[0].mxu0
    %v3937 = vpop.f32.mrb[0].mxu0
    %3938 = vdwg.mxu0
    %3939 = vmatprep.subr.bf16.mxu0 %v3474
    %3940 = vmatpush1.bf16.msra.mxu0 %v3473
    %3941 = vmatprep.subr.bf16.mxu0 %v3478
    %3942 = vmatpush1.bf16.msra.mxu0 %v3477
    %3943 = vmatprep.subr.bf16.mxu0 %v3482
    %3944 = vmatpush1.bf16.msra.mxu0 %v3481
    %3945 = vmatprep.subr.bf16.mxu0 %v3486
    %3946 = vmatpush1.bf16.msra.mxu0 %v3485
    %3947 = vmatprep.subr.bf16.mxu0 %v3490
    %3948 = vmatpush1.bf16.msra.mxu0 %v3489
    %3949 = vmatprep.subr.bf16.mxu0 %v3494
    %3950 = vmatpush1.bf16.msra.mxu0 %v3493
    %3951 = vmatprep.subr.bf16.mxu0 %v3498
    %3952 = vmatpush1.bf16.msra.mxu0 %v3497
    %3953 = vmatprep.subr.bf16.mxu0 %v3502
    %3954 = vmatpush1.bf16.msra.mxu0 %v3501
    %3955 = vmatprep.subr.bf16.mxu0 %v3506
    %3956 = vmatpush1.bf16.msra.mxu0 %v3505
    %3957 = vmatprep.subr.bf16.mxu0 %v3510
    %3958 = vmatpush1.bf16.msra.mxu0 %v3509
    %3959 = vmatprep.subr.bf16.mxu0 %v3514
    %3960 = vmatpush1.bf16.msra.mxu0 %v3513
    %3961 = vmatprep.subr.bf16.mxu0 %v3518
    %3962 = vmatpush1.bf16.msra.mxu0 %v3517
    %3963 = vmatprep.subr.bf16.mxu0 %v3522
    %3964 = vmatpush1.bf16.msra.mxu0 %v3521
    %3965 = vmatprep.subr.bf16.mxu0 %v3526
    %3966 = vmatpush1.bf16.msra.mxu0 %v3525
    %3967 = vmatprep.subr.bf16.mxu0 %v3530
    %3968 = vmatpush1.bf16.msra.mxu0 %v3529
    %3969 = vmatprep.subr.bf16.mxu0 %v3534
    %3970 = vmatpush1.bf16.msra.mxu0 %v3533
    %3971 = vmatprep.mubr.bf16.mxu0 %v2318
    %3972 = vmatmul.mubr.bf16.gmra.mrb[0].mxu0 %v2317
    %v3973 = vpop.f32.mrb[0].mxu0
    %v3974 = vadd.f32 %v3933, %v3973
    %v3975 = vpop.f32.mrb[0].mxu0
    %v3976 = vadd.f32 %v3935, %v3975
    %v3977 = vpop.f32.mrb[0].mxu0
    %v3978 = vpop.f32.mrb[0].mxu0
    %3979 = vdwg.mxu0
    %3980 = vmatprep.subr.bf16.mxu0 %v3538
    %3981 = vmatpush1.bf16.msra.mxu0 %v3537
    %3982 = vmatprep.subr.bf16.mxu0 %v3542
    %3983 = vmatpush1.bf16.msra.mxu0 %v3541
    %3984 = vmatprep.subr.bf16.mxu0 %v3546
    %3985 = vmatpush1.bf16.msra.mxu0 %v3545
    %3986 = vmatprep.subr.bf16.mxu0 %v3550
    %3987 = vmatpush1.bf16.msra.mxu0 %v3549
    %3988 = vmatprep.subr.bf16.mxu0 %v3554
    %3989 = vmatpush1.bf16.msra.mxu0 %v3553
    %3990 = vmatprep.subr.bf16.mxu0 %v3558
    %3991 = vmatpush1.bf16.msra.mxu0 %v3557
    %3992 = vmatprep.subr.bf16.mxu0 %v3562
    %3993 = vmatpush1.bf16.msra.mxu0 %v3561
    %3994 = vmatprep.subr.bf16.mxu0 %v3566
    %3995 = vmatpush1.bf16.msra.mxu0 %v3565
    %3996 = vmatprep.subr.bf16.mxu0 %v3570
    %3997 = vmatpush1.bf16.msra.mxu0 %v3569
    %3998 = vmatprep.subr.bf16.mxu0 %v3574
    %3999 = vmatpush1.bf16.msra.mxu0 %v3573
    %4000 = vmatprep.subr.bf16.mxu0 %v3578
    %4001 = vmatpush1.bf16.msra.mxu0 %v3577
    %4002 = vmatprep.subr.bf16.mxu0 %v3582
    %4003 = vmatpush1.bf16.msra.mxu0 %v3581
    %4004 = vmatprep.subr.bf16.mxu0 %v3586
    %4005 = vmatpush1.bf16.msra.mxu0 %v3585
    %4006 = vmatprep.subr.bf16.mxu0 %v3590
    %4007 = vmatpush1.bf16.msra.mxu0 %v3589
    %4008 = vmatprep.subr.bf16.mxu0 %v3594
    %4009 = vmatpush1.bf16.msra.mxu0 %v3593
    %4010 = vmatprep.subr.bf16.mxu0 %v3598
    %4011 = vmatpush1.bf16.msra.mxu0 %v3597
    %4012 = vmatprep.mubr.bf16.mxu0 %v2320
    %4013 = vmatmul.mubr.bf16.gmra.mrb[0].mxu0 %v2319
    %v4014 = vpop.f32.mrb[0].mxu0
    %v4015 = vadd.f32 %v3974, %v4014
    %v4016 = vpop.f32.mrb[0].mxu0
    %v4017 = vadd.f32 %v3976, %v4016
    %v4018 = vpop.f32.mrb[0].mxu0
    %v4019 = vpop.f32.mrb[0].mxu0
    %4020 = vdwg.mxu0
    %4021 = vmatprep.subr.bf16.mxu0 %v3348
    %4022 = vmatpush1.bf16.msra.mxu0 %v3347
    %4023 = vmatprep.subr.bf16.mxu0 %v3352
    %4024 = vmatpush1.bf16.msra.mxu0 %v3351
    %4025 = vmatprep.subr.bf16.mxu0 %v3356
    %4026 = vmatpush1.bf16.msra.mxu0 %v3355
    %4027 = vmatprep.subr.bf16.mxu0 %v3360
    %4028 = vmatpush1.bf16.msra.mxu0 %v3359
    %4029 = vmatprep.subr.bf16.mxu0 %v3364
    %4030 = vmatpush1.bf16.msra.mxu0 %v3363
    %4031 = vmatprep.subr.bf16.mxu0 %v3368
    %4032 = vmatpush1.bf16.msra.mxu0 %v3367
    %4033 = vmatprep.subr.bf16.mxu0 %v3372
    %4034 = vmatpush1.bf16.msra.mxu0 %v3371
    %4035 = vmatprep.subr.bf16.mxu0 %v3376
    %4036 = vmatpush1.bf16.msra.mxu0 %v3375
    %4037 = vmatprep.subr.bf16.mxu0 %v3380
    %4038 = vmatpush1.bf16.msra.mxu0 %v3379
    %4039 = vmatprep.subr.bf16.mxu0 %v3384
    %4040 = vmatpush1.bf16.msra.mxu0 %v3383
    %4041 = vmatprep.subr.bf16.mxu0 %v3388
    %4042 = vmatpush1.bf16.msra.mxu0 %v3387
    %4043 = vmatprep.subr.bf16.mxu0 %v3392
    %4044 = vmatpush1.bf16.msra.mxu0 %v3391
    %4045 = vmatprep.subr.bf16.mxu0 %v3396
    %4046 = vmatpush1.bf16.msra.mxu0 %v3395
    %4047 = vmatprep.subr.bf16.mxu0 %v3400
    %4048 = vmatpush1.bf16.msra.mxu0 %v3399
    %4049 = vmatprep.subr.bf16.mxu0 %v3404
    %4050 = vmatpush1.bf16.msra.mxu0 %v3403
    %4051 = vmatprep.subr.bf16.mxu0 %v3408
    %4052 = vmatpush1.bf16.msra.mxu0 %v3407
    %4053 = vmatprep.mubr.bf16.mxu0 %v2314
    %4054 = vmatmul.mubr.bf16.gmra.mrb[0].mxu0 %v2313
    %v4055 = vpop.f32.mrb[0].mxu0
    %v4056 = vadd.f32 0.0, %v4055
    %v4057 = vpop.f32.mrb[0].mxu0
    %v4058 = vadd.f32 0.0, %v4057
    %v4059 = vpop.f32.mrb[0].mxu0
    %v4060 = vpop.f32.mrb[0].mxu0
    %4061 = vdwg.mxu0
    %4062 = vmatprep.subr.bf16.mxu0 %v3412
    %4063 = vmatpush1.bf16.msra.mxu0 %v3411
    %4064 = vmatprep.subr.bf16.mxu0 %v3416
    %4065 = vmatpush1.bf16.msra.mxu0 %v3415
    %4066 = vmatprep.subr.bf16.mxu0 %v3420
    %4067 = vmatpush1.bf16.msra.mxu0 %v3419
    %4068 = vmatprep.subr.bf16.mxu0 %v3424
    %4069 = vmatpush1.bf16.msra.mxu0 %v3423
    %4070 = vmatprep.subr.bf16.mxu0 %v3428
    %4071 = vmatpush1.bf16.msra.mxu0 %v3427
    %4072 = vmatprep.subr.bf16.mxu0 %v3432
    %4073 = vmatpush1.bf16.msra.mxu0 %v3431
    %4074 = vmatprep.subr.bf16.mxu0 %v3436
    %4075 = vmatpush1.bf16.msra.mxu0 %v3435
    %4076 = vmatprep.subr.bf16.mxu0 %v3440
    %4077 = vmatpush1.bf16.msra.mxu0 %v3439
    %4078 = vmatprep.subr.bf16.mxu0 %v3444
    %4079 = vmatpush1.bf16.msra.mxu0 %v3443
    %4080 = vmatprep.subr.bf16.mxu0 %v3448
    %4081 = vmatpush1.bf16.msra.mxu0 %v3447
    %4082 = vmatprep.subr.bf16.mxu0 %v3452
    %4083 = vmatpush1.bf16.msra.mxu0 %v3451
    %4084 = vmatprep.subr.bf16.mxu0 %v3456
    %4085 = vmatpush1.bf16.msra.mxu0 %v3455
    %4086 = vmatprep.subr.bf16.mxu0 %v3460
    %4087 = vmatpush1.bf16.msra.mxu0 %v3459
    %4088 = vmatprep.subr.bf16.mxu0 %v3464
    %4089 = vmatpush1.bf16.msra.mxu0 %v3463
    %4090 = vmatprep.subr.bf16.mxu0 %v3468
    %4091 = vmatpush1.bf16.msra.mxu0 %v3467
    %4092 = vmatprep.subr.bf16.mxu0 %v3472
    %4093 = vmatpush1.bf16.msra.mxu0 %v3471
    %4094 = vmatprep.mubr.bf16.mxu0 %v2316
    %4095 = vmatmul.mubr.bf16.gmra.mrb[0].mxu0 %v2315
    %v4096 = vpop.f32.mrb[0].mxu0
    %v4097 = vadd.f32 %v4056, %v4096
    %v4098 = vpop.f32.mrb[0].mxu0
    %v4099 = vadd.f32 %v4058, %v4098
    %v4100 = vpop.f32.mrb[0].mxu0
    %v4101 = vpop.f32.mrb[0].mxu0
    %4102 = vdwg.mxu0
    %4103 = vmatprep.subr.bf16.mxu0 %v3476
    %4104 = vmatpush1.bf16.msra.mxu0 %v3475
    %4105 = vmatprep.subr.bf16.mxu0 %v3480
    %4106 = vmatpush1.bf16.msra.mxu0 %v3479
    %4107 = vmatprep.subr.bf16.mxu0 %v3484
    %4108 = vmatpush1.bf16.msra.mxu0 %v3483
    %4109 = vmatprep.subr.bf16.mxu0 %v3488
    %4110 = vmatpush1.bf16.msra.mxu0 %v3487
    %4111 = vmatprep.subr.bf16.mxu0 %v3492
    %4112 = vmatpush1.bf16.msra.mxu0 %v3491
    %4113 = vmatprep.subr.bf16.mxu0 %v3496
    %4114 = vmatpush1.bf16.msra.mxu0 %v3495
    %4115 = vmatprep.subr.bf16.mxu0 %v3500
    %4116 = vmatpush1.bf16.msra.mxu0 %v3499
    %4117 = vmatprep.subr.bf16.mxu0 %v3504
    %4118 = vmatpush1.bf16.msra.mxu0 %v3503
    %4119 = vmatprep.subr.bf16.mxu0 %v3508
    %4120 = vmatpush1.bf16.msra.mxu0 %v3507
    %4121 = vmatprep.subr.bf16.mxu0 %v3512
    %4122 = vmatpush1.bf16.msra.mxu0 %v3511
    %4123 = vmatprep.subr.bf16.mxu0 %v3516
    %4124 = vmatpush1.bf16.msra.mxu0 %v3515
    %4125 = vmatprep.subr.bf16.mxu0 %v3520
    %4126 = vmatpush1.bf16.msra.mxu0 %v3519
    %4127 = vmatprep.subr.bf16.mxu0 %v3524
    %4128 = vmatpush1.bf16.msra.mxu0 %v3523
    %4129 = vmatprep.subr.bf16.mxu0 %v3528
    %4130 = vmatpush1.bf16.msra.mxu0 %v3527
    %4131 = vmatprep.subr.bf16.mxu0 %v3532
    %4132 = vmatpush1.bf16.msra.mxu0 %v3531
    %4133 = vmatprep.subr.bf16.mxu0 %v3536
    %4134 = vmatpush1.bf16.msra.mxu0 %v3535
    %4135 = vmatprep.mubr.bf16.mxu0 %v2318
    %4136 = vmatmul.mubr.bf16.gmra.mrb[0].mxu0 %v2317
    %v4137 = vpop.f32.mrb[0].mxu0
    %v4138 = vadd.f32 %v4097, %v4137
    %v4139 = vpop.f32.mrb[0].mxu0
    %v4140 = vadd.f32 %v4099, %v4139
    %v4141 = vpop.f32.mrb[0].mxu0
    %v4142 = vpop.f32.mrb[0].mxu0
    %4143 = vdwg.mxu0
    %4144 = vmatprep.subr.bf16.mxu0 %v3540
    %4145 = vmatpush1.bf16.msra.mxu0 %v3539
    %4146 = vmatprep.subr.bf16.mxu0 %v3544
    %4147 = vmatpush1.bf16.msra.mxu0 %v3543
    %4148 = vmatprep.subr.bf16.mxu0 %v3548
    %4149 = vmatpush1.bf16.msra.mxu0 %v3547
    %4150 = vmatprep.subr.bf16.mxu0 %v3552
    %4151 = vmatpush1.bf16.msra.mxu0 %v3551
    %4152 = vmatprep.subr.bf16.mxu0 %v3556
    %4153 = vmatpush1.bf16.msra.mxu0 %v3555
    %4154 = vmatprep.subr.bf16.mxu0 %v3560
    %4155 = vmatpush1.bf16.msra.mxu0 %v3559
    %4156 = vmatprep.subr.bf16.mxu0 %v3564
    %4157 = vmatpush1.bf16.msra.mxu0 %v3563
    %4158 = vmatprep.subr.bf16.mxu0 %v3568
    %4159 = vmatpush1.bf16.msra.mxu0 %v3567
    %4160 = vmatprep.subr.bf16.mxu0 %v3572
    %4161 = vmatpush1.bf16.msra.mxu0 %v3571
    %4162 = vmatprep.subr.bf16.mxu0 %v3576
    %4163 = vmatpush1.bf16.msra.mxu0 %v3575
    %4164 = vmatprep.subr.bf16.mxu0 %v3580
    %4165 = vmatpush1.bf16.msra.mxu0 %v3579
    %4166 = vmatprep.subr.bf16.mxu0 %v3584
    %4167 = vmatpush1.bf16.msra.mxu0 %v3583
    %4168 = vmatprep.subr.bf16.mxu0 %v3588
    %4169 = vmatpush1.bf16.msra.mxu0 %v3587
    %4170 = vmatprep.subr.bf16.mxu0 %v3592
    %4171 = vmatpush1.bf16.msra.mxu0 %v3591
    %4172 = vmatprep.subr.bf16.mxu0 %v3596
    %4173 = vmatpush1.bf16.msra.mxu0 %v3595
    %4174 = vmatprep.subr.bf16.mxu0 %v3600
    %4175 = vmatpush1.bf16.msra.mxu0 %v3599
    %4176 = vmatprep.mubr.bf16.mxu0 %v2320
    %4177 = vmatmul.mubr.bf16.gmra.mrb[0].mxu0 %v2319
    %v4178 = vpop.f32.mrb[0].mxu0
    %v4179 = vadd.f32 %v4138, %v4178
    %v4180 = vpop.f32.mrb[0].mxu0
    %v4181 = vadd.f32 %v4140, %v4180
    %v4182 = vpop.f32.mrb[0].mxu0
    %v4183 = vpop.f32.mrb[0].mxu0
    %4184 = vdwg.mxu0
    %4185 = vmatprep.subr.bf16.mxu0 %v3346
    %4186 = vmatpush1.bf16.msra.mxu0 %v3345
    %4187 = vmatprep.subr.bf16.mxu0 %v3350
    %4188 = vmatpush1.bf16.msra.mxu0 %v3349
    %4189 = vmatprep.subr.bf16.mxu0 %v3354
    %4190 = vmatpush1.bf16.msra.mxu0 %v3353
    %4191 = vmatprep.subr.bf16.mxu0 %v3358
    %4192 = vmatpush1.bf16.msra.mxu0 %v3357
    %4193 = vmatprep.subr.bf16.mxu0 %v3362
    %4194 = vmatpush1.bf16.msra.mxu0 %v3361
    %4195 = vmatprep.subr.bf16.mxu0 %v3366
    %4196 = vmatpush1.bf16.msra.mxu0 %v3365
    %4197 = vmatprep.subr.bf16.mxu0 %v3370
    %4198 = vmatpush1.bf16.msra.mxu0 %v3369
    %4199 = vmatprep.subr.bf16.mxu0 %v3374
    %4200 = vmatpush1.bf16.msra.mxu0 %v3373
    %4201 = vmatprep.subr.bf16.mxu0 %v3378
    %4202 = vmatpush1.bf16.msra.mxu0 %v3377
    %4203 = vmatprep.subr.bf16.mxu0 %v3382
    %4204 = vmatpush1.bf16.msra.mxu0 %v3381
    %4205 = vmatprep.subr.bf16.mxu0 %v3386
    %4206 = vmatpush1.bf16.msra.mxu0 %v3385
    %4207 = vmatprep.subr.bf16.mxu0 %v3390
    %4208 = vmatpush1.bf16.msra.mxu0 %v3389
    %4209 = vmatprep.subr.bf16.mxu0 %v3394
    %4210 = vmatpush1.bf16.msra.mxu0 %v3393
    %4211 = vmatprep.subr.bf16.mxu0 %v3398
    %4212 = vmatpush1.bf16.msra.mxu0 %v3397
    %4213 = vmatprep.subr.bf16.mxu0 %v3402
    %4214 = vmatpush1.bf16.msra.mxu0 %v3401
    %4215 = vmatprep.subr.bf16.mxu0 %v3406
    %4216 = vmatpush1.bf16.msra.mxu0 %v3405
    %4217 = vmatprep.mubr.bf16.mxu0 %v2290
    %4218 = vmatmul.mubr.bf16.gmra.mrb[0].mxu0 %v2289
    %v4219 = vpop.f32.mrb[0].mxu0
    %v4220 = vadd.f32 %v4015, %v4219
    %v4221 = vpop.f32.mrb[0].mxu0
    %v4222 = vadd.f32 %v4017, %v4221
    %v4223 = vpop.f32.mrb[0].mxu0
    %v4224 = vpop.f32.mrb[0].mxu0
    %4225 = vdwg.mxu0
    %4226 = vmatprep.subr.bf16.mxu0 %v3410
    %4227 = vmatpush1.bf16.msra.mxu0 %v3409
    %4228 = vmatprep.subr.bf16.mxu0 %v3414
    %4229 = vmatpush1.bf16.msra.mxu0 %v3413
    %4230 = vmatprep.subr.bf16.mxu0 %v3418
    %4231 = vmatpush1.bf16.msra.mxu0 %v3417
    %4232 = vmatprep.subr.bf16.mxu0 %v3422
    %4233 = vmatpush1.bf16.msra.mxu0 %v3421
    %4234 = vmatprep.subr.bf16.mxu0 %v3426
    %4235 = vmatpush1.bf16.msra.mxu0 %v3425
    %4236 = vmatprep.subr.bf16.mxu0 %v3430
    %4237 = vmatpush1.bf16.msra.mxu0 %v3429
    %4238 = vmatprep.subr.bf16.mxu0 %v3434
    %4239 = vmatpush1.bf16.msra.mxu0 %v3433
    %4240 = vmatprep.subr.bf16.mxu0 %v3438
    %4241 = vmatpush1.bf16.msra.mxu0 %v3437
    %4242 = vmatprep.subr.bf16.mxu0 %v3442
    %4243 = vmatpush1.bf16.msra.mxu0 %v3441
    %4244 = vmatprep.subr.bf16.mxu0 %v3446
    %4245 = vmatpush1.bf16.msra.mxu0 %v3445
    %4246 = vmatprep.subr.bf16.mxu0 %v3450
    %4247 = vmatpush1.bf16.msra.mxu0 %v3449
    %4248 = vmatprep.subr.bf16.mxu0 %v3454
    %4249 = vmatpush1.bf16.msra.mxu0 %v3453
    %4250 = vmatprep.subr.bf16.mxu0 %v3458
    %4251 = vmatpush1.bf16.msra.mxu0 %v3457
    %4252 = vmatprep.subr.bf16.mxu0 %v3462
    %4253 = vmatpush1.bf16.msra.mxu0 %v3461
    %4254 = vmatprep.subr.bf16.mxu0 %v3466
    %4255 = vmatpush1.bf16.msra.mxu0 %v3465
    %4256 = vmatprep.subr.bf16.mxu0 %v3470
    %4257 = vmatpush1.bf16.msra.mxu0 %v3469
    %4258 = vmatprep.mubr.bf16.mxu0 %v2292
    %4259 = vmatmul.mubr.bf16.gmra.mrb[0].mxu0 %v2291
    %v4260 = vpop.f32.mrb[0].mxu0
    %v4261 = vadd.f32 %v4220, %v4260
    %v4262 = vpop.f32.mrb[0].mxu0
    %v4263 = vadd.f32 %v4222, %v4262
    %v4264 = vpop.f32.mrb[0].mxu0
    %v4265 = vpop.f32.mrb[0].mxu0
    %4266 = vdwg.mxu0
    %4267 = vmatprep.subr.bf16.mxu0 %v3474
    %4268 = vmatpush1.bf16.msra.mxu0 %v3473
    %4269 = vmatprep.subr.bf16.mxu0 %v3478
    %4270 = vmatpush1.bf16.msra.mxu0 %v3477
    %4271 = vmatprep.subr.bf16.mxu0 %v3482
    %4272 = vmatpush1.bf16.msra.mxu0 %v3481
    %4273 = vmatprep.subr.bf16.mxu0 %v3486
    %4274 = vmatpush1.bf16.msra.mxu0 %v3485
    %4275 = vmatprep.subr.bf16.mxu0 %v3490
    %4276 = vmatpush1.bf16.msra.mxu0 %v3489
    %4277 = vmatprep.subr.bf16.mxu0 %v3494
    %4278 = vmatpush1.bf16.msra.mxu0 %v3493
    %4279 = vmatprep.subr.bf16.mxu0 %v3498
    %4280 = vmatpush1.bf16.msra.mxu0 %v3497
    %4281 = vmatprep.subr.bf16.mxu0 %v3502
    %4282 = vmatpush1.bf16.msra.mxu0 %v3501
    %4283 = vmatprep.subr.bf16.mxu0 %v3506
    %4284 = vmatpush1.bf16.msra.mxu0 %v3505
    %4285 = vmatprep.subr.bf16.mxu0 %v3510
    %4286 = vmatpush1.bf16.msra.mxu0 %v3509
    %4287 = vmatprep.subr.bf16.mxu0 %v3514
    %4288 = vmatpush1.bf16.msra.mxu0 %v3513
    %4289 = vmatprep.subr.bf16.mxu0 %v3518
    %4290 = vmatpush1.bf16.msra.mxu0 %v3517
    %4291 = vmatprep.subr.bf16.mxu0 %v3522
    %4292 = vmatpush1.bf16.msra.mxu0 %v3521
    %4293 = vmatprep.subr.bf16.mxu0 %v3526
    %4294 = vmatpush1.bf16.msra.mxu0 %v3525
    %4295 = vmatprep.subr.bf16.mxu0 %v3530
    %4296 = vmatpush1.bf16.msra.mxu0 %v3529
    %4297 = vmatprep.subr.bf16.mxu0 %v3534
    %4298 = vmatpush1.bf16.msra.mxu0 %v3533
    %4299 = vmatprep.mubr.bf16.mxu0 %v2294
    %4300 = vmatmul.mubr.bf16.gmra.mrb[0].mxu0 %v2293
    %v4301 = vpop.f32.mrb[0].mxu0
    %v4302 = vadd.f32 %v4261, %v4301
    %v4303 = vpop.f32.mrb[0].mxu0
    %v4304 = vadd.f32 %v4263, %v4303
    %v4305 = vpop.f32.mrb[0].mxu0
    %v4306 = vpop.f32.mrb[0].mxu0
    %4307 = vdwg.mxu0
    %4308 = vmatprep.subr.bf16.mxu0 %v3538
    %4309 = vmatpush1.bf16.msra.mxu0 %v3537
    %4310 = vmatprep.subr.bf16.mxu0 %v3542
    %4311 = vmatpush1.bf16.msra.mxu0 %v3541
    %4312 = vmatprep.subr.bf16.mxu0 %v3546
    %4313 = vmatpush1.bf16.msra.mxu0 %v3545
    %4314 = vmatprep.subr.bf16.mxu0 %v3550
    %4315 = vmatpush1.bf16.msra.mxu0 %v3549
    %4316 = vmatprep.subr.bf16.mxu0 %v3554
    %4317 = vmatpush1.bf16.msra.mxu0 %v3553
    %4318 = vmatprep.subr.bf16.mxu0 %v3558
    %4319 = vmatpush1.bf16.msra.mxu0 %v3557
    %4320 = vmatprep.subr.bf16.mxu0 %v3562
    %4321 = vmatpush1.bf16.msra.mxu0 %v3561
    %4322 = vmatprep.subr.bf16.mxu0 %v3566
    %4323 = vmatpush1.bf16.msra.mxu0 %v3565
    %4324 = vmatprep.subr.bf16.mxu0 %v3570
    %4325 = vmatpush1.bf16.msra.mxu0 %v3569
    %4326 = vmatprep.subr.bf16.mxu0 %v3574
    %4327 = vmatpush1.bf16.msra.mxu0 %v3573
    %4328 = vmatprep.subr.bf16.mxu0 %v3578
    %4329 = vmatpush1.bf16.msra.mxu0 %v3577
    %4330 = vmatprep.subr.bf16.mxu0 %v3582
    %4331 = vmatpush1.bf16.msra.mxu0 %v3581
    %4332 = vmatprep.subr.bf16.mxu0 %v3586
    %4333 = vmatpush1.bf16.msra.mxu0 %v3585
    %4334 = vmatprep.subr.bf16.mxu0 %v3590
    %4335 = vmatpush1.bf16.msra.mxu0 %v3589
    %4336 = vmatprep.subr.bf16.mxu0 %v3594
    %4337 = vmatpush1.bf16.msra.mxu0 %v3593
    %4338 = vmatprep.subr.bf16.mxu0 %v3598
    %4339 = vmatpush1.bf16.msra.mxu0 %v3597
    %4340 = vmatprep.mubr.bf16.mxu0 %v2296
    %4341 = vmatmul.mubr.bf16.gmra.mrb[0].mxu0 %v2295
    %v4342 = vpop.f32.mrb[0].mxu0
    %v4343 = vadd.f32 %v4302, %v4342
    %v4344 = vpop.f32.mrb[0].mxu0
    %v4345 = vadd.f32 %v4304, %v4344
    %v4346 = vpop.f32.mrb[0].mxu0
    %v4347 = vpop.f32.mrb[0].mxu0
    %4348 = vdwg.mxu0
    %4349 = vmatprep.subr.bf16.mxu0 %v3348
    %4350 = vmatpush1.bf16.msra.mxu0 %v3347
    %4351 = vmatprep.subr.bf16.mxu0 %v3352
    %4352 = vmatpush1.bf16.msra.mxu0 %v3351
    %4353 = vmatprep.subr.bf16.mxu0 %v3356
    %4354 = vmatpush1.bf16.msra.mxu0 %v3355
    %4355 = vmatprep.subr.bf16.mxu0 %v3360
    %4356 = vmatpush1.bf16.msra.mxu0 %v3359
    %4357 = vmatprep.subr.bf16.mxu0 %v3364
    %4358 = vmatpush1.bf16.msra.mxu0 %v3363
    %4359 = vmatprep.subr.bf16.mxu0 %v3368
    %4360 = vmatpush1.bf16.msra.mxu0 %v3367
    %4361 = vmatprep.subr.bf16.mxu0 %v3372
    %4362 = vmatpush1.bf16.msra.mxu0 %v3371
    %4363 = vmatprep.subr.bf16.mxu0 %v3376
    %4364 = vmatpush1.bf16.msra.mxu0 %v3375
    %4365 = vmatprep.subr.bf16.mxu0 %v3380
    %4366 = vmatpush1.bf16.msra.mxu0 %v3379
    %4367 = vmatprep.subr.bf16.mxu0 %v3384
    %4368 = vmatpush1.bf16.msra.mxu0 %v3383
    %4369 = vmatprep.subr.bf16.mxu0 %v3388
    %4370 = vmatpush1.bf16.msra.mxu0 %v3387
    %4371 = vmatprep.subr.bf16.mxu0 %v3392
    %4372 = vmatpush1.bf16.msra.mxu0 %v3391
    %4373 = vmatprep.subr.bf16.mxu0 %v3396
    %4374 = vmatpush1.bf16.msra.mxu0 %v3395
    %4375 = vmatprep.subr.bf16.mxu0 %v3400
    %4376 = vmatpush1.bf16.msra.mxu0 %v3399
    %4377 = vmatprep.subr.bf16.mxu0 %v3404
    %4378 = vmatpush1.bf16.msra.mxu0 %v3403
    %4379 = vmatprep.subr.bf16.mxu0 %v3408
    %4380 = vmatpush1.bf16.msra.mxu0 %v3407
    %4381 = vmatprep.mubr.bf16.mxu0 %v2290
    %4382 = vmatmul.mubr.bf16.gmra.mrb[0].mxu0 %v2289
    %v4383 = vpop.f32.mrb[0].mxu0
    %v4384 = vadd.f32 %v4179, %v4383
    %v4385 = vpop.f32.mrb[0].mxu0
    %v4386 = vadd.f32 %v4181, %v4385
    %v4387 = vpop.f32.mrb[0].mxu0
    %v4388 = vpop.f32.mrb[0].mxu0
    %4389 = vdwg.mxu0
    %4390 = vmatprep.subr.bf16.mxu0 %v3412
    %4391 = vmatpush1.bf16.msra.mxu0 %v3411
    %4392 = vmatprep.subr.bf16.mxu0 %v3416
    %4393 = vmatpush1.bf16.msra.mxu0 %v3415
    %4394 = vmatprep.subr.bf16.mxu0 %v3420
    %4395 = vmatpush1.bf16.msra.mxu0 %v3419
    %4396 = vmatprep.subr.bf16.mxu0 %v3424
    %4397 = vmatpush1.bf16.msra.mxu0 %v3423
    %4398 = vmatprep.subr.bf16.mxu0 %v3428
    %4399 = vmatpush1.bf16.msra.mxu0 %v3427
    %4400 = vmatprep.subr.bf16.mxu0 %v3432
    %4401 = vmatpush1.bf16.msra.mxu0 %v3431
    %4402 = vmatprep.subr.bf16.mxu0 %v3436
    %4403 = vmatpush1.bf16.msra.mxu0 %v3435
    %4404 = vmatprep.subr.bf16.mxu0 %v3440
    %4405 = vmatpush1.bf16.msra.mxu0 %v3439
    %4406 = vmatprep.subr.bf16.mxu0 %v3444
    %4407 = vmatpush1.bf16.msra.mxu0 %v3443
    %4408 = vmatprep.subr.bf16.mxu0 %v3448
    %4409 = vmatpush1.bf16.msra.mxu0 %v3447
    %4410 = vmatprep.subr.bf16.mxu0 %v3452
    %4411 = vmatpush1.bf16.msra.mxu0 %v3451
    %4412 = vmatprep.subr.bf16.mxu0 %v3456
    %4413 = vmatpush1.bf16.msra.mxu0 %v3455
    %4414 = vmatprep.subr.bf16.mxu0 %v3460
    %4415 = vmatpush1.bf16.msra.mxu0 %v3459
    %4416 = vmatprep.subr.bf16.mxu0 %v3464
    %4417 = vmatpush1.bf16.msra.mxu0 %v3463
    %4418 = vmatprep.subr.bf16.mxu0 %v3468
    %4419 = vmatpush1.bf16.msra.mxu0 %v3467
    %4420 = vmatprep.subr.bf16.mxu0 %v3472
    %4421 = vmatpush1.bf16.msra.mxu0 %v3471
    %4422 = vmatprep.mubr.bf16.mxu0 %v2292
    %4423 = vmatmul.mubr.bf16.gmra.mrb[0].mxu0 %v2291
    %v4424 = vpop.f32.mrb[0].mxu0
    %v4425 = vadd.f32 %v4384, %v4424
    %v4426 = vpop.f32.mrb[0].mxu0
    %v4427 = vadd.f32 %v4386, %v4426
    %v4428 = vpop.f32.mrb[0].mxu0
    %v4429 = vpop.f32.mrb[0].mxu0
    %4430 = vdwg.mxu0
    %4431 = vmatprep.subr.bf16.mxu0 %v3476
    %4432 = vmatpush1.bf16.msra.mxu0 %v3475
    %4433 = vmatprep.subr.bf16.mxu0 %v3480
    %4434 = vmatpush1.bf16.msra.mxu0 %v3479
    %4435 = vmatprep.subr.bf16.mxu0 %v3484
    %4436 = vmatpush1.bf16.msra.mxu0 %v3483
    %4437 = vmatprep.subr.bf16.mxu0 %v3488
    %4438 = vmatpush1.bf16.msra.mxu0 %v3487
    %4439 = vmatprep.subr.bf16.mxu0 %v3492
    %4440 = vmatpush1.bf16.msra.mxu0 %v3491
    %4441 = vmatprep.subr.bf16.mxu0 %v3496
    %4442 = vmatpush1.bf16.msra.mxu0 %v3495
    %4443 = vmatprep.subr.bf16.mxu0 %v3500
    %4444 = vmatpush1.bf16.msra.mxu0 %v3499
    %4445 = vmatprep.subr.bf16.mxu0 %v3504
    %4446 = vmatpush1.bf16.msra.mxu0 %v3503
    %4447 = vmatprep.subr.bf16.mxu0 %v3508
    %4448 = vmatpush1.bf16.msra.mxu0 %v3507
    %4449 = vmatprep.subr.bf16.mxu0 %v3512
    %4450 = vmatpush1.bf16.msra.mxu0 %v3511
    %4451 = vmatprep.subr.bf16.mxu0 %v3516
    %4452 = vmatpush1.bf16.msra.mxu0 %v3515
    %4453 = vmatprep.subr.bf16.mxu0 %v3520
    %4454 = vmatpush1.bf16.msra.mxu0 %v3519
    %4455 = vmatprep.subr.bf16.mxu0 %v3524
    %4456 = vmatpush1.bf16.msra.mxu0 %v3523
    %4457 = vmatprep.subr.bf16.mxu0 %v3528
    %4458 = vmatpush1.bf16.msra.mxu0 %v3527
    %4459 = vmatprep.subr.bf16.mxu0 %v3532
    %4460 = vmatpush1.bf16.msra.mxu0 %v3531
    %4461 = vmatprep.subr.bf16.mxu0 %v3536
    %4462 = vmatpush1.bf16.msra.mxu0 %v3535
    %4463 = vmatprep.mubr.bf16.mxu0 %v2294
    %4464 = vmatmul.mubr.bf16.gmra.mrb[0].mxu0 %v2293
    %v4465 = vpop.f32.mrb[0].mxu0
    %v4466 = vadd.f32 %v4425, %v4465
    %v4467 = vpop.f32.mrb[0].mxu0
    %v4468 = vadd.f32 %v4427, %v4467
    %v4469 = vpop.f32.mrb[0].mxu0
    %v4470 = vpop.f32.mrb[0].mxu0
    %4471 = vdwg.mxu0
    %4472 = vmatprep.subr.bf16.mxu0 %v3540
    %4473 = vmatpush1.bf16.msra.mxu0 %v3539
    %4474 = vmatprep.subr.bf16.mxu0 %v3544
    %4475 = vmatpush1.bf16.msra.mxu0 %v3543
    %4476 = vmatprep.subr.bf16.mxu0 %v3548
    %4477 = vmatpush1.bf16.msra.mxu0 %v3547
    %4478 = vmatprep.subr.bf16.mxu0 %v3552
    %4479 = vmatpush1.bf16.msra.mxu0 %v3551
    %4480 = vmatprep.subr.bf16.mxu0 %v3556
    %4481 = vmatpush1.bf16.msra.mxu0 %v3555
    %4482 = vmatprep.subr.bf16.mxu0 %v3560
    %4483 = vmatpush1.bf16.msra.mxu0 %v3559
    %4484 = vmatprep.subr.bf16.mxu0 %v3564
    %4485 = vmatpush1.bf16.msra.mxu0 %v3563
    %4486 = vmatprep.subr.bf16.mxu0 %v3568
    %4487 = vmatpush1.bf16.msra.mxu0 %v3567
    %4488 = vmatprep.subr.bf16.mxu0 %v3572
    %4489 = vmatpush1.bf16.msra.mxu0 %v3571
    %4490 = vmatprep.subr.bf16.mxu0 %v3576
    %4491 = vmatpush1.bf16.msra.mxu0 %v3575
    %4492 = vmatprep.subr.bf16.mxu0 %v3580
    %4493 = vmatpush1.bf16.msra.mxu0 %v3579
    %4494 = vmatprep.subr.bf16.mxu0 %v3584
    %4495 = vmatpush1.bf16.msra.mxu0 %v3583
    %4496 = vmatprep.subr.bf16.mxu0 %v3588
    %4497 = vmatpush1.bf16.msra.mxu0 %v3587
    %4498 = vmatprep.subr.bf16.mxu0 %v3592
    %4499 = vmatpush1.bf16.msra.mxu0 %v3591
    %4500 = vmatprep.subr.bf16.mxu0 %v3596
    %4501 = vmatpush1.bf16.msra.mxu0 %v3595
    %4502 = vmatprep.subr.bf16.mxu0 %v3600
    %4503 = vmatpush1.bf16.msra.mxu0 %v3599
    %4504 = vmatprep.mubr.bf16.mxu0 %v2296
    %4505 = vmatmul.mubr.bf16.gmra.mrb[0].mxu0 %v2295
    %v4506 = vpop.f32.mrb[0].mxu0
    %v4507 = vadd.f32 %v4466, %v4506
    %v4508 = vpop.f32.mrb[0].mxu0
    %v4509 = vadd.f32 %v4468, %v4508
    %v4510 = vpop.f32.mrb[0].mxu0
    %v4511 = vpop.f32.mrb[0].mxu0
    %4512 = vdwg.mxu0
    %v4513 = vld [vmem:[#allocation7] sm:$0xff]
    %v4514 = vld [vmem:[#allocation7 + $0x8] sm:$0xff]
    %v4515 = vld [vmem:[#allocation7 + $0x10] sm:$0xff]
    %v4516 = vld [vmem:[#allocation7 + $0x18] sm:$0xff]
    %v4517 = vld [vmem:[#allocation7 + $0x20] sm:$0xff]
    %v4518 = vld [vmem:[#allocation7 + $0x28] sm:$0xff]
    %v4519 = vld [vmem:[#allocation7 + $0x30] sm:$0xff]
    %v4520 = vld [vmem:[#allocation7 + $0x38] sm:$0xff]
    %v4521 = vld [vmem:[#allocation7 + $0x40] sm:$0xff]
    %v4522 = vld [vmem:[#allocation7 + $0x48] sm:$0xff]
    %v4523 = vld [vmem:[#allocation7 + $0x50] sm:$0xff]
    %v4524 = vld [vmem:[#allocation7 + $0x58] sm:$0xff]
    %v4525 = vld [vmem:[#allocation7 + $0x60] sm:$0xff]
    %v4526 = vld [vmem:[#allocation7 + $0x68] sm:$0xff]
    %v4527 = vld [vmem:[#allocation7 + $0x70] sm:$0xff]
    %v4528 = vld [vmem:[#allocation7 + $0x78] sm:$0xff]
    %v4529 = vld [vmem:[#allocation7 + $0x80] sm:$0xff]
    %v4530 = vld [vmem:[#allocation7 + $0x88] sm:$0xff]
    %v4531 = vld [vmem:[#allocation7 + $0x90] sm:$0xff]
    %v4532 = vld [vmem:[#allocation7 + $0x98] sm:$0xff]
    %v4533 = vld [vmem:[#allocation7 + $0xa0] sm:$0xff]
    %v4534 = vld [vmem:[#allocation7 + $0xa8] sm:$0xff]
    %v4535 = vld [vmem:[#allocation7 + $0xb0] sm:$0xff]
    %v4536 = vld [vmem:[#allocation7 + $0xb8] sm:$0xff]
    %v4537 = vld [vmem:[#allocation7 + $0xc0] sm:$0xff]
    %v4538 = vld [vmem:[#allocation7 + $0xc8] sm:$0xff]
    %v4539 = vld [vmem:[#allocation7 + $0xd0] sm:$0xff]
    %v4540 = vld [vmem:[#allocation7 + $0xd8] sm:$0xff]
    %v4541 = vld [vmem:[#allocation7 + $0xe0] sm:$0xff]
    %v4542 = vld [vmem:[#allocation7 + $0xe8] sm:$0xff]
    %v4543 = vld [vmem:[#allocation7 + $0xf0] sm:$0xff]
    %v4544 = vld [vmem:[#allocation7 + $0xf8] sm:$0xff]
    %v4545 = vld [vmem:[#allocation7 + $0x100] sm:$0xff]
    %v4546 = vld [vmem:[#allocation7 + $0x108] sm:$0xff]
    %v4547 = vld [vmem:[#allocation7 + $0x110] sm:$0xff]
    %v4548 = vld [vmem:[#allocation7 + $0x118] sm:$0xff]
    %v4549 = vld [vmem:[#allocation7 + $0x120] sm:$0xff]
    %v4550 = vld [vmem:[#allocation7 + $0x128] sm:$0xff]
    %v4551 = vld [vmem:[#allocation7 + $0x130] sm:$0xff]
    %v4552 = vld [vmem:[#allocation7 + $0x138] sm:$0xff]
    %v4553 = vld [vmem:[#allocation7 + $0x140] sm:$0xff]
    %v4554 = vld [vmem:[#allocation7 + $0x148] sm:$0xff]
    %v4555 = vld [vmem:[#allocation7 + $0x150] sm:$0xff]
    %v4556 = vld [vmem:[#allocation7 + $0x158] sm:$0xff]
    %v4557 = vld [vmem:[#allocation7 + $0x160] sm:$0xff]
    %v4558 = vld [vmem:[#allocation7 + $0x168] sm:$0xff]
    %v4559 = vld [vmem:[#allocation7 + $0x170] sm:$0xff]
    %v4560 = vld [vmem:[#allocation7 + $0x178] sm:$0xff]
    %v4561 = vld [vmem:[#allocation7 + $0x180] sm:$0xff]
    %v4562 = vld [vmem:[#allocation7 + $0x188] sm:$0xff]
    %v4563 = vld [vmem:[#allocation7 + $0x190] sm:$0xff]
    %v4564 = vld [vmem:[#allocation7 + $0x198] sm:$0xff]
    %v4565 = vld [vmem:[#allocation7 + $0x1a0] sm:$0xff]
    %v4566 = vld [vmem:[#allocation7 + $0x1a8] sm:$0xff]
    %v4567 = vld [vmem:[#allocation7 + $0x1b0] sm:$0xff]
    %v4568 = vld [vmem:[#allocation7 + $0x1b8] sm:$0xff]
    %v4569 = vld [vmem:[#allocation7 + $0x1c0] sm:$0xff]
    %v4570 = vld [vmem:[#allocation7 + $0x1c8] sm:$0xff]
    %v4571 = vld [vmem:[#allocation7 + $0x1d0] sm:$0xff]
    %v4572 = vld [vmem:[#allocation7 + $0x1d8] sm:$0xff]
    %v4573 = vld [vmem:[#allocation7 + $0x1e0] sm:$0xff]
    %v4574 = vld [vmem:[#allocation7 + $0x1e8] sm:$0xff]
    %v4575 = vld [vmem:[#allocation7 + $0x1f0] sm:$0xff]
    %v4576 = vld [vmem:[#allocation7 + $0x1f8] sm:$0xff]
    %v4577 = vld [vmem:[#allocation7 + $0x200] sm:$0xff]
    %v4578 = vld [vmem:[#allocation7 + $0x208] sm:$0xff]
    %v4579 = vld [vmem:[#allocation7 + $0x210] sm:$0xff]
    %v4580 = vld [vmem:[#allocation7 + $0x218] sm:$0xff]
    %v4581 = vld [vmem:[#allocation7 + $0x220] sm:$0xff]
    %v4582 = vld [vmem:[#allocation7 + $0x228] sm:$0xff]
    %v4583 = vld [vmem:[#allocation7 + $0x230] sm:$0xff]
    %v4584 = vld [vmem:[#allocation7 + $0x238] sm:$0xff]
    %v4585 = vld [vmem:[#allocation7 + $0x240] sm:$0xff]
    %v4586 = vld [vmem:[#allocation7 + $0x248] sm:$0xff]
    %v4587 = vld [vmem:[#allocation7 + $0x250] sm:$0xff]
    %v4588 = vld [vmem:[#allocation7 + $0x258] sm:$0xff]
    %v4589 = vld [vmem:[#allocation7 + $0x260] sm:$0xff]
    %v4590 = vld [vmem:[#allocation7 + $0x268] sm:$0xff]
    %v4591 = vld [vmem:[#allocation7 + $0x270] sm:$0xff]
    %v4592 = vld [vmem:[#allocation7 + $0x278] sm:$0xff]
    %v4593 = vld [vmem:[#allocation7 + $0x280] sm:$0xff]
    %v4594 = vld [vmem:[#allocation7 + $0x288] sm:$0xff]
    %v4595 = vld [vmem:[#allocation7 + $0x290] sm:$0xff]
    %v4596 = vld [vmem:[#allocation7 + $0x298] sm:$0xff]
    %v4597 = vld [vmem:[#allocation7 + $0x2a0] sm:$0xff]
    %v4598 = vld [vmem:[#allocation7 + $0x2a8] sm:$0xff]
    %v4599 = vld [vmem:[#allocation7 + $0x2b0] sm:$0xff]
    %v4600 = vld [vmem:[#allocation7 + $0x2b8] sm:$0xff]
    %v4601 = vld [vmem:[#allocation7 + $0x2c0] sm:$0xff]
    %v4602 = vld [vmem:[#allocation7 + $0x2c8] sm:$0xff]
    %v4603 = vld [vmem:[#allocation7 + $0x2d0] sm:$0xff]
    %v4604 = vld [vmem:[#allocation7 + $0x2d8] sm:$0xff]
    %v4605 = vld [vmem:[#allocation7 + $0x2e0] sm:$0xff]
    %v4606 = vld [vmem:[#allocation7 + $0x2e8] sm:$0xff]
    %v4607 = vld [vmem:[#allocation7 + $0x2f0] sm:$0xff]
    %v4608 = vld [vmem:[#allocation7 + $0x2f8] sm:$0xff]
    %v4609 = vld [vmem:[#allocation7 + $0x300] sm:$0xff]
    %v4610 = vld [vmem:[#allocation7 + $0x308] sm:$0xff]
    %v4611 = vld [vmem:[#allocation7 + $0x310] sm:$0xff]
    %v4612 = vld [vmem:[#allocation7 + $0x318] sm:$0xff]
    %v4613 = vld [vmem:[#allocation7 + $0x320] sm:$0xff]
    %v4614 = vld [vmem:[#allocation7 + $0x328] sm:$0xff]
    %v4615 = vld [vmem:[#allocation7 + $0x330] sm:$0xff]
    %v4616 = vld [vmem:[#allocation7 + $0x338] sm:$0xff]
    %v4617 = vld [vmem:[#allocation7 + $0x340] sm:$0xff]
    %v4618 = vld [vmem:[#allocation7 + $0x348] sm:$0xff]
    %v4619 = vld [vmem:[#allocation7 + $0x350] sm:$0xff]
    %v4620 = vld [vmem:[#allocation7 + $0x358] sm:$0xff]
    %v4621 = vld [vmem:[#allocation7 + $0x360] sm:$0xff]
    %v4622 = vld [vmem:[#allocation7 + $0x368] sm:$0xff]
    %v4623 = vld [vmem:[#allocation7 + $0x370] sm:$0xff]
    %v4624 = vld [vmem:[#allocation7 + $0x378] sm:$0xff]
    %v4625 = vld [vmem:[#allocation7 + $0x380] sm:$0xff]
    %v4626 = vld [vmem:[#allocation7 + $0x388] sm:$0xff]
    %v4627 = vld [vmem:[#allocation7 + $0x390] sm:$0xff]
    %v4628 = vld [vmem:[#allocation7 + $0x398] sm:$0xff]
    %v4629 = vld [vmem:[#allocation7 + $0x3a0] sm:$0xff]
    %v4630 = vld [vmem:[#allocation7 + $0x3a8] sm:$0xff]
    %v4631 = vld [vmem:[#allocation7 + $0x3b0] sm:$0xff]
    %v4632 = vld [vmem:[#allocation7 + $0x3b8] sm:$0xff]
    %v4633 = vld [vmem:[#allocation7 + $0x3c0] sm:$0xff]
    %v4634 = vld [vmem:[#allocation7 + $0x3c8] sm:$0xff]
    %v4635 = vld [vmem:[#allocation7 + $0x3d0] sm:$0xff]
    %v4636 = vld [vmem:[#allocation7 + $0x3d8] sm:$0xff]
    %v4637 = vld [vmem:[#allocation7 + $0x3e0] sm:$0xff]
    %v4638 = vld [vmem:[#allocation7 + $0x3e8] sm:$0xff]
    %v4639 = vld [vmem:[#allocation7 + $0x3f0] sm:$0xff]
    %v4640 = vld [vmem:[#allocation7 + $0x3f8] sm:$0xff]
    %v4641 = vld [vmem:[#allocation7 + $0x400] sm:$0xff]
    %v4642 = vld [vmem:[#allocation7 + $0x408] sm:$0xff]
    %v4643 = vld [vmem:[#allocation7 + $0x410] sm:$0xff]
    %v4644 = vld [vmem:[#allocation7 + $0x418] sm:$0xff]
    %v4645 = vld [vmem:[#allocation7 + $0x420] sm:$0xff]
    %v4646 = vld [vmem:[#allocation7 + $0x428] sm:$0xff]
    %v4647 = vld [vmem:[#allocation7 + $0x430] sm:$0xff]
    %v4648 = vld [vmem:[#allocation7 + $0x438] sm:$0xff]
    %v4649 = vld [vmem:[#allocation7 + $0x440] sm:$0xff]
    %v4650 = vld [vmem:[#allocation7 + $0x448] sm:$0xff]
    %v4651 = vld [vmem:[#allocation7 + $0x450] sm:$0xff]
    %v4652 = vld [vmem:[#allocation7 + $0x458] sm:$0xff]
    %v4653 = vld [vmem:[#allocation7 + $0x460] sm:$0xff]
    %v4654 = vld [vmem:[#allocation7 + $0x468] sm:$0xff]
    %v4655 = vld [vmem:[#allocation7 + $0x470] sm:$0xff]
    %v4656 = vld [vmem:[#allocation7 + $0x478] sm:$0xff]
    %v4657 = vld [vmem:[#allocation7 + $0x480] sm:$0xff]
    %v4658 = vld [vmem:[#allocation7 + $0x488] sm:$0xff]
    %v4659 = vld [vmem:[#allocation7 + $0x490] sm:$0xff]
    %v4660 = vld [vmem:[#allocation7 + $0x498] sm:$0xff]
    %v4661 = vld [vmem:[#allocation7 + $0x4a0] sm:$0xff]
    %v4662 = vld [vmem:[#allocation7 + $0x4a8] sm:$0xff]
    %v4663 = vld [vmem:[#allocation7 + $0x4b0] sm:$0xff]
    %v4664 = vld [vmem:[#allocation7 + $0x4b8] sm:$0xff]
    %v4665 = vld [vmem:[#allocation7 + $0x4c0] sm:$0xff]
    %v4666 = vld [vmem:[#allocation7 + $0x4c8] sm:$0xff]
    %v4667 = vld [vmem:[#allocation7 + $0x4d0] sm:$0xff]
    %v4668 = vld [vmem:[#allocation7 + $0x4d8] sm:$0xff]
    %v4669 = vld [vmem:[#allocation7 + $0x4e0] sm:$0xff]
    %v4670 = vld [vmem:[#allocation7 + $0x4e8] sm:$0xff]
    %v4671 = vld [vmem:[#allocation7 + $0x4f0] sm:$0xff]
    %v4672 = vld [vmem:[#allocation7 + $0x4f8] sm:$0xff]
    %v4673 = vld [vmem:[#allocation7 + $0x500] sm:$0xff]
    %v4674 = vld [vmem:[#allocation7 + $0x508] sm:$0xff]
    %v4675 = vld [vmem:[#allocation7 + $0x510] sm:$0xff]
    %v4676 = vld [vmem:[#allocation7 + $0x518] sm:$0xff]
    %v4677 = vld [vmem:[#allocation7 + $0x520] sm:$0xff]
    %v4678 = vld [vmem:[#allocation7 + $0x528] sm:$0xff]
    %v4679 = vld [vmem:[#allocation7 + $0x530] sm:$0xff]
    %v4680 = vld [vmem:[#allocation7 + $0x538] sm:$0xff]
    %v4681 = vld [vmem:[#allocation7 + $0x540] sm:$0xff]
    %v4682 = vld [vmem:[#allocation7 + $0x548] sm:$0xff]
    %v4683 = vld [vmem:[#allocation7 + $0x550] sm:$0xff]
    %v4684 = vld [vmem:[#allocation7 + $0x558] sm:$0xff]
    %v4685 = vld [vmem:[#allocation7 + $0x560] sm:$0xff]
    %v4686 = vld [vmem:[#allocation7 + $0x568] sm:$0xff]
    %v4687 = vld [vmem:[#allocation7 + $0x570] sm:$0xff]
    %v4688 = vld [vmem:[#allocation7 + $0x578] sm:$0xff]
    %v4689 = vld [vmem:[#allocation7 + $0x580] sm:$0xff]
    %v4690 = vld [vmem:[#allocation7 + $0x588] sm:$0xff]
    %v4691 = vld [vmem:[#allocation7 + $0x590] sm:$0xff]
    %v4692 = vld [vmem:[#allocation7 + $0x598] sm:$0xff]
    %v4693 = vld [vmem:[#allocation7 + $0x5a0] sm:$0xff]
    %v4694 = vld [vmem:[#allocation7 + $0x5a8] sm:$0xff]
    %v4695 = vld [vmem:[#allocation7 + $0x5b0] sm:$0xff]
    %v4696 = vld [vmem:[#allocation7 + $0x5b8] sm:$0xff]
    %v4697 = vld [vmem:[#allocation7 + $0x5c0] sm:$0xff]
    %v4698 = vld [vmem:[#allocation7 + $0x5c8] sm:$0xff]
    %v4699 = vld [vmem:[#allocation7 + $0x5d0] sm:$0xff]
    %v4700 = vld [vmem:[#allocation7 + $0x5d8] sm:$0xff]
    %v4701 = vld [vmem:[#allocation7 + $0x5e0] sm:$0xff]
    %v4702 = vld [vmem:[#allocation7 + $0x5e8] sm:$0xff]
    %v4703 = vld [vmem:[#allocation7 + $0x5f0] sm:$0xff]
    %v4704 = vld [vmem:[#allocation7 + $0x5f8] sm:$0xff]
    %v4705 = vld [vmem:[#allocation7 + $0x600] sm:$0xff]
    %v4706 = vld [vmem:[#allocation7 + $0x608] sm:$0xff]
    %v4707 = vld [vmem:[#allocation7 + $0x610] sm:$0xff]
    %v4708 = vld [vmem:[#allocation7 + $0x618] sm:$0xff]
    %v4709 = vld [vmem:[#allocation7 + $0x620] sm:$0xff]
    %v4710 = vld [vmem:[#allocation7 + $0x628] sm:$0xff]
    %v4711 = vld [vmem:[#allocation7 + $0x630] sm:$0xff]
    %v4712 = vld [vmem:[#allocation7 + $0x638] sm:$0xff]
    %v4713 = vld [vmem:[#allocation7 + $0x640] sm:$0xff]
    %v4714 = vld [vmem:[#allocation7 + $0x648] sm:$0xff]
    %v4715 = vld [vmem:[#allocation7 + $0x650] sm:$0xff]
    %v4716 = vld [vmem:[#allocation7 + $0x658] sm:$0xff]
    %v4717 = vld [vmem:[#allocation7 + $0x660] sm:$0xff]
    %v4718 = vld [vmem:[#allocation7 + $0x668] sm:$0xff]
    %v4719 = vld [vmem:[#allocation7 + $0x670] sm:$0xff]
    %v4720 = vld [vmem:[#allocation7 + $0x678] sm:$0xff]
    %v4721 = vld [vmem:[#allocation7 + $0x680] sm:$0xff]
    %v4722 = vld [vmem:[#allocation7 + $0x688] sm:$0xff]
    %v4723 = vld [vmem:[#allocation7 + $0x690] sm:$0xff]
    %v4724 = vld [vmem:[#allocation7 + $0x698] sm:$0xff]
    %v4725 = vld [vmem:[#allocation7 + $0x6a0] sm:$0xff]
    %v4726 = vld [vmem:[#allocation7 + $0x6a8] sm:$0xff]
    %v4727 = vld [vmem:[#allocation7 + $0x6b0] sm:$0xff]
    %v4728 = vld [vmem:[#allocation7 + $0x6b8] sm:$0xff]
    %v4729 = vld [vmem:[#allocation7 + $0x6c0] sm:$0xff]
    %v4730 = vld [vmem:[#allocation7 + $0x6c8] sm:$0xff]
    %v4731 = vld [vmem:[#allocation7 + $0x6d0] sm:$0xff]
    %v4732 = vld [vmem:[#allocation7 + $0x6d8] sm:$0xff]
    %v4733 = vld [vmem:[#allocation7 + $0x6e0] sm:$0xff]
    %v4734 = vld [vmem:[#allocation7 + $0x6e8] sm:$0xff]
    %v4735 = vld [vmem:[#allocation7 + $0x6f0] sm:$0xff]
    %v4736 = vld [vmem:[#allocation7 + $0x6f8] sm:$0xff]
    %v4737 = vld [vmem:[#allocation7 + $0x700] sm:$0xff]
    %v4738 = vld [vmem:[#allocation7 + $0x708] sm:$0xff]
    %v4739 = vld [vmem:[#allocation7 + $0x710] sm:$0xff]
    %v4740 = vld [vmem:[#allocation7 + $0x718] sm:$0xff]
    %v4741 = vld [vmem:[#allocation7 + $0x720] sm:$0xff]
    %v4742 = vld [vmem:[#allocation7 + $0x728] sm:$0xff]
    %v4743 = vld [vmem:[#allocation7 + $0x730] sm:$0xff]
    %v4744 = vld [vmem:[#allocation7 + $0x738] sm:$0xff]
    %v4745 = vld [vmem:[#allocation7 + $0x740] sm:$0xff]
    %v4746 = vld [vmem:[#allocation7 + $0x748] sm:$0xff]
    %v4747 = vld [vmem:[#allocation7 + $0x750] sm:$0xff]
    %v4748 = vld [vmem:[#allocation7 + $0x758] sm:$0xff]
    %v4749 = vld [vmem:[#allocation7 + $0x760] sm:$0xff]
    %v4750 = vld [vmem:[#allocation7 + $0x768] sm:$0xff]
    %v4751 = vld [vmem:[#allocation7 + $0x770] sm:$0xff]
    %v4752 = vld [vmem:[#allocation7 + $0x778] sm:$0xff]
    %v4753 = vld [vmem:[#allocation7 + $0x780] sm:$0xff]
    %v4754 = vld [vmem:[#allocation7 + $0x788] sm:$0xff]
    %v4755 = vld [vmem:[#allocation7 + $0x790] sm:$0xff]
    %v4756 = vld [vmem:[#allocation7 + $0x798] sm:$0xff]
    %v4757 = vld [vmem:[#allocation7 + $0x7a0] sm:$0xff]
    %v4758 = vld [vmem:[#allocation7 + $0x7a8] sm:$0xff]
    %v4759 = vld [vmem:[#allocation7 + $0x7b0] sm:$0xff]
    %v4760 = vld [vmem:[#allocation7 + $0x7b8] sm:$0xff]
    %v4761 = vld [vmem:[#allocation7 + $0x7c0] sm:$0xff]
    %v4762 = vld [vmem:[#allocation7 + $0x7c8] sm:$0xff]
    %v4763 = vld [vmem:[#allocation7 + $0x7d0] sm:$0xff]
    %v4764 = vld [vmem:[#allocation7 + $0x7d8] sm:$0xff]
    %v4765 = vld [vmem:[#allocation7 + $0x7e0] sm:$0xff]
    %v4766 = vld [vmem:[#allocation7 + $0x7e8] sm:$0xff]
    %v4767 = vld [vmem:[#allocation7 + $0x7f0] sm:$0xff]
    %v4768 = vld [vmem:[#allocation7 + $0x7f8] sm:$0xff]
    %v5025 = vunpack.c.l.b16 %v4513
    %v5026 = vunpack.c.h.b16 %v4513
    %v5027 = vunpack.c.l.b16 %v4514
    %v5028 = vunpack.c.h.b16 %v4514
    %v5029 = vunpack.c.l.b16 %v4515
    %v5030 = vunpack.c.h.b16 %v4515
    %v5031 = vunpack.c.l.b16 %v4516
    %v5032 = vunpack.c.h.b16 %v4516
    %v5033 = vunpack.c.l.b16 %v4517
    %v5034 = vunpack.c.h.b16 %v4517
    %v5035 = vunpack.c.l.b16 %v4518
    %v5036 = vunpack.c.h.b16 %v4518
    %v5037 = vunpack.c.l.b16 %v4519
    %v5038 = vunpack.c.h.b16 %v4519
    %v5039 = vunpack.c.l.b16 %v4520
    %v5040 = vunpack.c.h.b16 %v4520
    %v5041 = vunpack.c.l.b16 %v4521
    %v5042 = vunpack.c.h.b16 %v4521
    %v5043 = vunpack.c.l.b16 %v4522
    %v5044 = vunpack.c.h.b16 %v4522
    %v5045 = vunpack.c.l.b16 %v4523
    %v5046 = vunpack.c.h.b16 %v4523
    %v5047 = vunpack.c.l.b16 %v4524
    %v5048 = vunpack.c.h.b16 %v4524
    %v5049 = vunpack.c.l.b16 %v4525
    %v5050 = vunpack.c.h.b16 %v4525
    %v5051 = vunpack.c.l.b16 %v4526
    %v5052 = vunpack.c.h.b16 %v4526
    %v5053 = vunpack.c.l.b16 %v4527
    %v5054 = vunpack.c.h.b16 %v4527
    %v5055 = vunpack.c.l.b16 %v4528
    %v5056 = vunpack.c.h.b16 %v4528
    %v5057 = vunpack.c.l.b16 %v4529
    %v5058 = vunpack.c.h.b16 %v4529
    %v5059 = vunpack.c.l.b16 %v4530
    %v5060 = vunpack.c.h.b16 %v4530
    %v5061 = vunpack.c.l.b16 %v4531
    %v5062 = vunpack.c.h.b16 %v4531
    %v5063 = vunpack.c.l.b16 %v4532
    %v5064 = vunpack.c.h.b16 %v4532
    %v5065 = vunpack.c.l.b16 %v4533
    %v5066 = vunpack.c.h.b16 %v4533
    %v5067 = vunpack.c.l.b16 %v4534
    %v5068 = vunpack.c.h.b16 %v4534
    %v5069 = vunpack.c.l.b16 %v4535
    %v5070 = vunpack.c.h.b16 %v4535
    %v5071 = vunpack.c.l.b16 %v4536
    %v5072 = vunpack.c.h.b16 %v4536
    %v5073 = vunpack.c.l.b16 %v4537
    %v5074 = vunpack.c.h.b16 %v4537
    %v5075 = vunpack.c.l.b16 %v4538
    %v5076 = vunpack.c.h.b16 %v4538
    %v5077 = vunpack.c.l.b16 %v4539
    %v5078 = vunpack.c.h.b16 %v4539
    %v5079 = vunpack.c.l.b16 %v4540
    %v5080 = vunpack.c.h.b16 %v4540
    %v5081 = vunpack.c.l.b16 %v4541
    %v5082 = vunpack.c.h.b16 %v4541
    %v5083 = vunpack.c.l.b16 %v4542
    %v5084 = vunpack.c.h.b16 %v4542
    %v5085 = vunpack.c.l.b16 %v4543
    %v5086 = vunpack.c.h.b16 %v4543
    %v5087 = vunpack.c.l.b16 %v4544
    %v5088 = vunpack.c.h.b16 %v4544
    %v5089 = vunpack.c.l.b16 %v4545
    %v5090 = vunpack.c.h.b16 %v4545
    %v5091 = vunpack.c.l.b16 %v4546
    %v5092 = vunpack.c.h.b16 %v4546
    %v5093 = vunpack.c.l.b16 %v4547
    %v5094 = vunpack.c.h.b16 %v4547
    %v5095 = vunpack.c.l.b16 %v4548
    %v5096 = vunpack.c.h.b16 %v4548
    %v5097 = vunpack.c.l.b16 %v4549
    %v5098 = vunpack.c.h.b16 %v4549
    %v5099 = vunpack.c.l.b16 %v4550
    %v5100 = vunpack.c.h.b16 %v4550
    %v5101 = vunpack.c.l.b16 %v4551
    %v5102 = vunpack.c.h.b16 %v4551
    %v5103 = vunpack.c.l.b16 %v4552
    %v5104 = vunpack.c.h.b16 %v4552
    %v5105 = vunpack.c.l.b16 %v4553
    %v5106 = vunpack.c.h.b16 %v4553
    %v5107 = vunpack.c.l.b16 %v4554
    %v5108 = vunpack.c.h.b16 %v4554
    %v5109 = vunpack.c.l.b16 %v4555
    %v5110 = vunpack.c.h.b16 %v4555
    %v5111 = vunpack.c.l.b16 %v4556
    %v5112 = vunpack.c.h.b16 %v4556
    %v5113 = vunpack.c.l.b16 %v4557
    %v5114 = vunpack.c.h.b16 %v4557
    %v5115 = vunpack.c.l.b16 %v4558
    %v5116 = vunpack.c.h.b16 %v4558
    %v5117 = vunpack.c.l.b16 %v4559
    %v5118 = vunpack.c.h.b16 %v4559
    %v5119 = vunpack.c.l.b16 %v4560
    %v5120 = vunpack.c.h.b16 %v4560
    %v5121 = vunpack.c.l.b16 %v4561
    %v5122 = vunpack.c.h.b16 %v4561
    %v5123 = vunpack.c.l.b16 %v4562
    %v5124 = vunpack.c.h.b16 %v4562
    %v5125 = vunpack.c.l.b16 %v4563
    %v5126 = vunpack.c.h.b16 %v4563
    %v5127 = vunpack.c.l.b16 %v4564
    %v5128 = vunpack.c.h.b16 %v4564
    %v5129 = vunpack.c.l.b16 %v4565
    %v5130 = vunpack.c.h.b16 %v4565
    %v5131 = vunpack.c.l.b16 %v4566
    %v5132 = vunpack.c.h.b16 %v4566
    %v5133 = vunpack.c.l.b16 %v4567
    %v5134 = vunpack.c.h.b16 %v4567
    %v5135 = vunpack.c.l.b16 %v4568
    %v5136 = vunpack.c.h.b16 %v4568
    %v5137 = vunpack.c.l.b16 %v4569
    %v5138 = vunpack.c.h.b16 %v4569
    %v5139 = vunpack.c.l.b16 %v4570
    %v5140 = vunpack.c.h.b16 %v4570
    %v5141 = vunpack.c.l.b16 %v4571
    %v5142 = vunpack.c.h.b16 %v4571
    %v5143 = vunpack.c.l.b16 %v4572
    %v5144 = vunpack.c.h.b16 %v4572
    %v5145 = vunpack.c.l.b16 %v4573
    %v5146 = vunpack.c.h.b16 %v4573
    %v5147 = vunpack.c.l.b16 %v4574
    %v5148 = vunpack.c.h.b16 %v4574
    %v5149 = vunpack.c.l.b16 %v4575
    %v5150 = vunpack.c.h.b16 %v4575
    %v5151 = vunpack.c.l.b16 %v4576
    %v5152 = vunpack.c.h.b16 %v4576
    %v5153 = vunpack.c.l.b16 %v4577
    %v5154 = vunpack.c.h.b16 %v4577
    %v5155 = vunpack.c.l.b16 %v4578
    %v5156 = vunpack.c.h.b16 %v4578
    %v5157 = vunpack.c.l.b16 %v4579
    %v5158 = vunpack.c.h.b16 %v4579
    %v5159 = vunpack.c.l.b16 %v4580
    %v5160 = vunpack.c.h.b16 %v4580
    %v5161 = vunpack.c.l.b16 %v4581
    %v5162 = vunpack.c.h.b16 %v4581
    %v5163 = vunpack.c.l.b16 %v4582
    %v5164 = vunpack.c.h.b16 %v4582
    %v5165 = vunpack.c.l.b16 %v4583
    %v5166 = vunpack.c.h.b16 %v4583
    %v5167 = vunpack.c.l.b16 %v4584
    %v5168 = vunpack.c.h.b16 %v4584
    %v5169 = vunpack.c.l.b16 %v4585
    %v5170 = vunpack.c.h.b16 %v4585
    %v5171 = vunpack.c.l.b16 %v4586
    %v5172 = vunpack.c.h.b16 %v4586
    %v5173 = vunpack.c.l.b16 %v4587
    %v5174 = vunpack.c.h.b16 %v4587
    %v5175 = vunpack.c.l.b16 %v4588
    %v5176 = vunpack.c.h.b16 %v4588
    %v5177 = vunpack.c.l.b16 %v4589
    %v5178 = vunpack.c.h.b16 %v4589
    %v5179 = vunpack.c.l.b16 %v4590
    %v5180 = vunpack.c.h.b16 %v4590
    %v5181 = vunpack.c.l.b16 %v4591
    %v5182 = vunpack.c.h.b16 %v4591
    %v5183 = vunpack.c.l.b16 %v4592
    %v5184 = vunpack.c.h.b16 %v4592
    %v5185 = vunpack.c.l.b16 %v4593
    %v5186 = vunpack.c.h.b16 %v4593
    %v5187 = vunpack.c.l.b16 %v4594
    %v5188 = vunpack.c.h.b16 %v4594
    %v5189 = vunpack.c.l.b16 %v4595
    %v5190 = vunpack.c.h.b16 %v4595
    %v5191 = vunpack.c.l.b16 %v4596
    %v5192 = vunpack.c.h.b16 %v4596
    %v5193 = vunpack.c.l.b16 %v4597
    %v5194 = vunpack.c.h.b16 %v4597
    %v5195 = vunpack.c.l.b16 %v4598
    %v5196 = vunpack.c.h.b16 %v4598
    %v5197 = vunpack.c.l.b16 %v4599
    %v5198 = vunpack.c.h.b16 %v4599
    %v5199 = vunpack.c.l.b16 %v4600
    %v5200 = vunpack.c.h.b16 %v4600
    %v5201 = vunpack.c.l.b16 %v4601
    %v5202 = vunpack.c.h.b16 %v4601
    %v5203 = vunpack.c.l.b16 %v4602
    %v5204 = vunpack.c.h.b16 %v4602
    %v5205 = vunpack.c.l.b16 %v4603
    %v5206 = vunpack.c.h.b16 %v4603
    %v5207 = vunpack.c.l.b16 %v4604
    %v5208 = vunpack.c.h.b16 %v4604
    %v5209 = vunpack.c.l.b16 %v4605
    %v5210 = vunpack.c.h.b16 %v4605
    %v5211 = vunpack.c.l.b16 %v4606
    %v5212 = vunpack.c.h.b16 %v4606
    %v5213 = vunpack.c.l.b16 %v4607
    %v5214 = vunpack.c.h.b16 %v4607
    %v5215 = vunpack.c.l.b16 %v4608
    %v5216 = vunpack.c.h.b16 %v4608
    %v5217 = vunpack.c.l.b16 %v4609
    %v5218 = vunpack.c.h.b16 %v4609
    %v5219 = vunpack.c.l.b16 %v4610
    %v5220 = vunpack.c.h.b16 %v4610
    %v5221 = vunpack.c.l.b16 %v4611
    %v5222 = vunpack.c.h.b16 %v4611
    %v5223 = vunpack.c.l.b16 %v4612
    %v5224 = vunpack.c.h.b16 %v4612
    %v5225 = vunpack.c.l.b16 %v4613
    %v5226 = vunpack.c.h.b16 %v4613
    %v5227 = vunpack.c.l.b16 %v4614
    %v5228 = vunpack.c.h.b16 %v4614
    %v5229 = vunpack.c.l.b16 %v4615
    %v5230 = vunpack.c.h.b16 %v4615
    %v5231 = vunpack.c.l.b16 %v4616
    %v5232 = vunpack.c.h.b16 %v4616
    %v5233 = vunpack.c.l.b16 %v4617
    %v5234 = vunpack.c.h.b16 %v4617
    %v5235 = vunpack.c.l.b16 %v4618
    %v5236 = vunpack.c.h.b16 %v4618
    %v5237 = vunpack.c.l.b16 %v4619
    %v5238 = vunpack.c.h.b16 %v4619
    %v5239 = vunpack.c.l.b16 %v4620
    %v5240 = vunpack.c.h.b16 %v4620
    %v5241 = vunpack.c.l.b16 %v4621
    %v5242 = vunpack.c.h.b16 %v4621
    %v5243 = vunpack.c.l.b16 %v4622
    %v5244 = vunpack.c.h.b16 %v4622
    %v5245 = vunpack.c.l.b16 %v4623
    %v5246 = vunpack.c.h.b16 %v4623
    %v5247 = vunpack.c.l.b16 %v4624
    %v5248 = vunpack.c.h.b16 %v4624
    %v5249 = vunpack.c.l.b16 %v4625
    %v5250 = vunpack.c.h.b16 %v4625
    %v5251 = vunpack.c.l.b16 %v4626
    %v5252 = vunpack.c.h.b16 %v4626
    %v5253 = vunpack.c.l.b16 %v4627
    %v5254 = vunpack.c.h.b16 %v4627
    %v5255 = vunpack.c.l.b16 %v4628
    %v5256 = vunpack.c.h.b16 %v4628
    %v5257 = vunpack.c.l.b16 %v4629
    %v5258 = vunpack.c.h.b16 %v4629
    %v5259 = vunpack.c.l.b16 %v4630
    %v5260 = vunpack.c.h.b16 %v4630
    %v5261 = vunpack.c.l.b16 %v4631
    %v5262 = vunpack.c.h.b16 %v4631
    %v5263 = vunpack.c.l.b16 %v4632
    %v5264 = vunpack.c.h.b16 %v4632
    %v5265 = vunpack.c.l.b16 %v4633
    %v5266 = vunpack.c.h.b16 %v4633
    %v5267 = vunpack.c.l.b16 %v4634
    %v5268 = vunpack.c.h.b16 %v4634
    %v5269 = vunpack.c.l.b16 %v4635
    %v5270 = vunpack.c.h.b16 %v4635
    %v5271 = vunpack.c.l.b16 %v4636
    %v5272 = vunpack.c.h.b16 %v4636
    %v5273 = vunpack.c.l.b16 %v4637
    %v5274 = vunpack.c.h.b16 %v4637
    %v5275 = vunpack.c.l.b16 %v4638
    %v5276 = vunpack.c.h.b16 %v4638
    %v5277 = vunpack.c.l.b16 %v4639
    %v5278 = vunpack.c.h.b16 %v4639
    %v5279 = vunpack.c.l.b16 %v4640
    %v5280 = vunpack.c.h.b16 %v4640
    %v5281 = vunpack.c.l.b16 %v4641
    %v5282 = vunpack.c.h.b16 %v4641
    %v5283 = vunpack.c.l.b16 %v4642
    %v5284 = vunpack.c.h.b16 %v4642
    %v5285 = vunpack.c.l.b16 %v4643
    %v5286 = vunpack.c.h.b16 %v4643
    %v5287 = vunpack.c.l.b16 %v4644
    %v5288 = vunpack.c.h.b16 %v4644
    %v5289 = vunpack.c.l.b16 %v4645
    %v5290 = vunpack.c.h.b16 %v4645
    %v5291 = vunpack.c.l.b16 %v4646
    %v5292 = vunpack.c.h.b16 %v4646
    %v5293 = vunpack.c.l.b16 %v4647
    %v5294 = vunpack.c.h.b16 %v4647
    %v5295 = vunpack.c.l.b16 %v4648
    %v5296 = vunpack.c.h.b16 %v4648
    %v5297 = vunpack.c.l.b16 %v4649
    %v5298 = vunpack.c.h.b16 %v4649
    %v5299 = vunpack.c.l.b16 %v4650
    %v5300 = vunpack.c.h.b16 %v4650
    %v5301 = vunpack.c.l.b16 %v4651
    %v5302 = vunpack.c.h.b16 %v4651
    %v5303 = vunpack.c.l.b16 %v4652
    %v5304 = vunpack.c.h.b16 %v4652
    %v5305 = vunpack.c.l.b16 %v4653
    %v5306 = vunpack.c.h.b16 %v4653
    %v5307 = vunpack.c.l.b16 %v4654
    %v5308 = vunpack.c.h.b16 %v4654
    %v5309 = vunpack.c.l.b16 %v4655
    %v5310 = vunpack.c.h.b16 %v4655
    %v5311 = vunpack.c.l.b16 %v4656
    %v5312 = vunpack.c.h.b16 %v4656
    %v5313 = vunpack.c.l.b16 %v4657
    %v5314 = vunpack.c.h.b16 %v4657
    %v5315 = vunpack.c.l.b16 %v4658
    %v5316 = vunpack.c.h.b16 %v4658
    %v5317 = vunpack.c.l.b16 %v4659
    %v5318 = vunpack.c.h.b16 %v4659
    %v5319 = vunpack.c.l.b16 %v4660
    %v5320 = vunpack.c.h.b16 %v4660
    %v5321 = vunpack.c.l.b16 %v4661
    %v5322 = vunpack.c.h.b16 %v4661
    %v5323 = vunpack.c.l.b16 %v4662
    %v5324 = vunpack.c.h.b16 %v4662
    %v5325 = vunpack.c.l.b16 %v4663
    %v5326 = vunpack.c.h.b16 %v4663
    %v5327 = vunpack.c.l.b16 %v4664
    %v5328 = vunpack.c.h.b16 %v4664
    %v5329 = vunpack.c.l.b16 %v4665
    %v5330 = vunpack.c.h.b16 %v4665
    %v5331 = vunpack.c.l.b16 %v4666
    %v5332 = vunpack.c.h.b16 %v4666
    %v5333 = vunpack.c.l.b16 %v4667
    %v5334 = vunpack.c.h.b16 %v4667
    %v5335 = vunpack.c.l.b16 %v4668
    %v5336 = vunpack.c.h.b16 %v4668
    %v5337 = vunpack.c.l.b16 %v4669
    %v5338 = vunpack.c.h.b16 %v4669
    %v5339 = vunpack.c.l.b16 %v4670
    %v5340 = vunpack.c.h.b16 %v4670
    %v5341 = vunpack.c.l.b16 %v4671
    %v5342 = vunpack.c.h.b16 %v4671
    %v5343 = vunpack.c.l.b16 %v4672
    %v5344 = vunpack.c.h.b16 %v4672
    %v5345 = vunpack.c.l.b16 %v4673
    %v5346 = vunpack.c.h.b16 %v4673
    %v5347 = vunpack.c.l.b16 %v4674
    %v5348 = vunpack.c.h.b16 %v4674
    %v5349 = vunpack.c.l.b16 %v4675
    %v5350 = vunpack.c.h.b16 %v4675
    %v5351 = vunpack.c.l.b16 %v4676
    %v5352 = vunpack.c.h.b16 %v4676
    %v5353 = vunpack.c.l.b16 %v4677
    %v5354 = vunpack.c.h.b16 %v4677
    %v5355 = vunpack.c.l.b16 %v4678
    %v5356 = vunpack.c.h.b16 %v4678
    %v5357 = vunpack.c.l.b16 %v4679
    %v5358 = vunpack.c.h.b16 %v4679
    %v5359 = vunpack.c.l.b16 %v4680
    %v5360 = vunpack.c.h.b16 %v4680
    %v5361 = vunpack.c.l.b16 %v4681
    %v5362 = vunpack.c.h.b16 %v4681
    %v5363 = vunpack.c.l.b16 %v4682
    %v5364 = vunpack.c.h.b16 %v4682
    %v5365 = vunpack.c.l.b16 %v4683
    %v5366 = vunpack.c.h.b16 %v4683
    %v5367 = vunpack.c.l.b16 %v4684
    %v5368 = vunpack.c.h.b16 %v4684
    %v5369 = vunpack.c.l.b16 %v4685
    %v5370 = vunpack.c.h.b16 %v4685
    %v5371 = vunpack.c.l.b16 %v4686
    %v5372 = vunpack.c.h.b16 %v4686
    %v5373 = vunpack.c.l.b16 %v4687
    %v5374 = vunpack.c.h.b16 %v4687
    %v5375 = vunpack.c.l.b16 %v4688
    %v5376 = vunpack.c.h.b16 %v4688
    %v5377 = vunpack.c.l.b16 %v4689
    %v5378 = vunpack.c.h.b16 %v4689
    %v5379 = vunpack.c.l.b16 %v4690
    %v5380 = vunpack.c.h.b16 %v4690
    %v5381 = vunpack.c.l.b16 %v4691
    %v5382 = vunpack.c.h.b16 %v4691
    %v5383 = vunpack.c.l.b16 %v4692
    %v5384 = vunpack.c.h.b16 %v4692
    %v5385 = vunpack.c.l.b16 %v4693
    %v5386 = vunpack.c.h.b16 %v4693
    %v5387 = vunpack.c.l.b16 %v4694
    %v5388 = vunpack.c.h.b16 %v4694
    %v5389 = vunpack.c.l.b16 %v4695
    %v5390 = vunpack.c.h.b16 %v4695
    %v5391 = vunpack.c.l.b16 %v4696
    %v5392 = vunpack.c.h.b16 %v4696
    %v5393 = vunpack.c.l.b16 %v4697
    %v5394 = vunpack.c.h.b16 %v4697
    %v5395 = vunpack.c.l.b16 %v4698
    %v5396 = vunpack.c.h.b16 %v4698
    %v5397 = vunpack.c.l.b16 %v4699
    %v5398 = vunpack.c.h.b16 %v4699
    %v5399 = vunpack.c.l.b16 %v4700
    %v5400 = vunpack.c.h.b16 %v4700
    %v5401 = vunpack.c.l.b16 %v4701
    %v5402 = vunpack.c.h.b16 %v4701
    %v5403 = vunpack.c.l.b16 %v4702
    %v5404 = vunpack.c.h.b16 %v4702
    %v5405 = vunpack.c.l.b16 %v4703
    %v5406 = vunpack.c.h.b16 %v4703
    %v5407 = vunpack.c.l.b16 %v4704
    %v5408 = vunpack.c.h.b16 %v4704
    %v5409 = vunpack.c.l.b16 %v4705
    %v5410 = vunpack.c.h.b16 %v4705
    %v5411 = vunpack.c.l.b16 %v4706
    %v5412 = vunpack.c.h.b16 %v4706
    %v5413 = vunpack.c.l.b16 %v4707
    %v5414 = vunpack.c.h.b16 %v4707
    %v5415 = vunpack.c.l.b16 %v4708
    %v5416 = vunpack.c.h.b16 %v4708
    %v5417 = vunpack.c.l.b16 %v4709
    %v5418 = vunpack.c.h.b16 %v4709
    %v5419 = vunpack.c.l.b16 %v4710
    %v5420 = vunpack.c.h.b16 %v4710
    %v5421 = vunpack.c.l.b16 %v4711
    %v5422 = vunpack.c.h.b16 %v4711
    %v5423 = vunpack.c.l.b16 %v4712
    %v5424 = vunpack.c.h.b16 %v4712
    %v5425 = vunpack.c.l.b16 %v4713
    %v5426 = vunpack.c.h.b16 %v4713
    %v5427 = vunpack.c.l.b16 %v4714
    %v5428 = vunpack.c.h.b16 %v4714
    %v5429 = vunpack.c.l.b16 %v4715
    %v5430 = vunpack.c.h.b16 %v4715
    %v5431 = vunpack.c.l.b16 %v4716
    %v5432 = vunpack.c.h.b16 %v4716
    %v5433 = vunpack.c.l.b16 %v4717
    %v5434 = vunpack.c.h.b16 %v4717
    %v5435 = vunpack.c.l.b16 %v4718
    %v5436 = vunpack.c.h.b16 %v4718
    %v5437 = vunpack.c.l.b16 %v4719
    %v5438 = vunpack.c.h.b16 %v4719
    %v5439 = vunpack.c.l.b16 %v4720
    %v5440 = vunpack.c.h.b16 %v4720
    %v5441 = vunpack.c.l.b16 %v4721
    %v5442 = vunpack.c.h.b16 %v4721
    %v5443 = vunpack.c.l.b16 %v4722
    %v5444 = vunpack.c.h.b16 %v4722
    %v5445 = vunpack.c.l.b16 %v4723
    %v5446 = vunpack.c.h.b16 %v4723
    %v5447 = vunpack.c.l.b16 %v4724
    %v5448 = vunpack.c.h.b16 %v4724
    %v5449 = vunpack.c.l.b16 %v4725
    %v5450 = vunpack.c.h.b16 %v4725
    %v5451 = vunpack.c.l.b16 %v4726
    %v5452 = vunpack.c.h.b16 %v4726
    %v5453 = vunpack.c.l.b16 %v4727
    %v5454 = vunpack.c.h.b16 %v4727
    %v5455 = vunpack.c.l.b16 %v4728
    %v5456 = vunpack.c.h.b16 %v4728
    %v5457 = vunpack.c.l.b16 %v4729
    %v5458 = vunpack.c.h.b16 %v4729
    %v5459 = vunpack.c.l.b16 %v4730
    %v5460 = vunpack.c.h.b16 %v4730
    %v5461 = vunpack.c.l.b16 %v4731
    %v5462 = vunpack.c.h.b16 %v4731
    %v5463 = vunpack.c.l.b16 %v4732
    %v5464 = vunpack.c.h.b16 %v4732
    %v5465 = vunpack.c.l.b16 %v4733
    %v5466 = vunpack.c.h.b16 %v4733
    %v5467 = vunpack.c.l.b16 %v4734
    %v5468 = vunpack.c.h.b16 %v4734
    %v5469 = vunpack.c.l.b16 %v4735
    %v5470 = vunpack.c.h.b16 %v4735
    %v5471 = vunpack.c.l.b16 %v4736
    %v5472 = vunpack.c.h.b16 %v4736
    %v5473 = vunpack.c.l.b16 %v4737
    %v5474 = vunpack.c.h.b16 %v4737
    %v5475 = vunpack.c.l.b16 %v4738
    %v5476 = vunpack.c.h.b16 %v4738
    %v5477 = vunpack.c.l.b16 %v4739
    %v5478 = vunpack.c.h.b16 %v4739
    %v5479 = vunpack.c.l.b16 %v4740
    %v5480 = vunpack.c.h.b16 %v4740
    %v5481 = vunpack.c.l.b16 %v4741
    %v5482 = vunpack.c.h.b16 %v4741
    %v5483 = vunpack.c.l.b16 %v4742
    %v5484 = vunpack.c.h.b16 %v4742
    %v5485 = vunpack.c.l.b16 %v4743
    %v5486 = vunpack.c.h.b16 %v4743
    %v5487 = vunpack.c.l.b16 %v4744
    %v5488 = vunpack.c.h.b16 %v4744
    %v5489 = vunpack.c.l.b16 %v4745
    %v5490 = vunpack.c.h.b16 %v4745
    %v5491 = vunpack.c.l.b16 %v4746
    %v5492 = vunpack.c.h.b16 %v4746
    %v5493 = vunpack.c.l.b16 %v4747
    %v5494 = vunpack.c.h.b16 %v4747
    %v5495 = vunpack.c.l.b16 %v4748
    %v5496 = vunpack.c.h.b16 %v4748
    %v5497 = vunpack.c.l.b16 %v4749
    %v5498 = vunpack.c.h.b16 %v4749
    %v5499 = vunpack.c.l.b16 %v4750
    %v5500 = vunpack.c.h.b16 %v4750
    %v5501 = vunpack.c.l.b16 %v4751
    %v5502 = vunpack.c.h.b16 %v4751
    %v5503 = vunpack.c.l.b16 %v4752
    %v5504 = vunpack.c.h.b16 %v4752
    %v5505 = vunpack.c.l.b16 %v4753
    %v5506 = vunpack.c.h.b16 %v4753
    %v5507 = vunpack.c.l.b16 %v4754
    %v5508 = vunpack.c.h.b16 %v4754
    %v5509 = vunpack.c.l.b16 %v4755
    %v5510 = vunpack.c.h.b16 %v4755
    %v5511 = vunpack.c.l.b16 %v4756
    %v5512 = vunpack.c.h.b16 %v4756
    %v5513 = vunpack.c.l.b16 %v4757
    %v5514 = vunpack.c.h.b16 %v4757
    %v5515 = vunpack.c.l.b16 %v4758
    %v5516 = vunpack.c.h.b16 %v4758
    %v5517 = vunpack.c.l.b16 %v4759
    %v5518 = vunpack.c.h.b16 %v4759
    %v5519 = vunpack.c.l.b16 %v4760
    %v5520 = vunpack.c.h.b16 %v4760
    %v5521 = vunpack.c.l.b16 %v4761
    %v5522 = vunpack.c.h.b16 %v4761
    %v5523 = vunpack.c.l.b16 %v4762
    %v5524 = vunpack.c.h.b16 %v4762
    %v5525 = vunpack.c.l.b16 %v4763
    %v5526 = vunpack.c.h.b16 %v4763
    %v5527 = vunpack.c.l.b16 %v4764
    %v5528 = vunpack.c.h.b16 %v4764
    %v5529 = vunpack.c.l.b16 %v4765
    %v5530 = vunpack.c.h.b16 %v4765
    %v5531 = vunpack.c.l.b16 %v4766
    %v5532 = vunpack.c.h.b16 %v4766
    %v5533 = vunpack.c.l.b16 %v4767
    %v5534 = vunpack.c.h.b16 %v4767
    %v5535 = vunpack.c.l.b16 %v4768
    %v5536 = vunpack.c.h.b16 %v4768
    %v5537 = vpack.c.b16 %v5029, %v5025
    %v5538 = vpack.c.b16 %v5030, %v5026
    %v5539 = vpack.c.b16 %v5031, %v5027
    %v5540 = vpack.c.b16 %v5032, %v5028
    %v5541 = vpack.c.b16 %v5037, %v5033
    %v5542 = vpack.c.b16 %v5038, %v5034
    %v5543 = vpack.c.b16 %v5039, %v5035
    %v5544 = vpack.c.b16 %v5040, %v5036
    %v5545 = vpack.c.b16 %v5045, %v5041
    %v5546 = vpack.c.b16 %v5046, %v5042
    %v5547 = vpack.c.b16 %v5047, %v5043
    %v5548 = vpack.c.b16 %v5048, %v5044
    %v5549 = vpack.c.b16 %v5053, %v5049
    %v5550 = vpack.c.b16 %v5054, %v5050
    %v5551 = vpack.c.b16 %v5055, %v5051
    %v5552 = vpack.c.b16 %v5056, %v5052
    %v5553 = vpack.c.b16 %v5061, %v5057
    %v5554 = vpack.c.b16 %v5062, %v5058
    %v5555 = vpack.c.b16 %v5063, %v5059
    %v5556 = vpack.c.b16 %v5064, %v5060
    %v5557 = vpack.c.b16 %v5069, %v5065
    %v5558 = vpack.c.b16 %v5070, %v5066
    %v5559 = vpack.c.b16 %v5071, %v5067
    %v5560 = vpack.c.b16 %v5072, %v5068
    %v5561 = vpack.c.b16 %v5077, %v5073
    %v5562 = vpack.c.b16 %v5078, %v5074
    %v5563 = vpack.c.b16 %v5079, %v5075
    %v5564 = vpack.c.b16 %v5080, %v5076
    %v5565 = vpack.c.b16 %v5085, %v5081
    %v5566 = vpack.c.b16 %v5086, %v5082
    %v5567 = vpack.c.b16 %v5087, %v5083
    %v5568 = vpack.c.b16 %v5088, %v5084
    %v5569 = vpack.c.b16 %v5093, %v5089
    %v5570 = vpack.c.b16 %v5094, %v5090
    %v5571 = vpack.c.b16 %v5095, %v5091
    %v5572 = vpack.c.b16 %v5096, %v5092
    %v5573 = vpack.c.b16 %v5101, %v5097
    %v5574 = vpack.c.b16 %v5102, %v5098
    %v5575 = vpack.c.b16 %v5103, %v5099
    %v5576 = vpack.c.b16 %v5104, %v5100
    %v5577 = vpack.c.b16 %v5109, %v5105
    %v5578 = vpack.c.b16 %v5110, %v5106
    %v5579 = vpack.c.b16 %v5111, %v5107
    %v5580 = vpack.c.b16 %v5112, %v5108
    %v5581 = vpack.c.b16 %v5117, %v5113
    %v5582 = vpack.c.b16 %v5118, %v5114
    %v5583 = vpack.c.b16 %v5119, %v5115
    %v5584 = vpack.c.b16 %v5120, %v5116
    %v5585 = vpack.c.b16 %v5125, %v5121
    %v5586 = vpack.c.b16 %v5126, %v5122
    %v5587 = vpack.c.b16 %v5127, %v5123
    %v5588 = vpack.c.b16 %v5128, %v5124
    %v5589 = vpack.c.b16 %v5133, %v5129
    %v5590 = vpack.c.b16 %v5134, %v5130
    %v5591 = vpack.c.b16 %v5135, %v5131
    %v5592 = vpack.c.b16 %v5136, %v5132
    %v5593 = vpack.c.b16 %v5141, %v5137
    %v5594 = vpack.c.b16 %v5142, %v5138
    %v5595 = vpack.c.b16 %v5143, %v5139
    %v5596 = vpack.c.b16 %v5144, %v5140
    %v5597 = vpack.c.b16 %v5149, %v5145
    %v5598 = vpack.c.b16 %v5150, %v5146
    %v5599 = vpack.c.b16 %v5151, %v5147
    %v5600 = vpack.c.b16 %v5152, %v5148
    %v5601 = vpack.c.b16 %v5157, %v5153
    %v5602 = vpack.c.b16 %v5158, %v5154
    %v5603 = vpack.c.b16 %v5159, %v5155
    %v5604 = vpack.c.b16 %v5160, %v5156
    %v5605 = vpack.c.b16 %v5165, %v5161
    %v5606 = vpack.c.b16 %v5166, %v5162
    %v5607 = vpack.c.b16 %v5167, %v5163
    %v5608 = vpack.c.b16 %v5168, %v5164
    %v5609 = vpack.c.b16 %v5173, %v5169
    %v5610 = vpack.c.b16 %v5174, %v5170
    %v5611 = vpack.c.b16 %v5175, %v5171
    %v5612 = vpack.c.b16 %v5176, %v5172
    %v5613 = vpack.c.b16 %v5181, %v5177
    %v5614 = vpack.c.b16 %v5182, %v5178
    %v5615 = vpack.c.b16 %v5183, %v5179
    %v5616 = vpack.c.b16 %v5184, %v5180
    %v5617 = vpack.c.b16 %v5189, %v5185
    %v5618 = vpack.c.b16 %v5190, %v5186
    %v5619 = vpack.c.b16 %v5191, %v5187
    %v5620 = vpack.c.b16 %v5192, %v5188
    %v5621 = vpack.c.b16 %v5197, %v5193
    %v5622 = vpack.c.b16 %v5198, %v5194
    %v5623 = vpack.c.b16 %v5199, %v5195
    %v5624 = vpack.c.b16 %v5200, %v5196
    %v5625 = vpack.c.b16 %v5205, %v5201
    %v5626 = vpack.c.b16 %v5206, %v5202
    %v5627 = vpack.c.b16 %v5207, %v5203
    %v5628 = vpack.c.b16 %v5208, %v5204
    %v5629 = vpack.c.b16 %v5213, %v5209
    %v5630 = vpack.c.b16 %v5214, %v5210
    %v5631 = vpack.c.b16 %v5215, %v5211
    %v5632 = vpack.c.b16 %v5216, %v5212
    %v5633 = vpack.c.b16 %v5221, %v5217
    %v5634 = vpack.c.b16 %v5222, %v5218
    %v5635 = vpack.c.b16 %v5223, %v5219
    %v5636 = vpack.c.b16 %v5224, %v5220
    %v5637 = vpack.c.b16 %v5229, %v5225
    %v5638 = vpack.c.b16 %v5230, %v5226
    %v5639 = vpack.c.b16 %v5231, %v5227
    %v5640 = vpack.c.b16 %v5232, %v5228
    %v5641 = vpack.c.b16 %v5237, %v5233
    %v5642 = vpack.c.b16 %v5238, %v5234
    %v5643 = vpack.c.b16 %v5239, %v5235
    %v5644 = vpack.c.b16 %v5240, %v5236
    %v5645 = vpack.c.b16 %v5245, %v5241
    %v5646 = vpack.c.b16 %v5246, %v5242
    %v5647 = vpack.c.b16 %v5247, %v5243
    %v5648 = vpack.c.b16 %v5248, %v5244
    %v5649 = vpack.c.b16 %v5253, %v5249
    %v5650 = vpack.c.b16 %v5254, %v5250
    %v5651 = vpack.c.b16 %v5255, %v5251
    %v5652 = vpack.c.b16 %v5256, %v5252
    %v5653 = vpack.c.b16 %v5261, %v5257
    %v5654 = vpack.c.b16 %v5262, %v5258
    %v5655 = vpack.c.b16 %v5263, %v5259
    %v5656 = vpack.c.b16 %v5264, %v5260
    %v5657 = vpack.c.b16 %v5269, %v5265
    %v5658 = vpack.c.b16 %v5270, %v5266
    %v5659 = vpack.c.b16 %v5271, %v5267
    %v5660 = vpack.c.b16 %v5272, %v5268
    %v5661 = vpack.c.b16 %v5277, %v5273
    %v5662 = vpack.c.b16 %v5278, %v5274
    %v5663 = vpack.c.b16 %v5279, %v5275
    %v5664 = vpack.c.b16 %v5280, %v5276
    %v5665 = vpack.c.b16 %v5285, %v5281
    %v5666 = vpack.c.b16 %v5286, %v5282
    %v5667 = vpack.c.b16 %v5287, %v5283
    %v5668 = vpack.c.b16 %v5288, %v5284
    %v5669 = vpack.c.b16 %v5293, %v5289
    %v5670 = vpack.c.b16 %v5294, %v5290
    %v5671 = vpack.c.b16 %v5295, %v5291
    %v5672 = vpack.c.b16 %v5296, %v5292
    %v5673 = vpack.c.b16 %v5301, %v5297
    %v5674 = vpack.c.b16 %v5302, %v5298
    %v5675 = vpack.c.b16 %v5303, %v5299
    %v5676 = vpack.c.b16 %v5304, %v5300
    %v5677 = vpack.c.b16 %v5309, %v5305
    %v5678 = vpack.c.b16 %v5310, %v5306
    %v5679 = vpack.c.b16 %v5311, %v5307
    %v5680 = vpack.c.b16 %v5312, %v5308
    %v5681 = vpack.c.b16 %v5317, %v5313
    %v5682 = vpack.c.b16 %v5318, %v5314
    %v5683 = vpack.c.b16 %v5319, %v5315
    %v5684 = vpack.c.b16 %v5320, %v5316
    %v5685 = vpack.c.b16 %v5325, %v5321
    %v5686 = vpack.c.b16 %v5326, %v5322
    %v5687 = vpack.c.b16 %v5327, %v5323
    %v5688 = vpack.c.b16 %v5328, %v5324
    %v5689 = vpack.c.b16 %v5333, %v5329
    %v5690 = vpack.c.b16 %v5334, %v5330
    %v5691 = vpack.c.b16 %v5335, %v5331
    %v5692 = vpack.c.b16 %v5336, %v5332
    %v5693 = vpack.c.b16 %v5341, %v5337
    %v5694 = vpack.c.b16 %v5342, %v5338
    %v5695 = vpack.c.b16 %v5343, %v5339
    %v5696 = vpack.c.b16 %v5344, %v5340
    %v5697 = vpack.c.b16 %v5349, %v5345
    %v5698 = vpack.c.b16 %v5350, %v5346
    %v5699 = vpack.c.b16 %v5351, %v5347
    %v5700 = vpack.c.b16 %v5352, %v5348
    %v5701 = vpack.c.b16 %v5357, %v5353
    %v5702 = vpack.c.b16 %v5358, %v5354
    %v5703 = vpack.c.b16 %v5359, %v5355
    %v5704 = vpack.c.b16 %v5360, %v5356
    %v5705 = vpack.c.b16 %v5365, %v5361
    %v5706 = vpack.c.b16 %v5366, %v5362
    %v5707 = vpack.c.b16 %v5367, %v5363
    %v5708 = vpack.c.b16 %v5368, %v5364
    %v5709 = vpack.c.b16 %v5373, %v5369
    %v5710 = vpack.c.b16 %v5374, %v5370
    %v5711 = vpack.c.b16 %v5375, %v5371
    %v5712 = vpack.c.b16 %v5376, %v5372
    %v5713 = vpack.c.b16 %v5381, %v5377
    %v5714 = vpack.c.b16 %v5382, %v5378
    %v5715 = vpack.c.b16 %v5383, %v5379
    %v5716 = vpack.c.b16 %v5384, %v5380
    %v5717 = vpack.c.b16 %v5389, %v5385
    %v5718 = vpack.c.b16 %v5390, %v5386
    %v5719 = vpack.c.b16 %v5391, %v5387
    %v5720 = vpack.c.b16 %v5392, %v5388
    %v5721 = vpack.c.b16 %v5397, %v5393
    %v5722 = vpack.c.b16 %v5398, %v5394
    %v5723 = vpack.c.b16 %v5399, %v5395
    %v5724 = vpack.c.b16 %v5400, %v5396
    %v5725 = vpack.c.b16 %v5405, %v5401
    %v5726 = vpack.c.b16 %v5406, %v5402
    %v5727 = vpack.c.b16 %v5407, %v5403
    %v5728 = vpack.c.b16 %v5408, %v5404
    %v5729 = vpack.c.b16 %v5413, %v5409
    %v5730 = vpack.c.b16 %v5414, %v5410
    %v5731 = vpack.c.b16 %v5415, %v5411
    %v5732 = vpack.c.b16 %v5416, %v5412
    %v5733 = vpack.c.b16 %v5421, %v5417
    %v5734 = vpack.c.b16 %v5422, %v5418
    %v5735 = vpack.c.b16 %v5423, %v5419
    %v5736 = vpack.c.b16 %v5424, %v5420
    %v5737 = vpack.c.b16 %v5429, %v5425
    %v5738 = vpack.c.b16 %v5430, %v5426
    %v5739 = vpack.c.b16 %v5431, %v5427
    %v5740 = vpack.c.b16 %v5432, %v5428
    %v5741 = vpack.c.b16 %v5437, %v5433
    %v5742 = vpack.c.b16 %v5438, %v5434
    %v5743 = vpack.c.b16 %v5439, %v5435
    %v5744 = vpack.c.b16 %v5440, %v5436
    %v5745 = vpack.c.b16 %v5445, %v5441
    %v5746 = vpack.c.b16 %v5446, %v5442
    %v5747 = vpack.c.b16 %v5447, %v5443
    %v5748 = vpack.c.b16 %v5448, %v5444
    %v5749 = vpack.c.b16 %v5453, %v5449
    %v5750 = vpack.c.b16 %v5454, %v5450
    %v5751 = vpack.c.b16 %v5455, %v5451
    %v5752 = vpack.c.b16 %v5456, %v5452
    %v5753 = vpack.c.b16 %v5461, %v5457
    %v5754 = vpack.c.b16 %v5462, %v5458
    %v5755 = vpack.c.b16 %v5463, %v5459
    %v5756 = vpack.c.b16 %v5464, %v5460
    %v5757 = vpack.c.b16 %v5469, %v5465
    %v5758 = vpack.c.b16 %v5470, %v5466
    %v5759 = vpack.c.b16 %v5471, %v5467
    %v5760 = vpack.c.b16 %v5472, %v5468
    %v5761 = vpack.c.b16 %v5477, %v5473
    %v5762 = vpack.c.b16 %v5478, %v5474
    %v5763 = vpack.c.b16 %v5479, %v5475
    %v5764 = vpack.c.b16 %v5480, %v5476
    %v5765 = vpack.c.b16 %v5485, %v5481
    %v5766 = vpack.c.b16 %v5486, %v5482
    %v5767 = vpack.c.b16 %v5487, %v5483
    %v5768 = vpack.c.b16 %v5488, %v5484
    %v5769 = vpack.c.b16 %v5493, %v5489
    %v5770 = vpack.c.b16 %v5494, %v5490
    %v5771 = vpack.c.b16 %v5495, %v5491
    %v5772 = vpack.c.b16 %v5496, %v5492
    %v5773 = vpack.c.b16 %v5501, %v5497
    %v5774 = vpack.c.b16 %v5502, %v5498
    %v5775 = vpack.c.b16 %v5503, %v5499
    %v5776 = vpack.c.b16 %v5504, %v5500
    %v5777 = vpack.c.b16 %v5509, %v5505
    %v5778 = vpack.c.b16 %v5510, %v5506
    %v5779 = vpack.c.b16 %v5511, %v5507
    %v5780 = vpack.c.b16 %v5512, %v5508
    %v5781 = vpack.c.b16 %v5517, %v5513
    %v5782 = vpack.c.b16 %v5518, %v5514
    %v5783 = vpack.c.b16 %v5519, %v5515
    %v5784 = vpack.c.b16 %v5520, %v5516
    %v5785 = vpack.c.b16 %v5525, %v5521
    %v5786 = vpack.c.b16 %v5526, %v5522
    %v5787 = vpack.c.b16 %v5527, %v5523
    %v5788 = vpack.c.b16 %v5528, %v5524
    %v5789 = vpack.c.b16 %v5533, %v5529
    %v5790 = vpack.c.b16 %v5534, %v5530
    %v5791 = vpack.c.b16 %v5535, %v5531
    %v5792 = vpack.c.b16 %v5536, %v5532
    %6049 = vmatprep.subr.bf16.mxu0 %v5538
    %6050 = vmatpush1.bf16.msra.mxu0 %v5537
    %6051 = vmatprep.subr.bf16.mxu0 %v5542
    %6052 = vmatpush1.bf16.msra.mxu0 %v5541
    %6053 = vmatprep.subr.bf16.mxu0 %v5546
    %6054 = vmatpush1.bf16.msra.mxu0 %v5545
    %6055 = vmatprep.subr.bf16.mxu0 %v5550
    %6056 = vmatpush1.bf16.msra.mxu0 %v5549
    %6057 = vmatprep.subr.bf16.mxu0 %v5554
    %6058 = vmatpush1.bf16.msra.mxu0 %v5553
    %6059 = vmatprep.subr.bf16.mxu0 %v5558
    %6060 = vmatpush1.bf16.msra.mxu0 %v5557
    %6061 = vmatprep.subr.bf16.mxu0 %v5562
    %6062 = vmatpush1.bf16.msra.mxu0 %v5561
    %6063 = vmatprep.subr.bf16.mxu0 %v5566
    %6064 = vmatpush1.bf16.msra.mxu0 %v5565
    %6065 = vmatprep.subr.bf16.mxu0 %v5570
    %6066 = vmatpush1.bf16.msra.mxu0 %v5569
    %6067 = vmatprep.subr.bf16.mxu0 %v5574
    %6068 = vmatpush1.bf16.msra.mxu0 %v5573
    %6069 = vmatprep.subr.bf16.mxu0 %v5578
    %6070 = vmatpush1.bf16.msra.mxu0 %v5577
    %6071 = vmatprep.subr.bf16.mxu0 %v5582
    %6072 = vmatpush1.bf16.msra.mxu0 %v5581
    %6073 = vmatprep.subr.bf16.mxu0 %v5586
    %6074 = vmatpush1.bf16.msra.mxu0 %v5585
    %6075 = vmatprep.subr.bf16.mxu0 %v5590
    %6076 = vmatpush1.bf16.msra.mxu0 %v5589
    %6077 = vmatprep.subr.bf16.mxu0 %v5594
    %6078 = vmatpush1.bf16.msra.mxu0 %v5593
    %6079 = vmatprep.subr.bf16.mxu0 %v5598
    %6080 = vmatpush1.bf16.msra.mxu0 %v5597
    %6081 = vmatprep.mubr.bf16.mxu0 %v2290
    %6082 = vmatmul.mubr.bf16.gmra.mrb[0].mxu0 %v2289
    %v6083 = vpop.f32.mrb[0].mxu0
    %v6084 = vadd.f32 0.0, %v6083
    %v6085 = vpop.f32.mrb[0].mxu0
    %v6086 = vadd.f32 0.0, %v6085
    %v6087 = vpop.f32.mrb[0].mxu0
    %v6088 = vpop.f32.mrb[0].mxu0
    %6089 = vdwg.mxu0
    %6090 = vmatprep.subr.bf16.mxu0 %v5602
    %6091 = vmatpush1.bf16.msra.mxu0 %v5601
    %6092 = vmatprep.subr.bf16.mxu0 %v5606
    %6093 = vmatpush1.bf16.msra.mxu0 %v5605
    %6094 = vmatprep.subr.bf16.mxu0 %v5610
    %6095 = vmatpush1.bf16.msra.mxu0 %v5609
    %6096 = vmatprep.subr.bf16.mxu0 %v5614
    %6097 = vmatpush1.bf16.msra.mxu0 %v5613
    %6098 = vmatprep.subr.bf16.mxu0 %v5618
    %6099 = vmatpush1.bf16.msra.mxu0 %v5617
    %6100 = vmatprep.subr.bf16.mxu0 %v5622
    %6101 = vmatpush1.bf16.msra.mxu0 %v5621
    %6102 = vmatprep.subr.bf16.mxu0 %v5626
    %6103 = vmatpush1.bf16.msra.mxu0 %v5625
    %6104 = vmatprep.subr.bf16.mxu0 %v5630
    %6105 = vmatpush1.bf16.msra.mxu0 %v5629
    %6106 = vmatprep.subr.bf16.mxu0 %v5634
    %6107 = vmatpush1.bf16.msra.mxu0 %v5633
    %6108 = vmatprep.subr.bf16.mxu0 %v5638
    %6109 = vmatpush1.bf16.msra.mxu0 %v5637
    %6110 = vmatprep.subr.bf16.mxu0 %v5642
    %6111 = vmatpush1.bf16.msra.mxu0 %v5641
    %6112 = vmatprep.subr.bf16.mxu0 %v5646
    %6113 = vmatpush1.bf16.msra.mxu0 %v5645
    %6114 = vmatprep.subr.bf16.mxu0 %v5650
    %6115 = vmatpush1.bf16.msra.mxu0 %v5649
    %6116 = vmatprep.subr.bf16.mxu0 %v5654
    %6117 = vmatpush1.bf16.msra.mxu0 %v5653
    %6118 = vmatprep.subr.bf16.mxu0 %v5658
    %6119 = vmatpush1.bf16.msra.mxu0 %v5657
    %6120 = vmatprep.subr.bf16.mxu0 %v5662
    %6121 = vmatpush1.bf16.msra.mxu0 %v5661
    %6122 = vmatprep.mubr.bf16.mxu0 %v2292
    %6123 = vmatmul.mubr.bf16.gmra.mrb[0].mxu0 %v2291
    %v6124 = vpop.f32.mrb[0].mxu0
    %v6125 = vadd.f32 %v6084, %v6124
    %v6126 = vpop.f32.mrb[0].mxu0
    %v6127 = vadd.f32 %v6086, %v6126
    %v6128 = vpop.f32.mrb[0].mxu0
    %v6129 = vpop.f32.mrb[0].mxu0
    %6130 = vdwg.mxu0
    %6131 = vmatprep.subr.bf16.mxu0 %v5666
    %6132 = vmatpush1.bf16.msra.mxu0 %v5665
    %6133 = vmatprep.subr.bf16.mxu0 %v5670
    %6134 = vmatpush1.bf16.msra.mxu0 %v5669
    %6135 = vmatprep.subr.bf16.mxu0 %v5674
    %6136 = vmatpush1.bf16.msra.mxu0 %v5673
    %6137 = vmatprep.subr.bf16.mxu0 %v5678
    %6138 = vmatpush1.bf16.msra.mxu0 %v5677
    %6139 = vmatprep.subr.bf16.mxu0 %v5682
    %6140 = vmatpush1.bf16.msra.mxu0 %v5681
    %6141 = vmatprep.subr.bf16.mxu0 %v5686
    %6142 = vmatpush1.bf16.msra.mxu0 %v5685
    %6143 = vmatprep.subr.bf16.mxu0 %v5690
    %6144 = vmatpush1.bf16.msra.mxu0 %v5689
    %6145 = vmatprep.subr.bf16.mxu0 %v5694
    %6146 = vmatpush1.bf16.msra.mxu0 %v5693
    %6147 = vmatprep.subr.bf16.mxu0 %v5698
    %6148 = vmatpush1.bf16.msra.mxu0 %v5697
    %6149 = vmatprep.subr.bf16.mxu0 %v5702
    %6150 = vmatpush1.bf16.msra.mxu0 %v5701
    %6151 = vmatprep.subr.bf16.mxu0 %v5706
    %6152 = vmatpush1.bf16.msra.mxu0 %v5705
    %6153 = vmatprep.subr.bf16.mxu0 %v5710
    %6154 = vmatpush1.bf16.msra.mxu0 %v5709
    %6155 = vmatprep.subr.bf16.mxu0 %v5714
    %6156 = vmatpush1.bf16.msra.mxu0 %v5713
    %6157 = vmatprep.subr.bf16.mxu0 %v5718
    %6158 = vmatpush1.bf16.msra.mxu0 %v5717
    %6159 = vmatprep.subr.bf16.mxu0 %v5722
    %6160 = vmatpush1.bf16.msra.mxu0 %v5721
    %6161 = vmatprep.subr.bf16.mxu0 %v5726
    %6162 = vmatpush1.bf16.msra.mxu0 %v5725
    %6163 = vmatprep.mubr.bf16.mxu0 %v2294
    %6164 = vmatmul.mubr.bf16.gmra.mrb[0].mxu0 %v2293
    %v6165 = vpop.f32.mrb[0].mxu0
    %v6166 = vadd.f32 %v6125, %v6165
    %v6167 = vpop.f32.mrb[0].mxu0
    %v6168 = vadd.f32 %v6127, %v6167
    %v6169 = vpop.f32.mrb[0].mxu0
    %v6170 = vpop.f32.mrb[0].mxu0
    %6171 = vdwg.mxu0
    %6172 = vmatprep.subr.bf16.mxu0 %v5730
    %6173 = vmatpush1.bf16.msra.mxu0 %v5729
    %6174 = vmatprep.subr.bf16.mxu0 %v5734
    %6175 = vmatpush1.bf16.msra.mxu0 %v5733
    %6176 = vmatprep.subr.bf16.mxu0 %v5738
    %6177 = vmatpush1.bf16.msra.mxu0 %v5737
    %6178 = vmatprep.subr.bf16.mxu0 %v5742
    %6179 = vmatpush1.bf16.msra.mxu0 %v5741
    %6180 = vmatprep.subr.bf16.mxu0 %v5746
    %6181 = vmatpush1.bf16.msra.mxu0 %v5745
    %6182 = vmatprep.subr.bf16.mxu0 %v5750
    %6183 = vmatpush1.bf16.msra.mxu0 %v5749
    %6184 = vmatprep.subr.bf16.mxu0 %v5754
    %6185 = vmatpush1.bf16.msra.mxu0 %v5753
    %6186 = vmatprep.subr.bf16.mxu0 %v5758
    %6187 = vmatpush1.bf16.msra.mxu0 %v5757
    %6188 = vmatprep.subr.bf16.mxu0 %v5762
    %6189 = vmatpush1.bf16.msra.mxu0 %v5761
    %6190 = vmatprep.subr.bf16.mxu0 %v5766
    %6191 = vmatpush1.bf16.msra.mxu0 %v5765
    %6192 = vmatprep.subr.bf16.mxu0 %v5770
    %6193 = vmatpush1.bf16.msra.mxu0 %v5769
    %6194 = vmatprep.subr.bf16.mxu0 %v5774
    %6195 = vmatpush1.bf16.msra.mxu0 %v5773
    %6196 = vmatprep.subr.bf16.mxu0 %v5778
    %6197 = vmatpush1.bf16.msra.mxu0 %v5777
    %6198 = vmatprep.subr.bf16.mxu0 %v5782
    %6199 = vmatpush1.bf16.msra.mxu0 %v5781
    %6200 = vmatprep.subr.bf16.mxu0 %v5786
    %6201 = vmatpush1.bf16.msra.mxu0 %v5785
    %6202 = vmatprep.subr.bf16.mxu0 %v5790
    %6203 = vmatpush1.bf16.msra.mxu0 %v5789
    %6204 = vmatprep.mubr.bf16.mxu0 %v2296
    %6205 = vmatmul.mubr.bf16.gmra.mrb[0].mxu0 %v2295
    %v6206 = vpop.f32.mrb[0].mxu0
    %v6207 = vadd.f32 %v6166, %v6206
    %v6208 = vpop.f32.mrb[0].mxu0
    %v6209 = vadd.f32 %v6168, %v6208
    %v6210 = vpop.f32.mrb[0].mxu0
    %v6211 = vpop.f32.mrb[0].mxu0
    %6212 = vdwg.mxu0
    %6213 = vmatprep.subr.bf16.mxu0 %v5540
    %6214 = vmatpush1.bf16.msra.mxu0 %v5539
    %6215 = vmatprep.subr.bf16.mxu0 %v5544
    %6216 = vmatpush1.bf16.msra.mxu0 %v5543
    %6217 = vmatprep.subr.bf16.mxu0 %v5548
    %6218 = vmatpush1.bf16.msra.mxu0 %v5547
    %6219 = vmatprep.subr.bf16.mxu0 %v5552
    %6220 = vmatpush1.bf16.msra.mxu0 %v5551
    %6221 = vmatprep.subr.bf16.mxu0 %v5556
    %6222 = vmatpush1.bf16.msra.mxu0 %v5555
    %6223 = vmatprep.subr.bf16.mxu0 %v5560
    %6224 = vmatpush1.bf16.msra.mxu0 %v5559
    %6225 = vmatprep.subr.bf16.mxu0 %v5564
    %6226 = vmatpush1.bf16.msra.mxu0 %v5563
    %6227 = vmatprep.subr.bf16.mxu0 %v5568
    %6228 = vmatpush1.bf16.msra.mxu0 %v5567
    %6229 = vmatprep.subr.bf16.mxu0 %v5572
    %6230 = vmatpush1.bf16.msra.mxu0 %v5571
    %6231 = vmatprep.subr.bf16.mxu0 %v5576
    %6232 = vmatpush1.bf16.msra.mxu0 %v5575
    %6233 = vmatprep.subr.bf16.mxu0 %v5580
    %6234 = vmatpush1.bf16.msra.mxu0 %v5579
    %6235 = vmatprep.subr.bf16.mxu0 %v5584
    %6236 = vmatpush1.bf16.msra.mxu0 %v5583
    %6237 = vmatprep.subr.bf16.mxu0 %v5588
    %6238 = vmatpush1.bf16.msra.mxu0 %v5587
    %6239 = vmatprep.subr.bf16.mxu0 %v5592
    %6240 = vmatpush1.bf16.msra.mxu0 %v5591
    %6241 = vmatprep.subr.bf16.mxu0 %v5596
    %6242 = vmatpush1.bf16.msra.mxu0 %v5595
    %6243 = vmatprep.subr.bf16.mxu0 %v5600
    %6244 = vmatpush1.bf16.msra.mxu0 %v5599
    %6245 = vmatprep.mubr.bf16.mxu0 %v2290
    %6246 = vmatmul.mubr.bf16.gmra.mrb[0].mxu0 %v2289
    %v6247 = vpop.f32.mrb[0].mxu0
    %v6248 = vadd.f32 0.0, %v6247
    %v6249 = vpop.f32.mrb[0].mxu0
    %v6250 = vadd.f32 0.0, %v6249
    %v6251 = vpop.f32.mrb[0].mxu0
    %v6252 = vpop.f32.mrb[0].mxu0
    %6253 = vdwg.mxu0
    %6254 = vmatprep.subr.bf16.mxu0 %v5604
    %6255 = vmatpush1.bf16.msra.mxu0 %v5603
    %6256 = vmatprep.subr.bf16.mxu0 %v5608
    %6257 = vmatpush1.bf16.msra.mxu0 %v5607
    %6258 = vmatprep.subr.bf16.mxu0 %v5612
    %6259 = vmatpush1.bf16.msra.mxu0 %v5611
    %6260 = vmatprep.subr.bf16.mxu0 %v5616
    %6261 = vmatpush1.bf16.msra.mxu0 %v5615
    %6262 = vmatprep.subr.bf16.mxu0 %v5620
    %6263 = vmatpush1.bf16.msra.mxu0 %v5619
    %6264 = vmatprep.subr.bf16.mxu0 %v5624
    %6265 = vmatpush1.bf16.msra.mxu0 %v5623
    %6266 = vmatprep.subr.bf16.mxu0 %v5628
    %6267 = vmatpush1.bf16.msra.mxu0 %v5627
    %6268 = vmatprep.subr.bf16.mxu0 %v5632
    %6269 = vmatpush1.bf16.msra.mxu0 %v5631
    %6270 = vmatprep.subr.bf16.mxu0 %v5636
    %6271 = vmatpush1.bf16.msra.mxu0 %v5635
    %6272 = vmatprep.subr.bf16.mxu0 %v5640
    %6273 = vmatpush1.bf16.msra.mxu0 %v5639
    %6274 = vmatprep.subr.bf16.mxu0 %v5644
    %6275 = vmatpush1.bf16.msra.mxu0 %v5643
    %6276 = vmatprep.subr.bf16.mxu0 %v5648
    %6277 = vmatpush1.bf16.msra.mxu0 %v5647
    %6278 = vmatprep.subr.bf16.mxu0 %v5652
    %6279 = vmatpush1.bf16.msra.mxu0 %v5651
    %6280 = vmatprep.subr.bf16.mxu0 %v5656
    %6281 = vmatpush1.bf16.msra.mxu0 %v5655
    %6282 = vmatprep.subr.bf16.mxu0 %v5660
    %6283 = vmatpush1.bf16.msra.mxu0 %v5659
    %6284 = vmatprep.subr.bf16.mxu0 %v5664
    %6285 = vmatpush1.bf16.msra.mxu0 %v5663
    %6286 = vmatprep.mubr.bf16.mxu0 %v2292
    %6287 = vmatmul.mubr.bf16.gmra.mrb[0].mxu0 %v2291
    %v6288 = vpop.f32.mrb[0].mxu0
    %v6289 = vadd.f32 %v6248, %v6288
    %v6290 = vpop.f32.mrb[0].mxu0
    %v6291 = vadd.f32 %v6250, %v6290
    %v6292 = vpop.f32.mrb[0].mxu0
    %v6293 = vpop.f32.mrb[0].mxu0
    %6294 = vdwg.mxu0
    %6295 = vmatprep.subr.bf16.mxu0 %v5668
    %6296 = vmatpush1.bf16.msra.mxu0 %v5667
    %6297 = vmatprep.subr.bf16.mxu0 %v5672
    %6298 = vmatpush1.bf16.msra.mxu0 %v5671
    %6299 = vmatprep.subr.bf16.mxu0 %v5676
    %6300 = vmatpush1.bf16.msra.mxu0 %v5675
    %6301 = vmatprep.subr.bf16.mxu0 %v5680
    %6302 = vmatpush1.bf16.msra.mxu0 %v5679
    %6303 = vmatprep.subr.bf16.mxu0 %v5684
    %6304 = vmatpush1.bf16.msra.mxu0 %v5683
    %6305 = vmatprep.subr.bf16.mxu0 %v5688
    %6306 = vmatpush1.bf16.msra.mxu0 %v5687
    %6307 = vmatprep.subr.bf16.mxu0 %v5692
    %6308 = vmatpush1.bf16.msra.mxu0 %v5691
    %6309 = vmatprep.subr.bf16.mxu0 %v5696
    %6310 = vmatpush1.bf16.msra.mxu0 %v5695
    %6311 = vmatprep.subr.bf16.mxu0 %v5700
    %6312 = vmatpush1.bf16.msra.mxu0 %v5699
    %6313 = vmatprep.subr.bf16.mxu0 %v5704
    %6314 = vmatpush1.bf16.msra.mxu0 %v5703
    %6315 = vmatprep.subr.bf16.mxu0 %v5708
    %6316 = vmatpush1.bf16.msra.mxu0 %v5707
    %6317 = vmatprep.subr.bf16.mxu0 %v5712
    %6318 = vmatpush1.bf16.msra.mxu0 %v5711
    %6319 = vmatprep.subr.bf16.mxu0 %v5716
    %6320 = vmatpush1.bf16.msra.mxu0 %v5715
    %6321 = vmatprep.subr.bf16.mxu0 %v5720
    %6322 = vmatpush1.bf16.msra.mxu0 %v5719
    %6323 = vmatprep.subr.bf16.mxu0 %v5724
    %6324 = vmatpush1.bf16.msra.mxu0 %v5723
    %6325 = vmatprep.subr.bf16.mxu0 %v5728
    %6326 = vmatpush1.bf16.msra.mxu0 %v5727
    %6327 = vmatprep.mubr.bf16.mxu0 %v2294
    %6328 = vmatmul.mubr.bf16.gmra.mrb[0].mxu0 %v2293
    %v6329 = vpop.f32.mrb[0].mxu0
    %v6330 = vadd.f32 %v6289, %v6329
    %v6331 = vpop.f32.mrb[0].mxu0
    %v6332 = vadd.f32 %v6291, %v6331
    %v6333 = vpop.f32.mrb[0].mxu0
    %v6334 = vpop.f32.mrb[0].mxu0
    %6335 = vdwg.mxu0
    %6336 = vmatprep.subr.bf16.mxu0 %v5732
    %6337 = vmatpush1.bf16.msra.mxu0 %v5731
    %6338 = vmatprep.subr.bf16.mxu0 %v5736
    %6339 = vmatpush1.bf16.msra.mxu0 %v5735
    %6340 = vmatprep.subr.bf16.mxu0 %v5740
    %6341 = vmatpush1.bf16.msra.mxu0 %v5739
    %6342 = vmatprep.subr.bf16.mxu0 %v5744
    %6343 = vmatpush1.bf16.msra.mxu0 %v5743
    %6344 = vmatprep.subr.bf16.mxu0 %v5748
    %6345 = vmatpush1.bf16.msra.mxu0 %v5747
    %6346 = vmatprep.subr.bf16.mxu0 %v5752
    %6347 = vmatpush1.bf16.msra.mxu0 %v5751
    %6348 = vmatprep.subr.bf16.mxu0 %v5756
    %6349 = vmatpush1.bf16.msra.mxu0 %v5755
    %6350 = vmatprep.subr.bf16.mxu0 %v5760
    %6351 = vmatpush1.bf16.msra.mxu0 %v5759
    %6352 = vmatprep.subr.bf16.mxu0 %v5764
    %6353 = vmatpush1.bf16.msra.mxu0 %v5763
    %6354 = vmatprep.subr.bf16.mxu0 %v5768
    %6355 = vmatpush1.bf16.msra.mxu0 %v5767
    %6356 = vmatprep.subr.bf16.mxu0 %v5772
    %6357 = vmatpush1.bf16.msra.mxu0 %v5771
    %6358 = vmatprep.subr.bf16.mxu0 %v5776
    %6359 = vmatpush1.bf16.msra.mxu0 %v5775
    %6360 = vmatprep.subr.bf16.mxu0 %v5780
    %6361 = vmatpush1.bf16.msra.mxu0 %v5779
    %6362 = vmatprep.subr.bf16.mxu0 %v5784
    %6363 = vmatpush1.bf16.msra.mxu0 %v5783
    %6364 = vmatprep.subr.bf16.mxu0 %v5788
    %6365 = vmatpush1.bf16.msra.mxu0 %v5787
    %6366 = vmatprep.subr.bf16.mxu0 %v5792
    %6367 = vmatpush1.bf16.msra.mxu0 %v5791
    %6368 = vmatprep.mubr.bf16.mxu0 %v2296
    %6369 = vmatmul.mubr.bf16.gmra.mrb[0].mxu0 %v2295
    %v6370 = vpop.f32.mrb[0].mxu0
    %v6371 = vadd.f32 %v6330, %v6370
    %v6372 = vpop.f32.mrb[0].mxu0
    %v6373 = vadd.f32 %v6332, %v6372
    %v6374 = vpop.f32.mrb[0].mxu0
    %v6375 = vpop.f32.mrb[0].mxu0
    %6376 = vdwg.mxu0
    %v6377 = vadd.f32 %v4343, %v6207
    %v6378 = vadd.f32 %v4345, %v6209
    %v6379 = vadd.f32 %v4507, %v6371
    %v6380 = vadd.f32 %v4509, %v6373
    %v6381 = vld [vmem:[%s6] sm:$0xf]
    %v6383 = vlaneseq
    %v6384 = vshrl.u32 %v6383, 7
    %v6385 = vsub.s32 0, %v6384
    %v6386 = vrot.slane %v6381, %v6385
    %v6387 = vlaneseq
    %v6388 = vshrl.u32 %v6387, 7
    %v6389 = vsub.s32 1, %v6388
    %v6390 = vrot.slane %v6381, %v6389
    %v6391 = vlaneseq
    %v6392 = vshrl.u32 %v6391, 7
    %v6393 = vsub.s32 2, %v6392
    %v6394 = vrot.slane %v6381, %v6393
    %v6395 = vlaneseq
    %v6396 = vshrl.u32 %v6395, 7
    %v6397 = vsub.s32 3, %v6396
    %v6398 = vrot.slane %v6381, %v6397
    %v6403 = vadd.f32 %v6377, %v6386
    %v6404 = vadd.f32 %v6378, %v6390
    %v6405 = vadd.f32 %v6379, %v6394
    %v6406 = vadd.f32 %v6380, %v6398
    %v6407 = vmax.f32 %v6403, 0.0
    %v6408 = vmax.f32 %v6404, 0.0
    %v6409 = vmax.f32 %v6405, 0.0
    %v6410 = vmax.f32 %v6406, 0.0
    %v6411 = vpack.c.bf16 %v6407, %v6407
    %v6412 = vpack.c.bf16 %v6408, %v6408
    %v6413 = vpack.c.bf16 %v6409, %v6409
    %v6414 = vpack.c.bf16 %v6410, %v6410
    %v6415 = vunpack.c.l.bf16 %v6411
    %v6416 = vunpack.c.l.bf16 %v6412
    %v6417 = vunpack.c.l.bf16 %v6413
    %v6418 = vunpack.c.l.bf16 %v6414
    %v6419 = vsub.f32 %v6407, %v6415
    %v6420 = vsub.f32 %v6408, %v6416
    %v6421 = vsub.f32 %v6409, %v6417
    %v6422 = vsub.f32 %v6410, %v6418
    %v6423 = vpack.c.bf16 %v6419, %v6419
    %v6424 = vpack.c.bf16 %v6420, %v6420
    %v6425 = vpack.c.bf16 %v6421, %v6421
    %v6426 = vpack.c.bf16 %v6422, %v6422
    %v6427 = vld [vmem:[#allocation9] sm:$0xff]
    %v6428 = vld [vmem:[#allocation9 + $0x8] sm:$0xff]
    %v6429 = vld [vmem:[#allocation9 + $0x10] sm:$0xff]
    %v6430 = vld [vmem:[#allocation9 + $0x18] sm:$0xff]
    %v6431 = vld [vmem:[#allocation9 + $0x20] sm:$0xff]
    %v6432 = vld [vmem:[#allocation9 + $0x28] sm:$0xff]
    %v6433 = vld [vmem:[#allocation9 + $0x30] sm:$0xff]
    %v6434 = vld [vmem:[#allocation9 + $0x38] sm:$0xff]
    %v6435 = vld [vmem:[#allocation9 + $0x40] sm:$0xff]
    %v6436 = vld [vmem:[#allocation9 + $0x48] sm:$0xff]
    %v6437 = vld [vmem:[#allocation9 + $0x50] sm:$0xff]
    %v6438 = vld [vmem:[#allocation9 + $0x58] sm:$0xff]
    %v6439 = vld [vmem:[#allocation9 + $0x60] sm:$0xff]
    %v6440 = vld [vmem:[#allocation9 + $0x68] sm:$0xff]
    %v6441 = vld [vmem:[#allocation9 + $0x70] sm:$0xff]
    %v6442 = vld [vmem:[#allocation9 + $0x78] sm:$0xff]
    %v6443 = vld [vmem:[#allocation9 + $0x80] sm:$0xff]
    %v6444 = vld [vmem:[#allocation9 + $0x88] sm:$0xff]
    %v6445 = vld [vmem:[#allocation9 + $0x90] sm:$0xff]
    %v6446 = vld [vmem:[#allocation9 + $0x98] sm:$0xff]
    %v6447 = vld [vmem:[#allocation9 + $0xa0] sm:$0xff]
    %v6448 = vld [vmem:[#allocation9 + $0xa8] sm:$0xff]
    %v6449 = vld [vmem:[#allocation9 + $0xb0] sm:$0xff]
    %v6450 = vld [vmem:[#allocation9 + $0xb8] sm:$0xff]
    %v6451 = vld [vmem:[#allocation9 + $0xc0] sm:$0xff]
    %v6452 = vld [vmem:[#allocation9 + $0xc8] sm:$0xff]
    %v6453 = vld [vmem:[#allocation9 + $0xd0] sm:$0xff]
    %v6454 = vld [vmem:[#allocation9 + $0xd8] sm:$0xff]
    %v6455 = vld [vmem:[#allocation9 + $0xe0] sm:$0xff]
    %v6456 = vld [vmem:[#allocation9 + $0xe8] sm:$0xff]
    %v6457 = vld [vmem:[#allocation9 + $0xf0] sm:$0xff]
    %v6458 = vld [vmem:[#allocation9 + $0xf8] sm:$0xff]
    %v6459 = vld [vmem:[#allocation9 + $0x100] sm:$0xff]
    %v6460 = vld [vmem:[#allocation9 + $0x108] sm:$0xff]
    %v6461 = vld [vmem:[#allocation9 + $0x110] sm:$0xff]
    %v6462 = vld [vmem:[#allocation9 + $0x118] sm:$0xff]
    %v6463 = vld [vmem:[#allocation9 + $0x120] sm:$0xff]
    %v6464 = vld [vmem:[#allocation9 + $0x128] sm:$0xff]
    %v6465 = vld [vmem:[#allocation9 + $0x130] sm:$0xff]
    %v6466 = vld [vmem:[#allocation9 + $0x138] sm:$0xff]
    %v6467 = vld [vmem:[#allocation9 + $0x140] sm:$0xff]
    %v6468 = vld [vmem:[#allocation9 + $0x148] sm:$0xff]
    %v6469 = vld [vmem:[#allocation9 + $0x150] sm:$0xff]
    %v6470 = vld [vmem:[#allocation9 + $0x158] sm:$0xff]
    %v6471 = vld [vmem:[#allocation9 + $0x160] sm:$0xff]
    %v6472 = vld [vmem:[#allocation9 + $0x168] sm:$0xff]
    %v6473 = vld [vmem:[#allocation9 + $0x170] sm:$0xff]
    %v6474 = vld [vmem:[#allocation9 + $0x178] sm:$0xff]
    %v6475 = vld [vmem:[#allocation9 + $0x180] sm:$0xff]
    %v6476 = vld [vmem:[#allocation9 + $0x188] sm:$0xff]
    %v6477 = vld [vmem:[#allocation9 + $0x190] sm:$0xff]
    %v6478 = vld [vmem:[#allocation9 + $0x198] sm:$0xff]
    %v6479 = vld [vmem:[#allocation9 + $0x1a0] sm:$0xff]
    %v6480 = vld [vmem:[#allocation9 + $0x1a8] sm:$0xff]
    %v6481 = vld [vmem:[#allocation9 + $0x1b0] sm:$0xff]
    %v6482 = vld [vmem:[#allocation9 + $0x1b8] sm:$0xff]
    %v6483 = vld [vmem:[#allocation9 + $0x1c0] sm:$0xff]
    %v6484 = vld [vmem:[#allocation9 + $0x1c8] sm:$0xff]
    %v6485 = vld [vmem:[#allocation9 + $0x1d0] sm:$0xff]
    %v6486 = vld [vmem:[#allocation9 + $0x1d8] sm:$0xff]
    %v6487 = vld [vmem:[#allocation9 + $0x1e0] sm:$0xff]
    %v6488 = vld [vmem:[#allocation9 + $0x1e8] sm:$0xff]
    %v6489 = vld [vmem:[#allocation9 + $0x1f0] sm:$0xff]
    %v6490 = vld [vmem:[#allocation9 + $0x1f8] sm:$0xff]
    %v6555 = vunpack.c.l.b16 %v6427
    %v6556 = vunpack.c.h.b16 %v6427
    %v6557 = vunpack.c.l.b16 %v6428
    %v6558 = vunpack.c.h.b16 %v6428
    %v6559 = vunpack.c.l.b16 %v6429
    %v6560 = vunpack.c.h.b16 %v6429
    %v6561 = vunpack.c.l.b16 %v6430
    %v6562 = vunpack.c.h.b16 %v6430
    %v6563 = vunpack.c.l.b16 %v6431
    %v6564 = vunpack.c.h.b16 %v6431
    %v6565 = vunpack.c.l.b16 %v6432
    %v6566 = vunpack.c.h.b16 %v6432
    %v6567 = vunpack.c.l.b16 %v6433
    %v6568 = vunpack.c.h.b16 %v6433
    %v6569 = vunpack.c.l.b16 %v6434
    %v6570 = vunpack.c.h.b16 %v6434
    %v6571 = vunpack.c.l.b16 %v6435
    %v6572 = vunpack.c.h.b16 %v6435
    %v6573 = vunpack.c.l.b16 %v6436
    %v6574 = vunpack.c.h.b16 %v6436
    %v6575 = vunpack.c.l.b16 %v6437
    %v6576 = vunpack.c.h.b16 %v6437
    %v6577 = vunpack.c.l.b16 %v6438
    %v6578 = vunpack.c.h.b16 %v6438
    %v6579 = vunpack.c.l.b16 %v6439
    %v6580 = vunpack.c.h.b16 %v6439
    %v6581 = vunpack.c.l.b16 %v6440
    %v6582 = vunpack.c.h.b16 %v6440
    %v6583 = vunpack.c.l.b16 %v6441
    %v6584 = vunpack.c.h.b16 %v6441
    %v6585 = vunpack.c.l.b16 %v6442
    %v6586 = vunpack.c.h.b16 %v6442
    %v6587 = vunpack.c.l.b16 %v6443
    %v6588 = vunpack.c.h.b16 %v6443
    %v6589 = vunpack.c.l.b16 %v6444
    %v6590 = vunpack.c.h.b16 %v6444
    %v6591 = vunpack.c.l.b16 %v6445
    %v6592 = vunpack.c.h.b16 %v6445
    %v6593 = vunpack.c.l.b16 %v6446
    %v6594 = vunpack.c.h.b16 %v6446
    %v6595 = vunpack.c.l.b16 %v6447
    %v6596 = vunpack.c.h.b16 %v6447
    %v6597 = vunpack.c.l.b16 %v6448
    %v6598 = vunpack.c.h.b16 %v6448
    %v6599 = vunpack.c.l.b16 %v6449
    %v6600 = vunpack.c.h.b16 %v6449
    %v6601 = vunpack.c.l.b16 %v6450
    %v6602 = vunpack.c.h.b16 %v6450
    %v6603 = vunpack.c.l.b16 %v6451
    %v6604 = vunpack.c.h.b16 %v6451
    %v6605 = vunpack.c.l.b16 %v6452
    %v6606 = vunpack.c.h.b16 %v6452
    %v6607 = vunpack.c.l.b16 %v6453
    %v6608 = vunpack.c.h.b16 %v6453
    %v6609 = vunpack.c.l.b16 %v6454
    %v6610 = vunpack.c.h.b16 %v6454
    %v6611 = vunpack.c.l.b16 %v6455
    %v6612 = vunpack.c.h.b16 %v6455
    %v6613 = vunpack.c.l.b16 %v6456
    %v6614 = vunpack.c.h.b16 %v6456
    %v6615 = vunpack.c.l.b16 %v6457
    %v6616 = vunpack.c.h.b16 %v6457
    %v6617 = vunpack.c.l.b16 %v6458
    %v6618 = vunpack.c.h.b16 %v6458
    %v6619 = vunpack.c.l.b16 %v6459
    %v6620 = vunpack.c.h.b16 %v6459
    %v6621 = vunpack.c.l.b16 %v6460
    %v6622 = vunpack.c.h.b16 %v6460
    %v6623 = vunpack.c.l.b16 %v6461
    %v6624 = vunpack.c.h.b16 %v6461
    %v6625 = vunpack.c.l.b16 %v6462
    %v6626 = vunpack.c.h.b16 %v6462
    %v6627 = vunpack.c.l.b16 %v6463
    %v6628 = vunpack.c.h.b16 %v6463
    %v6629 = vunpack.c.l.b16 %v6464
    %v6630 = vunpack.c.h.b16 %v6464
    %v6631 = vunpack.c.l.b16 %v6465
    %v6632 = vunpack.c.h.b16 %v6465
    %v6633 = vunpack.c.l.b16 %v6466
    %v6634 = vunpack.c.h.b16 %v6466
    %v6635 = vunpack.c.l.b16 %v6467
    %v6636 = vunpack.c.h.b16 %v6467
    %v6637 = vunpack.c.l.b16 %v6468
    %v6638 = vunpack.c.h.b16 %v6468
    %v6639 = vunpack.c.l.b16 %v6469
    %v6640 = vunpack.c.h.b16 %v6469
    %v6641 = vunpack.c.l.b16 %v6470
    %v6642 = vunpack.c.h.b16 %v6470
    %v6643 = vunpack.c.l.b16 %v6471
    %v6644 = vunpack.c.h.b16 %v6471
    %v6645 = vunpack.c.l.b16 %v6472
    %v6646 = vunpack.c.h.b16 %v6472
    %v6647 = vunpack.c.l.b16 %v6473
    %v6648 = vunpack.c.h.b16 %v6473
    %v6649 = vunpack.c.l.b16 %v6474
    %v6650 = vunpack.c.h.b16 %v6474
    %v6651 = vunpack.c.l.b16 %v6475
    %v6652 = vunpack.c.h.b16 %v6475
    %v6653 = vunpack.c.l.b16 %v6476
    %v6654 = vunpack.c.h.b16 %v6476
    %v6655 = vunpack.c.l.b16 %v6477
    %v6656 = vunpack.c.h.b16 %v6477
    %v6657 = vunpack.c.l.b16 %v6478
    %v6658 = vunpack.c.h.b16 %v6478
    %v6659 = vunpack.c.l.b16 %v6479
    %v6660 = vunpack.c.h.b16 %v6479
    %v6661 = vunpack.c.l.b16 %v6480
    %v6662 = vunpack.c.h.b16 %v6480
    %v6663 = vunpack.c.l.b16 %v6481
    %v6664 = vunpack.c.h.b16 %v6481
    %v6665 = vunpack.c.l.b16 %v6482
    %v6666 = vunpack.c.h.b16 %v6482
    %v6667 = vunpack.c.l.b16 %v6483
    %v6668 = vunpack.c.h.b16 %v6483
    %v6669 = vunpack.c.l.b16 %v6484
    %v6670 = vunpack.c.h.b16 %v6484
    %v6671 = vunpack.c.l.b16 %v6485
    %v6672 = vunpack.c.h.b16 %v6485
    %v6673 = vunpack.c.l.b16 %v6486
    %v6674 = vunpack.c.h.b16 %v6486
    %v6675 = vunpack.c.l.b16 %v6487
    %v6676 = vunpack.c.h.b16 %v6487
    %v6677 = vunpack.c.l.b16 %v6488
    %v6678 = vunpack.c.h.b16 %v6488
    %v6679 = vunpack.c.l.b16 %v6489
    %v6680 = vunpack.c.h.b16 %v6489
    %v6681 = vunpack.c.l.b16 %v6490
    %v6682 = vunpack.c.h.b16 %v6490
    %v6683 = vpack.c.b16 %v6557, %v6555
    %v6684 = vpack.c.b16 %v6558, %v6556
    %v6685 = vpack.c.b16 %v6561, %v6559
    %v6686 = vpack.c.b16 %v6562, %v6560
    %v6687 = vpack.c.b16 %v6565, %v6563
    %v6688 = vpack.c.b16 %v6566, %v6564
    %v6689 = vpack.c.b16 %v6569, %v6567
    %v6690 = vpack.c.b16 %v6570, %v6568
    %v6691 = vpack.c.b16 %v6573, %v6571
    %v6692 = vpack.c.b16 %v6574, %v6572
    %v6693 = vpack.c.b16 %v6577, %v6575
    %v6694 = vpack.c.b16 %v6578, %v6576
    %v6695 = vpack.c.b16 %v6581, %v6579
    %v6696 = vpack.c.b16 %v6582, %v6580
    %v6697 = vpack.c.b16 %v6585, %v6583
    %v6698 = vpack.c.b16 %v6586, %v6584
    %v6699 = vpack.c.b16 %v6589, %v6587
    %v6700 = vpack.c.b16 %v6590, %v6588
    %v6701 = vpack.c.b16 %v6593, %v6591
    %v6702 = vpack.c.b16 %v6594, %v6592
    %v6703 = vpack.c.b16 %v6597, %v6595
    %v6704 = vpack.c.b16 %v6598, %v6596
    %v6705 = vpack.c.b16 %v6601, %v6599
    %v6706 = vpack.c.b16 %v6602, %v6600
    %v6707 = vpack.c.b16 %v6605, %v6603
    %v6708 = vpack.c.b16 %v6606, %v6604
    %v6709 = vpack.c.b16 %v6609, %v6607
    %v6710 = vpack.c.b16 %v6610, %v6608
    %v6711 = vpack.c.b16 %v6613, %v6611
    %v6712 = vpack.c.b16 %v6614, %v6612
    %v6713 = vpack.c.b16 %v6617, %v6615
    %v6714 = vpack.c.b16 %v6618, %v6616
    %v6715 = vpack.c.b16 %v6621, %v6619
    %v6716 = vpack.c.b16 %v6622, %v6620
    %v6717 = vpack.c.b16 %v6625, %v6623
    %v6718 = vpack.c.b16 %v6626, %v6624
    %v6719 = vpack.c.b16 %v6629, %v6627
    %v6720 = vpack.c.b16 %v6630, %v6628
    %v6721 = vpack.c.b16 %v6633, %v6631
    %v6722 = vpack.c.b16 %v6634, %v6632
    %v6723 = vpack.c.b16 %v6637, %v6635
    %v6724 = vpack.c.b16 %v6638, %v6636
    %v6725 = vpack.c.b16 %v6641, %v6639
    %v6726 = vpack.c.b16 %v6642, %v6640
    %v6727 = vpack.c.b16 %v6645, %v6643
    %v6728 = vpack.c.b16 %v6646, %v6644
    %v6729 = vpack.c.b16 %v6649, %v6647
    %v6730 = vpack.c.b16 %v6650, %v6648
    %v6731 = vpack.c.b16 %v6653, %v6651
    %v6732 = vpack.c.b16 %v6654, %v6652
    %v6733 = vpack.c.b16 %v6657, %v6655
    %v6734 = vpack.c.b16 %v6658, %v6656
    %v6735 = vpack.c.b16 %v6661, %v6659
    %v6736 = vpack.c.b16 %v6662, %v6660
    %v6737 = vpack.c.b16 %v6665, %v6663
    %v6738 = vpack.c.b16 %v6666, %v6664
    %v6739 = vpack.c.b16 %v6669, %v6667
    %v6740 = vpack.c.b16 %v6670, %v6668
    %v6741 = vpack.c.b16 %v6673, %v6671
    %v6742 = vpack.c.b16 %v6674, %v6672
    %v6743 = vpack.c.b16 %v6677, %v6675
    %v6744 = vpack.c.b16 %v6678, %v6676
    %v6745 = vpack.c.b16 %v6681, %v6679
    %v6746 = vpack.c.b16 %v6682, %v6680
    %6811 = vmatprep.subr.bf16.mxu0 %v6684
    %6812 = vmatpush1.bf16.msra.mxu0 %v6683
    %6813 = vmatprep.subr.bf16.mxu0 %v6686
    %6814 = vmatpush1.bf16.msra.mxu0 %v6685
    %6815 = vmatprep.subr.bf16.mxu0 %v6688
    %6816 = vmatpush1.bf16.msra.mxu0 %v6687
    %6817 = vmatprep.subr.bf16.mxu0 %v6690
    %6818 = vmatpush1.bf16.msra.mxu0 %v6689
    %6819 = vmatprep.subr.bf16.mxu0 %v6692
    %6820 = vmatpush1.bf16.msra.mxu0 %v6691
    %6821 = vmatprep.subr.bf16.mxu0 %v6694
    %6822 = vmatpush1.bf16.msra.mxu0 %v6693
    %6823 = vmatprep.subr.bf16.mxu0 %v6696
    %6824 = vmatpush1.bf16.msra.mxu0 %v6695
    %6825 = vmatprep.subr.bf16.mxu0 %v6698
    %6826 = vmatpush1.bf16.msra.mxu0 %v6697
    %6827 = vmatprep.subr.bf16.mxu0 %v6700
    %6828 = vmatpush1.bf16.msra.mxu0 %v6699
    %6829 = vmatprep.subr.bf16.mxu0 %v6702
    %6830 = vmatpush1.bf16.msra.mxu0 %v6701
    %6831 = vmatprep.subr.bf16.mxu0 %v6704
    %6832 = vmatpush1.bf16.msra.mxu0 %v6703
    %6833 = vmatprep.subr.bf16.mxu0 %v6706
    %6834 = vmatpush1.bf16.msra.mxu0 %v6705
    %6835 = vmatprep.subr.bf16.mxu0 %v6708
    %6836 = vmatpush1.bf16.msra.mxu0 %v6707
    %6837 = vmatprep.subr.bf16.mxu0 %v6710
    %6838 = vmatpush1.bf16.msra.mxu0 %v6709
    %6839 = vmatprep.subr.bf16.mxu0 %v6712
    %6840 = vmatpush1.bf16.msra.mxu0 %v6711
    %6841 = vmatprep.subr.bf16.mxu0 %v6714
    %6842 = vmatpush1.bf16.msra.mxu0 %v6713
    %6843 = vmatprep.mubr.bf16.mxu0 %v6424
    %6844 = vmatmul.mubr.bf16.gmra.mrb[0].mxu0 %v6423
    %v6845 = vpop.f32.mrb[0].mxu0
    %v6846 = vadd.f32 0.0, %v6845
    %v6847 = vpop.f32.mrb[0].mxu0
    %v6848 = vadd.f32 0.0, %v6847
    %v6849 = vpop.f32.mrb[0].mxu0
    %v6850 = vpop.f32.mrb[0].mxu0
    %6851 = vdwg.mxu0
    %6852 = vmatprep.subr.bf16.mxu0 %v6716
    %6853 = vmatpush1.bf16.msra.mxu0 %v6715
    %6854 = vmatprep.subr.bf16.mxu0 %v6718
    %6855 = vmatpush1.bf16.msra.mxu0 %v6717
    %6856 = vmatprep.subr.bf16.mxu0 %v6720
    %6857 = vmatpush1.bf16.msra.mxu0 %v6719
    %6858 = vmatprep.subr.bf16.mxu0 %v6722
    %6859 = vmatpush1.bf16.msra.mxu0 %v6721
    %6860 = vmatprep.subr.bf16.mxu0 %v6724
    %6861 = vmatpush1.bf16.msra.mxu0 %v6723
    %6862 = vmatprep.subr.bf16.mxu0 %v6726
    %6863 = vmatpush1.bf16.msra.mxu0 %v6725
    %6864 = vmatprep.subr.bf16.mxu0 %v6728
    %6865 = vmatpush1.bf16.msra.mxu0 %v6727
    %6866 = vmatprep.subr.bf16.mxu0 %v6730
    %6867 = vmatpush1.bf16.msra.mxu0 %v6729
    %6868 = vmatprep.subr.bf16.mxu0 %v6732
    %6869 = vmatpush1.bf16.msra.mxu0 %v6731
    %6870 = vmatprep.subr.bf16.mxu0 %v6734
    %6871 = vmatpush1.bf16.msra.mxu0 %v6733
    %6872 = vmatprep.subr.bf16.mxu0 %v6736
    %6873 = vmatpush1.bf16.msra.mxu0 %v6735
    %6874 = vmatprep.subr.bf16.mxu0 %v6738
    %6875 = vmatpush1.bf16.msra.mxu0 %v6737
    %6876 = vmatprep.subr.bf16.mxu0 %v6740
    %6877 = vmatpush1.bf16.msra.mxu0 %v6739
    %6878 = vmatprep.subr.bf16.mxu0 %v6742
    %6879 = vmatpush1.bf16.msra.mxu0 %v6741
    %6880 = vmatprep.subr.bf16.mxu0 %v6744
    %6881 = vmatpush1.bf16.msra.mxu0 %v6743
    %6882 = vmatprep.subr.bf16.mxu0 %v6746
    %6883 = vmatpush1.bf16.msra.mxu0 %v6745
    %6884 = vmatprep.mubr.bf16.mxu0 %v6426
    %6885 = vmatmul.mubr.bf16.gmra.mrb[0].mxu0 %v6425
    %v6886 = vpop.f32.mrb[0].mxu0
    %v6887 = vadd.f32 %v6846, %v6886
    %v6888 = vpop.f32.mrb[0].mxu0
    %v6889 = vadd.f32 %v6848, %v6888
    %v6890 = vpop.f32.mrb[0].mxu0
    %v6891 = vpop.f32.mrb[0].mxu0
    %6892 = vdwg.mxu0
    %6893 = vmatprep.subr.bf16.mxu0 %v6684
    %6894 = vmatpush1.bf16.msra.mxu0 %v6683
    %6895 = vmatprep.subr.bf16.mxu0 %v6686
    %6896 = vmatpush1.bf16.msra.mxu0 %v6685
    %6897 = vmatprep.subr.bf16.mxu0 %v6688
    %6898 = vmatpush1.bf16.msra.mxu0 %v6687
    %6899 = vmatprep.subr.bf16.mxu0 %v6690
    %6900 = vmatpush1.bf16.msra.mxu0 %v6689
    %6901 = vmatprep.subr.bf16.mxu0 %v6692
    %6902 = vmatpush1.bf16.msra.mxu0 %v6691
    %6903 = vmatprep.subr.bf16.mxu0 %v6694
    %6904 = vmatpush1.bf16.msra.mxu0 %v6693
    %6905 = vmatprep.subr.bf16.mxu0 %v6696
    %6906 = vmatpush1.bf16.msra.mxu0 %v6695
    %6907 = vmatprep.subr.bf16.mxu0 %v6698
    %6908 = vmatpush1.bf16.msra.mxu0 %v6697
    %6909 = vmatprep.subr.bf16.mxu0 %v6700
    %6910 = vmatpush1.bf16.msra.mxu0 %v6699
    %6911 = vmatprep.subr.bf16.mxu0 %v6702
    %6912 = vmatpush1.bf16.msra.mxu0 %v6701
    %6913 = vmatprep.subr.bf16.mxu0 %v6704
    %6914 = vmatpush1.bf16.msra.mxu0 %v6703
    %6915 = vmatprep.subr.bf16.mxu0 %v6706
    %6916 = vmatpush1.bf16.msra.mxu0 %v6705
    %6917 = vmatprep.subr.bf16.mxu0 %v6708
    %6918 = vmatpush1.bf16.msra.mxu0 %v6707
    %6919 = vmatprep.subr.bf16.mxu0 %v6710
    %6920 = vmatpush1.bf16.msra.mxu0 %v6709
    %6921 = vmatprep.subr.bf16.mxu0 %v6712
    %6922 = vmatpush1.bf16.msra.mxu0 %v6711
    %6923 = vmatprep.subr.bf16.mxu0 %v6714
    %6924 = vmatpush1.bf16.msra.mxu0 %v6713
    %6925 = vmatprep.mubr.bf16.mxu0 %v6412
    %6926 = vmatmul.mubr.bf16.gmra.mrb[0].mxu0 %v6411
    %v6927 = vpop.f32.mrb[0].mxu0
    %v6928 = vadd.f32 %v6887, %v6927
    %v6929 = vpop.f32.mrb[0].mxu0
    %v6930 = vadd.f32 %v6889, %v6929
    %v6931 = vpop.f32.mrb[0].mxu0
    %v6932 = vpop.f32.mrb[0].mxu0
    %6933 = vdwg.mxu0
    %6934 = vmatprep.subr.bf16.mxu0 %v6716
    %6935 = vmatpush1.bf16.msra.mxu0 %v6715
    %6936 = vmatprep.subr.bf16.mxu0 %v6718
    %6937 = vmatpush1.bf16.msra.mxu0 %v6717
    %6938 = vmatprep.subr.bf16.mxu0 %v6720
    %6939 = vmatpush1.bf16.msra.mxu0 %v6719
    %6940 = vmatprep.subr.bf16.mxu0 %v6722
    %6941 = vmatpush1.bf16.msra.mxu0 %v6721
    %6942 = vmatprep.subr.bf16.mxu0 %v6724
    %6943 = vmatpush1.bf16.msra.mxu0 %v6723
    %6944 = vmatprep.subr.bf16.mxu0 %v6726
    %6945 = vmatpush1.bf16.msra.mxu0 %v6725
    %6946 = vmatprep.subr.bf16.mxu0 %v6728
    %6947 = vmatpush1.bf16.msra.mxu0 %v6727
    %6948 = vmatprep.subr.bf16.mxu0 %v6730
    %6949 = vmatpush1.bf16.msra.mxu0 %v6729
    %6950 = vmatprep.subr.bf16.mxu0 %v6732
    %6951 = vmatpush1.bf16.msra.mxu0 %v6731
    %6952 = vmatprep.subr.bf16.mxu0 %v6734
    %6953 = vmatpush1.bf16.msra.mxu0 %v6733
    %6954 = vmatprep.subr.bf16.mxu0 %v6736
    %6955 = vmatpush1.bf16.msra.mxu0 %v6735
    %6956 = vmatprep.subr.bf16.mxu0 %v6738
    %6957 = vmatpush1.bf16.msra.mxu0 %v6737
    %6958 = vmatprep.subr.bf16.mxu0 %v6740
    %6959 = vmatpush1.bf16.msra.mxu0 %v6739
    %6960 = vmatprep.subr.bf16.mxu0 %v6742
    %6961 = vmatpush1.bf16.msra.mxu0 %v6741
    %6962 = vmatprep.subr.bf16.mxu0 %v6744
    %6963 = vmatpush1.bf16.msra.mxu0 %v6743
    %6964 = vmatprep.subr.bf16.mxu0 %v6746
    %6965 = vmatpush1.bf16.msra.mxu0 %v6745
    %6966 = vmatprep.mubr.bf16.mxu0 %v6414
    %6967 = vmatmul.mubr.bf16.gmra.mrb[0].mxu0 %v6413
    %v6968 = vpop.f32.mrb[0].mxu0
    %v6969 = vadd.f32 %v6928, %v6968
    %v6970 = vpop.f32.mrb[0].mxu0
    %v6971 = vadd.f32 %v6930, %v6970
    %v6972 = vpop.f32.mrb[0].mxu0
    %v6973 = vpop.f32.mrb[0].mxu0
    %6974 = vdwg.mxu0
    %v6975 = vld [vmem:[#allocation10] sm:$0xff]
    %v6976 = vld [vmem:[#allocation10 + $0x8] sm:$0xff]
    %v6977 = vld [vmem:[#allocation10 + $0x10] sm:$0xff]
    %v6978 = vld [vmem:[#allocation10 + $0x18] sm:$0xff]
    %v6979 = vld [vmem:[#allocation10 + $0x20] sm:$0xff]
    %v6980 = vld [vmem:[#allocation10 + $0x28] sm:$0xff]
    %v6981 = vld [vmem:[#allocation10 + $0x30] sm:$0xff]
    %v6982 = vld [vmem:[#allocation10 + $0x38] sm:$0xff]
    %v6983 = vld [vmem:[#allocation10 + $0x40] sm:$0xff]
    %v6984 = vld [vmem:[#allocation10 + $0x48] sm:$0xff]
    %v6985 = vld [vmem:[#allocation10 + $0x50] sm:$0xff]
    %v6986 = vld [vmem:[#allocation10 + $0x58] sm:$0xff]
    %v6987 = vld [vmem:[#allocation10 + $0x60] sm:$0xff]
    %v6988 = vld [vmem:[#allocation10 + $0x68] sm:$0xff]
    %v6989 = vld [vmem:[#allocation10 + $0x70] sm:$0xff]
    %v6990 = vld [vmem:[#allocation10 + $0x78] sm:$0xff]
    %v6991 = vld [vmem:[#allocation10 + $0x80] sm:$0xff]
    %v6992 = vld [vmem:[#allocation10 + $0x88] sm:$0xff]
    %v6993 = vld [vmem:[#allocation10 + $0x90] sm:$0xff]
    %v6994 = vld [vmem:[#allocation10 + $0x98] sm:$0xff]
    %v6995 = vld [vmem:[#allocation10 + $0xa0] sm:$0xff]
    %v6996 = vld [vmem:[#allocation10 + $0xa8] sm:$0xff]
    %v6997 = vld [vmem:[#allocation10 + $0xb0] sm:$0xff]
    %v6998 = vld [vmem:[#allocation10 + $0xb8] sm:$0xff]
    %v6999 = vld [vmem:[#allocation10 + $0xc0] sm:$0xff]
    %v7000 = vld [vmem:[#allocation10 + $0xc8] sm:$0xff]
    %v7001 = vld [vmem:[#allocation10 + $0xd0] sm:$0xff]
    %v7002 = vld [vmem:[#allocation10 + $0xd8] sm:$0xff]
    %v7003 = vld [vmem:[#allocation10 + $0xe0] sm:$0xff]
    %v7004 = vld [vmem:[#allocation10 + $0xe8] sm:$0xff]
    %v7005 = vld [vmem:[#allocation10 + $0xf0] sm:$0xff]
    %v7006 = vld [vmem:[#allocation10 + $0xf8] sm:$0xff]
    %v7007 = vld [vmem:[#allocation10 + $0x100] sm:$0xff]
    %v7008 = vld [vmem:[#allocation10 + $0x108] sm:$0xff]
    %v7009 = vld [vmem:[#allocation10 + $0x110] sm:$0xff]
    %v7010 = vld [vmem:[#allocation10 + $0x118] sm:$0xff]
    %v7011 = vld [vmem:[#allocation10 + $0x120] sm:$0xff]
    %v7012 = vld [vmem:[#allocation10 + $0x128] sm:$0xff]
    %v7013 = vld [vmem:[#allocation10 + $0x130] sm:$0xff]
    %v7014 = vld [vmem:[#allocation10 + $0x138] sm:$0xff]
    %v7015 = vld [vmem:[#allocation10 + $0x140] sm:$0xff]
    %v7016 = vld [vmem:[#allocation10 + $0x148] sm:$0xff]
    %v7017 = vld [vmem:[#allocation10 + $0x150] sm:$0xff]
    %v7018 = vld [vmem:[#allocation10 + $0x158] sm:$0xff]
    %v7019 = vld [vmem:[#allocation10 + $0x160] sm:$0xff]
    %v7020 = vld [vmem:[#allocation10 + $0x168] sm:$0xff]
    %v7021 = vld [vmem:[#allocation10 + $0x170] sm:$0xff]
    %v7022 = vld [vmem:[#allocation10 + $0x178] sm:$0xff]
    %v7023 = vld [vmem:[#allocation10 + $0x180] sm:$0xff]
    %v7024 = vld [vmem:[#allocation10 + $0x188] sm:$0xff]
    %v7025 = vld [vmem:[#allocation10 + $0x190] sm:$0xff]
    %v7026 = vld [vmem:[#allocation10 + $0x198] sm:$0xff]
    %v7027 = vld [vmem:[#allocation10 + $0x1a0] sm:$0xff]
    %v7028 = vld [vmem:[#allocation10 + $0x1a8] sm:$0xff]
    %v7029 = vld [vmem:[#allocation10 + $0x1b0] sm:$0xff]
    %v7030 = vld [vmem:[#allocation10 + $0x1b8] sm:$0xff]
    %v7031 = vld [vmem:[#allocation10 + $0x1c0] sm:$0xff]
    %v7032 = vld [vmem:[#allocation10 + $0x1c8] sm:$0xff]
    %v7033 = vld [vmem:[#allocation10 + $0x1d0] sm:$0xff]
    %v7034 = vld [vmem:[#allocation10 + $0x1d8] sm:$0xff]
    %v7035 = vld [vmem:[#allocation10 + $0x1e0] sm:$0xff]
    %v7036 = vld [vmem:[#allocation10 + $0x1e8] sm:$0xff]
    %v7037 = vld [vmem:[#allocation10 + $0x1f0] sm:$0xff]
    %v7038 = vld [vmem:[#allocation10 + $0x1f8] sm:$0xff]
    %v7103 = vunpack.c.l.b16 %v6975
    %v7104 = vunpack.c.h.b16 %v6975
    %v7105 = vunpack.c.l.b16 %v6976
    %v7106 = vunpack.c.h.b16 %v6976
    %v7107 = vunpack.c.l.b16 %v6977
    %v7108 = vunpack.c.h.b16 %v6977
    %v7109 = vunpack.c.l.b16 %v6978
    %v7110 = vunpack.c.h.b16 %v6978
    %v7111 = vunpack.c.l.b16 %v6979
    %v7112 = vunpack.c.h.b16 %v6979
    %v7113 = vunpack.c.l.b16 %v6980
    %v7114 = vunpack.c.h.b16 %v6980
    %v7115 = vunpack.c.l.b16 %v6981
    %v7116 = vunpack.c.h.b16 %v6981
    %v7117 = vunpack.c.l.b16 %v6982
    %v7118 = vunpack.c.h.b16 %v6982
    %v7119 = vunpack.c.l.b16 %v6983
    %v7120 = vunpack.c.h.b16 %v6983
    %v7121 = vunpack.c.l.b16 %v6984
    %v7122 = vunpack.c.h.b16 %v6984
    %v7123 = vunpack.c.l.b16 %v6985
    %v7124 = vunpack.c.h.b16 %v6985
    %v7125 = vunpack.c.l.b16 %v6986
    %v7126 = vunpack.c.h.b16 %v6986
    %v7127 = vunpack.c.l.b16 %v6987
    %v7128 = vunpack.c.h.b16 %v6987
    %v7129 = vunpack.c.l.b16 %v6988
    %v7130 = vunpack.c.h.b16 %v6988
    %v7131 = vunpack.c.l.b16 %v6989
    %v7132 = vunpack.c.h.b16 %v6989
    %v7133 = vunpack.c.l.b16 %v6990
    %v7134 = vunpack.c.h.b16 %v6990
    %v7135 = vunpack.c.l.b16 %v6991
    %v7136 = vunpack.c.h.b16 %v6991
    %v7137 = vunpack.c.l.b16 %v6992
    %v7138 = vunpack.c.h.b16 %v6992
    %v7139 = vunpack.c.l.b16 %v6993
    %v7140 = vunpack.c.h.b16 %v6993
    %v7141 = vunpack.c.l.b16 %v6994
    %v7142 = vunpack.c.h.b16 %v6994
    %v7143 = vunpack.c.l.b16 %v6995
    %v7144 = vunpack.c.h.b16 %v6995
    %v7145 = vunpack.c.l.b16 %v6996
    %v7146 = vunpack.c.h.b16 %v6996
    %v7147 = vunpack.c.l.b16 %v6997
    %v7148 = vunpack.c.h.b16 %v6997
    %v7149 = vunpack.c.l.b16 %v6998
    %v7150 = vunpack.c.h.b16 %v6998
    %v7151 = vunpack.c.l.b16 %v6999
    %v7152 = vunpack.c.h.b16 %v6999
    %v7153 = vunpack.c.l.b16 %v7000
    %v7154 = vunpack.c.h.b16 %v7000
    %v7155 = vunpack.c.l.b16 %v7001
    %v7156 = vunpack.c.h.b16 %v7001
    %v7157 = vunpack.c.l.b16 %v7002
    %v7158 = vunpack.c.h.b16 %v7002
    %v7159 = vunpack.c.l.b16 %v7003
    %v7160 = vunpack.c.h.b16 %v7003
    %v7161 = vunpack.c.l.b16 %v7004
    %v7162 = vunpack.c.h.b16 %v7004
    %v7163 = vunpack.c.l.b16 %v7005
    %v7164 = vunpack.c.h.b16 %v7005
    %v7165 = vunpack.c.l.b16 %v7006
    %v7166 = vunpack.c.h.b16 %v7006
    %v7167 = vunpack.c.l.b16 %v7007
    %v7168 = vunpack.c.h.b16 %v7007
    %v7169 = vunpack.c.l.b16 %v7008
    %v7170 = vunpack.c.h.b16 %v7008
    %v7171 = vunpack.c.l.b16 %v7009
    %v7172 = vunpack.c.h.b16 %v7009
    %v7173 = vunpack.c.l.b16 %v7010
    %v7174 = vunpack.c.h.b16 %v7010
    %v7175 = vunpack.c.l.b16 %v7011
    %v7176 = vunpack.c.h.b16 %v7011
    %v7177 = vunpack.c.l.b16 %v7012
    %v7178 = vunpack.c.h.b16 %v7012
    %v7179 = vunpack.c.l.b16 %v7013
    %v7180 = vunpack.c.h.b16 %v7013
    %v7181 = vunpack.c.l.b16 %v7014
    %v7182 = vunpack.c.h.b16 %v7014
    %v7183 = vunpack.c.l.b16 %v7015
    %v7184 = vunpack.c.h.b16 %v7015
    %v7185 = vunpack.c.l.b16 %v7016
    %v7186 = vunpack.c.h.b16 %v7016
    %v7187 = vunpack.c.l.b16 %v7017
    %v7188 = vunpack.c.h.b16 %v7017
    %v7189 = vunpack.c.l.b16 %v7018
    %v7190 = vunpack.c.h.b16 %v7018
    %v7191 = vunpack.c.l.b16 %v7019
    %v7192 = vunpack.c.h.b16 %v7019
    %v7193 = vunpack.c.l.b16 %v7020
    %v7194 = vunpack.c.h.b16 %v7020
    %v7195 = vunpack.c.l.b16 %v7021
    %v7196 = vunpack.c.h.b16 %v7021
    %v7197 = vunpack.c.l.b16 %v7022
    %v7198 = vunpack.c.h.b16 %v7022
    %v7199 = vunpack.c.l.b16 %v7023
    %v7200 = vunpack.c.h.b16 %v7023
    %v7201 = vunpack.c.l.b16 %v7024
    %v7202 = vunpack.c.h.b16 %v7024
    %v7203 = vunpack.c.l.b16 %v7025
    %v7204 = vunpack.c.h.b16 %v7025
    %v7205 = vunpack.c.l.b16 %v7026
    %v7206 = vunpack.c.h.b16 %v7026
    %v7207 = vunpack.c.l.b16 %v7027
    %v7208 = vunpack.c.h.b16 %v7027
    %v7209 = vunpack.c.l.b16 %v7028
    %v7210 = vunpack.c.h.b16 %v7028
    %v7211 = vunpack.c.l.b16 %v7029
    %v7212 = vunpack.c.h.b16 %v7029
    %v7213 = vunpack.c.l.b16 %v7030
    %v7214 = vunpack.c.h.b16 %v7030
    %v7215 = vunpack.c.l.b16 %v7031
    %v7216 = vunpack.c.h.b16 %v7031
    %v7217 = vunpack.c.l.b16 %v7032
    %v7218 = vunpack.c.h.b16 %v7032
    %v7219 = vunpack.c.l.b16 %v7033
    %v7220 = vunpack.c.h.b16 %v7033
    %v7221 = vunpack.c.l.b16 %v7034
    %v7222 = vunpack.c.h.b16 %v7034
    %v7223 = vunpack.c.l.b16 %v7035
    %v7224 = vunpack.c.h.b16 %v7035
    %v7225 = vunpack.c.l.b16 %v7036
    %v7226 = vunpack.c.h.b16 %v7036
    %v7227 = vunpack.c.l.b16 %v7037
    %v7228 = vunpack.c.h.b16 %v7037
    %v7229 = vunpack.c.l.b16 %v7038
    %v7230 = vunpack.c.h.b16 %v7038
    %v7231 = vpack.c.b16 %v7105, %v7103
    %v7232 = vpack.c.b16 %v7106, %v7104
    %v7233 = vpack.c.b16 %v7109, %v7107
    %v7234 = vpack.c.b16 %v7110, %v7108
    %v7235 = vpack.c.b16 %v7113, %v7111
    %v7236 = vpack.c.b16 %v7114, %v7112
    %v7237 = vpack.c.b16 %v7117, %v7115
    %v7238 = vpack.c.b16 %v7118, %v7116
    %v7239 = vpack.c.b16 %v7121, %v7119
    %v7240 = vpack.c.b16 %v7122, %v7120
    %v7241 = vpack.c.b16 %v7125, %v7123
    %v7242 = vpack.c.b16 %v7126, %v7124
    %v7243 = vpack.c.b16 %v7129, %v7127
    %v7244 = vpack.c.b16 %v7130, %v7128
    %v7245 = vpack.c.b16 %v7133, %v7131
    %v7246 = vpack.c.b16 %v7134, %v7132
    %v7247 = vpack.c.b16 %v7137, %v7135
    %v7248 = vpack.c.b16 %v7138, %v7136
    %v7249 = vpack.c.b16 %v7141, %v7139
    %v7250 = vpack.c.b16 %v7142, %v7140
    %v7251 = vpack.c.b16 %v7145, %v7143
    %v7252 = vpack.c.b16 %v7146, %v7144
    %v7253 = vpack.c.b16 %v7149, %v7147
    %v7254 = vpack.c.b16 %v7150, %v7148
    %v7255 = vpack.c.b16 %v7153, %v7151
    %v7256 = vpack.c.b16 %v7154, %v7152
    %v7257 = vpack.c.b16 %v7157, %v7155
    %v7258 = vpack.c.b16 %v7158, %v7156
    %v7259 = vpack.c.b16 %v7161, %v7159
    %v7260 = vpack.c.b16 %v7162, %v7160
    %v7261 = vpack.c.b16 %v7165, %v7163
    %v7262 = vpack.c.b16 %v7166, %v7164
    %v7263 = vpack.c.b16 %v7169, %v7167
    %v7264 = vpack.c.b16 %v7170, %v7168
    %v7265 = vpack.c.b16 %v7173, %v7171
    %v7266 = vpack.c.b16 %v7174, %v7172
    %v7267 = vpack.c.b16 %v7177, %v7175
    %v7268 = vpack.c.b16 %v7178, %v7176
    %v7269 = vpack.c.b16 %v7181, %v7179
    %v7270 = vpack.c.b16 %v7182, %v7180
    %v7271 = vpack.c.b16 %v7185, %v7183
    %v7272 = vpack.c.b16 %v7186, %v7184
    %v7273 = vpack.c.b16 %v7189, %v7187
    %v7274 = vpack.c.b16 %v7190, %v7188
    %v7275 = vpack.c.b16 %v7193, %v7191
    %v7276 = vpack.c.b16 %v7194, %v7192
    %v7277 = vpack.c.b16 %v7197, %v7195
    %v7278 = vpack.c.b16 %v7198, %v7196
    %v7279 = vpack.c.b16 %v7201, %v7199
    %v7280 = vpack.c.b16 %v7202, %v7200
    %v7281 = vpack.c.b16 %v7205, %v7203
    %v7282 = vpack.c.b16 %v7206, %v7204
    %v7283 = vpack.c.b16 %v7209, %v7207
    %v7284 = vpack.c.b16 %v7210, %v7208
    %v7285 = vpack.c.b16 %v7213, %v7211
    %v7286 = vpack.c.b16 %v7214, %v7212
    %v7287 = vpack.c.b16 %v7217, %v7215
    %v7288 = vpack.c.b16 %v7218, %v7216
    %v7289 = vpack.c.b16 %v7221, %v7219
    %v7290 = vpack.c.b16 %v7222, %v7220
    %v7291 = vpack.c.b16 %v7225, %v7223
    %v7292 = vpack.c.b16 %v7226, %v7224
    %v7293 = vpack.c.b16 %v7229, %v7227
    %v7294 = vpack.c.b16 %v7230, %v7228
    %7359 = vmatprep.subr.bf16.mxu0 %v7232
    %7360 = vmatpush1.bf16.msra.mxu0 %v7231
    %7361 = vmatprep.subr.bf16.mxu0 %v7234
    %7362 = vmatpush1.bf16.msra.mxu0 %v7233
    %7363 = vmatprep.subr.bf16.mxu0 %v7236
    %7364 = vmatpush1.bf16.msra.mxu0 %v7235
    %7365 = vmatprep.subr.bf16.mxu0 %v7238
    %7366 = vmatpush1.bf16.msra.mxu0 %v7237
    %7367 = vmatprep.subr.bf16.mxu0 %v7240
    %7368 = vmatpush1.bf16.msra.mxu0 %v7239
    %7369 = vmatprep.subr.bf16.mxu0 %v7242
    %7370 = vmatpush1.bf16.msra.mxu0 %v7241
    %7371 = vmatprep.subr.bf16.mxu0 %v7244
    %7372 = vmatpush1.bf16.msra.mxu0 %v7243
    %7373 = vmatprep.subr.bf16.mxu0 %v7246
    %7374 = vmatpush1.bf16.msra.mxu0 %v7245
    %7375 = vmatprep.subr.bf16.mxu0 %v7248
    %7376 = vmatpush1.bf16.msra.mxu0 %v7247
    %7377 = vmatprep.subr.bf16.mxu0 %v7250
    %7378 = vmatpush1.bf16.msra.mxu0 %v7249
    %7379 = vmatprep.subr.bf16.mxu0 %v7252
    %7380 = vmatpush1.bf16.msra.mxu0 %v7251
    %7381 = vmatprep.subr.bf16.mxu0 %v7254
    %7382 = vmatpush1.bf16.msra.mxu0 %v7253
    %7383 = vmatprep.subr.bf16.mxu0 %v7256
    %7384 = vmatpush1.bf16.msra.mxu0 %v7255
    %7385 = vmatprep.subr.bf16.mxu0 %v7258
    %7386 = vmatpush1.bf16.msra.mxu0 %v7257
    %7387 = vmatprep.subr.bf16.mxu0 %v7260
    %7388 = vmatpush1.bf16.msra.mxu0 %v7259
    %7389 = vmatprep.subr.bf16.mxu0 %v7262
    %7390 = vmatpush1.bf16.msra.mxu0 %v7261
    %7391 = vmatprep.mubr.bf16.mxu0 %v6412
    %7392 = vmatmul.mubr.bf16.gmra.mrb[0].mxu0 %v6411
    %v7393 = vpop.f32.mrb[0].mxu0
    %v7394 = vadd.f32 0.0, %v7393
    %v7395 = vpop.f32.mrb[0].mxu0
    %v7396 = vadd.f32 0.0, %v7395
    %v7397 = vpop.f32.mrb[0].mxu0
    %v7398 = vpop.f32.mrb[0].mxu0
    %7399 = vdwg.mxu0
    %7400 = vmatprep.subr.bf16.mxu0 %v7264
    %7401 = vmatpush1.bf16.msra.mxu0 %v7263
    %7402 = vmatprep.subr.bf16.mxu0 %v7266
    %7403 = vmatpush1.bf16.msra.mxu0 %v7265
    %7404 = vmatprep.subr.bf16.mxu0 %v7268
    %7405 = vmatpush1.bf16.msra.mxu0 %v7267
    %7406 = vmatprep.subr.bf16.mxu0 %v7270
    %7407 = vmatpush1.bf16.msra.mxu0 %v7269
    %7408 = vmatprep.subr.bf16.mxu0 %v7272
    %7409 = vmatpush1.bf16.msra.mxu0 %v7271
    %7410 = vmatprep.subr.bf16.mxu0 %v7274
    %7411 = vmatpush1.bf16.msra.mxu0 %v7273
    %7412 = vmatprep.subr.bf16.mxu0 %v7276
    %7413 = vmatpush1.bf16.msra.mxu0 %v7275
    %7414 = vmatprep.subr.bf16.mxu0 %v7278
    %7415 = vmatpush1.bf16.msra.mxu0 %v7277
    %7416 = vmatprep.subr.bf16.mxu0 %v7280
    %7417 = vmatpush1.bf16.msra.mxu0 %v7279
    %7418 = vmatprep.subr.bf16.mxu0 %v7282
    %7419 = vmatpush1.bf16.msra.mxu0 %v7281
    %7420 = vmatprep.subr.bf16.mxu0 %v7284
    %7421 = vmatpush1.bf16.msra.mxu0 %v7283
    %7422 = vmatprep.subr.bf16.mxu0 %v7286
    %7423 = vmatpush1.bf16.msra.mxu0 %v7285
    %7424 = vmatprep.subr.bf16.mxu0 %v7288
    %7425 = vmatpush1.bf16.msra.mxu0 %v7287
    %7426 = vmatprep.subr.bf16.mxu0 %v7290
    %7427 = vmatpush1.bf16.msra.mxu0 %v7289
    %7428 = vmatprep.subr.bf16.mxu0 %v7292
    %7429 = vmatpush1.bf16.msra.mxu0 %v7291
    %7430 = vmatprep.subr.bf16.mxu0 %v7294
    %7431 = vmatpush1.bf16.msra.mxu0 %v7293
    %7432 = vmatprep.mubr.bf16.mxu0 %v6414
    %7433 = vmatmul.mubr.bf16.gmra.mrb[0].mxu0 %v6413
    %v7434 = vpop.f32.mrb[0].mxu0
    %v7435 = vadd.f32 %v7394, %v7434
    %v7436 = vpop.f32.mrb[0].mxu0
    %v7437 = vadd.f32 %v7396, %v7436
    %v7438 = vpop.f32.mrb[0].mxu0
    %v7439 = vpop.f32.mrb[0].mxu0
    %7440 = vdwg.mxu0
    %v7441 = vadd.f32 %v6969, %v7435
    %v7442 = vadd.f32 %v6971, %v7437
    %v7443 = vld [vmem:[%s9] sm:$0x3]
    %v7445 = vlaneseq
    %v7446 = vshrl.u32 %v7445, 7
    %v7447 = vsub.s32 0, %v7446
    %v7448 = vrot.slane %v7443, %v7447
    %v7449 = vlaneseq
    %v7450 = vshrl.u32 %v7449, 7
    %v7451 = vsub.s32 1, %v7450
    %v7452 = vrot.slane %v7443, %v7451
    %v7455 = vadd.f32 %v7441, %v7448
    %v7456 = vadd.f32 %v7442, %v7452
    %v7457 = vmax.f32 %v7455, 0.0
    %v7458 = vmax.f32 %v7456, 0.0
    %v7459 = vpack.c.bf16 %v7457, %v7457
    %v7460 = vpack.c.bf16 %v7458, %v7458
    %v7461 = vunpack.c.l.bf16 %v7459
    %v7462 = vunpack.c.l.bf16 %v7460
    %v7463 = vsub.f32 %v7457, %v7461
    %v7464 = vsub.f32 %v7458, %v7462
    %v7465 = vpack.c.bf16 %v7463, %v7463
    %v7466 = vpack.c.bf16 %v7464, %v7464
    %v7467 = vld [vmem:[%s10] sm:$0xff]
    %v7468 = vld [vmem:[%s10 + $0x8] sm:$0xff]
    %v7469 = vld [vmem:[%s10 + $0x10] sm:$0xff]
    %v7470 = vld [vmem:[%s10 + $0x18] sm:$0xff]
    %v7471 = vld [vmem:[%s10 + $0x20] sm:$0xff]
    %v7472 = vld [vmem:[%s10 + $0x28] sm:$0xff]
    %v7473 = vld [vmem:[%s10 + $0x30] sm:$0xff]
    %v7474 = vld [vmem:[%s10 + $0x38] sm:$0xff]
    %v7475 = vld [vmem:[%s10 + $0x40] sm:$0xff]
    %v7476 = vld [vmem:[%s10 + $0x48] sm:$0xff]
    %v7477 = vld [vmem:[%s10 + $0x50] sm:$0xff]
    %v7478 = vld [vmem:[%s10 + $0x58] sm:$0xff]
    %v7479 = vld [vmem:[%s10 + $0x60] sm:$0xff]
    %v7480 = vld [vmem:[%s10 + $0x68] sm:$0xff]
    %v7481 = vld [vmem:[%s10 + $0x70] sm:$0xff]
    %v7482 = vld [vmem:[%s10 + $0x78] sm:$0xff]
    %v7483 = vld [vmem:[%s10 + $0x80] sm:$0xff]
    %v7484 = vld [vmem:[%s10 + $0x88] sm:$0xff]
    %v7485 = vld [vmem:[%s10 + $0x90] sm:$0xff]
    %v7486 = vld [vmem:[%s10 + $0x98] sm:$0xff]
    %v7487 = vld [vmem:[%s10 + $0xa0] sm:$0xff]
    %v7488 = vld [vmem:[%s10 + $0xa8] sm:$0xff]
    %v7489 = vld [vmem:[%s10 + $0xb0] sm:$0xff]
    %v7490 = vld [vmem:[%s10 + $0xb8] sm:$0xff]
    %v7491 = vld [vmem:[%s10 + $0xc0] sm:$0xff]
    %v7492 = vld [vmem:[%s10 + $0xc8] sm:$0xff]
    %v7493 = vld [vmem:[%s10 + $0xd0] sm:$0xff]
    %v7494 = vld [vmem:[%s10 + $0xd8] sm:$0xff]
    %v7495 = vld [vmem:[%s10 + $0xe0] sm:$0xff]
    %v7496 = vld [vmem:[%s10 + $0xe8] sm:$0xff]
    %v7497 = vld [vmem:[%s10 + $0xf0] sm:$0xff]
    %v7498 = vld [vmem:[%s10 + $0xf8] sm:$0xff]
    %v7531 = vunpack.c.l.b16 %v7467
    %v7532 = vunpack.c.h.b16 %v7467
    %v7533 = vunpack.c.l.b16 %v7468
    %v7534 = vunpack.c.h.b16 %v7468
    %v7535 = vunpack.c.l.b16 %v7469
    %v7536 = vunpack.c.h.b16 %v7469
    %v7537 = vunpack.c.l.b16 %v7470
    %v7538 = vunpack.c.h.b16 %v7470
    %v7539 = vunpack.c.l.b16 %v7471
    %v7540 = vunpack.c.h.b16 %v7471
    %v7541 = vunpack.c.l.b16 %v7472
    %v7542 = vunpack.c.h.b16 %v7472
    %v7543 = vunpack.c.l.b16 %v7473
    %v7544 = vunpack.c.h.b16 %v7473
    %v7545 = vunpack.c.l.b16 %v7474
    %v7546 = vunpack.c.h.b16 %v7474
    %v7547 = vunpack.c.l.b16 %v7475
    %v7548 = vunpack.c.h.b16 %v7475
    %v7549 = vunpack.c.l.b16 %v7476
    %v7550 = vunpack.c.h.b16 %v7476
    %v7551 = vunpack.c.l.b16 %v7477
    %v7552 = vunpack.c.h.b16 %v7477
    %v7553 = vunpack.c.l.b16 %v7478
    %v7554 = vunpack.c.h.b16 %v7478
    %v7555 = vunpack.c.l.b16 %v7479
    %v7556 = vunpack.c.h.b16 %v7479
    %v7557 = vunpack.c.l.b16 %v7480
    %v7558 = vunpack.c.h.b16 %v7480
    %v7559 = vunpack.c.l.b16 %v7481
    %v7560 = vunpack.c.h.b16 %v7481
    %v7561 = vunpack.c.l.b16 %v7482
    %v7562 = vunpack.c.h.b16 %v7482
    %v7563 = vunpack.c.l.b16 %v7483
    %v7564 = vunpack.c.h.b16 %v7483
    %v7565 = vunpack.c.l.b16 %v7484
    %v7566 = vunpack.c.h.b16 %v7484
    %v7567 = vunpack.c.l.b16 %v7485
    %v7568 = vunpack.c.h.b16 %v7485
    %v7569 = vunpack.c.l.b16 %v7486
    %v7570 = vunpack.c.h.b16 %v7486
    %v7571 = vunpack.c.l.b16 %v7487
    %v7572 = vunpack.c.h.b16 %v7487
    %v7573 = vunpack.c.l.b16 %v7488
    %v7574 = vunpack.c.h.b16 %v7488
    %v7575 = vunpack.c.l.b16 %v7489
    %v7576 = vunpack.c.h.b16 %v7489
    %v7577 = vunpack.c.l.b16 %v7490
    %v7578 = vunpack.c.h.b16 %v7490
    %v7579 = vunpack.c.l.b16 %v7491
    %v7580 = vunpack.c.h.b16 %v7491
    %v7581 = vunpack.c.l.b16 %v7492
    %v7582 = vunpack.c.h.b16 %v7492
    %v7583 = vunpack.c.l.b16 %v7493
    %v7584 = vunpack.c.h.b16 %v7493
    %v7585 = vunpack.c.l.b16 %v7494
    %v7586 = vunpack.c.h.b16 %v7494
    %v7587 = vunpack.c.l.b16 %v7495
    %v7588 = vunpack.c.h.b16 %v7495
    %v7589 = vunpack.c.l.b16 %v7496
    %v7590 = vunpack.c.h.b16 %v7496
    %v7591 = vunpack.c.l.b16 %v7497
    %v7592 = vunpack.c.h.b16 %v7497
    %v7593 = vunpack.c.l.b16 %v7498
    %v7594 = vunpack.c.h.b16 %v7498
    %v7595 = vpack.c.b16 %v7533, %v7531
    %v7596 = vpack.c.b16 %v7534, %v7532
    %v7597 = vpack.c.b16 %v7537, %v7535
    %v7598 = vpack.c.b16 %v7538, %v7536
    %v7599 = vpack.c.b16 %v7541, %v7539
    %v7600 = vpack.c.b16 %v7542, %v7540
    %v7601 = vpack.c.b16 %v7545, %v7543
    %v7602 = vpack.c.b16 %v7546, %v7544
    %v7603 = vpack.c.b16 %v7549, %v7547
    %v7604 = vpack.c.b16 %v7550, %v7548
    %v7605 = vpack.c.b16 %v7553, %v7551
    %v7606 = vpack.c.b16 %v7554, %v7552
    %v7607 = vpack.c.b16 %v7557, %v7555
    %v7608 = vpack.c.b16 %v7558, %v7556
    %v7609 = vpack.c.b16 %v7561, %v7559
    %v7610 = vpack.c.b16 %v7562, %v7560
    %v7611 = vpack.c.b16 %v7565, %v7563
    %v7612 = vpack.c.b16 %v7566, %v7564
    %v7613 = vpack.c.b16 %v7569, %v7567
    %v7614 = vpack.c.b16 %v7570, %v7568
    %v7615 = vpack.c.b16 %v7573, %v7571
    %v7616 = vpack.c.b16 %v7574, %v7572
    %v7617 = vpack.c.b16 %v7577, %v7575
    %v7618 = vpack.c.b16 %v7578, %v7576
    %v7619 = vpack.c.b16 %v7581, %v7579
    %v7620 = vpack.c.b16 %v7582, %v7580
    %v7621 = vpack.c.b16 %v7585, %v7583
    %v7622 = vpack.c.b16 %v7586, %v7584
    %v7623 = vpack.c.b16 %v7589, %v7587
    %v7624 = vpack.c.b16 %v7590, %v7588
    %v7625 = vpack.c.b16 %v7593, %v7591
    %v7626 = vpack.c.b16 %v7594, %v7592
    %7659 = vmatprep.subr.bf16.mxu0 %v7596
    %7660 = vmatpush1.bf16.msra.mxu0 %v7595
    %7661 = vmatprep.subr.bf16.mxu0 %v7598
    %7662 = vmatpush1.bf16.msra.mxu0 %v7597
    %7663 = vmatprep.subr.bf16.mxu0 %v7600
    %7664 = vmatpush1.bf16.msra.mxu0 %v7599
    %7665 = vmatprep.subr.bf16.mxu0 %v7602
    %7666 = vmatpush1.bf16.msra.mxu0 %v7601
    %7667 = vmatprep.subr.bf16.mxu0 %v7604
    %7668 = vmatpush1.bf16.msra.mxu0 %v7603
    %7669 = vmatprep.subr.bf16.mxu0 %v7606
    %7670 = vmatpush1.bf16.msra.mxu0 %v7605
    %7671 = vmatprep.subr.bf16.mxu0 %v7608
    %7672 = vmatpush1.bf16.msra.mxu0 %v7607
    %7673 = vmatprep.subr.bf16.mxu0 %v7610
    %7674 = vmatpush1.bf16.msra.mxu0 %v7609
    %7675 = vmatprep.subr.bf16.mxu0 %v7612
    %7676 = vmatpush1.bf16.msra.mxu0 %v7611
    %7677 = vmatprep.subr.bf16.mxu0 %v7614
    %7678 = vmatpush1.bf16.msra.mxu0 %v7613
    %7679 = vmatprep.subr.bf16.mxu0 %v7616
    %7680 = vmatpush1.bf16.msra.mxu0 %v7615
    %7681 = vmatprep.subr.bf16.mxu0 %v7618
    %7682 = vmatpush1.bf16.msra.mxu0 %v7617
    %7683 = vmatprep.subr.bf16.mxu0 %v7620
    %7684 = vmatpush1.bf16.msra.mxu0 %v7619
    %7685 = vmatprep.subr.bf16.mxu0 %v7622
    %7686 = vmatpush1.bf16.msra.mxu0 %v7621
    %7687 = vmatprep.subr.bf16.mxu0 %v7624
    %7688 = vmatpush1.bf16.msra.mxu0 %v7623
    %7689 = vmatprep.subr.bf16.mxu0 %v7626
    %7690 = vmatpush1.bf16.msra.mxu0 %v7625
    %7691 = vmatprep.mubr.bf16.mxu0 %v7466
    %7692 = vmatmul.mubr.bf16.gmra.mrb[0].mxu0 %v7465
    %v7693 = vpop.f32.mrb[0].mxu0
    %v7694 = vadd.f32 0.0, %v7693
    %v7695 = vpop.f32.mrb[0].mxu0
    %v7696 = vadd.f32 0.0, %v7695
    %v7697 = vpop.f32.mrb[0].mxu0
    %v7698 = vpop.f32.mrb[0].mxu0
    %7699 = vdwg.mxu0
    %7700 = vmatprep.subr.bf16.mxu0 %v7596
    %7701 = vmatpush1.bf16.msra.mxu0 %v7595
    %7702 = vmatprep.subr.bf16.mxu0 %v7598
    %7703 = vmatpush1.bf16.msra.mxu0 %v7597
    %7704 = vmatprep.subr.bf16.mxu0 %v7600
    %7705 = vmatpush1.bf16.msra.mxu0 %v7599
    %7706 = vmatprep.subr.bf16.mxu0 %v7602
    %7707 = vmatpush1.bf16.msra.mxu0 %v7601
    %7708 = vmatprep.subr.bf16.mxu0 %v7604
    %7709 = vmatpush1.bf16.msra.mxu0 %v7603
    %7710 = vmatprep.subr.bf16.mxu0 %v7606
    %7711 = vmatpush1.bf16.msra.mxu0 %v7605
    %7712 = vmatprep.subr.bf16.mxu0 %v7608
    %7713 = vmatpush1.bf16.msra.mxu0 %v7607
    %7714 = vmatprep.subr.bf16.mxu0 %v7610
    %7715 = vmatpush1.bf16.msra.mxu0 %v7609
    %7716 = vmatprep.subr.bf16.mxu0 %v7612
    %7717 = vmatpush1.bf16.msra.mxu0 %v7611
    %7718 = vmatprep.subr.bf16.mxu0 %v7614
    %7719 = vmatpush1.bf16.msra.mxu0 %v7613
    %7720 = vmatprep.subr.bf16.mxu0 %v7616
    %7721 = vmatpush1.bf16.msra.mxu0 %v7615
    %7722 = vmatprep.subr.bf16.mxu0 %v7618
    %7723 = vmatpush1.bf16.msra.mxu0 %v7617
    %7724 = vmatprep.subr.bf16.mxu0 %v7620
    %7725 = vmatpush1.bf16.msra.mxu0 %v7619
    %7726 = vmatprep.subr.bf16.mxu0 %v7622
    %7727 = vmatpush1.bf16.msra.mxu0 %v7621
    %7728 = vmatprep.subr.bf16.mxu0 %v7624
    %7729 = vmatpush1.bf16.msra.mxu0 %v7623
    %7730 = vmatprep.subr.bf16.mxu0 %v7626
    %7731 = vmatpush1.bf16.msra.mxu0 %v7625
    %7732 = vmatprep.mubr.bf16.mxu0 %v7460
    %7733 = vmatmul.mubr.bf16.gmra.mrb[0].mxu0 %v7459
    %v7734 = vpop.f32.mrb[0].mxu0
    %v7735 = vadd.f32 %v7694, %v7734
    %v7736 = vpop.f32.mrb[0].mxu0
    %v7737 = vadd.f32 %v7696, %v7736
    %v7738 = vpop.f32.mrb[0].mxu0
    %v7739 = vpop.f32.mrb[0].mxu0
    %7740 = vdwg.mxu0
    %v7741 = vld [vmem:[#allocation12] sm:$0xff]
    %v7742 = vld [vmem:[#allocation12 + $0x8] sm:$0xff]
    %v7743 = vld [vmem:[#allocation12 + $0x10] sm:$0xff]
    %v7744 = vld [vmem:[#allocation12 + $0x18] sm:$0xff]
    %v7745 = vld [vmem:[#allocation12 + $0x20] sm:$0xff]
    %v7746 = vld [vmem:[#allocation12 + $0x28] sm:$0xff]
    %v7747 = vld [vmem:[#allocation12 + $0x30] sm:$0xff]
    %v7748 = vld [vmem:[#allocation12 + $0x38] sm:$0xff]
    %v7749 = vld [vmem:[#allocation12 + $0x40] sm:$0xff]
    %v7750 = vld [vmem:[#allocation12 + $0x48] sm:$0xff]
    %v7751 = vld [vmem:[#allocation12 + $0x50] sm:$0xff]
    %v7752 = vld [vmem:[#allocation12 + $0x58] sm:$0xff]
    %v7753 = vld [vmem:[#allocation12 + $0x60] sm:$0xff]
    %v7754 = vld [vmem:[#allocation12 + $0x68] sm:$0xff]
    %v7755 = vld [vmem:[#allocation12 + $0x70] sm:$0xff]
    %v7756 = vld [vmem:[#allocation12 + $0x78] sm:$0xff]
    %v7757 = vld [vmem:[#allocation12 + $0x80] sm:$0xff]
    %v7758 = vld [vmem:[#allocation12 + $0x88] sm:$0xff]
    %v7759 = vld [vmem:[#allocation12 + $0x90] sm:$0xff]
    %v7760 = vld [vmem:[#allocation12 + $0x98] sm:$0xff]
    %v7761 = vld [vmem:[#allocation12 + $0xa0] sm:$0xff]
    %v7762 = vld [vmem:[#allocation12 + $0xa8] sm:$0xff]
    %v7763 = vld [vmem:[#allocation12 + $0xb0] sm:$0xff]
    %v7764 = vld [vmem:[#allocation12 + $0xb8] sm:$0xff]
    %v7765 = vld [vmem:[#allocation12 + $0xc0] sm:$0xff]
    %v7766 = vld [vmem:[#allocation12 + $0xc8] sm:$0xff]
    %v7767 = vld [vmem:[#allocation12 + $0xd0] sm:$0xff]
    %v7768 = vld [vmem:[#allocation12 + $0xd8] sm:$0xff]
    %v7769 = vld [vmem:[#allocation12 + $0xe0] sm:$0xff]
    %v7770 = vld [vmem:[#allocation12 + $0xe8] sm:$0xff]
    %v7771 = vld [vmem:[#allocation12 + $0xf0] sm:$0xff]
    %v7772 = vld [vmem:[#allocation12 + $0xf8] sm:$0xff]
    %v7805 = vunpack.c.l.b16 %v7741
    %v7806 = vunpack.c.h.b16 %v7741
    %v7807 = vunpack.c.l.b16 %v7742
    %v7808 = vunpack.c.h.b16 %v7742
    %v7809 = vunpack.c.l.b16 %v7743
    %v7810 = vunpack.c.h.b16 %v7743
    %v7811 = vunpack.c.l.b16 %v7744
    %v7812 = vunpack.c.h.b16 %v7744
    %v7813 = vunpack.c.l.b16 %v7745
    %v7814 = vunpack.c.h.b16 %v7745
    %v7815 = vunpack.c.l.b16 %v7746
    %v7816 = vunpack.c.h.b16 %v7746
    %v7817 = vunpack.c.l.b16 %v7747
    %v7818 = vunpack.c.h.b16 %v7747
    %v7819 = vunpack.c.l.b16 %v7748
    %v7820 = vunpack.c.h.b16 %v7748
    %v7821 = vunpack.c.l.b16 %v7749
    %v7822 = vunpack.c.h.b16 %v7749
    %v7823 = vunpack.c.l.b16 %v7750
    %v7824 = vunpack.c.h.b16 %v7750
    %v7825 = vunpack.c.l.b16 %v7751
    %v7826 = vunpack.c.h.b16 %v7751
    %v7827 = vunpack.c.l.b16 %v7752
    %v7828 = vunpack.c.h.b16 %v7752
    %v7829 = vunpack.c.l.b16 %v7753
    %v7830 = vunpack.c.h.b16 %v7753
    %v7831 = vunpack.c.l.b16 %v7754
    %v7832 = vunpack.c.h.b16 %v7754
    %v7833 = vunpack.c.l.b16 %v7755
    %v7834 = vunpack.c.h.b16 %v7755
    %v7835 = vunpack.c.l.b16 %v7756
    %v7836 = vunpack.c.h.b16 %v7756
    %v7837 = vunpack.c.l.b16 %v7757
    %v7838 = vunpack.c.h.b16 %v7757
    %v7839 = vunpack.c.l.b16 %v7758
    %v7840 = vunpack.c.h.b16 %v7758
    %v7841 = vunpack.c.l.b16 %v7759
    %v7842 = vunpack.c.h.b16 %v7759
    %v7843 = vunpack.c.l.b16 %v7760
    %v7844 = vunpack.c.h.b16 %v7760
    %v7845 = vunpack.c.l.b16 %v7761
    %v7846 = vunpack.c.h.b16 %v7761
    %v7847 = vunpack.c.l.b16 %v7762
    %v7848 = vunpack.c.h.b16 %v7762
    %v7849 = vunpack.c.l.b16 %v7763
    %v7850 = vunpack.c.h.b16 %v7763
    %v7851 = vunpack.c.l.b16 %v7764
    %v7852 = vunpack.c.h.b16 %v7764
    %v7853 = vunpack.c.l.b16 %v7765
    %v7854 = vunpack.c.h.b16 %v7765
    %v7855 = vunpack.c.l.b16 %v7766
    %v7856 = vunpack.c.h.b16 %v7766
    %v7857 = vunpack.c.l.b16 %v7767
    %v7858 = vunpack.c.h.b16 %v7767
    %v7859 = vunpack.c.l.b16 %v7768
    %v7860 = vunpack.c.h.b16 %v7768
    %v7861 = vunpack.c.l.b16 %v7769
    %v7862 = vunpack.c.h.b16 %v7769
    %v7863 = vunpack.c.l.b16 %v7770
    %v7864 = vunpack.c.h.b16 %v7770
    %v7865 = vunpack.c.l.b16 %v7771
    %v7866 = vunpack.c.h.b16 %v7771
    %v7867 = vunpack.c.l.b16 %v7772
    %v7868 = vunpack.c.h.b16 %v7772
    %v7869 = vpack.c.b16 %v7807, %v7805
    %v7870 = vpack.c.b16 %v7808, %v7806
    %v7871 = vpack.c.b16 %v7811, %v7809
    %v7872 = vpack.c.b16 %v7812, %v7810
    %v7873 = vpack.c.b16 %v7815, %v7813
    %v7874 = vpack.c.b16 %v7816, %v7814
    %v7875 = vpack.c.b16 %v7819, %v7817
    %v7876 = vpack.c.b16 %v7820, %v7818
    %v7877 = vpack.c.b16 %v7823, %v7821
    %v7878 = vpack.c.b16 %v7824, %v7822
    %v7879 = vpack.c.b16 %v7827, %v7825
    %v7880 = vpack.c.b16 %v7828, %v7826
    %v7881 = vpack.c.b16 %v7831, %v7829
    %v7882 = vpack.c.b16 %v7832, %v7830
    %v7883 = vpack.c.b16 %v7835, %v7833
    %v7884 = vpack.c.b16 %v7836, %v7834
    %v7885 = vpack.c.b16 %v7839, %v7837
    %v7886 = vpack.c.b16 %v7840, %v7838
    %v7887 = vpack.c.b16 %v7843, %v7841
    %v7888 = vpack.c.b16 %v7844, %v7842
    %v7889 = vpack.c.b16 %v7847, %v7845
    %v7890 = vpack.c.b16 %v7848, %v7846
    %v7891 = vpack.c.b16 %v7851, %v7849
    %v7892 = vpack.c.b16 %v7852, %v7850
    %v7893 = vpack.c.b16 %v7855, %v7853
    %v7894 = vpack.c.b16 %v7856, %v7854
    %v7895 = vpack.c.b16 %v7859, %v7857
    %v7896 = vpack.c.b16 %v7860, %v7858
    %v7897 = vpack.c.b16 %v7863, %v7861
    %v7898 = vpack.c.b16 %v7864, %v7862
    %v7899 = vpack.c.b16 %v7867, %v7865
    %v7900 = vpack.c.b16 %v7868, %v7866
    %7933 = vmatprep.subr.bf16.mxu0 %v7870
    %7934 = vmatpush1.bf16.msra.mxu0 %v7869
    %7935 = vmatprep.subr.bf16.mxu0 %v7872
    %7936 = vmatpush1.bf16.msra.mxu0 %v7871
    %7937 = vmatprep.subr.bf16.mxu0 %v7874
    %7938 = vmatpush1.bf16.msra.mxu0 %v7873
    %7939 = vmatprep.subr.bf16.mxu0 %v7876
    %7940 = vmatpush1.bf16.msra.mxu0 %v7875
    %7941 = vmatprep.subr.bf16.mxu0 %v7878
    %7942 = vmatpush1.bf16.msra.mxu0 %v7877
    %7943 = vmatprep.subr.bf16.mxu0 %v7880
    %7944 = vmatpush1.bf16.msra.mxu0 %v7879
    %7945 = vmatprep.subr.bf16.mxu0 %v7882
    %7946 = vmatpush1.bf16.msra.mxu0 %v7881
    %7947 = vmatprep.subr.bf16.mxu0 %v7884
    %7948 = vmatpush1.bf16.msra.mxu0 %v7883
    %7949 = vmatprep.subr.bf16.mxu0 %v7886
    %7950 = vmatpush1.bf16.msra.mxu0 %v7885
    %7951 = vmatprep.subr.bf16.mxu0 %v7888
    %7952 = vmatpush1.bf16.msra.mxu0 %v7887
    %7953 = vmatprep.subr.bf16.mxu0 %v7890
    %7954 = vmatpush1.bf16.msra.mxu0 %v7889
    %7955 = vmatprep.subr.bf16.mxu0 %v7892
    %7956 = vmatpush1.bf16.msra.mxu0 %v7891
    %7957 = vmatprep.subr.bf16.mxu0 %v7894
    %7958 = vmatpush1.bf16.msra.mxu0 %v7893
    %7959 = vmatprep.subr.bf16.mxu0 %v7896
    %7960 = vmatpush1.bf16.msra.mxu0 %v7895
    %7961 = vmatprep.subr.bf16.mxu0 %v7898
    %7962 = vmatpush1.bf16.msra.mxu0 %v7897
    %7963 = vmatprep.subr.bf16.mxu0 %v7900
    %7964 = vmatpush1.bf16.msra.mxu0 %v7899
    %7965 = vmatprep.mubr.bf16.mxu0 %v7460
    %7966 = vmatmul.mubr.bf16.gmra.mrb[0].mxu0 %v7459
    %v7967 = vpop.f32.mrb[0].mxu0
    %v7968 = vadd.f32 0.0, %v7967
    %v7969 = vpop.f32.mrb[0].mxu0
    %v7970 = vadd.f32 0.0, %v7969
    %v7971 = vpop.f32.mrb[0].mxu0
    %v7972 = vpop.f32.mrb[0].mxu0
    %7973 = vdwg.mxu0
    %v7974 = vadd.f32 %v7735, %v7968
    %v7975 = vadd.f32 %v7737, %v7970
    %v7976 = vld [vmem:[%s12] sm:$0x3]
    %v7978 = vlaneseq
    %v7979 = vshrl.u32 %v7978, 7
    %v7980 = vsub.s32 0, %v7979
    %v7981 = vrot.slane %v7976, %v7980
    %v7982 = vlaneseq
    %v7983 = vshrl.u32 %v7982, 7
    %v7984 = vsub.s32 1, %v7983
    %v7985 = vrot.slane %v7976, %v7984
    %v7988 = vadd.f32 %v7974, %v7981
    %v7989 = vadd.f32 %v7975, %v7985
    %v7990 = vmax.f32 %v7988, 0.0
    %v7991 = vmax.f32 %v7989, 0.0
    %v7992 = vpack.c.bf16 %v7990, %v7990
    %v7993 = vpack.c.bf16 %v7991, %v7991
    %v7994 = vunpack.c.l.bf16 %v7992
    %v7995 = vunpack.c.l.bf16 %v7993
    %v7996 = vsub.f32 %v7990, %v7994
    %v7997 = vsub.f32 %v7991, %v7995
    %v7998 = vpack.c.bf16 %v7996, %v7996
    %v7999 = vpack.c.bf16 %v7997, %v7997
    %v8000 = vld [vmem:[#allocation13] sm:$0xff]
    %v8001 = vld [vmem:[#allocation13 + $0x8] sm:$0xff]
    %v8002 = vld [vmem:[#allocation13 + $0x10] sm:$0xff]
    %v8003 = vld [vmem:[#allocation13 + $0x18] sm:$0xff]
    %v8004 = vld [vmem:[#allocation13 + $0x20] sm:$0xff]
    %v8005 = vld [vmem:[#allocation13 + $0x28] sm:$0xff]
    %v8006 = vld [vmem:[#allocation13 + $0x30] sm:$0xff]
    %v8007 = vld [vmem:[#allocation13 + $0x38] sm:$0xff]
    %v8008 = vld [vmem:[#allocation13 + $0x40] sm:$0xff]
    %v8009 = vld [vmem:[#allocation13 + $0x48] sm:$0xff]
    %v8010 = vld [vmem:[#allocation13 + $0x50] sm:$0xff]
    %v8011 = vld [vmem:[#allocation13 + $0x58] sm:$0xff]
    %v8012 = vld [vmem:[#allocation13 + $0x60] sm:$0xff]
    %v8013 = vld [vmem:[#allocation13 + $0x68] sm:$0xff]
    %v8014 = vld [vmem:[#allocation13 + $0x70] sm:$0xff]
    %v8015 = vld [vmem:[#allocation13 + $0x78] sm:$0xff]
    %v8016 = vld [vmem:[#allocation13 + $0x80] sm:$0xff]
    %v8017 = vld [vmem:[#allocation13 + $0x88] sm:$0xff]
    %v8018 = vld [vmem:[#allocation13 + $0x90] sm:$0xff]
    %v8019 = vld [vmem:[#allocation13 + $0x98] sm:$0xff]
    %v8020 = vld [vmem:[#allocation13 + $0xa0] sm:$0xff]
    %v8021 = vld [vmem:[#allocation13 + $0xa8] sm:$0xff]
    %v8022 = vld [vmem:[#allocation13 + $0xb0] sm:$0xff]
    %v8023 = vld [vmem:[#allocation13 + $0xb8] sm:$0xff]
    %v8024 = vld [vmem:[#allocation13 + $0xc0] sm:$0xff]
    %v8025 = vld [vmem:[#allocation13 + $0xc8] sm:$0xff]
    %v8026 = vld [vmem:[#allocation13 + $0xd0] sm:$0xff]
    %v8027 = vld [vmem:[#allocation13 + $0xd8] sm:$0xff]
    %v8028 = vld [vmem:[#allocation13 + $0xe0] sm:$0xff]
    %v8029 = vld [vmem:[#allocation13 + $0xe8] sm:$0xff]
    %v8030 = vld [vmem:[#allocation13 + $0xf0] sm:$0xff]
    %v8031 = vld [vmem:[#allocation13 + $0xf8] sm:$0xff]
    %v8064 = vunpack.c.l.b16 %v8000
    %v8065 = vunpack.c.h.b16 %v8000
    %v8066 = vunpack.c.l.b16 %v8001
    %v8067 = vunpack.c.h.b16 %v8001
    %v8068 = vunpack.c.l.b16 %v8002
    %v8069 = vunpack.c.h.b16 %v8002
    %v8070 = vunpack.c.l.b16 %v8003
    %v8071 = vunpack.c.h.b16 %v8003
    %v8072 = vunpack.c.l.b16 %v8004
    %v8073 = vunpack.c.h.b16 %v8004
    %v8074 = vunpack.c.l.b16 %v8005
    %v8075 = vunpack.c.h.b16 %v8005
    %v8076 = vunpack.c.l.b16 %v8006
    %v8077 = vunpack.c.h.b16 %v8006
    %v8078 = vunpack.c.l.b16 %v8007
    %v8079 = vunpack.c.h.b16 %v8007
    %v8080 = vunpack.c.l.b16 %v8008
    %v8081 = vunpack.c.h.b16 %v8008
    %v8082 = vunpack.c.l.b16 %v8009
    %v8083 = vunpack.c.h.b16 %v8009
    %v8084 = vunpack.c.l.b16 %v8010
    %v8085 = vunpack.c.h.b16 %v8010
    %v8086 = vunpack.c.l.b16 %v8011
    %v8087 = vunpack.c.h.b16 %v8011
    %v8088 = vunpack.c.l.b16 %v8012
    %v8089 = vunpack.c.h.b16 %v8012
    %v8090 = vunpack.c.l.b16 %v8013
    %v8091 = vunpack.c.h.b16 %v8013
    %v8092 = vunpack.c.l.b16 %v8014
    %v8093 = vunpack.c.h.b16 %v8014
    %v8094 = vunpack.c.l.b16 %v8015
    %v8095 = vunpack.c.h.b16 %v8015
    %v8096 = vunpack.c.l.b16 %v8016
    %v8097 = vunpack.c.h.b16 %v8016
    %v8098 = vunpack.c.l.b16 %v8017
    %v8099 = vunpack.c.h.b16 %v8017
    %v8100 = vunpack.c.l.b16 %v8018
    %v8101 = vunpack.c.h.b16 %v8018
    %v8102 = vunpack.c.l.b16 %v8019
    %v8103 = vunpack.c.h.b16 %v8019
    %v8104 = vunpack.c.l.b16 %v8020
    %v8105 = vunpack.c.h.b16 %v8020
    %v8106 = vunpack.c.l.b16 %v8021
    %v8107 = vunpack.c.h.b16 %v8021
    %v8108 = vunpack.c.l.b16 %v8022
    %v8109 = vunpack.c.h.b16 %v8022
    %v8110 = vunpack.c.l.b16 %v8023
    %v8111 = vunpack.c.h.b16 %v8023
    %v8112 = vunpack.c.l.b16 %v8024
    %v8113 = vunpack.c.h.b16 %v8024
    %v8114 = vunpack.c.l.b16 %v8025
    %v8115 = vunpack.c.h.b16 %v8025
    %v8116 = vunpack.c.l.b16 %v8026
    %v8117 = vunpack.c.h.b16 %v8026
    %v8118 = vunpack.c.l.b16 %v8027
    %v8119 = vunpack.c.h.b16 %v8027
    %v8120 = vunpack.c.l.b16 %v8028
    %v8121 = vunpack.c.h.b16 %v8028
    %v8122 = vunpack.c.l.b16 %v8029
    %v8123 = vunpack.c.h.b16 %v8029
    %v8124 = vunpack.c.l.b16 %v8030
    %v8125 = vunpack.c.h.b16 %v8030
    %v8126 = vunpack.c.l.b16 %v8031
    %v8127 = vunpack.c.h.b16 %v8031
    %v8128 = vpack.c.b16 %v8066, %v8064
    %v8129 = vpack.c.b16 %v8067, %v8065
    %v8130 = vpack.c.b16 %v8070, %v8068
    %v8131 = vpack.c.b16 %v8071, %v8069
    %v8132 = vpack.c.b16 %v8074, %v8072
    %v8133 = vpack.c.b16 %v8075, %v8073
    %v8134 = vpack.c.b16 %v8078, %v8076
    %v8135 = vpack.c.b16 %v8079, %v8077
    %v8136 = vpack.c.b16 %v8082, %v8080
    %v8137 = vpack.c.b16 %v8083, %v8081
    %v8138 = vpack.c.b16 %v8086, %v8084
    %v8139 = vpack.c.b16 %v8087, %v8085
    %v8140 = vpack.c.b16 %v8090, %v8088
    %v8141 = vpack.c.b16 %v8091, %v8089
    %v8142 = vpack.c.b16 %v8094, %v8092
    %v8143 = vpack.c.b16 %v8095, %v8093
    %v8144 = vpack.c.b16 %v8098, %v8096
    %v8145 = vpack.c.b16 %v8099, %v8097
    %v8146 = vpack.c.b16 %v8102, %v8100
    %v8147 = vpack.c.b16 %v8103, %v8101
    %v8148 = vpack.c.b16 %v8106, %v8104
    %v8149 = vpack.c.b16 %v8107, %v8105
    %v8150 = vpack.c.b16 %v8110, %v8108
    %v8151 = vpack.c.b16 %v8111, %v8109
    %v8152 = vpack.c.b16 %v8114, %v8112
    %v8153 = vpack.c.b16 %v8115, %v8113
    %v8154 = vpack.c.b16 %v8118, %v8116
    %v8155 = vpack.c.b16 %v8119, %v8117
    %v8156 = vpack.c.b16 %v8122, %v8120
    %v8157 = vpack.c.b16 %v8123, %v8121
    %v8158 = vpack.c.b16 %v8126, %v8124
    %v8159 = vpack.c.b16 %v8127, %v8125
    %8192 = vmatprep.subr.bf16.mxu0 %v8129
    %8193 = vmatpush1.bf16.msra.mxu0 %v8128
    %8194 = vmatprep.subr.bf16.mxu0 %v8131
    %8195 = vmatpush1.bf16.msra.mxu0 %v8130
    %8196 = vmatprep.subr.bf16.mxu0 %v8133
    %8197 = vmatpush1.bf16.msra.mxu0 %v8132
    %8198 = vmatprep.subr.bf16.mxu0 %v8135
    %8199 = vmatpush1.bf16.msra.mxu0 %v8134
    %8200 = vmatprep.subr.bf16.mxu0 %v8137
    %8201 = vmatpush1.bf16.msra.mxu0 %v8136
    %8202 = vmatprep.subr.bf16.mxu0 %v8139
    %8203 = vmatpush1.bf16.msra.mxu0 %v8138
    %8204 = vmatprep.subr.bf16.mxu0 %v8141
    %8205 = vmatpush1.bf16.msra.mxu0 %v8140
    %8206 = vmatprep.subr.bf16.mxu0 %v8143
    %8207 = vmatpush1.bf16.msra.mxu0 %v8142
    %8208 = vmatprep.subr.bf16.mxu0 %v8145
    %8209 = vmatpush1.bf16.msra.mxu0 %v8144
    %8210 = vmatprep.subr.bf16.mxu0 %v8147
    %8211 = vmatpush1.bf16.msra.mxu0 %v8146
    %8212 = vmatprep.subr.bf16.mxu0 %v8149
    %8213 = vmatpush1.bf16.msra.mxu0 %v8148
    %8214 = vmatprep.subr.bf16.mxu0 %v8151
    %8215 = vmatpush1.bf16.msra.mxu0 %v8150
    %8216 = vmatprep.subr.bf16.mxu0 %v8153
    %8217 = vmatpush1.bf16.msra.mxu0 %v8152
    %8218 = vmatprep.subr.bf16.mxu0 %v8155
    %8219 = vmatpush1.bf16.msra.mxu0 %v8154
    %8220 = vmatprep.subr.bf16.mxu0 %v8157
    %8221 = vmatpush1.bf16.msra.mxu0 %v8156
    %8222 = vmatprep.subr.bf16.mxu0 %v8159
    %8223 = vmatpush1.bf16.msra.mxu0 %v8158
    %8224 = vmatprep.mubr.bf16.mxu0 %v7999
    %8225 = vmatmul.mubr.bf16.gmra.mrb[0].mxu0 %v7998
    %v8226 = vpop.f32.mrb[0].mxu0
    %v8227 = vadd.f32 0.0, %v8226
    %v8228 = vpop.f32.mrb[0].mxu0
    %v8229 = vadd.f32 0.0, %v8228
    %v8230 = vpop.f32.mrb[0].mxu0
    %v8231 = vpop.f32.mrb[0].mxu0
    %8232 = vdwg.mxu0
    %8233 = vmatprep.subr.bf16.mxu0 %v8129
    %8234 = vmatpush1.bf16.msra.mxu0 %v8128
    %8235 = vmatprep.subr.bf16.mxu0 %v8131
    %8236 = vmatpush1.bf16.msra.mxu0 %v8130
    %8237 = vmatprep.subr.bf16.mxu0 %v8133
    %8238 = vmatpush1.bf16.msra.mxu0 %v8132
    %8239 = vmatprep.subr.bf16.mxu0 %v8135
    %8240 = vmatpush1.bf16.msra.mxu0 %v8134
    %8241 = vmatprep.subr.bf16.mxu0 %v8137
    %8242 = vmatpush1.bf16.msra.mxu0 %v8136
    %8243 = vmatprep.subr.bf16.mxu0 %v8139
    %8244 = vmatpush1.bf16.msra.mxu0 %v8138
    %8245 = vmatprep.subr.bf16.mxu0 %v8141
    %8246 = vmatpush1.bf16.msra.mxu0 %v8140
    %8247 = vmatprep.subr.bf16.mxu0 %v8143
    %8248 = vmatpush1.bf16.msra.mxu0 %v8142
    %8249 = vmatprep.subr.bf16.mxu0 %v8145
    %8250 = vmatpush1.bf16.msra.mxu0 %v8144
    %8251 = vmatprep.subr.bf16.mxu0 %v8147
    %8252 = vmatpush1.bf16.msra.mxu0 %v8146
    %8253 = vmatprep.subr.bf16.mxu0 %v8149
    %8254 = vmatpush1.bf16.msra.mxu0 %v8148
    %8255 = vmatprep.subr.bf16.mxu0 %v8151
    %8256 = vmatpush1.bf16.msra.mxu0 %v8150
    %8257 = vmatprep.subr.bf16.mxu0 %v8153
    %8258 = vmatpush1.bf16.msra.mxu0 %v8152
    %8259 = vmatprep.subr.bf16.mxu0 %v8155
    %8260 = vmatpush1.bf16.msra.mxu0 %v8154
    %8261 = vmatprep.subr.bf16.mxu0 %v8157
    %8262 = vmatpush1.bf16.msra.mxu0 %v8156
    %8263 = vmatprep.subr.bf16.mxu0 %v8159
    %8264 = vmatpush1.bf16.msra.mxu0 %v8158
    %8265 = vmatprep.mubr.bf16.mxu0 %v7993
    %8266 = vmatmul.mubr.bf16.gmra.mrb[0].mxu0 %v7992
    %v8267 = vpop.f32.mrb[0].mxu0
    %v8268 = vadd.f32 %v8227, %v8267
    %v8269 = vpop.f32.mrb[0].mxu0
    %v8270 = vadd.f32 %v8229, %v8269
    %v8271 = vpop.f32.mrb[0].mxu0
    %v8272 = vpop.f32.mrb[0].mxu0
    %8273 = vdwg.mxu0
    %v8274 = vld [vmem:[#allocation15] sm:$0xff]
    %v8275 = vld [vmem:[#allocation15 + $0x8] sm:$0xff]
    %v8276 = vld [vmem:[#allocation15 + $0x10] sm:$0xff]
    %v8277 = vld [vmem:[#allocation15 + $0x18] sm:$0xff]
    %v8278 = vld [vmem:[#allocation15 + $0x20] sm:$0xff]
    %v8279 = vld [vmem:[#allocation15 + $0x28] sm:$0xff]
    %v8280 = vld [vmem:[#allocation15 + $0x30] sm:$0xff]
    %v8281 = vld [vmem:[#allocation15 + $0x38] sm:$0xff]
    %v8282 = vld [vmem:[#allocation15 + $0x40] sm:$0xff]
    %v8283 = vld [vmem:[#allocation15 + $0x48] sm:$0xff]
    %v8284 = vld [vmem:[#allocation15 + $0x50] sm:$0xff]
    %v8285 = vld [vmem:[#allocation15 + $0x58] sm:$0xff]
    %v8286 = vld [vmem:[#allocation15 + $0x60] sm:$0xff]
    %v8287 = vld [vmem:[#allocation15 + $0x68] sm:$0xff]
    %v8288 = vld [vmem:[#allocation15 + $0x70] sm:$0xff]
    %v8289 = vld [vmem:[#allocation15 + $0x78] sm:$0xff]
    %v8290 = vld [vmem:[#allocation15 + $0x80] sm:$0xff]
    %v8291 = vld [vmem:[#allocation15 + $0x88] sm:$0xff]
    %v8292 = vld [vmem:[#allocation15 + $0x90] sm:$0xff]
    %v8293 = vld [vmem:[#allocation15 + $0x98] sm:$0xff]
    %v8294 = vld [vmem:[#allocation15 + $0xa0] sm:$0xff]
    %v8295 = vld [vmem:[#allocation15 + $0xa8] sm:$0xff]
    %v8296 = vld [vmem:[#allocation15 + $0xb0] sm:$0xff]
    %v8297 = vld [vmem:[#allocation15 + $0xb8] sm:$0xff]
    %v8298 = vld [vmem:[#allocation15 + $0xc0] sm:$0xff]
    %v8299 = vld [vmem:[#allocation15 + $0xc8] sm:$0xff]
    %v8300 = vld [vmem:[#allocation15 + $0xd0] sm:$0xff]
    %v8301 = vld [vmem:[#allocation15 + $0xd8] sm:$0xff]
    %v8302 = vld [vmem:[#allocation15 + $0xe0] sm:$0xff]
    %v8303 = vld [vmem:[#allocation15 + $0xe8] sm:$0xff]
    %v8304 = vld [vmem:[#allocation15 + $0xf0] sm:$0xff]
    %v8305 = vld [vmem:[#allocation15 + $0xf8] sm:$0xff]
    %v8338 = vunpack.c.l.b16 %v8274
    %v8339 = vunpack.c.h.b16 %v8274
    %v8340 = vunpack.c.l.b16 %v8275
    %v8341 = vunpack.c.h.b16 %v8275
    %v8342 = vunpack.c.l.b16 %v8276
    %v8343 = vunpack.c.h.b16 %v8276
    %v8344 = vunpack.c.l.b16 %v8277
    %v8345 = vunpack.c.h.b16 %v8277
    %v8346 = vunpack.c.l.b16 %v8278
    %v8347 = vunpack.c.h.b16 %v8278
    %v8348 = vunpack.c.l.b16 %v8279
    %v8349 = vunpack.c.h.b16 %v8279
    %v8350 = vunpack.c.l.b16 %v8280
    %v8351 = vunpack.c.h.b16 %v8280
    %v8352 = vunpack.c.l.b16 %v8281
    %v8353 = vunpack.c.h.b16 %v8281
    %v8354 = vunpack.c.l.b16 %v8282
    %v8355 = vunpack.c.h.b16 %v8282
    %v8356 = vunpack.c.l.b16 %v8283
    %v8357 = vunpack.c.h.b16 %v8283
    %v8358 = vunpack.c.l.b16 %v8284
    %v8359 = vunpack.c.h.b16 %v8284
    %v8360 = vunpack.c.l.b16 %v8285
    %v8361 = vunpack.c.h.b16 %v8285
    %v8362 = vunpack.c.l.b16 %v8286
    %v8363 = vunpack.c.h.b16 %v8286
    %v8364 = vunpack.c.l.b16 %v8287
    %v8365 = vunpack.c.h.b16 %v8287
    %v8366 = vunpack.c.l.b16 %v8288
    %v8367 = vunpack.c.h.b16 %v8288
    %v8368 = vunpack.c.l.b16 %v8289
    %v8369 = vunpack.c.h.b16 %v8289
    %v8370 = vunpack.c.l.b16 %v8290
    %v8371 = vunpack.c.h.b16 %v8290
    %v8372 = vunpack.c.l.b16 %v8291
    %v8373 = vunpack.c.h.b16 %v8291
    %v8374 = vunpack.c.l.b16 %v8292
    %v8375 = vunpack.c.h.b16 %v8292
    %v8376 = vunpack.c.l.b16 %v8293
    %v8377 = vunpack.c.h.b16 %v8293
    %v8378 = vunpack.c.l.b16 %v8294
    %v8379 = vunpack.c.h.b16 %v8294
    %v8380 = vunpack.c.l.b16 %v8295
    %v8381 = vunpack.c.h.b16 %v8295
    %v8382 = vunpack.c.l.b16 %v8296
    %v8383 = vunpack.c.h.b16 %v8296
    %v8384 = vunpack.c.l.b16 %v8297
    %v8385 = vunpack.c.h.b16 %v8297
    %v8386 = vunpack.c.l.b16 %v8298
    %v8387 = vunpack.c.h.b16 %v8298
    %v8388 = vunpack.c.l.b16 %v8299
    %v8389 = vunpack.c.h.b16 %v8299
    %v8390 = vunpack.c.l.b16 %v8300
    %v8391 = vunpack.c.h.b16 %v8300
    %v8392 = vunpack.c.l.b16 %v8301
    %v8393 = vunpack.c.h.b16 %v8301
    %v8394 = vunpack.c.l.b16 %v8302
    %v8395 = vunpack.c.h.b16 %v8302
    %v8396 = vunpack.c.l.b16 %v8303
    %v8397 = vunpack.c.h.b16 %v8303
    %v8398 = vunpack.c.l.b16 %v8304
    %v8399 = vunpack.c.h.b16 %v8304
    %v8400 = vunpack.c.l.b16 %v8305
    %v8401 = vunpack.c.h.b16 %v8305
    %v8402 = vpack.c.b16 %v8340, %v8338
    %v8403 = vpack.c.b16 %v8341, %v8339
    %v8404 = vpack.c.b16 %v8344, %v8342
    %v8405 = vpack.c.b16 %v8345, %v8343
    %v8406 = vpack.c.b16 %v8348, %v8346
    %v8407 = vpack.c.b16 %v8349, %v8347
    %v8408 = vpack.c.b16 %v8352, %v8350
    %v8409 = vpack.c.b16 %v8353, %v8351
    %v8410 = vpack.c.b16 %v8356, %v8354
    %v8411 = vpack.c.b16 %v8357, %v8355
    %v8412 = vpack.c.b16 %v8360, %v8358
    %v8413 = vpack.c.b16 %v8361, %v8359
    %v8414 = vpack.c.b16 %v8364, %v8362
    %v8415 = vpack.c.b16 %v8365, %v8363
    %v8416 = vpack.c.b16 %v8368, %v8366
    %v8417 = vpack.c.b16 %v8369, %v8367
    %v8418 = vpack.c.b16 %v8372, %v8370
    %v8419 = vpack.c.b16 %v8373, %v8371
    %v8420 = vpack.c.b16 %v8376, %v8374
    %v8421 = vpack.c.b16 %v8377, %v8375
    %v8422 = vpack.c.b16 %v8380, %v8378
    %v8423 = vpack.c.b16 %v8381, %v8379
    %v8424 = vpack.c.b16 %v8384, %v8382
    %v8425 = vpack.c.b16 %v8385, %v8383
    %v8426 = vpack.c.b16 %v8388, %v8386
    %v8427 = vpack.c.b16 %v8389, %v8387
    %v8428 = vpack.c.b16 %v8392, %v8390
    %v8429 = vpack.c.b16 %v8393, %v8391
    %v8430 = vpack.c.b16 %v8396, %v8394
    %v8431 = vpack.c.b16 %v8397, %v8395
    %v8432 = vpack.c.b16 %v8400, %v8398
    %v8433 = vpack.c.b16 %v8401, %v8399
    %8466 = vmatprep.subr.bf16.mxu0 %v8403
    %8467 = vmatpush1.bf16.msra.mxu0 %v8402
    %8468 = vmatprep.subr.bf16.mxu0 %v8405
    %8469 = vmatpush1.bf16.msra.mxu0 %v8404
    %8470 = vmatprep.subr.bf16.mxu0 %v8407
    %8471 = vmatpush1.bf16.msra.mxu0 %v8406
    %8472 = vmatprep.subr.bf16.mxu0 %v8409
    %8473 = vmatpush1.bf16.msra.mxu0 %v8408
    %8474 = vmatprep.subr.bf16.mxu0 %v8411
    %8475 = vmatpush1.bf16.msra.mxu0 %v8410
    %8476 = vmatprep.subr.bf16.mxu0 %v8413
    %8477 = vmatpush1.bf16.msra.mxu0 %v8412
    %8478 = vmatprep.subr.bf16.mxu0 %v8415
    %8479 = vmatpush1.bf16.msra.mxu0 %v8414
    %8480 = vmatprep.subr.bf16.mxu0 %v8417
    %8481 = vmatpush1.bf16.msra.mxu0 %v8416
    %8482 = vmatprep.subr.bf16.mxu0 %v8419
    %8483 = vmatpush1.bf16.msra.mxu0 %v8418
    %8484 = vmatprep.subr.bf16.mxu0 %v8421
    %8485 = vmatpush1.bf16.msra.mxu0 %v8420
    %8486 = vmatprep.subr.bf16.mxu0 %v8423
    %8487 = vmatpush1.bf16.msra.mxu0 %v8422
    %8488 = vmatprep.subr.bf16.mxu0 %v8425
    %8489 = vmatpush1.bf16.msra.mxu0 %v8424
    %8490 = vmatprep.subr.bf16.mxu0 %v8427
    %8491 = vmatpush1.bf16.msra.mxu0 %v8426
    %8492 = vmatprep.subr.bf16.mxu0 %v8429
    %8493 = vmatpush1.bf16.msra.mxu0 %v8428
    %8494 = vmatprep.subr.bf16.mxu0 %v8431
    %8495 = vmatpush1.bf16.msra.mxu0 %v8430
    %8496 = vmatprep.subr.bf16.mxu0 %v8433
    %8497 = vmatpush1.bf16.msra.mxu0 %v8432
    %8498 = vmatprep.mubr.bf16.mxu0 %v7993
    %8499 = vmatmul.mubr.bf16.gmra.mrb[0].mxu0 %v7992
    %v8500 = vpop.f32.mrb[0].mxu0
    %v8501 = vadd.f32 0.0, %v8500
    %v8502 = vpop.f32.mrb[0].mxu0
    %v8503 = vadd.f32 0.0, %v8502
    %v8504 = vpop.f32.mrb[0].mxu0
    %v8505 = vpop.f32.mrb[0].mxu0
    %8506 = vdwg.mxu0
    %v8507 = vadd.f32 %v8268, %v8501
    %v8508 = vadd.f32 %v8270, %v8503
    %v8509 = vld [vmem:[%s15] sm:$0x3]
    %v8511 = vlaneseq
    %v8512 = vshrl.u32 %v8511, 7
    %v8513 = vsub.s32 0, %v8512
    %v8514 = vrot.slane %v8509, %v8513
    %v8515 = vlaneseq
    %v8516 = vshrl.u32 %v8515, 7
    %v8517 = vsub.s32 1, %v8516
    %v8518 = vrot.slane %v8509, %v8517
    %v8521 = vadd.f32 %v8507, %v8514
    %v8522 = vadd.f32 %v8508, %v8518
    %v8523 = vmax.f32 %v8521, 0.0
    %v8524 = vmax.f32 %v8522, 0.0
    %v8525 = vpack.c.bf16 %v8523, %v8523
    %v8526 = vpack.c.bf16 %v8524, %v8524
    %v8527 = vunpack.c.l.bf16 %v8525
    %v8528 = vunpack.c.l.bf16 %v8526
    %v8529 = vsub.f32 %v8523, %v8527
    %v8530 = vsub.f32 %v8524, %v8528
    %v8531 = vpack.c.bf16 %v8529, %v8529
    %v8532 = vpack.c.bf16 %v8530, %v8530
    %v8533 = vld [vmem:[%s16] sm:$0xf]
    %v8534 = vld [vmem:[%s16 + $0x4] sm:$0xf]
    %v8535 = vld [vmem:[%s16 + $0x8] sm:$0xf]
    %v8536 = vld [vmem:[%s16 + $0xc] sm:$0xf]
    %v8537 = vld [vmem:[%s16 + $0x10] sm:$0xf]
    %v8538 = vld [vmem:[%s16 + $0x14] sm:$0xf]
    %v8539 = vld [vmem:[%s16 + $0x18] sm:$0xf]
    %v8540 = vld [vmem:[%s16 + $0x1c] sm:$0xf]
    %v8541 = vld [vmem:[%s16 + $0x20] sm:$0xf]
    %v8542 = vld [vmem:[%s16 + $0x24] sm:$0xf]
    %v8543 = vld [vmem:[%s16 + $0x28] sm:$0xf]
    %v8544 = vld [vmem:[%s16 + $0x2c] sm:$0xf]
    %v8545 = vld [vmem:[%s16 + $0x30] sm:$0xf]
    %v8546 = vld [vmem:[%s16 + $0x34] sm:$0xf]
    %v8547 = vld [vmem:[%s16 + $0x38] sm:$0xf]
    %v8548 = vld [vmem:[%s16 + $0x3c] sm:$0xf]
    %v8549 = vld [vmem:[%s16 + $0x40] sm:$0xf]
    %v8550 = vld [vmem:[%s16 + $0x44] sm:$0xf]
    %v8551 = vld [vmem:[%s16 + $0x48] sm:$0xf]
    %v8552 = vld [vmem:[%s16 + $0x4c] sm:$0xf]
    %v8553 = vld [vmem:[%s16 + $0x50] sm:$0xf]
    %v8554 = vld [vmem:[%s16 + $0x54] sm:$0xf]
    %v8555 = vld [vmem:[%s16 + $0x58] sm:$0xf]
    %v8556 = vld [vmem:[%s16 + $0x5c] sm:$0xf]
    %v8557 = vld [vmem:[%s16 + $0x60] sm:$0xf]
    %v8558 = vld [vmem:[%s16 + $0x64] sm:$0xf]
    %v8559 = vld [vmem:[%s16 + $0x68] sm:$0xf]
    %v8560 = vld [vmem:[%s16 + $0x6c] sm:$0xf]
    %v8561 = vld [vmem:[%s16 + $0x70] sm:$0xf]
    %v8562 = vld [vmem:[%s16 + $0x74] sm:$0xf]
    %v8563 = vld [vmem:[%s16 + $0x78] sm:$0xf]
    %v8564 = vld [vmem:[%s16 + $0x7c] sm:$0x1]
    %v8597 = vunpack.c.l.b16 %v8533
    %v8598 = vunpack.c.l.b16 %v8534
    %v8599 = vunpack.c.l.b16 %v8535
    %v8600 = vunpack.c.l.b16 %v8536
    %v8601 = vunpack.c.l.b16 %v8537
    %v8602 = vunpack.c.l.b16 %v8538
    %v8603 = vunpack.c.l.b16 %v8539
    %v8604 = vunpack.c.l.b16 %v8540
    %v8605 = vunpack.c.l.b16 %v8541
    %v8606 = vunpack.c.l.b16 %v8542
    %v8607 = vunpack.c.l.b16 %v8543
    %v8608 = vunpack.c.l.b16 %v8544
    %v8609 = vunpack.c.l.b16 %v8545
    %v8610 = vunpack.c.l.b16 %v8546
    %v8611 = vunpack.c.l.b16 %v8547
    %v8612 = vunpack.c.l.b16 %v8548
    %v8613 = vunpack.c.l.b16 %v8549
    %v8614 = vunpack.c.l.b16 %v8550
    %v8615 = vunpack.c.l.b16 %v8551
    %v8616 = vunpack.c.l.b16 %v8552
    %v8617 = vunpack.c.l.b16 %v8553
    %v8618 = vunpack.c.l.b16 %v8554
    %v8619 = vunpack.c.l.b16 %v8555
    %v8620 = vunpack.c.l.b16 %v8556
    %v8621 = vunpack.c.l.b16 %v8557
    %v8622 = vunpack.c.l.b16 %v8558
    %v8623 = vunpack.c.l.b16 %v8559
    %v8624 = vunpack.c.l.b16 %v8560
    %v8625 = vunpack.c.l.b16 %v8561
    %v8626 = vunpack.c.l.b16 %v8562
    %v8627 = vunpack.c.l.b16 %v8563
    %v8628 = vunpack.c.l.b16 %v8564
    %v8629 = vpack.c.b16 %v8598, %v8597
    %v8630 = vpack.c.b16 %v8600, %v8599
    %v8631 = vpack.c.b16 %v8602, %v8601
    %v8632 = vpack.c.b16 %v8604, %v8603
    %v8633 = vpack.c.b16 %v8606, %v8605
    %v8634 = vpack.c.b16 %v8608, %v8607
    %v8635 = vpack.c.b16 %v8610, %v8609
    %v8636 = vpack.c.b16 %v8612, %v8611
    %v8637 = vpack.c.b16 %v8614, %v8613
    %v8638 = vpack.c.b16 %v8616, %v8615
    %v8639 = vpack.c.b16 %v8618, %v8617
    %v8640 = vpack.c.b16 %v8620, %v8619
    %v8641 = vpack.c.b16 %v8622, %v8621
    %v8642 = vpack.c.b16 %v8624, %v8623
    %v8643 = vpack.c.b16 %v8626, %v8625
    %v8644 = vpack.c.b16 %v8628, %v8627
    %vm8660 = vcmask 998400
    %v8662 = vsel %vm8660, %v8532, 0
    %vm8664 = vcmask 1044480
    %v8666 = vsel %vm8664, %v8644, 0
    %8668 = vmatprep.subr.bf16.mxu0 0
    %8669 = vmatpush1.bf16.msra.mxu0 %v8629
    %8670 = vmatprep.subr.bf16.mxu0 0
    %8671 = vmatpush1.bf16.msra.mxu0 %v8630
    %8672 = vmatprep.subr.bf16.mxu0 0
    %8673 = vmatpush1.bf16.msra.mxu0 %v8631
    %8674 = vmatprep.subr.bf16.mxu0 0
    %8675 = vmatpush1.bf16.msra.mxu0 %v8632
    %8676 = vmatprep.subr.bf16.mxu0 0
    %8677 = vmatpush1.bf16.msra.mxu0 %v8633
    %8678 = vmatprep.subr.bf16.mxu0 0
    %8679 = vmatpush1.bf16.msra.mxu0 %v8634
    %8680 = vmatprep.subr.bf16.mxu0 0
    %8681 = vmatpush1.bf16.msra.mxu0 %v8635
    %8682 = vmatprep.subr.bf16.mxu0 0
    %8683 = vmatpush1.bf16.msra.mxu0 %v8636
    %8684 = vmatprep.subr.bf16.mxu0 0
    %8685 = vmatpush1.bf16.msra.mxu0 %v8637
    %8686 = vmatprep.subr.bf16.mxu0 0
    %8687 = vmatpush1.bf16.msra.mxu0 %v8638
    %8688 = vmatprep.subr.bf16.mxu0 0
    %8689 = vmatpush1.bf16.msra.mxu0 %v8639
    %8690 = vmatprep.subr.bf16.mxu0 0
    %8691 = vmatpush1.bf16.msra.mxu0 %v8640
    %8692 = vmatprep.subr.bf16.mxu0 0
    %8693 = vmatpush1.bf16.msra.mxu0 %v8641
    %8694 = vmatprep.subr.bf16.mxu0 0
    %8695 = vmatpush1.bf16.msra.mxu0 %v8642
    %8696 = vmatprep.subr.bf16.mxu0 0
    %8697 = vmatpush1.bf16.msra.mxu0 %v8643
    %8698 = vmatprep.subr.bf16.mxu0 0
    %8699 = vmatpush1.bf16.msra.mxu0 %v8666
    %8700 = vmatprep.mubr.bf16.mxu0 %v8662
    %8701 = vmatmul.mubr.bf16.gmra.mrb[0].mxu0 %v8531
    %v8702 = vpop.f32.mrb[0].mxu0
    %v8703 = vadd.f32 0.0, %v8702
    %v8704 = vpop.f32.mrb[0].mxu0
    %v8705 = vpop.f32.mrb[0].mxu0
    %v8706 = vpop.f32.mrb[0].mxu0
    %8707 = vdwg.mxu0
    %v8709 = vsel %vm8660, %v8526, 0
    %8711 = vmatprep.subr.bf16.mxu0 0
    %8712 = vmatpush1.bf16.msra.mxu0 %v8629
    %8713 = vmatprep.subr.bf16.mxu0 0
    %8714 = vmatpush1.bf16.msra.mxu0 %v8630
    %8715 = vmatprep.subr.bf16.mxu0 0
    %8716 = vmatpush1.bf16.msra.mxu0 %v8631
    %8717 = vmatprep.subr.bf16.mxu0 0
    %8718 = vmatpush1.bf16.msra.mxu0 %v8632
    %8719 = vmatprep.subr.bf16.mxu0 0
    %8720 = vmatpush1.bf16.msra.mxu0 %v8633
    %8721 = vmatprep.subr.bf16.mxu0 0
    %8722 = vmatpush1.bf16.msra.mxu0 %v8634
    %8723 = vmatprep.subr.bf16.mxu0 0
    %8724 = vmatpush1.bf16.msra.mxu0 %v8635
    %8725 = vmatprep.subr.bf16.mxu0 0
    %8726 = vmatpush1.bf16.msra.mxu0 %v8636
    %8727 = vmatprep.subr.bf16.mxu0 0
    %8728 = vmatpush1.bf16.msra.mxu0 %v8637
    %8729 = vmatprep.subr.bf16.mxu0 0
    %8730 = vmatpush1.bf16.msra.mxu0 %v8638
    %8731 = vmatprep.subr.bf16.mxu0 0
    %8732 = vmatpush1.bf16.msra.mxu0 %v8639
    %8733 = vmatprep.subr.bf16.mxu0 0
    %8734 = vmatpush1.bf16.msra.mxu0 %v8640
    %8735 = vmatprep.subr.bf16.mxu0 0
    %8736 = vmatpush1.bf16.msra.mxu0 %v8641
    %8737 = vmatprep.subr.bf16.mxu0 0
    %8738 = vmatpush1.bf16.msra.mxu0 %v8642
    %8739 = vmatprep.subr.bf16.mxu0 0
    %8740 = vmatpush1.bf16.msra.mxu0 %v8643
    %8741 = vmatprep.subr.bf16.mxu0 0
    %8742 = vmatpush1.bf16.msra.mxu0 %v8666
    %8743 = vmatprep.mubr.bf16.mxu0 %v8709
    %8744 = vmatmul.mubr.bf16.gmra.mrb[0].mxu0 %v8525
    %v8745 = vpop.f32.mrb[0].mxu0
    %v8746 = vadd.f32 %v8703, %v8745
    %v8747 = vpop.f32.mrb[0].mxu0
    %v8748 = vpop.f32.mrb[0].mxu0
    %v8749 = vpop.f32.mrb[0].mxu0
    %8750 = vdwg.mxu0
    %v8751 = vld [vmem:[%s17] sm:$0xf]
    %v8752 = vld [vmem:[%s17 + $0x4] sm:$0xf]
    %v8753 = vld [vmem:[%s17 + $0x8] sm:$0xf]
    %v8754 = vld [vmem:[%s17 + $0xc] sm:$0xf]
    %v8755 = vld [vmem:[%s17 + $0x10] sm:$0xf]
    %v8756 = vld [vmem:[%s17 + $0x14] sm:$0xf]
    %v8757 = vld [vmem:[%s17 + $0x18] sm:$0xf]
    %v8758 = vld [vmem:[%s17 + $0x1c] sm:$0xf]
    %v8759 = vld [vmem:[%s17 + $0x20] sm:$0xf]
    %v8760 = vld [vmem:[%s17 + $0x24] sm:$0xf]
    %v8761 = vld [vmem:[%s17 + $0x28] sm:$0xf]
    %v8762 = vld [vmem:[%s17 + $0x2c] sm:$0xf]
    %v8763 = vld [vmem:[%s17 + $0x30] sm:$0xf]
    %v8764 = vld [vmem:[%s17 + $0x34] sm:$0xf]
    %v8765 = vld [vmem:[%s17 + $0x38] sm:$0xf]
    %v8766 = vld [vmem:[%s17 + $0x3c] sm:$0xf]
    %v8767 = vld [vmem:[%s17 + $0x40] sm:$0xf]
    %v8768 = vld [vmem:[%s17 + $0x44] sm:$0xf]
    %v8769 = vld [vmem:[%s17 + $0x48] sm:$0xf]
    %v8770 = vld [vmem:[%s17 + $0x4c] sm:$0xf]
    %v8771 = vld [vmem:[%s17 + $0x50] sm:$0xf]
    %v8772 = vld [vmem:[%s17 + $0x54] sm:$0xf]
    %v8773 = vld [vmem:[%s17 + $0x58] sm:$0xf]
    %v8774 = vld [vmem:[%s17 + $0x5c] sm:$0xf]
    %v8775 = vld [vmem:[%s17 + $0x60] sm:$0xf]
    %v8776 = vld [vmem:[%s17 + $0x64] sm:$0xf]
    %v8777 = vld [vmem:[%s17 + $0x68] sm:$0xf]
    %v8778 = vld [vmem:[%s17 + $0x6c] sm:$0xf]
    %v8779 = vld [vmem:[%s17 + $0x70] sm:$0xf]
    %v8780 = vld [vmem:[%s17 + $0x74] sm:$0xf]
    %v8781 = vld [vmem:[%s17 + $0x78] sm:$0xf]
    %v8782 = vld [vmem:[%s17 + $0x7c] sm:$0x1]
    %v8815 = vunpack.c.l.b16 %v8751
    %v8816 = vunpack.c.l.b16 %v8752
    %v8817 = vunpack.c.l.b16 %v8753
    %v8818 = vunpack.c.l.b16 %v8754
    %v8819 = vunpack.c.l.b16 %v8755
    %v8820 = vunpack.c.l.b16 %v8756
    %v8821 = vunpack.c.l.b16 %v8757
    %v8822 = vunpack.c.l.b16 %v8758
    %v8823 = vunpack.c.l.b16 %v8759
    %v8824 = vunpack.c.l.b16 %v8760
    %v8825 = vunpack.c.l.b16 %v8761
    %v8826 = vunpack.c.l.b16 %v8762
    %v8827 = vunpack.c.l.b16 %v8763
    %v8828 = vunpack.c.l.b16 %v8764
    %v8829 = vunpack.c.l.b16 %v8765
    %v8830 = vunpack.c.l.b16 %v8766
    %v8831 = vunpack.c.l.b16 %v8767
    %v8832 = vunpack.c.l.b16 %v8768
    %v8833 = vunpack.c.l.b16 %v8769
    %v8834 = vunpack.c.l.b16 %v8770
    %v8835 = vunpack.c.l.b16 %v8771
    %v8836 = vunpack.c.l.b16 %v8772
    %v8837 = vunpack.c.l.b16 %v8773
    %v8838 = vunpack.c.l.b16 %v8774
    %v8839 = vunpack.c.l.b16 %v8775
    %v8840 = vunpack.c.l.b16 %v8776
    %v8841 = vunpack.c.l.b16 %v8777
    %v8842 = vunpack.c.l.b16 %v8778
    %v8843 = vunpack.c.l.b16 %v8779
    %v8844 = vunpack.c.l.b16 %v8780
    %v8845 = vunpack.c.l.b16 %v8781
    %v8846 = vunpack.c.l.b16 %v8782
    %v8847 = vpack.c.b16 %v8816, %v8815
    %v8848 = vpack.c.b16 %v8818, %v8817
    %v8849 = vpack.c.b16 %v8820, %v8819
    %v8850 = vpack.c.b16 %v8822, %v8821
    %v8851 = vpack.c.b16 %v8824, %v8823
    %v8852 = vpack.c.b16 %v8826, %v8825
    %v8853 = vpack.c.b16 %v8828, %v8827
    %v8854 = vpack.c.b16 %v8830, %v8829
    %v8855 = vpack.c.b16 %v8832, %v8831
    %v8856 = vpack.c.b16 %v8834, %v8833
    %v8857 = vpack.c.b16 %v8836, %v8835
    %v8858 = vpack.c.b16 %v8838, %v8837
    %v8859 = vpack.c.b16 %v8840, %v8839
    %v8860 = vpack.c.b16 %v8842, %v8841
    %v8861 = vpack.c.b16 %v8844, %v8843
    %v8862 = vpack.c.b16 %v8846, %v8845
    %v8879 = vsel %vm8664, %v8862, 0
    %8881 = vmatprep.subr.bf16.mxu0 0
    %8882 = vmatpush1.bf16.msra.mxu0 %v8847
    %8883 = vmatprep.subr.bf16.mxu0 0
    %8884 = vmatpush1.bf16.msra.mxu0 %v8848
    %8885 = vmatprep.subr.bf16.mxu0 0
    %8886 = vmatpush1.bf16.msra.mxu0 %v8849
    %8887 = vmatprep.subr.bf16.mxu0 0
    %8888 = vmatpush1.bf16.msra.mxu0 %v8850
    %8889 = vmatprep.subr.bf16.mxu0 0
    %8890 = vmatpush1.bf16.msra.mxu0 %v8851
    %8891 = vmatprep.subr.bf16.mxu0 0
    %8892 = vmatpush1.bf16.msra.mxu0 %v8852
    %8893 = vmatprep.subr.bf16.mxu0 0
    %8894 = vmatpush1.bf16.msra.mxu0 %v8853
    %8895 = vmatprep.subr.bf16.mxu0 0
    %8896 = vmatpush1.bf16.msra.mxu0 %v8854
    %8897 = vmatprep.subr.bf16.mxu0 0
    %8898 = vmatpush1.bf16.msra.mxu0 %v8855
    %8899 = vmatprep.subr.bf16.mxu0 0
    %8900 = vmatpush1.bf16.msra.mxu0 %v8856
    %8901 = vmatprep.subr.bf16.mxu0 0
    %8902 = vmatpush1.bf16.msra.mxu0 %v8857
    %8903 = vmatprep.subr.bf16.mxu0 0
    %8904 = vmatpush1.bf16.msra.mxu0 %v8858
    %8905 = vmatprep.subr.bf16.mxu0 0
    %8906 = vmatpush1.bf16.msra.mxu0 %v8859
    %8907 = vmatprep.subr.bf16.mxu0 0
    %8908 = vmatpush1.bf16.msra.mxu0 %v8860
    %8909 = vmatprep.subr.bf16.mxu0 0
    %8910 = vmatpush1.bf16.msra.mxu0 %v8861
    %8911 = vmatprep.subr.bf16.mxu0 0
    %8912 = vmatpush1.bf16.msra.mxu0 %v8879
    %8913 = vmatprep.mubr.bf16.mxu0 %v8709
    %8914 = vmatmul.mubr.bf16.gmra.mrb[0].mxu0 %v8525
    %v8915 = vpop.f32.mrb[0].mxu0
    %v8916 = vadd.f32 0.0, %v8915
    %v8917 = vpop.f32.mrb[0].mxu0
    %v8918 = vpop.f32.mrb[0].mxu0
    %v8919 = vpop.f32.mrb[0].mxu0
    %8920 = vdwg.mxu0
    %v8921 = vadd.f32 %v8746, %v8916
    %v8922 = vld [vmem:[%s18] sm:$0x1]
    %v8924 = vlaneseq
    %v8925 = vshrl.u32 %v8924, 7
    %v8926 = vsub.s32 0, %v8925
    %v8927 = vrot.slane %v8922, %v8926
    %v8929 = vadd.f32 %v8921, %v8927
    %vm8930 = vcmask 64512
    %8931 = vst.msk [vmem:[%s19] sm:$0xff] %vm8930, %v8929
    // Predicated region
    $region114: #{encoder_deep_conv_forward.1} parent=1 // pred_check
      _
    $region115: #{encoder_deep_conv_forward.1} parent=1 // pred_check_branch
      %8933 = sbr.rel (0) target = $region117
    $region116: #{encoder_deep_conv_forward.1} parent=1 // pred_region
      _
    $region117: #{encoder_deep_conv_forward.1} parent=1 // pred_fallthru
      _
    // Predicated region
    $region118: #{encoder_deep_conv_forward.1} parent=1 // pred_check
      _
    $region119: #{encoder_deep_conv_forward.1} parent=1 // pred_check_branch
      %8935 = sbr.rel (0) target = $region121
    $region120: #{encoder_deep_conv_forward.1} parent=1 // pred_region
      _
    $region121: #{encoder_deep_conv_forward.1} parent=1 // pred_fallthru
      _
    %8936 = vsyncpa [#allocation3], 1
    %8937 = vsyncpa [#allocation5], 1
    %8938 = vsyncpa [#allocation8], 1
    %8939 = vsyncpa [#allocation11], 1
    %8940 = vsyncpa [#allocation14], 1

</llo_original>
